<compile_context>
chip_gen: v7x
topology: tpu7x:2x2x1
jax: 0.10.0
libtpu: 0.0.40
codegen_flags: <defaults>
</compile_context>

<pallas_src>
import numpy as np
import jax
import jax.numpy as jnp
from jax import lax
from jax.experimental import pallas as pl
from jax.experimental.pallas import tpu as pltpu


# --------------------------------------------------------------------------------------
# host-side deterministic helpers (equivalent of sca_utils.get_gaussian_kernel, resize mats)
# --------------------------------------------------------------------------------------

def get_gaussian_kernel(sd=1.5):
    ksz = int(4 * sd + 1)                     # 7
    assert ksz % 2 == 1
    x = np.arange(ksz, dtype=np.float64) - (ksz - 1) / 2.0
    k = np.exp(-(x ** 2) / (2.0 * sd * sd))
    k = k / k.sum()
    return ksz, k.astype(np.float32)


def blur_crop_matrix(n_full, g1d, crop):
    """(n_full - 2*crop, n_full) matrix giving rows [crop : n_full-crop] of the 1-D
    Gaussian blur of a reflect-padded signal: blur + crop + padding folded into one
    band matrix (for crop >= pad the reflection never triggers)."""
    ksz = len(g1d)
    pad = ksz // 2
    n_out = n_full - 2 * crop
    M = np.zeros((n_out, n_full), np.float32)
    for r in range(n_out):
        for k in range(ksz):
            idx = r + crop - pad + k
            if idx < 0:
                idx = -idx
            elif idx >= n_full:
                idx = 2 * (n_full - 1) - idx
            M[r, idx] += g1d[k]
    return M


def resize_matrix_ac_true(n_out, n_in):
    # bilinear interpolation matrix, align_corners=True
    if n_out == 1:
        src = np.zeros((1,), np.float64)
    else:
        src = np.arange(n_out, dtype=np.float64) * (n_in - 1) / (n_out - 1)
    i0 = np.clip(np.floor(src).astype(np.int64), 0, n_in - 1)
    i1 = np.minimum(i0 + 1, n_in - 1)
    w1 = src - i0
    w0 = 1.0 - w1
    M = np.zeros((n_out, n_in), np.float32)
    M[np.arange(n_out), i0] += w0
    M[np.arange(n_out), i1] += w1
    return M


def resize_matrix_ac_false(n_out, n_in):
    # bilinear interpolation matrix, align_corners=False (negative src clamped, like torch)
    scale = n_in / n_out
    src = (np.arange(n_out, dtype=np.float64) + 0.5) * scale - 0.5
    src = np.maximum(src, 0.0)
    i0 = np.minimum(np.floor(src).astype(np.int64), n_in - 1)
    i1 = np.minimum(i0 + 1, n_in - 1)
    w1 = src - i0
    w0 = 1.0 - w1
    M = np.zeros((n_out, n_in), np.float32)
    M[np.arange(n_out), i0] += w0
    M[np.arange(n_out), i1] += w1
    return M


# --------------------------------------------------------------------------------------
# Pallas kernel 1: Gaussian blur + bi-crop as two batched banded matmuls, single grid step
#   x2d:    (N*Hs, Ws)   f32  (all 2*B*C images stacked along the row/M axis)
#   mwt:    (Ws, Wc)     f32  (blur+crop along W, transposed)
#   mh_big: (N*Hc, N*Hs) f32  (kron(I_N, blur+crop along H), block-diagonal)
#   out:    (N*Hc, Wc)   f32
# --------------------------------------------------------------------------------------

def gauss_blur_crop_pallas(x2d, mwt, mh_big):
    NH, Ws = x2d.shape
    Wc = mwt.shape[1]
    NHc = mh_big.shape[0]

    def kernel(x_ref, mwt_ref, mhb_ref, o_ref):
        y = jnp.dot(x_ref[...], mwt_ref[...], preferred_element_type=jnp.float32)
        o_ref[...] = jnp.dot(mhb_ref[...], y, preferred_element_type=jnp.float32)

    return pl.pallas_call(
        kernel,
        out_shape=jax.ShapeDtypeStruct((NHc, Wc), jnp.float32),
        grid=(1,),
        in_specs=[pl.BlockSpec((NH, Ws), lambda i: (0, 0)),
                  pl.BlockSpec((Ws, Wc), lambda i: (0, 0)),
                  pl.BlockSpec((NHc, NH), lambda i: (0, 0))],
        out_specs=pl.BlockSpec((NHc, Wc), lambda i: (0, 0)),
        compiler_params=pltpu.CompilerParams(dimension_semantics=("arbitrary",)),
    )(x2d, mwt, mh_big)


# --------------------------------------------------------------------------------------
# Pallas kernel 2: separable bilinear downsample as two batched matmuls, single grid step
#   x2d:    (N*H, W)     bf16 (B*5 planes: flow(2) + gt(3)); upcast to f32 in-kernel
#   wwt:    (W, Ws)      f32
#   wh_big: (N*Hs, N*H)  f32  (kron(I_N, Wh), block-diagonal)
#   out:    (N*Hs, Ws)   f32
# --------------------------------------------------------------------------------------

def resize_matmul_pallas(x2d_bf16, wwt, wh_big):
    NH, W = x2d_bf16.shape
    Ws = wwt.shape[1]
    NHs = wh_big.shape[0]

    def kernel(x_ref, wwt_ref, whb_ref, o_ref):
        x = x_ref[...].astype(jnp.float32)                      # single rounding: input only
        y = jnp.dot(x, wwt_ref[...], preferred_element_type=jnp.float32)     # (N*H, Ws)
        o_ref[...] = jnp.dot(whb_ref[...], y, preferred_element_type=jnp.float32)

    return pl.pallas_call(
        kernel,
        out_shape=jax.ShapeDtypeStruct((NHs, Ws), jnp.float32),
        grid=(1,),
        in_specs=[pl.BlockSpec((NH, W), lambda i: (0, 0)),
                  pl.BlockSpec((W, Ws), lambda i: (0, 0)),
                  pl.BlockSpec((NHs, NH), lambda i: (0, 0))],
        out_specs=pl.BlockSpec((NHs, Ws), lambda i: (0, 0)),
        compiler_params=pltpu.CompilerParams(dimension_semantics=("arbitrary",)),
    )(x2d_bf16, wwt, wh_big)


# --------------------------------------------------------------------------------------
# Pallas kernel 3: fused per-batch 3x3 color transform + masked MSE sums, single grid step
#   Whole (B,3,H,W) problem in one invocation (<1 MiB resident).  The mask arrives
#   pre-threshold (f32 bilinear upsample) and the > 0.9 compare is done in-kernel.
#   Row-strip loop keeps the live set within the vreg file.
# --------------------------------------------------------------------------------------

def fused_cmat_mse_pallas(pred, gt, valid_soft, c_mat):
    """pred/gt: (B,3,H,W) f32; valid_soft: (B,1,H,W) f32 (pre-threshold); c_mat: (B,3,3).
       Returns (sum_c sum_pix ((cmat . pred) - gt)^2 * (valid_soft>0.9), sum_pix valid)."""
    B, C, H, W = pred.shape
    assert C == 3
    cm_flat = c_mat.reshape(B * 9).astype(jnp.float32)          # cm_flat[b*9 + 3*k + c]
    R = 32 if (H % 32 == 0 and H >= 32) else H
    n_strips = H // R

    def kernel(cm_ref, p_ref, g_ref, v_ref, ms_ref, vs_ref):
        e_part = jnp.zeros((R, W), jnp.float32)
        v_part = jnp.zeros((R, W), jnp.float32)
        for b in range(B):
            cm = [cm_ref[b * 9 + i] for i in range(9)]
            for s in range(n_strips):
                r0, r1 = s * R, (s + 1) * R
                v = jnp.where(v_ref[b, 0, r0:r1, :] > 0.9,
                              jnp.float32(1.0), jnp.float32(0.0))
                x0 = p_ref[b, 0, r0:r1, :]
                x1 = p_ref[b, 1, r0:r1, :]
                x2 = p_ref[b, 2, r0:r1, :]
                err = None
                for c in range(3):
                    pm = x0 * cm[0 + c] + x1 * cm[3 + c] + x2 * cm[6 + c]
                    d = pm - g_ref[b, c, r0:r1, :]
                    err = d * d if err is None else err + d * d
                e_part = e_part + err * v
                v_part = v_part + v
        ms_ref[...] = jnp.zeros((1, 1), jnp.float32) + jnp.sum(e_part)
        vs_ref[...] = jnp.zeros((1, 1), jnp.float32) + jnp.sum(v_part)

    ms, vs = pl.pallas_call(
        kernel,
        out_shape=(jax.ShapeDtypeStruct((1, 1), jnp.float32),
                   jax.ShapeDtypeStruct((1, 1), jnp.float32)),
        grid=(1,),
        in_specs=[pl.BlockSpec(memory_space=pltpu.MemorySpace.SMEM),
                  pl.BlockSpec((B, 3, H, W), lambda i: (0, 0, 0, 0)),
                  pl.BlockSpec((B, 3, H, W), lambda i: (0, 0, 0, 0)),
                  pl.BlockSpec((B, 1, H, W), lambda i: (0, 0, 0, 0))],
        out_specs=(pl.BlockSpec((1, 1), lambda i: (0, 0)),
                   pl.BlockSpec((1, 1), lambda i: (0, 0))),
        compiler_params=pltpu.CompilerParams(dimension_semantics=("arbitrary",)),
    )(cm_flat, pred, gt, valid_soft)
    return ms[0, 0], vs[0, 0]


# --------------------------------------------------------------------------------------
# plain-JAX glue: warp (grid_sample), synthetic alignment net
# --------------------------------------------------------------------------------------

def _grid_sample_bilinear_zeros(img, x, y):
    # img: (B, C, H, W); x, y: (B, Ho, Wo) absolute pixel coords
    B, C, H, W = img.shape
    x0 = jnp.floor(x); y0 = jnp.floor(y)
    x1 = x0 + 1.0;      y1 = y0 + 1.0
    w00 = (x1 - x) * (y1 - y)
    w01 = (x1 - x) * (y - y0)
    w10 = (x - x0) * (y1 - y)
    w11 = (x - x0) * (y - y0)
    flat = img.reshape(B, C, H * W)

    def gather(xi, yi):
        valid = (xi >= 0) & (xi <= W - 1) & (yi >= 0) & (yi <= H - 1)
        xc = jnp.clip(xi, 0, W - 1).astype(jnp.int32)
        yc = jnp.clip(yi, 0, H - 1).astype(jnp.int32)
        idx = (yc * W + xc).reshape(B, -1)
        g = jax.vmap(lambda f, i: jnp.take(f, i, axis=1))(flat, idx)
        g = g.reshape(B, C, *xi.shape[1:])
        return g * valid[:, None].astype(img.dtype)

    return (gather(x0, y0) * w00[:, None] + gather(x0, y1) * w01[:, None]
            + gather(x1, y0) * w10[:, None] + gather(x1, y1) * w11[:, None])


def warp(feat, flow):
    # TODO(synk): bilinear grid_sample is a data-dependent gather; kept in plain JAX glue.
    B, C, H, W = feat.shape
    x = jnp.arange(W, dtype=jnp.float32)[None, None, :] + flow[:, 0]
    y = jnp.arange(H, dtype=jnp.float32)[None, :, None] + flow[:, 1]
    return _grid_sample_bilinear_zeros(feat, x, y)


def alignment_net(pred_n, gt_n, params):
    # Synthetic deterministic stand-in for the external alignment network (e.g. PWC-Net):
    # a single 3x3 conv over concat(pred, gt) producing a small 2-channel flow.
    w, b = params
    x = jnp.concatenate([pred_n, gt_n], axis=1)
    flow = lax.conv_general_dilated(x, w, window_strides=(1, 1), padding="SAME",
                                    dimension_numbers=("NCHW", "OIHW", "NCHW"))
    return jnp.tanh(flow + b[None, :, None, None]) * 0.5


# --------------------------------------------------------------------------------------
# AlignedL2 forward
# --------------------------------------------------------------------------------------

def make_aligned_l2(sr_factor=4, boundary_ignore=None):
    ksz, g1d = get_gaussian_kernel(sd=1.5)

    def match_colors(im_ref, im_q, im_test):
        """Returns (c_mat (B,3,3), valid_soft (B,1,Ht,Wt) pre-threshold f32).  The 3x3
        transform and the >0.9 threshold are applied later, fused with the masked MSE."""
        B, C, Hs, Ws = im_ref.shape
        bi = 5
        Hc, Wc = Hs - 2 * bi, Ws - 2 * bi
        N = 2 * B * C

        # Gaussian smoothing + [bi:-bi] crop folded into band matrices (Pallas kernel #1).
        mh = blur_crop_matrix(Hs, g1d, bi)                        # (Hc, Hs)
        mw = blur_crop_matrix(Ws, g1d, bi)                        # (Wc, Ws)
        mh_big = np.kron(np.eye(N, dtype=np.float32), mh)         # (N*Hc, N*Hs) block-diag
        stacked = jnp.concatenate([im_ref, im_q], axis=0).reshape(N * Hs, Ws)
        blurred = gauss_blur_crop_pallas(stacked, jnp.asarray(mw.T), jnp.asarray(mh_big))
        blurred = blurred.reshape(2, B, C, Hc, Wc)
        im_ref_mean, im_q_mean = blurred[0], blurred[1]
        ref_re = im_ref_mean.reshape(B, C, Hc * Wc)
        q_re = im_q_mean.reshape(B, C, Hc * Wc)

        # least-squares color transform (3x3 per batch) via normal equations -- tiny, JAX glue
        gram = jnp.einsum("bkp,blp->bkl", q_re, q_re, precision="highest")
        rhs = jnp.einsum("bkp,blp->bkl", q_re, ref_re, precision="highest")
        c_mat = jnp.linalg.solve(gram, rhs)                        # (B,3,3)

        q_conv = jnp.einsum("bkp,bkc->bcp", q_re, c_mat, precision="highest")
        err = jnp.linalg.norm((q_conv - ref_re) * 255.0, axis=1).reshape(B, Hc, Wc)
        valid_lr = (err < 20.0).astype(jnp.float32)

        # upsample valid mask (bilinear, align_corners=False) -- tiny 6x6 glue in JAX;
        # kept PRE-threshold; the >0.9 compare happens inside Pallas kernel #3.
        Ht, Wt = im_test.shape[-2:]
        Mh_up = jnp.asarray(resize_matrix_ac_false(Ht, Hc))
        Mw_up = jnp.asarray(resize_matrix_ac_false(Wt, Wc))
        valid_soft = jnp.einsum("oi,bij,pj->bop", Mh_up, valid_lr, Mw_up,
                                precision="highest")
        return c_mat, valid_soft[:, None]                          # (B,1,Ht,Wt) f32

    def forward(pred, gt, burst_input, align_params):
        B, C, H, W = gt.shape
        flow = alignment_net(pred / (jnp.max(pred) + 1e-6),
                             gt / (jnp.max(gt) + 1e-6), align_params)    # (B,2,H,W)
        pred_warped = warp(pred, flow)

        ds_factor = 1.0 / float(2.0 * sr_factor)
        Hs, Ws = int(H * ds_factor), int(W * ds_factor)

        # bilinear downsample (align_corners=True) of flow & gt -- Pallas kernel #2.
        # NOTE: wh_big is block-diagonal over the B*5 planes; for very large B one would
        # tile a grid over planes instead of growing this matrix quadratically.
        N5 = B * 5
        Wh = resize_matrix_ac_true(Hs, H)                          # (Hs, H)
        WwT = resize_matrix_ac_true(Ws, W).T                       # (W, Ws)
        wh_big = np.kron(np.eye(N5, dtype=np.float32), Wh)         # (N5*Hs, N5*H)
        stacked = (jnp.concatenate([flow, gt], axis=1)
                   .reshape(N5 * H, W).astype(jnp.bfloat16))
        ds = resize_matmul_pallas(stacked, jnp.asarray(WwT),
                                  jnp.asarray(wh_big)).reshape(B, 5, Hs, Ws)
        flow_ds = ds[:, :2] * ds_factor
        frame_gt_ds = ds[:, 2:]

        burst_0 = jnp.take(burst_input[:, 0], jnp.array([0, 1, 3]), axis=1)   # (B,3,Hs,Ws)
        burst_0_warped = warp(burst_0, flow_ds)

        c_mat, valid_soft = match_colors(frame_gt_ds, burst_0_warped, pred_warped)

        # The 3x3 color transform is per-pixel, so cropping before applying it is
        # equivalent to cropping the transformed image (as the original module does).
        if boundary_ignore is not None:
            bi = boundary_ignore
            pred_c = pred_warped[..., bi:-bi, bi:-bi]
            gt_c = gt[..., bi:-bi, bi:-bi]
            valid_c = valid_soft[..., bi:-bi, bi:-bi]
        else:
            pred_c, gt_c, valid_c = pred_warped, gt, valid_soft

        Cc = gt_c.shape[1]
        # fused color-matrix apply + in-kernel mask threshold + masked MSE -- Pallas kernel #3
        msum, vsum = fused_cmat_mse_pallas(pred_c, gt_c, valid_c, c_mat)
        elem_ratio = float(Cc)            # mse.numel() / valid.numel()
        eps = 1e-12
        return msum / (vsum * elem_ratio + eps)

    return jax.jit(forward)


# --------------------------------------------------------------------------------------
# demo
# --------------------------------------------------------------------------------------

if __name__ == "__main__":
    key = jax.random.PRNGKey(0)
    k1, k2, k3, k4 = jax.random.split(key, 4)

    B, C, H, W = 2, 3, 128, 128
    sr_factor = 4
    Hs, Ws = H // (2 * sr_factor), W // (2 * sr_factor)     # 16, 16 (packed Bayer LR size)

    # smooth synthetic GT + slightly noisy prediction
    yy = jnp.arange(H, dtype=jnp.float32) / H
    xx = jnp.arange(W, dtype=jnp.float32) / W
    freqs = [(1.0, 2.0), (2.0, 1.0), (3.0, 3.0)]
    base = jnp.stack([0.5 + 0.35 * jnp.sin(2 * jnp.pi * (fy * yy[:, None] + fx * xx[None, :]) + c)
                      for c, (fy, fx) in enumerate(freqs)], axis=0)[None]      # (1,3,H,W)
    gt = jnp.clip(base + 0.02 * jax.random.normal(k1, (B, C, H, W)), 0.0, 1.0).astype(jnp.float32)
    pred = jnp.clip(gt + 0.03 * jax.random.normal(k2, (B, C, H, W)), 0.0, 1.0).astype(jnp.float32)

    # synthetic packed-RGGB burst roughly consistent with gt (burst_input: (B, frames, 4, Hs, Ws))
    pool = gt.reshape(B, C, Hs, 2 * sr_factor, Ws, 2 * sr_factor).mean(axis=(3, 5))
    b0 = jnp.stack([pool[:, 0], pool[:, 1], pool[:, 1], pool[:, 2]], axis=1)   # (B,4,Hs,Ws)
    burst_input = (jnp.broadcast_to(b0[:, None], (B, 4, 4, Hs, Ws))
                   + 0.01 * jax.random.normal(k3, (B, 4, 4, Hs, Ws))).astype(jnp.float32)

    # deterministic synthetic alignment-net parameters (3x3 conv: 6 -> 2 channels)
    align_params = (0.05 * jax.random.normal(k4, (2, 6, 3, 3), jnp.float32),
                    jnp.zeros((2,), jnp.float32))

    aligned_l2 = make_aligned_l2(sr_factor=sr_factor, boundary_ignore=None)
    out = aligned_l2(pred, gt, burst_input, align_params)
    out = jax.block_until_ready(out)
    assert np.isfinite(float(out))
    print("KERNEL_OK")
</pallas_src>

<mosaic_0001>
module attributes {stable_mosaic.version = 11 : i64} {
  func.func private @main(%arg0: i32) attributes {dimension_semantics = [#tpu.dimension_semantics<core_parallel>], iteration_bounds = array<i64: 2>, tpu.core_type = #tpu.core_type<sc_scalar_subcore>, window_params = []} {
    return
  }
}

module attributes {stable_mosaic.version = 11 : i64} {
  func.func private @main(%arg0: i32) attributes {dimension_semantics = [#tpu.dimension_semantics<core_parallel>], iteration_bounds = array<i64: 2>, tpu.core_type = #tpu.core_type<sc_scalar_subcore>, window_params = []} {
    return
  }
}

module attributes {stable_mosaic.version = 11 : i64} {
  func.func @kernel(%arg0: i32, %arg1: memref<1280x128xbf16, #tpu.memory_space<vmem>>, %arg2: memref<128x16xf32, #tpu.memory_space<vmem>>, %arg3: memref<160x1280xf32, #tpu.memory_space<vmem>>, %arg4: memref<160x16xf32, #tpu.memory_space<vmem>>) attributes {dimension_semantics = [#tpu.dimension_semantics<arbitrary>], iteration_bounds = array<i64: 1>, scalar_prefetch = 0 : i64, scratch_operands = 0 : i64, tpu.core_type = #tpu.core_type<tc>, window_params = [{pipeline_mode = #tpu.pipeline_mode<synchronous>, transform_indices = @transform_0, window_bounds = array<i64: 1280, 128>}, {pipeline_mode = #tpu.pipeline_mode<synchronous>, transform_indices = @transform_1, window_bounds = array<i64: 128, 16>}, {pipeline_mode = #tpu.pipeline_mode<synchronous>, transform_indices = @transform_2, window_bounds = array<i64: 160, 1280>}, {pipeline_mode = #tpu.pipeline_mode<synchronous>, transform_indices = @transform_3, window_bounds = array<i64: 160, 16>}]} {
    %c0 = arith.constant 0 : index
    %c0_0 = arith.constant 0 : index
    %0 = vector.load %arg1[%c0, %c0_0] : memref<1280x128xbf16, #tpu.memory_space<vmem>>, vector<1280x128xbf16>
    %1 = arith.extf %0 : vector<1280x128xbf16> to vector<1280x128xf32>
    %c0_1 = arith.constant 0 : index
    %c0_2 = arith.constant 0 : index
    %2 = vector.load %arg2[%c0_1, %c0_2] : memref<128x16xf32, #tpu.memory_space<vmem>>, vector<128x16xf32>
    %cst = arith.constant dense<0.000000e+00> : vector<1280x16xf32>
    %3 = tpu.matmul %1, %2, %cst {dimension_numbers = #tpu.dot_dimension_numbers<[1], [0], [0], [1], [0, 0, 1, 1], [], []>} : vector<1280x128xf32>, vector<128x16xf32>, vector<1280x16xf32> -> vector<1280x16xf32>
    %c0_3 = arith.constant 0 : index
    %c0_4 = arith.constant 0 : index
    %4 = vector.load %arg3[%c0_3, %c0_4] : memref<160x1280xf32, #tpu.memory_space<vmem>>, vector<160x1280xf32>
    %cst_5 = arith.constant dense<0.000000e+00> : vector<160x16xf32>
    %5 = tpu.matmul %4, %3, %cst_5 {dimension_numbers = #tpu.dot_dimension_numbers<[1], [0], [0], [1], [0, 0, 1, 1], [], []>} : vector<160x1280xf32>, vector<1280x16xf32>, vector<160x16xf32> -> vector<160x16xf32>
    %c0_6 = arith.constant 0 : index
    %c0_7 = arith.constant 0 : index
    %6 = vector.load %arg4[%c0_6, %c0_7] : memref<160x16xf32, #tpu.memory_space<vmem>>, vector<160x16xf32>
    tpu.vector_store %arg4[%c0_6, %c0_7], %5 {strides = array<i32>} : memref<160x16xf32, #tpu.memory_space<vmem>>, vector<160x16xf32>,
    return
  }
  func.func @transform_0(%arg0: i32) -> (i32, i32) {
    %c0_i32 = arith.constant 0 : i32
    %c0_i32_0 = arith.constant 0 : i32
    %c0_i32_1 = arith.constant 0 : i32
    return %c0_i32, %c0_i32_0 : i32, i32
  }
  func.func @transform_1(%arg0: i32) -> (i32, i32) {
    %c0_i32 = arith.constant 0 : i32
    %c0_i32_0 = arith.constant 0 : i32
    %c0_i32_1 = arith.constant 0 : i32
    return %c0_i32, %c0_i32_0 : i32, i32
  }
  func.func @transform_2(%arg0: i32) -> (i32, i32) {
    %c0_i32 = arith.constant 0 : i32
    %c0_i32_0 = arith.constant 0 : i32
    %c0_i32_1 = arith.constant 0 : i32
    return %c0_i32, %c0_i32_0 : i32, i32
  }
  func.func @transform_3(%arg0: i32) -> (i32, i32) {
    %c0_i32 = arith.constant 0 : i32
    %c0_i32_0 = arith.constant 0 : i32
    %c0_i32_1 = arith.constant 0 : i32
    return %c0_i32, %c0_i32_0 : i32, i32
  }
}

module attributes {stable_mosaic.version = 11 : i64} {
  func.func @kernel(%arg0: i32, %arg1: memref<192x16xf32, #tpu.memory_space<vmem>>, %arg2: memref<16x6xf32, #tpu.memory_space<vmem>>, %arg3: memref<72x192xf32, #tpu.memory_space<vmem>>, %arg4: memref<72x6xf32, #tpu.memory_space<vmem>>) attributes {dimension_semantics = [#tpu.dimension_semantics<arbitrary>], iteration_bounds = array<i64: 1>, scalar_prefetch = 0 : i64, scratch_operands = 0 : i64, tpu.core_type = #tpu.core_type<tc>, window_params = [{pipeline_mode = #tpu.pipeline_mode<synchronous>, transform_indices = @transform_0, window_bounds = array<i64: 192, 16>}, {pipeline_mode = #tpu.pipeline_mode<synchronous>, transform_indices = @transform_1, window_bounds = array<i64: 16, 6>}, {pipeline_mode = #tpu.pipeline_mode<synchronous>, transform_indices = @transform_2, window_bounds = array<i64: 72, 192>}, {pipeline_mode = #tpu.pipeline_mode<synchronous>, transform_indices = @transform_3, window_bounds = array<i64: 72, 6>}]} {
    %c0 = arith.constant 0 : index
    %c0_0 = arith.constant 0 : index
    %0 = vector.load %arg1[%c0, %c0_0] : memref<192x16xf32, #tpu.memory_space<vmem>>, vector<192x16xf32>
    %c0_1 = arith.constant 0 : index
    %c0_2 = arith.constant 0 : index
    %1 = vector.load %arg2[%c0_1, %c0_2] : memref<16x6xf32, #tpu.memory_space<vmem>>, vector<16x6xf32>
    %cst = arith.constant dense<0.000000e+00> : vector<192x6xf32>
    %2 = tpu.matmul %0, %1, %cst {dimension_numbers = #tpu.dot_dimension_numbers<[1], [0], [0], [1], [0, 0, 1, 1], [], []>} : vector<192x16xf32>, vector<16x6xf32>, vector<192x6xf32> -> vector<192x6xf32>
    %c0_3 = arith.constant 0 : index
    %c0_4 = arith.constant 0 : index
    %3 = vector.load %arg3[%c0_3, %c0_4] : memref<72x192xf32, #tpu.memory_space<vmem>>, vector<72x192xf32>
    %cst_5 = arith.constant dense<0.000000e+00> : vector<72x6xf32>
    %4 = tpu.matmul %3, %2, %cst_5 {dimension_numbers = #tpu.dot_dimension_numbers<[1], [0], [0], [1], [0, 0, 1, 1], [], []>} : vector<72x192xf32>, vector<192x6xf32>, vector<72x6xf32> -> vector<72x6xf32>
    %c0_6 = arith.constant 0 : index
    %c0_7 = arith.constant 0 : index
    %5 = vector.load %arg4[%c0_6, %c0_7] : memref<72x6xf32, #tpu.memory_space<vmem>>, vector<72x6xf32>
    tpu.vector_store %arg4[%c0_6, %c0_7], %4 {strides = array<i32>} : memref<72x6xf32, #tpu.memory_space<vmem>>, vector<72x6xf32>,
    return
  }
  func.func @transform_0(%arg0: i32) -> (i32, i32) {
    %c0_i32 = arith.constant 0 : i32
    %c0_i32_0 = arith.constant 0 : i32
    %c0_i32_1 = arith.constant 0 : i32
    return %c0_i32, %c0_i32_0 : i32, i32
  }
  func.func @transform_1(%arg0: i32) -> (i32, i32) {
    %c0_i32 = arith.constant 0 : i32
    %c0_i32_0 = arith.constant 0 : i32
    %c0_i32_1 = arith.constant 0 : i32
    return %c0_i32, %c0_i32_0 : i32, i32
  }
  func.func @transform_2(%arg0: i32) -> (i32, i32) {
    %c0_i32 = arith.constant 0 : i32
    %c0_i32_0 = arith.constant 0 : i32
    %c0_i32_1 = arith.constant 0 : i32
    return %c0_i32, %c0_i32_0 : i32, i32
  }
  func.func @transform_3(%arg0: i32) -> (i32, i32) {
    %c0_i32 = arith.constant 0 : i32
    %c0_i32_0 = arith.constant 0 : i32
    %c0_i32_1 = arith.constant 0 : i32
    return %c0_i32, %c0_i32_0 : i32, i32
  }
}

module attributes {stable_mosaic.version = 11 : i64} {
  func.func @kernel(%arg0: i32, %arg1: memref<18xf32, #tpu.memory_space<smem>>, %arg2: memref<2x3x128x128xf32, #tpu.memory_space<vmem>>, %arg3: memref<2x3x128x128xf32, #tpu.memory_space<vmem>>, %arg4: memref<2x1x128x128xf32, #tpu.memory_space<vmem>>, %arg5: memref<1x1xf32, #tpu.memory_space<vmem>>, %arg6: memref<1x1xf32, #tpu.memory_space<vmem>>) attributes {dimension_semantics = [#tpu.dimension_semantics<arbitrary>], iteration_bounds = array<i64: 1>, scalar_prefetch = 0 : i64, scratch_operands = 0 : i64, tpu.core_type = #tpu.core_type<tc>, window_params = [{transform_indices = @transform_0, window_bounds = array<i64: 18>}, {pipeline_mode = #tpu.pipeline_mode<synchronous>, transform_indices = @transform_1, window_bounds = array<i64: 2, 3, 128, 128>}, {pipeline_mode = #tpu.pipeline_mode<synchronous>, transform_indices = @transform_2, window_bounds = array<i64: 2, 3, 128, 128>}, {pipeline_mode = #tpu.pipeline_mode<synchronous>, transform_indices = @transform_3, window_bounds = array<i64: 2, 1, 128, 128>}, {pipeline_mode = #tpu.pipeline_mode<synchronous>, transform_indices = @transform_4, window_bounds = array<i64: 1, 1>}, {pipeline_mode = #tpu.pipeline_mode<synchronous>, transform_indices = @transform_5, window_bounds = array<i64: 1, 1>}]} {
    %cst = arith.constant 0.000000e+00 : f32
    %0 = vector.broadcast %cst : f32 to vector<32x128xf32>
    %cst_0 = arith.constant 0.000000e+00 : f32
    %1 = vector.broadcast %cst_0 : f32 to vector<32x128xf32>
    %c0 = arith.constant 0 : index
    %2 = memref.load %arg1[%c0] : memref<18xf32, #tpu.memory_space<smem>>
    %c1 = arith.constant 1 : index
    %3 = memref.load %arg1[%c1] : memref<18xf32, #tpu.memory_space<smem>>
    %c2 = arith.constant 2 : index
    %4 = memref.load %arg1[%c2] : memref<18xf32, #tpu.memory_space<smem>>
    %c3 = arith.constant 3 : index
    %5 = memref.load %arg1[%c3] : memref<18xf32, #tpu.memory_space<smem>>
    %c4 = arith.constant 4 : index
    %6 = memref.load %arg1[%c4] : memref<18xf32, #tpu.memory_space<smem>>
    %c5 = arith.constant 5 : index
    %7 = memref.load %arg1[%c5] : memref<18xf32, #tpu.memory_space<smem>>
    %c6 = arith.constant 6 : index
    %8 = memref.load %arg1[%c6] : memref<18xf32, #tpu.memory_space<smem>>
    %c7 = arith.constant 7 : index
    %9 = memref.load %arg1[%c7] : memref<18xf32, #tpu.memory_space<smem>>
    %c8 = arith.constant 8 : index
    %10 = memref.load %arg1[%c8] : memref<18xf32, #tpu.memory_space<smem>>
    %c0_1 = arith.constant 0 : index
    %c0_2 = arith.constant 0 : index
    %c0_3 = arith.constant 0 : index
    %c0_4 = arith.constant 0 : index
    %11 = vector.load %arg4[%c0_1, %c0_2, %c0_3, %c0_4] : memref<2x1x128x128xf32, #tpu.memory_space<vmem>>, vector<1x1x32x128xf32>
    %12 = vector.shape_cast %11 : vector<1x1x32x128xf32> to vector<32x128xf32>
    %cst_5 = arith.constant 0.899999976 : f32
    %13 = vector.broadcast %cst_5 : f32 to vector<32x128xf32>
    %14 = arith.cmpf ogt, %12, %13 : vector<32x128xf32>
    %cst_6 = arith.constant 1.000000e+00 : f32
    %cst_7 = arith.constant 0.000000e+00 : f32
    %15 = vector.broadcast %cst_6 : f32 to vector<32x128xf32>
    %16 = vector.broadcast %cst_7 : f32 to vector<32x128xf32>
    %17 = arith.select %14, %15, %16 : vector<32x128xi1>, vector<32x128xf32>
    %c0_8 = arith.constant 0 : index
    %c0_9 = arith.constant 0 : index
    %c0_10 = arith.constant 0 : index
    %c0_11 = arith.constant 0 : index
    %18 = vector.load %arg2[%c0_8, %c0_9, %c0_10, %c0_11] : memref<2x3x128x128xf32, #tpu.memory_space<vmem>>, vector<1x1x32x128xf32>
    %19 = vector.shape_cast %18 : vector<1x1x32x128xf32> to vector<32x128xf32>
    %c0_12 = arith.constant 0 : index
    %c1_13 = arith.constant 1 : index
    %c0_14 = arith.constant 0 : index
    %c0_15 = arith.constant 0 : index
    %20 = vector.load %arg2[%c0_12, %c1_13, %c0_14, %c0_15] : memref<2x3x128x128xf32, #tpu.memory_space<vmem>>, vector<1x1x32x128xf32>
    %21 = vector.shape_cast %20 : vector<1x1x32x128xf32> to vector<32x128xf32>
    %c0_16 = arith.constant 0 : index
    %c2_17 = arith.constant 2 : index
    %c0_18 = arith.constant 0 : index
    %c0_19 = arith.constant 0 : index
    %22 = vector.load %arg2[%c0_16, %c2_17, %c0_18, %c0_19] : memref<2x3x128x128xf32, #tpu.memory_space<vmem>>, vector<1x1x32x128xf32>
    %23 = vector.shape_cast %22 : vector<1x1x32x128xf32> to vector<32x128xf32>
    %24 = vector.broadcast %2 : f32 to vector<32x128xf32>
    %25 = arith.mulf %19, %24 : vector<32x128xf32>
    %26 = vector.broadcast %5 : f32 to vector<32x128xf32>
    %27 = arith.mulf %21, %26 : vector<32x128xf32>
    %28 = arith.addf %25, %27 : vector<32x128xf32>
    %29 = vector.broadcast %8 : f32 to vector<32x128xf32>
    %30 = arith.mulf %23, %29 : vector<32x128xf32>
    %31 = arith.addf %28, %30 : vector<32x128xf32>
    %c0_20 = arith.constant 0 : index
    %c0_21 = arith.constant 0 : index
    %c0_22 = arith.constant 0 : index
    %c0_23 = arith.constant 0 : index
    %32 = vector.load %arg3[%c0_20, %c0_21, %c0_22, %c0_23] : memref<2x3x128x128xf32, #tpu.memory_space<vmem>>, vector<1x1x32x128xf32>
    %33 = vector.shape_cast %32 : vector<1x1x32x128xf32> to vector<32x128xf32>
    %34 = arith.subf %31, %33 : vector<32x128xf32>
    %35 = arith.mulf %34, %34 : vector<32x128xf32>
    %36 = vector.broadcast %3 : f32 to vector<32x128xf32>
    %37 = arith.mulf %19, %36 : vector<32x128xf32>
    %38 = vector.broadcast %6 : f32 to vector<32x128xf32>
    %39 = arith.mulf %21, %38 : vector<32x128xf32>
    %40 = arith.addf %37, %39 : vector<32x128xf32>
    %41 = vector.broadcast %9 : f32 to vector<32x128xf32>
    %42 = arith.mulf %23, %41 : vector<32x128xf32>
    %43 = arith.addf %40, %42 : vector<32x128xf32>
    %c0_24 = arith.constant 0 : index
    %c1_25 = arith.constant 1 : index
    %c0_26 = arith.constant 0 : index
    %c0_27 = arith.constant 0 : index
    %44 = vector.load %arg3[%c0_24, %c1_25, %c0_26, %c0_27] : memref<2x3x128x128xf32, #tpu.memory_space<vmem>>, vector<1x1x32x128xf32>
    %45 = vector.shape_cast %44 : vector<1x1x32x128xf32> to vector<32x128xf32>
    %46 = arith.subf %43, %45 : vector<32x128xf32>
    %47 = arith.mulf %46, %46 : vector<32x128xf32>
    %48 = arith.addf %35, %47 : vector<32x128xf32>
    %49 = vector.broadcast %4 : f32 to vector<32x128xf32>
    %50 = arith.mulf %19, %49 : vector<32x128xf32>
    %51 = vector.broadcast %7 : f32 to vector<32x128xf32>
    %52 = arith.mulf %21, %51 : vector<32x128xf32>
    %53 = arith.addf %50, %52 : vector<32x128xf32>
    %54 = vector.broadcast %10 : f32 to vector<32x128xf32>
    %55 = arith.mulf %23, %54 : vector<32x128xf32>
    %56 = arith.addf %53, %55 : vector<32x128xf32>
    %c0_28 = arith.constant 0 : index
    %c2_29 = arith.constant 2 : index
    %c0_30 = arith.constant 0 : index
    %c0_31 = arith.constant 0 : index
    %57 = vector.load %arg3[%c0_28, %c2_29, %c0_30, %c0_31] : memref<2x3x128x128xf32, #tpu.memory_space<vmem>>, vector<1x1x32x128xf32>
    %58 = vector.shape_cast %57 : vector<1x1x32x128xf32> to vector<32x128xf32>
    %59 = arith.subf %56, %58 : vector<32x128xf32>
    %60 = arith.mulf %59, %59 : vector<32x128xf32>
    %61 = arith.addf %48, %60 : vector<32x128xf32>
    %62 = arith.mulf %61, %17 : vector<32x128xf32>
    %63 = arith.addf %0, %62 : vector<32x128xf32>
    %64 = arith.addf %1, %17 : vector<32x128xf32>
    %c0_32 = arith.constant 0 : index
    %c0_33 = arith.constant 0 : index
    %c32 = arith.constant 32 : index
    %c0_34 = arith.constant 0 : index
    %65 = vector.load %arg4[%c0_32, %c0_33, %c32, %c0_34] : memref<2x1x128x128xf32, #tpu.memory_space<vmem>>, vector<1x1x32x128xf32>
    %66 = vector.shape_cast %65 : vector<1x1x32x128xf32> to vector<32x128xf32>
    %cst_35 = arith.constant 0.899999976 : f32
    %67 = vector.broadcast %cst_35 : f32 to vector<32x128xf32>
    %68 = arith.cmpf ogt, %66, %67 : vector<32x128xf32>
    %cst_36 = arith.constant 1.000000e+00 : f32
    %cst_37 = arith.constant 0.000000e+00 : f32
    %69 = vector.broadcast %cst_36 : f32 to vector<32x128xf32>
    %70 = vector.broadcast %cst_37 : f32 to vector<32x128xf32>
    %71 = arith.select %68, %69, %70 : vector<32x128xi1>, vector<32x128xf32>
    %c0_38 = arith.constant 0 : index
    %c0_39 = arith.constant 0 : index
    %c32_40 = arith.constant 32 : index
    %c0_41 = arith.constant 0 : index
    %72 = vector.load %arg2[%c0_38, %c0_39, %c32_40, %c0_41] : memref<2x3x128x128xf32, #tpu.memory_space<vmem>>, vector<1x1x32x128xf32>
    %73 = vector.shape_cast %72 : vector<1x1x32x128xf32> to vector<32x128xf32>
    %c0_42 = arith.constant 0 : index
    %c1_43 = arith.constant 1 : index
    %c32_44 = arith.constant 32 : index
    %c0_45 = arith.constant 0 : index
    %74 = vector.load %arg2[%c0_42, %c1_43, %c32_44, %c0_45] : memref<2x3x128x128xf32, #tpu.memory_space<vmem>>, vector<1x1x32x128xf32>
    %75 = vector.shape_cast %74 : vector<1x1x32x128xf32> to vector<32x128xf32>
    %c0_46 = arith.constant 0 : index
    %c2_47 = arith.constant 2 : index
    %c32_48 = arith.constant 32 : index
    %c0_49 = arith.constant 0 : index
    %76 = vector.load %arg2[%c0_46, %c2_47, %c32_48, %c0_49] : memref<2x3x128x128xf32, #tpu.memory_space<vmem>>, vector<1x1x32x128xf32>
    %77 = vector.shape_cast %76 : vector<1x1x32x128xf32> to vector<32x128xf32>
    %78 = vector.broadcast %2 : f32 to vector<32x128xf32>
    %79 = arith.mulf %73, %78 : vector<32x128xf32>
    %80 = vector.broadcast %5 : f32 to vector<32x128xf32>
    %81 = arith.mulf %75, %80 : vector<32x128xf32>
    %82 = arith.addf %79, %81 : vector<32x128xf32>
    %83 = vector.broadcast %8 : f32 to vector<32x128xf32>
    %84 = arith.mulf %77, %83 : vector<32x128xf32>
    %85 = arith.addf %82, %84 : vector<32x128xf32>
    %c0_50 = arith.constant 0 : index
    %c0_51 = arith.constant 0 : index
    %c32_52 = arith.constant 32 : index
    %c0_53 = arith.constant 0 : index
    %86 = vector.load %arg3[%c0_50, %c0_51, %c32_52, %c0_53] : memref<2x3x128x128xf32, #tpu.memory_space<vmem>>, vector<1x1x32x128xf32>
    %87 = vector.shape_cast %86 : vector<1x1x32x128xf32> to vector<32x128xf32>
    %88 = arith.subf %85, %87 : vector<32x128xf32>
    %89 = arith.mulf %88, %88 : vector<32x128xf32>
    %90 = vector.broadcast %3 : f32 to vector<32x128xf32>
    %91 = arith.mulf %73, %90 : vector<32x128xf32>
    %92 = vector.broadcast %6 : f32 to vector<32x128xf32>
    %93 = arith.mulf %75, %92 : vector<32x128xf32>
    %94 = arith.addf %91, %93 : vector<32x128xf32>
    %95 = vector.broadcast %9 : f32 to vector<32x128xf32>
    %96 = arith.mulf %77, %95 : vector<32x128xf32>
    %97 = arith.addf %94, %96 : vector<32x128xf32>
    %c0_54 = arith.constant 0 : index
    %c1_55 = arith.constant 1 : index
    %c32_56 = arith.constant 32 : index
    %c0_57 = arith.constant 0 : index
    %98 = vector.load %arg3[%c0_54, %c1_55, %c32_56, %c0_57] : memref<2x3x128x128xf32, #tpu.memory_space<vmem>>, vector<1x1x32x128xf32>
    %99 = vector.shape_cast %98 : vector<1x1x32x128xf32> to vector<32x128xf32>
    %100 = arith.subf %97, %99 : vector<32x128xf32>
    %101 = arith.mulf %100, %100 : vector<32x128xf32>
    %102 = arith.addf %89, %101 : vector<32x128xf32>
    %103 = vector.broadcast %4 : f32 to vector<32x128xf32>
    %104 = arith.mulf %73, %103 : vector<32x128xf32>
    %105 = vector.broadcast %7 : f32 to vector<32x128xf32>
    %106 = arith.mulf %75, %105 : vector<32x128xf32>
    %107 = arith.addf %104, %106 : vector<32x128xf32>
    %108 = vector.broadcast %10 : f32 to vector<32x128xf32>
    %109 = arith.mulf %77, %108 : vector<32x128xf32>
    %110 = arith.addf %107, %109 : vector<32x128xf32>
    %c0_58 = arith.constant 0 : index
    %c2_59 = arith.constant 2 : index
    %c32_60 = arith.constant 32 : index
    %c0_61 = arith.constant 0 : index
    %111 = vector.load %arg3[%c0_58, %c2_59, %c32_60, %c0_61] : memref<2x3x128x128xf32, #tpu.memory_space<vmem>>, vector<1x1x32x128xf32>
    %112 = vector.shape_cast %111 : vector<1x1x32x128xf32> to vector<32x128xf32>
    %113 = arith.subf %110, %112 : vector<32x128xf32>
    %114 = arith.mulf %113, %113 : vector<32x128xf32>
    %115 = arith.addf %102, %114 : vector<32x128xf32>
    %116 = arith.mulf %115, %71 : vector<32x128xf32>
    %117 = arith.addf %63, %116 : vector<32x128xf32>
    %118 = arith.addf %64, %71 : vector<32x128xf32>
    %c0_62 = arith.constant 0 : index
    %c0_63 = arith.constant 0 : index
    %c64 = arith.constant 64 : index
    %c0_64 = arith.constant 0 : index
    %119 = vector.load %arg4[%c0_62, %c0_63, %c64, %c0_64] : memref<2x1x128x128xf32, #tpu.memory_space<vmem>>, vector<1x1x32x128xf32>
    %120 = vector.shape_cast %119 : vector<1x1x32x128xf32> to vector<32x128xf32>
    %cst_65 = arith.constant 0.899999976 : f32
    %121 = vector.broadcast %cst_65 : f32 to vector<32x128xf32>
    %122 = arith.cmpf ogt, %120, %121 : vector<32x128xf32>
    %cst_66 = arith.constant 1.000000e+00 : f32
    %cst_67 = arith.constant 0.000000e+00 : f32
    %123 = vector.broadcast %cst_66 : f32 to vector<32x128xf32>
    %124 = vector.broadcast %cst_67 : f32 to vector<32x128xf32>
    %125 = arith.select %122, %123, %124 : vector<32x128xi1>, vector<32x128xf32>
    %c0_68 = arith.constant 0 : index
    %c0_69 = arith.constant 0 : index
    %c64_70 = arith.constant 64 : index
    %c0_71 = arith.constant 0 : index
    %126 = vector.load %arg2[%c0_68, %c0_69, %c64_70, %c0_71] : memref<2x3x128x128xf32, #tpu.memory_space<vmem>>, vector<1x1x32x128xf32>
    %127 = vector.shape_cast %126 : vector<1x1x32x128xf32> to vector<32x128xf32>
    %c0_72 = arith.constant 0 : index
    %c1_73 = arith.constant 1 : index
    %c64_74 = arith.constant 64 : index
    %c0_75 = arith.constant 0 : index
    %128 = vector.load %arg2[%c0_72, %c1_73, %c64_74, %c0_75] : memref<2x3x128x128xf32, #tpu.memory_space<vmem>>, vector<1x1x32x128xf32>
    %129 = vector.shape_cast %128 : vector<1x1x32x128xf32> to vector<32x128xf32>
    %c0_76 = arith.constant 0 : index
    %c2_77 = arith.constant 2 : index
    %c64_78 = arith.constant 64 : index
    %c0_79 = arith.constant 0 : index
    %130 = vector.load %arg2[%c0_76, %c2_77, %c64_78, %c0_79] : memref<2x3x128x128xf32, #tpu.memory_space<vmem>>, vector<1x1x32x128xf32>
    %131 = vector.shape_cast %130 : vector<1x1x32x128xf32> to vector<32x128xf32>
    %132 = vector.broadcast %2 : f32 to vector<32x128xf32>
    %133 = arith.mulf %127, %132 : vector<32x128xf32>
    %134 = vector.broadcast %5 : f32 to vector<32x128xf32>
    %135 = arith.mulf %129, %134 : vector<32x128xf32>
    %136 = arith.addf %133, %135 : vector<32x128xf32>
    %137 = vector.broadcast %8 : f32 to vector<32x128xf32>
    %138 = arith.mulf %131, %137 : vector<32x128xf32>
    %139 = arith.addf %136, %138 : vector<32x128xf32>
    %c0_80 = arith.constant 0 : index
    %c0_81 = arith.constant 0 : index
    %c64_82 = arith.constant 64 : index
    %c0_83 = arith.constant 0 : index
    %140 = vector.load %arg3[%c0_80, %c0_81, %c64_82, %c0_83] : memref<2x3x128x128xf32, #tpu.memory_space<vmem>>, vector<1x1x32x128xf32>
    %141 = vector.shape_cast %140 : vector<1x1x32x128xf32> to vector<32x128xf32>
    %142 = arith.subf %139, %141 : vector<32x128xf32>
    %143 = arith.mulf %142, %142 : vector<32x128xf32>
    %144 = vector.broadcast %3 : f32 to vector<32x128xf32>
    %145 = arith.mulf %127, %144 : vector<32x128xf32>
    %146 = vector.broadcast %6 : f32 to vector<32x128xf32>
    %147 = arith.mulf %129, %146 : vector<32x128xf32>
    %148 = arith.addf %145, %147 : vector<32x128xf32>
    %149 = vector.broadcast %9 : f32 to vector<32x128xf32>
    %150 = arith.mulf %131, %149 : vector<32x128xf32>
    %151 = arith.addf %148, %150 : vector<32x128xf32>
    %c0_84 = arith.constant 0 : index
    %c1_85 = arith.constant 1 : index
    %c64_86 = arith.constant 64 : index
    %c0_87 = arith.constant 0 : index
    %152 = vector.load %arg3[%c0_84, %c1_85, %c64_86, %c0_87] : memref<2x3x128x128xf32, #tpu.memory_space<vmem>>, vector<1x1x32x128xf32>
    %153 = vector.shape_cast %152 : vector<1x1x32x128xf32> to vector<32x128xf32>
    %154 = arith.subf %151, %153 : vector<32x128xf32>
    %155 = arith.mulf %154, %154 : vector<32x128xf32>
    %156 = arith.addf %143, %155 : vector<32x128xf32>
    %157 = vector.broadcast %4 : f32 to vector<32x128xf32>
    %158 = arith.mulf %127, %157 : vector<32x128xf32>
    %159 = vector.broadcast %7 : f32 to vector<32x128xf32>
    %160 = arith.mulf %129, %159 : vector<32x128xf32>
    %161 = arith.addf %158, %160 : vector<32x128xf32>
    %162 = vector.broadcast %10 : f32 to vector<32x128xf32>
    %163 = arith.mulf %131, %162 : vector<32x128xf32>
    %164 = arith.addf %161, %163 : vector<32x128xf32>
    %c0_88 = arith.constant 0 : index
    %c2_89 = arith.constant 2 : index
    %c64_90 = arith.constant 64 : index
    %c0_91 = arith.constant 0 : index
    %165 = vector.load %arg3[%c0_88, %c2_89, %c64_90, %c0_91] : memref<2x3x128x128xf32, #tpu.memory_space<vmem>>, vector<1x1x32x128xf32>
    %166 = vector.shape_cast %165 : vector<1x1x32x128xf32> to vector<32x128xf32>
    %167 = arith.subf %164, %166 : vector<32x128xf32>
    %168 = arith.mulf %167, %167 : vector<32x128xf32>
    %169 = arith.addf %156, %168 : vector<32x128xf32>
    %170 = arith.mulf %169, %125 : vector<32x128xf32>
    %171 = arith.addf %117, %170 : vector<32x128xf32>
    %172 = arith.addf %118, %125 : vector<32x128xf32>
    %c0_92 = arith.constant 0 : index
    %c0_93 = arith.constant 0 : index
    %c96 = arith.constant 96 : index
    %c0_94 = arith.constant 0 : index
    %173 = vector.load %arg4[%c0_92, %c0_93, %c96, %c0_94] : memref<2x1x128x128xf32, #tpu.memory_space<vmem>>, vector<1x1x32x128xf32>
    %174 = vector.shape_cast %173 : vector<1x1x32x128xf32> to vector<32x128xf32>
    %cst_95 = arith.constant 0.899999976 : f32
    %175 = vector.broadcast %cst_95 : f32 to vector<32x128xf32>
    %176 = arith.cmpf ogt, %174, %175 : vector<32x128xf32>
    %cst_96 = arith.constant 1.000000e+00 : f32
    %cst_97 = arith.constant 0.000000e+00 : f32
    %177 = vector.broadcast %cst_96 : f32 to vector<32x128xf32>
    %178 = vector.broadcast %cst_97 : f32 to vector<32x128xf32>
    %179 = arith.select %176, %177, %178 : vector<32x128xi1>, vector<32x128xf32>
    %c0_98 = arith.constant 0 : index
    %c0_99 = arith.constant 0 : index
    %c96_100 = arith.constant 96 : index
    %c0_101 = arith.constant 0 : index
    %180 = vector.load %arg2[%c0_98, %c0_99, %c96_100, %c0_101] : memref<2x3x128x128xf32, #tpu.memory_space<vmem>>, vector<1x1x32x128xf32>
    %181 = vector.shape_cast %180 : vector<1x1x32x128xf32> to vector<32x128xf32>
    %c0_102 = arith.constant 0 : index
    %c1_103 = arith.constant 1 : index
    %c96_104 = arith.constant 96 : index
    %c0_105 = arith.constant 0 : index
    %182 = vector.load %arg2[%c0_102, %c1_103, %c96_104, %c0_105] : memref<2x3x128x128xf32, #tpu.memory_space<vmem>>, vector<1x1x32x128xf32>
    %183 = vector.shape_cast %182 : vector<1x1x32x128xf32> to vector<32x128xf32>
    %c0_106 = arith.constant 0 : index
    %c2_107 = arith.constant 2 : index
    %c96_108 = arith.constant 96 : index
    %c0_109 = arith.constant 0 : index
    %184 = vector.load %arg2[%c0_106, %c2_107, %c96_108, %c0_109] : memref<2x3x128x128xf32, #tpu.memory_space<vmem>>, vector<1x1x32x128xf32>
    %185 = vector.shape_cast %184 : vector<1x1x32x128xf32> to vector<32x128xf32>
    %186 = vector.broadcast %2 : f32 to vector<32x128xf32>
    %187 = arith.mulf %181, %186 : vector<32x128xf32>
    %188 = vector.broadcast %5 : f32 to vector<32x128xf32>
    %189 = arith.mulf %183, %188 : vector<32x128xf32>
    %190 = arith.addf %187, %189 : vector<32x128xf32>
    %191 = vector.broadcast %8 : f32 to vector<32x128xf32>
    %192 = arith.mulf %185, %191 : vector<32x128xf32>
    %193 = arith.addf %190, %192 : vector<32x128xf32>
    %c0_110 = arith.constant 0 : index
    %c0_111 = arith.constant 0 : index
    %c96_112 = arith.constant 96 : index
    %c0_113 = arith.constant 0 : index
    %194 = vector.load %arg3[%c0_110, %c0_111, %c96_112, %c0_113] : memref<2x3x128x128xf32, #tpu.memory_space<vmem>>, vector<1x1x32x128xf32>
    %195 = vector.shape_cast %194 : vector<1x1x32x128xf32> to vector<32x128xf32>
    %196 = arith.subf %193, %195 : vector<32x128xf32>
    %197 = arith.mulf %196, %196 : vector<32x128xf32>
    %198 = vector.broadcast %3 : f32 to vector<32x128xf32>
    %199 = arith.mulf %181, %198 : vector<32x128xf32>
    %200 = vector.broadcast %6 : f32 to vector<32x128xf32>
    %201 = arith.mulf %183, %200 : vector<32x128xf32>
    %202 = arith.addf %199, %201 : vector<32x128xf32>
    %203 = vector.broadcast %9 : f32 to vector<32x128xf32>
    %204 = arith.mulf %185, %203 : vector<32x128xf32>
    %205 = arith.addf %202, %204 : vector<32x128xf32>
    %c0_114 = arith.constant 0 : index
    %c1_115 = arith.constant 1 : index
    %c96_116 = arith.constant 96 : index
    %c0_117 = arith.constant 0 : index
    %206 = vector.load %arg3[%c0_114, %c1_115, %c96_116, %c0_117] : memref<2x3x128x128xf32, #tpu.memory_space<vmem>>, vector<1x1x32x128xf32>
    %207 = vector.shape_cast %206 : vector<1x1x32x128xf32> to vector<32x128xf32>
    %208 = arith.subf %205, %207 : vector<32x128xf32>
    %209 = arith.mulf %208, %208 : vector<32x128xf32>
    %210 = arith.addf %197, %209 : vector<32x128xf32>
    %211 = vector.broadcast %4 : f32 to vector<32x128xf32>
    %212 = arith.mulf %181, %211 : vector<32x128xf32>
    %213 = vector.broadcast %7 : f32 to vector<32x128xf32>
    %214 = arith.mulf %183, %213 : vector<32x128xf32>
    %215 = arith.addf %212, %214 : vector<32x128xf32>
    %216 = vector.broadcast %10 : f32 to vector<32x128xf32>
    %217 = arith.mulf %185, %216 : vector<32x128xf32>
    %218 = arith.addf %215, %217 : vector<32x128xf32>
    %c0_118 = arith.constant 0 : index
    %c2_119 = arith.constant 2 : index
    %c96_120 = arith.constant 96 : index
    %c0_121 = arith.constant 0 : index
    %219 = vector.load %arg3[%c0_118, %c2_119, %c96_120, %c0_121] : memref<2x3x128x128xf32, #tpu.memory_space<vmem>>, vector<1x1x32x128xf32>
    %220 = vector.shape_cast %219 : vector<1x1x32x128xf32> to vector<32x128xf32>
    %221 = arith.subf %218, %220 : vector<32x128xf32>
    %222 = arith.mulf %221, %221 : vector<32x128xf32>
    %223 = arith.addf %210, %222 : vector<32x128xf32>
    %224 = arith.mulf %223, %179 : vector<32x128xf32>
    %225 = arith.addf %171, %224 : vector<32x128xf32>
    %226 = arith.addf %172, %179 : vector<32x128xf32>
    %c9 = arith.constant 9 : index
    %227 = memref.load %arg1[%c9] : memref<18xf32, #tpu.memory_space<smem>>
    %c10 = arith.constant 10 : index
    %228 = memref.load %arg1[%c10] : memref<18xf32, #tpu.memory_space<smem>>
    %c11 = arith.constant 11 : index
    %229 = memref.load %arg1[%c11] : memref<18xf32, #tpu.memory_space<smem>>
    %c12 = arith.constant 12 : index
    %230 = memref.load %arg1[%c12] : memref<18xf32, #tpu.memory_space<smem>>
    %c13 = arith.constant 13 : index
    %231 = memref.load %arg1[%c13] : memref<18xf32, #tpu.memory_space<smem>>
    %c14 = arith.constant 14 : index
    %232 = memref.load %arg1[%c14] : memref<18xf32, #tpu.memory_space<smem>>
    %c15 = arith.constant 15 : index
    %233 = memref.load %arg1[%c15] : memref<18xf32, #tpu.memory_space<smem>>
    %c16 = arith.constant 16 : index
    %234 = memref.load %arg1[%c16] : memref<18xf32, #tpu.memory_space<smem>>
    %c17 = arith.constant 17 : index
    %235 = memref.load %arg1[%c17] : memref<18xf32, #tpu.memory_space<smem>>
    %c1_122 = arith.constant 1 : index
    %c0_123 = arith.constant 0 : index
    %c0_124 = arith.constant 0 : index
    %c0_125 = arith.constant 0 : index
    %236 = vector.load %arg4[%c1_122, %c0_123, %c0_124, %c0_125] : memref<2x1x128x128xf32, #tpu.memory_space<vmem>>, vector<1x1x32x128xf32>
    %237 = vector.shape_cast %236 : vector<1x1x32x128xf32> to vector<32x128xf32>
    %cst_126 = arith.constant 0.899999976 : f32
    %238 = vector.broadcast %cst_126 : f32 to vector<32x128xf32>
    %239 = arith.cmpf ogt, %237, %238 : vector<32x128xf32>
    %cst_127 = arith.constant 1.000000e+00 : f32
    %cst_128 = arith.constant 0.000000e+00 : f32
    %240 = vector.broadcast %cst_127 : f32 to vector<32x128xf32>
    %241 = vector.broadcast %cst_128 : f32 to vector<32x128xf32>
    %242 = arith.select %239, %240, %241 : vector<32x128xi1>, vector<32x128xf32>
    %c1_129 = arith.constant 1 : index
    %c0_130 = arith.constant 0 : index
    %c0_131 = arith.constant 0 : index
    %c0_132 = arith.constant 0 : index
    %243 = vector.load %arg2[%c1_129, %c0_130, %c0_131, %c0_132] : memref<2x3x128x128xf32, #tpu.memory_space<vmem>>, vector<1x1x32x128xf32>
    %244 = vector.shape_cast %243 : vector<1x1x32x128xf32> to vector<32x128xf32>
    %c1_133 = arith.constant 1 : index
    %c1_134 = arith.constant 1 : index
    %c0_135 = arith.constant 0 : index
    %c0_136 = arith.constant 0 : index
    %245 = vector.load %arg2[%c1_133, %c1_134, %c0_135, %c0_136] : memref<2x3x128x128xf32, #tpu.memory_space<vmem>>, vector<1x1x32x128xf32>
    %246 = vector.shape_cast %245 : vector<1x1x32x128xf32> to vector<32x128xf32>
    %c1_137 = arith.constant 1 : index
    %c2_138 = arith.constant 2 : index
    %c0_139 = arith.constant 0 : index
    %c0_140 = arith.constant 0 : index
    %247 = vector.load %arg2[%c1_137, %c2_138, %c0_139, %c0_140] : memref<2x3x128x128xf32, #tpu.memory_space<vmem>>, vector<1x1x32x128xf32>
    %248 = vector.shape_cast %247 : vector<1x1x32x128xf32> to vector<32x128xf32>
    %249 = vector.broadcast %227 : f32 to vector<32x128xf32>
    %250 = arith.mulf %244, %249 : vector<32x128xf32>
    %251 = vector.broadcast %230 : f32 to vector<32x128xf32>
    %252 = arith.mulf %246, %251 : vector<32x128xf32>
    %253 = arith.addf %250, %252 : vector<32x128xf32>
    %254 = vector.broadcast %233 : f32 to vector<32x128xf32>
    %255 = arith.mulf %248, %254 : vector<32x128xf32>
    %256 = arith.addf %253, %255 : vector<32x128xf32>
    %c1_141 = arith.constant 1 : index
    %c0_142 = arith.constant 0 : index
    %c0_143 = arith.constant 0 : index
    %c0_144 = arith.constant 0 : index
    %257 = vector.load %arg3[%c1_141, %c0_142, %c0_143, %c0_144] : memref<2x3x128x128xf32, #tpu.memory_space<vmem>>, vector<1x1x32x128xf32>
    %258 = vector.shape_cast %257 : vector<1x1x32x128xf32> to vector<32x128xf32>
    %259 = arith.subf %256, %258 : vector<32x128xf32>
    %260 = arith.mulf %259, %259 : vector<32x128xf32>
    %261 = vector.broadcast %228 : f32 to vector<32x128xf32>
    %262 = arith.mulf %244, %261 : vector<32x128xf32>
    %263 = vector.broadcast %231 : f32 to vector<32x128xf32>
    %264 = arith.mulf %246, %263 : vector<32x128xf32>
    %265 = arith.addf %262, %264 : vector<32x128xf32>
    %266 = vector.broadcast %234 : f32 to vector<32x128xf32>
    %267 = arith.mulf %248, %266 : vector<32x128xf32>
    %268 = arith.addf %265, %267 : vector<32x128xf32>
    %c1_145 = arith.constant 1 : index
    %c1_146 = arith.constant 1 : index
    %c0_147 = arith.constant 0 : index
    %c0_148 = arith.constant 0 : index
    %269 = vector.load %arg3[%c1_145, %c1_146, %c0_147, %c0_148] : memref<2x3x128x128xf32, #tpu.memory_space<vmem>>, vector<1x1x32x128xf32>
    %270 = vector.shape_cast %269 : vector<1x1x32x128xf32> to vector<32x128xf32>
    %271 = arith.subf %268, %270 : vector<32x128xf32>
    %272 = arith.mulf %271, %271 : vector<32x128xf32>
    %273 = arith.addf %260, %272 : vector<32x128xf32>
    %274 = vector.broadcast %229 : f32 to vector<32x128xf32>
    %275 = arith.mulf %244, %274 : vector<32x128xf32>
    %276 = vector.broadcast %232 : f32 to vector<32x128xf32>
    %277 = arith.mulf %246, %276 : vector<32x128xf32>
    %278 = arith.addf %275, %277 : vector<32x128xf32>
    %279 = vector.broadcast %235 : f32 to vector<32x128xf32>
    %280 = arith.mulf %248, %279 : vector<32x128xf32>
    %281 = arith.addf %278, %280 : vector<32x128xf32>
    %c1_149 = arith.constant 1 : index
    %c2_150 = arith.constant 2 : index
    %c0_151 = arith.constant 0 : index
    %c0_152 = arith.constant 0 : index
    %282 = vector.load %arg3[%c1_149, %c2_150, %c0_151, %c0_152] : memref<2x3x128x128xf32, #tpu.memory_space<vmem>>, vector<1x1x32x128xf32>
    %283 = vector.shape_cast %282 : vector<1x1x32x128xf32> to vector<32x128xf32>
    %284 = arith.subf %281, %283 : vector<32x128xf32>
    %285 = arith.mulf %284, %284 : vector<32x128xf32>
    %286 = arith.addf %273, %285 : vector<32x128xf32>
    %287 = arith.mulf %286, %242 : vector<32x128xf32>
    %288 = arith.addf %225, %287 : vector<32x128xf32>
    %289 = arith.addf %226, %242 : vector<32x128xf32>
    %c1_153 = arith.constant 1 : index
    %c0_154 = arith.constant 0 : index
    %c32_155 = arith.constant 32 : index
    %c0_156 = arith.constant 0 : index
    %290 = vector.load %arg4[%c1_153, %c0_154, %c32_155, %c0_156] : memref<2x1x128x128xf32, #tpu.memory_space<vmem>>, vector<1x1x32x128xf32>
    %291 = vector.shape_cast %290 : vector<1x1x32x128xf32> to vector<32x128xf32>
    %cst_157 = arith.constant 0.899999976 : f32
    %292 = vector.broadcast %cst_157 : f32 to vector<32x128xf32>
    %293 = arith.cmpf ogt, %291, %292 : vector<32x128xf32>
    %cst_158 = arith.constant 1.000000e+00 : f32
    %cst_159 = arith.constant 0.000000e+00 : f32
    %294 = vector.broadcast %cst_158 : f32 to vector<32x128xf32>
    %295 = vector.broadcast %cst_159 : f32 to vector<32x128xf32>
    %296 = arith.select %293, %294, %295 : vector<32x128xi1>, vector<32x128xf32>
    %c1_160 = arith.constant 1 : index
    %c0_161 = arith.constant 0 : index
    %c32_162 = arith.constant 32 : index
    %c0_163 = arith.constant 0 : index
    %297 = vector.load %arg2[%c1_160, %c0_161, %c32_162, %c0_163] : memref<2x3x128x128xf32, #tpu.memory_space<vmem>>, vector<1x1x32x128xf32>
    %298 = vector.shape_cast %297 : vector<1x1x32x128xf32> to vector<32x128xf32>
    %c1_164 = arith.constant 1 : index
    %c1_165 = arith.constant 1 : index
    %c32_166 = arith.constant 32 : index
    %c0_167 = arith.constant 0 : index
    %299 = vector.load %arg2[%c1_164, %c1_165, %c32_166, %c0_167] : memref<2x3x128x128xf32, #tpu.memory_space<vmem>>, vector<1x1x32x128xf32>
    %300 = vector.shape_cast %299 : vector<1x1x32x128xf32> to vector<32x128xf32>
    %c1_168 = arith.constant 1 : index
    %c2_169 = arith.constant 2 : index
    %c32_170 = arith.constant 32 : index
    %c0_171 = arith.constant 0 : index
    %301 = vector.load %arg2[%c1_168, %c2_169, %c32_170, %c0_171] : memref<2x3x128x128xf32, #tpu.memory_space<vmem>>, vector<1x1x32x128xf32>
    %302 = vector.shape_cast %301 : vector<1x1x32x128xf32> to vector<32x128xf32>
    %303 = vector.broadcast %227 : f32 to vector<32x128xf32>
    %304 = arith.mulf %298, %303 : vector<32x128xf32>
    %305 = vector.broadcast %230 : f32 to vector<32x128xf32>
    %306 = arith.mulf %300, %305 : vector<32x128xf32>
    %307 = arith.addf %304, %306 : vector<32x128xf32>
    %308 = vector.broadcast %233 : f32 to vector<32x128xf32>
    %309 = arith.mulf %302, %308 : vector<32x128xf32>
    %310 = arith.addf %307, %309 : vector<32x128xf32>
    %c1_172 = arith.constant 1 : index
    %c0_173 = arith.constant 0 : index
    %c32_174 = arith.constant 32 : index
    %c0_175 = arith.constant 0 : index
    %311 = vector.load %arg3[%c1_172, %c0_173, %c32_174, %c0_175] : memref<2x3x128x128xf32, #tpu.memory_space<vmem>>, vector<1x1x32x128xf32>
    %312 = vector.shape_cast %311 : vector<1x1x32x128xf32> to vector<32x128xf32>
    %313 = arith.subf %310, %312 : vector<32x128xf32>
    %314 = arith.mulf %313, %313 : vector<32x128xf32>
    %315 = vector.broadcast %228 : f32 to vector<32x128xf32>
    %316 = arith.mulf %298, %315 : vector<32x128xf32>
    %317 = vector.broadcast %231 : f32 to vector<32x128xf32>
    %318 = arith.mulf %300, %317 : vector<32x128xf32>
    %319 = arith.addf %316, %318 : vector<32x128xf32>
    %320 = vector.broadcast %234 : f32 to vector<32x128xf32>
    %321 = arith.mulf %302, %320 : vector<32x128xf32>
    %322 = arith.addf %319, %321 : vector<32x128xf32>
    %c1_176 = arith.constant 1 : index
    %c1_177 = arith.constant 1 : index
    %c32_178 = arith.constant 32 : index
    %c0_179 = arith.constant 0 : index
    %323 = vector.load %arg3[%c1_176, %c1_177, %c32_178, %c0_179] : memref<2x3x128x128xf32, #tpu.memory_space<vmem>>, vector<1x1x32x128xf32>
    %324 = vector.shape_cast %323 : vector<1x1x32x128xf32> to vector<32x128xf32>
    %325 = arith.subf %322, %324 : vector<32x128xf32>
    %326 = arith.mulf %325, %325 : vector<32x128xf32>
    %327 = arith.addf %314, %326 : vector<32x128xf32>
    %328 = vector.broadcast %229 : f32 to vector<32x128xf32>
    %329 = arith.mulf %298, %328 : vector<32x128xf32>
    %330 = vector.broadcast %232 : f32 to vector<32x128xf32>
    %331 = arith.mulf %300, %330 : vector<32x128xf32>
    %332 = arith.addf %329, %331 : vector<32x128xf32>
    %333 = vector.broadcast %235 : f32 to vector<32x128xf32>
    %334 = arith.mulf %302, %333 : vector<32x128xf32>
    %335 = arith.addf %332, %334 : vector<32x128xf32>
    %c1_180 = arith.constant 1 : index
    %c2_181 = arith.constant 2 : index
    %c32_182 = arith.constant 32 : index
    %c0_183 = arith.constant 0 : index
    %336 = vector.load %arg3[%c1_180, %c2_181, %c32_182, %c0_183] : memref<2x3x128x128xf32, #tpu.memory_space<vmem>>, vector<1x1x32x128xf32>
    %337 = vector.shape_cast %336 : vector<1x1x32x128xf32> to vector<32x128xf32>
    %338 = arith.subf %335, %337 : vector<32x128xf32>
    %339 = arith.mulf %338, %338 : vector<32x128xf32>
    %340 = arith.addf %327, %339 : vector<32x128xf32>
    %341 = arith.mulf %340, %296 : vector<32x128xf32>
    %342 = arith.addf %288, %341 : vector<32x128xf32>
    %343 = arith.addf %289, %296 : vector<32x128xf32>
    %c1_184 = arith.constant 1 : index
    %c0_185 = arith.constant 0 : index
    %c64_186 = arith.constant 64 : index
    %c0_187 = arith.constant 0 : index
    %344 = vector.load %arg4[%c1_184, %c0_185, %c64_186, %c0_187] : memref<2x1x128x128xf32, #tpu.memory_space<vmem>>, vector<1x1x32x128xf32>
    %345 = vector.shape_cast %344 : vector<1x1x32x128xf32> to vector<32x128xf32>
    %cst_188 = arith.constant 0.899999976 : f32
    %346 = vector.broadcast %cst_188 : f32 to vector<32x128xf32>
    %347 = arith.cmpf ogt, %345, %346 : vector<32x128xf32>
    %cst_189 = arith.constant 1.000000e+00 : f32
    %cst_190 = arith.constant 0.000000e+00 : f32
    %348 = vector.broadcast %cst_189 : f32 to vector<32x128xf32>
    %349 = vector.broadcast %cst_190 : f32 to vector<32x128xf32>
    %350 = arith.select %347, %348, %349 : vector<32x128xi1>, vector<32x128xf32>
    %c1_191 = arith.constant 1 : index
    %c0_192 = arith.constant 0 : index
    %c64_193 = arith.constant 64 : index
    %c0_194 = arith.constant 0 : index
    %351 = vector.load %arg2[%c1_191, %c0_192, %c64_193, %c0_194] : memref<2x3x128x128xf32, #tpu.memory_space<vmem>>, vector<1x1x32x128xf32>
    %352 = vector.shape_cast %351 : vector<1x1x32x128xf32> to vector<32x128xf32>
    %c1_195 = arith.constant 1 : index
    %c1_196 = arith.constant 1 : index
    %c64_197 = arith.constant 64 : index
    %c0_198 = arith.constant 0 : index
    %353 = vector.load %arg2[%c1_195, %c1_196, %c64_197, %c0_198] : memref<2x3x128x128xf32, #tpu.memory_space<vmem>>, vector<1x1x32x128xf32>
    %354 = vector.shape_cast %353 : vector<1x1x32x128xf32> to vector<32x128xf32>
    %c1_199 = arith.constant 1 : index
    %c2_200 = arith.constant 2 : index
    %c64_201 = arith.constant 64 : index
    %c0_202 = arith.constant 0 : index
    %355 = vector.load %arg2[%c1_199, %c2_200, %c64_201, %c0_202] : memref<2x3x128x128xf32, #tpu.memory_space<vmem>>, vector<1x1x32x128xf32>
    %356 = vector.shape_cast %355 : vector<1x1x32x128xf32> to vector<32x128xf32>
    %357 = vector.broadcast %227 : f32 to vector<32x128xf32>
    %358 = arith.mulf %352, %357 : vector<32x128xf32>
    %359 = vector.broadcast %230 : f32 to vector<32x128xf32>
    %360 = arith.mulf %354, %359 : vector<32x128xf32>
    %361 = arith.addf %358, %360 : vector<32x128xf32>
    %362 = vector.broadcast %233 : f32 to vector<32x128xf32>
    %363 = arith.mulf %356, %362 : vector<32x128xf32>
    %364 = arith.addf %361, %363 : vector<32x128xf32>
    %c1_203 = arith.constant 1 : index
    %c0_204 = arith.constant 0 : index
    %c64_205 = arith.constant 64 : index
    %c0_206 = arith.constant 0 : index
    %365 = vector.load %arg3[%c1_203, %c0_204, %c64_205, %c0_206] : memref<2x3x128x128xf32, #tpu.memory_space<vmem>>, vector<1x1x32x128xf32>
    %366 = vector.shape_cast %365 : vector<1x1x32x128xf32> to vector<32x128xf32>
    %367 = arith.subf %364, %366 : vector<32x128xf32>
    %368 = arith.mulf %367, %367 : vector<32x128xf32>
    %369 = vector.broadcast %228 : f32 to vector<32x128xf32>
    %370 = arith.mulf %352, %369 : vector<32x128xf32>
    %371 = vector.broadcast %231 : f32 to vector<32x128xf32>
    %372 = arith.mulf %354, %371 : vector<32x128xf32>
    %373 = arith.addf %370, %372 : vector<32x128xf32>
    %374 = vector.broadcast %234 : f32 to vector<32x128xf32>
    %375 = arith.mulf %356, %374 : vector<32x128xf32>
    %376 = arith.addf %373, %375 : vector<32x128xf32>
    %c1_207 = arith.constant 1 : index
    %c1_208 = arith.constant 1 : index
    %c64_209 = arith.constant 64 : index
    %c0_210 = arith.constant 0 : index
    %377 = vector.load %arg3[%c1_207, %c1_208, %c64_209, %c0_210] : memref<2x3x128x128xf32, #tpu.memory_space<vmem>>, vector<1x1x32x128xf32>
    %378 = vector.shape_cast %377 : vector<1x1x32x128xf32> to vector<32x128xf32>
    %379 = arith.subf %376, %378 : vector<32x128xf32>
    %380 = arith.mulf %379, %379 : vector<32x128xf32>
    %381 = arith.addf %368, %380 : vector<32x128xf32>
    %382 = vector.broadcast %229 : f32 to vector<32x128xf32>
    %383 = arith.mulf %352, %382 : vector<32x128xf32>
    %384 = vector.broadcast %232 : f32 to vector<32x128xf32>
    %385 = arith.mulf %354, %384 : vector<32x128xf32>
    %386 = arith.addf %383, %385 : vector<32x128xf32>
    %387 = vector.broadcast %235 : f32 to vector<32x128xf32>
    %388 = arith.mulf %356, %387 : vector<32x128xf32>
    %389 = arith.addf %386, %388 : vector<32x128xf32>
    %c1_211 = arith.constant 1 : index
    %c2_212 = arith.constant 2 : index
    %c64_213 = arith.constant 64 : index
    %c0_214 = arith.constant 0 : index
    %390 = vector.load %arg3[%c1_211, %c2_212, %c64_213, %c0_214] : memref<2x3x128x128xf32, #tpu.memory_space<vmem>>, vector<1x1x32x128xf32>
    %391 = vector.shape_cast %390 : vector<1x1x32x128xf32> to vector<32x128xf32>
    %392 = arith.subf %389, %391 : vector<32x128xf32>
    %393 = arith.mulf %392, %392 : vector<32x128xf32>
    %394 = arith.addf %381, %393 : vector<32x128xf32>
    %395 = arith.mulf %394, %350 : vector<32x128xf32>
    %396 = arith.addf %342, %395 : vector<32x128xf32>
    %397 = arith.addf %343, %350 : vector<32x128xf32>
    %c1_215 = arith.constant 1 : index
    %c0_216 = arith.constant 0 : index
    %c96_217 = arith.constant 96 : index
    %c0_218 = arith.constant 0 : index
    %398 = vector.load %arg4[%c1_215, %c0_216, %c96_217, %c0_218] : memref<2x1x128x128xf32, #tpu.memory_space<vmem>>, vector<1x1x32x128xf32>
    %399 = vector.shape_cast %398 : vector<1x1x32x128xf32> to vector<32x128xf32>
    %cst_219 = arith.constant 0.899999976 : f32
    %400 = vector.broadcast %cst_219 : f32 to vector<32x128xf32>
    %401 = arith.cmpf ogt, %399, %400 : vector<32x128xf32>
    %cst_220 = arith.constant 1.000000e+00 : f32
    %cst_221 = arith.constant 0.000000e+00 : f32
    %402 = vector.broadcast %cst_220 : f32 to vector<32x128xf32>
    %403 = vector.broadcast %cst_221 : f32 to vector<32x128xf32>
    %404 = arith.select %401, %402, %403 : vector<32x128xi1>, vector<32x128xf32>
    %c1_222 = arith.constant 1 : index
    %c0_223 = arith.constant 0 : index
    %c96_224 = arith.constant 96 : index
    %c0_225 = arith.constant 0 : index
    %405 = vector.load %arg2[%c1_222, %c0_223, %c96_224, %c0_225] : memref<2x3x128x128xf32, #tpu.memory_space<vmem>>, vector<1x1x32x128xf32>
    %406 = vector.shape_cast %405 : vector<1x1x32x128xf32> to vector<32x128xf32>
    %c1_226 = arith.constant 1 : index
    %c1_227 = arith.constant 1 : index
    %c96_228 = arith.constant 96 : index
    %c0_229 = arith.constant 0 : index
    %407 = vector.load %arg2[%c1_226, %c1_227, %c96_228, %c0_229] : memref<2x3x128x128xf32, #tpu.memory_space<vmem>>, vector<1x1x32x128xf32>
    %408 = vector.shape_cast %407 : vector<1x1x32x128xf32> to vector<32x128xf32>
    %c1_230 = arith.constant 1 : index
    %c2_231 = arith.constant 2 : index
    %c96_232 = arith.constant 96 : index
    %c0_233 = arith.constant 0 : index
    %409 = vector.load %arg2[%c1_230, %c2_231, %c96_232, %c0_233] : memref<2x3x128x128xf32, #tpu.memory_space<vmem>>, vector<1x1x32x128xf32>
    %410 = vector.shape_cast %409 : vector<1x1x32x128xf32> to vector<32x128xf32>
    %411 = vector.broadcast %227 : f32 to vector<32x128xf32>
    %412 = arith.mulf %406, %411 : vector<32x128xf32>
    %413 = vector.broadcast %230 : f32 to vector<32x128xf32>
    %414 = arith.mulf %408, %413 : vector<32x128xf32>
    %415 = arith.addf %412, %414 : vector<32x128xf32>
    %416 = vector.broadcast %233 : f32 to vector<32x128xf32>
    %417 = arith.mulf %410, %416 : vector<32x128xf32>
    %418 = arith.addf %415, %417 : vector<32x128xf32>
    %c1_234 = arith.constant 1 : index
    %c0_235 = arith.constant 0 : index
    %c96_236 = arith.constant 96 : index
    %c0_237 = arith.constant 0 : index
    %419 = vector.load %arg3[%c1_234, %c0_235, %c96_236, %c0_237] : memref<2x3x128x128xf32, #tpu.memory_space<vmem>>, vector<1x1x32x128xf32>
    %420 = vector.shape_cast %419 : vector<1x1x32x128xf32> to vector<32x128xf32>
    %421 = arith.subf %418, %420 : vector<32x128xf32>
    %422 = arith.mulf %421, %421 : vector<32x128xf32>
    %423 = vector.broadcast %228 : f32 to vector<32x128xf32>
    %424 = arith.mulf %406, %423 : vector<32x128xf32>
    %425 = vector.broadcast %231 : f32 to vector<32x128xf32>
    %426 = arith.mulf %408, %425 : vector<32x128xf32>
    %427 = arith.addf %424, %426 : vector<32x128xf32>
    %428 = vector.broadcast %234 : f32 to vector<32x128xf32>
    %429 = arith.mulf %410, %428 : vector<32x128xf32>
    %430 = arith.addf %427, %429 : vector<32x128xf32>
    %c1_238 = arith.constant 1 : index
    %c1_239 = arith.constant 1 : index
    %c96_240 = arith.constant 96 : index
    %c0_241 = arith.constant 0 : index
    %431 = vector.load %arg3[%c1_238, %c1_239, %c96_240, %c0_241] : memref<2x3x128x128xf32, #tpu.memory_space<vmem>>, vector<1x1x32x128xf32>
    %432 = vector.shape_cast %431 : vector<1x1x32x128xf32> to vector<32x128xf32>
    %433 = arith.subf %430, %432 : vector<32x128xf32>
    %434 = arith.mulf %433, %433 : vector<32x128xf32>
    %435 = arith.addf %422, %434 : vector<32x128xf32>
    %436 = vector.broadcast %229 : f32 to vector<32x128xf32>
    %437 = arith.mulf %406, %436 : vector<32x128xf32>
    %438 = vector.broadcast %232 : f32 to vector<32x128xf32>
    %439 = arith.mulf %408, %438 : vector<32x128xf32>
    %440 = arith.addf %437, %439 : vector<32x128xf32>
    %441 = vector.broadcast %235 : f32 to vector<32x128xf32>
    %442 = arith.mulf %410, %441 : vector<32x128xf32>
    %443 = arith.addf %440, %442 : vector<32x128xf32>
    %c1_242 = arith.constant 1 : index
    %c2_243 = arith.constant 2 : index
    %c96_244 = arith.constant 96 : index
    %c0_245 = arith.constant 0 : index
    %444 = vector.load %arg3[%c1_242, %c2_243, %c96_244, %c0_245] : memref<2x3x128x128xf32, #tpu.memory_space<vmem>>, vector<1x1x32x128xf32>
    %445 = vector.shape_cast %444 : vector<1x1x32x128xf32> to vector<32x128xf32>
    %446 = arith.subf %443, %445 : vector<32x128xf32>
    %447 = arith.mulf %446, %446 : vector<32x128xf32>
    %448 = arith.addf %435, %447 : vector<32x128xf32>
    %449 = arith.mulf %448, %404 : vector<32x128xf32>
    %450 = arith.addf %396, %449 : vector<32x128xf32>
    %451 = arith.addf %397, %404 : vector<32x128xf32>
    %cst_246 = arith.constant 0.000000e+00 : f32
    %452 = vector.broadcast %cst_246 : f32 to vector<1x1xf32>
    %453 = vector.shape_cast %450 : vector<32x128xf32> to vector<1x32x128xf32>
    %cst_247 = arith.constant dense<0.000000e+00> : vector<1xf32>
    %454 = vector.multi_reduction <add>, %453, %cst_247 [1, 2] : vector<1x32x128xf32> to vector<1xf32>
    %455 = vector.shape_cast %454 : vector<1xf32> to vector<1x1x1xf32>
    %456 = vector.extract %455[0, 0, 0] : f32 from vector<1x1x1xf32>
    %457 = vector.broadcast %456 : f32 to vector<1x1xf32>
    %458 = arith.addf %452, %457 : vector<1x1xf32>
    %c0_248 = arith.constant 0 : index
    %c0_249 = arith.constant 0 : index
    %459 = vector.load %arg5[%c0_248, %c0_249] : memref<1x1xf32, #tpu.memory_space<vmem>>, vector<1x1xf32>
    tpu.vector_store %arg5[%c0_248, %c0_249], %458 {strides = array<i32>} : memref<1x1xf32, #tpu.memory_space<vmem>>, vector<1x1xf32>,
    %cst_250 = arith.constant 0.000000e+00 : f32
    %460 = vector.broadcast %cst_250 : f32 to vector<1x1xf32>
    %461 = vector.shape_cast %451 : vector<32x128xf32> to vector<1x32x128xf32>
    %cst_251 = arith.constant dense<0.000000e+00> : vector<1xf32>
    %462 = vector.multi_reduction <add>, %461, %cst_251 [1, 2] : vector<1x32x128xf32> to vector<1xf32>
    %463 = vector.shape_cast %462 : vector<1xf32> to vector<1x1x1xf32>
    %464 = vector.extract %463[0, 0, 0] : f32 from vector<1x1x1xf32>
    %465 = vector.broadcast %464 : f32 to vector<1x1xf32>
    %466 = arith.addf %460, %465 : vector<1x1xf32>
    %c0_252 = arith.constant 0 : index
    %c0_253 = arith.constant 0 : index
    %467 = vector.load %arg6[%c0_252, %c0_253] : memref<1x1xf32, #tpu.memory_space<vmem>>, vector<1x1xf32>
    tpu.vector_store %arg6[%c0_252, %c0_253], %466 {strides = array<i32>} : memref<1x1xf32, #tpu.memory_space<vmem>>, vector<1x1xf32>,
    return
  }
  func.func @transform_0(%arg0: i32) -> i32 {
    %c0_i32 = arith.constant 0 : i32
    %c0_i32_0 = arith.constant 0 : i32
    return %c0_i32 : i32
  }
  func.func @transform_1(%arg0: i32) -> (i32, i32, i32, i32) {
    %c0_i32 = arith.constant 0 : i32
    %c0_i32_0 = arith.constant 0 : i32
    %c0_i32_1 = arith.constant 0 : i32
    %c0_i32_2 = arith.constant 0 : i32
    %c0_i32_3 = arith.constant 0 : i32
    return %c0_i32, %c0_i32_0, %c0_i32_1, %c0_i32_2 : i32, i32, i32, i32
  }
  func.func @transform_2(%arg0: i32) -> (i32, i32, i32, i32) {
    %c0_i32 = arith.constant 0 : i32
    %c0_i32_0 = arith.constant 0 : i32
    %c0_i32_1 = arith.constant 0 : i32
    %c0_i32_2 = arith.constant 0 : i32
    %c0_i32_3 = arith.constant 0 : i32
    return %c0_i32, %c0_i32_0, %c0_i32_1, %c0_i32_2 : i32, i32, i32, i32
  }
  func.func @transform_3(%arg0: i32) -> (i32, i32, i32, i32) {
    %c0_i32 = arith.constant 0 : i32
    %c0_i32_0 = arith.constant 0 : i32
    %c0_i32_1 = arith.constant 0 : i32
    %c0_i32_2 = arith.constant 0 : i32
    %c0_i32_3 = arith.constant 0 : i32
    return %c0_i32, %c0_i32_0, %c0_i32_1, %c0_i32_2 : i32, i32, i32, i32
  }
  func.func @transform_4(%arg0: i32) -> (i32, i32) {
    %c0_i32 = arith.constant 0 : i32
    %c0_i32_0 = arith.constant 0 : i32
    %c0_i32_1 = arith.constant 0 : i32
    return %c0_i32, %c0_i32_0 : i32, i32
  }
  func.func @transform_5(%arg0: i32) -> (i32, i32) {
    %c0_i32 = arith.constant 0 : i32
    %c0_i32_0 = arith.constant 0 : i32
    %c0_i32_1 = arith.constant 0 : i32
    return %c0_i32, %c0_i32_0 : i32, i32
  }
}

</mosaic_0001>

<llo_original>
// kernel: forward.3
$region0: #{forward.3}
  #allocation0 [shape = 'u32[]', space=smem, size = 0x4, offset = 0x4, fixed_abs, tag = 'smem constant byte address 0x4 - core index']
  #allocation1 [shape = 'u32[144,128]{1,0:T(1,128)}', space=vmem, size = 0x12000, scoped, tag = 'internal scratch']
  %s0 = inlined_call_operand.vmem [shape: bf16[1280,128], index: 0, kind: input, shape index: {}]
  %s1 = inlined_call_operand.vmem [shape: f32[128,16], index: 1, kind: input, shape index: {}]
  %s2 = inlined_call_operand.vmem [shape: f32[160,1280], index: 2, kind: input, shape index: {}]
  %s3 = inlined_call_operand.vmem [shape: f32[160,16], index: 3, kind: output, shape index: {}]
  %s4 = sld [smem:[#allocation0]]
  $region22: #{forward.3} parent=0
    _
  %s6 = ssub.s32 1, %s4
  %s7 = scalar_select 0, %s6, %s4
  // Predicated region
  $region2: #{forward.3} parent=0 // pred_check
    _
  $region3: #{forward.3} parent=0 // pred_check_branch
    %9 = sbr.rel (0) target = $region5
  $region4: #{forward.3} parent=0 // pred_region
    _
  $region5: #{forward.3} parent=0 // pred_fallthru
    _
  // Predicated region
  $region6: #{forward.3} parent=0 // pred_check
    _
  $region7: #{forward.3} parent=0 // pred_check_branch
    %11 = sbr.rel (0) target = $region9
  $region8: #{forward.3} parent=0 // pred_region
    _
  $region9: #{forward.3} parent=0 // pred_fallthru
    _
  // Predicated region
  $region10: #{forward.3} parent=0 // pred_check
    _
  $region11: #{forward.3} parent=0 // pred_check_branch
    %13 = sbr.rel (0) target = $region13
  $region12: #{forward.3} parent=0 // pred_region
    _
  $region13: #{forward.3} parent=0 // pred_fallthru
    _
  %v14 = vld [vmem:[%s0] sm:$0xf]
  %v15 = vld [vmem:[%s0 + $0x4] sm:$0xf]
  %v16 = vld [vmem:[%s0 + $0x8] sm:$0xf]
  %v17 = vld [vmem:[%s0 + $0xc] sm:$0xf]
  %v18 = vld [vmem:[%s0 + $0x10] sm:$0xf]
  %v19 = vld [vmem:[%s0 + $0x14] sm:$0xf]
  %v20 = vld [vmem:[%s0 + $0x18] sm:$0xf]
  %v21 = vld [vmem:[%s0 + $0x1c] sm:$0xf]
  %v22 = vld [vmem:[%s0 + $0x20] sm:$0xf]
  %v23 = vld [vmem:[%s0 + $0x24] sm:$0xf]
  %v24 = vld [vmem:[%s0 + $0x28] sm:$0xf]
  %v25 = vld [vmem:[%s0 + $0x2c] sm:$0xf]
  %v26 = vld [vmem:[%s0 + $0x30] sm:$0xf]
  %v27 = vld [vmem:[%s0 + $0x34] sm:$0xf]
  %v28 = vld [vmem:[%s0 + $0x38] sm:$0xf]
  %v29 = vld [vmem:[%s0 + $0x3c] sm:$0xf]
  %v30 = vld [vmem:[%s0 + $0x40] sm:$0xf]
  %v31 = vld [vmem:[%s0 + $0x44] sm:$0xf]
  %v32 = vld [vmem:[%s0 + $0x48] sm:$0xf]
  %v33 = vld [vmem:[%s0 + $0x4c] sm:$0xf]
  %v34 = vld [vmem:[%s0 + $0x50] sm:$0xf]
  %v35 = vld [vmem:[%s0 + $0x54] sm:$0xf]
  %v36 = vld [vmem:[%s0 + $0x58] sm:$0xf]
  %v37 = vld [vmem:[%s0 + $0x5c] sm:$0xf]
  %v38 = vld [vmem:[%s0 + $0x60] sm:$0xf]
  %v39 = vld [vmem:[%s0 + $0x64] sm:$0xf]
  %v40 = vld [vmem:[%s0 + $0x68] sm:$0xf]
  %v41 = vld [vmem:[%s0 + $0x6c] sm:$0xf]
  %v42 = vld [vmem:[%s0 + $0x70] sm:$0xf]
  %v43 = vld [vmem:[%s0 + $0x74] sm:$0xf]
  %v44 = vld [vmem:[%s0 + $0x78] sm:$0xf]
  %v45 = vld [vmem:[%s0 + $0x7c] sm:$0xf]
  %v46 = vld [vmem:[%s0 + $0x80] sm:$0xf]
  %v47 = vld [vmem:[%s0 + $0x84] sm:$0xf]
  %v48 = vld [vmem:[%s0 + $0x88] sm:$0xf]
  %v49 = vld [vmem:[%s0 + $0x8c] sm:$0xf]
  %v50 = vld [vmem:[%s0 + $0x90] sm:$0xf]
  %v51 = vld [vmem:[%s0 + $0x94] sm:$0xf]
  %v52 = vld [vmem:[%s0 + $0x98] sm:$0xf]
  %v53 = vld [vmem:[%s0 + $0x9c] sm:$0xf]
  %v54 = vld [vmem:[%s0 + $0xa0] sm:$0xf]
  %v55 = vld [vmem:[%s0 + $0xa4] sm:$0xf]
  %v56 = vld [vmem:[%s0 + $0xa8] sm:$0xf]
  %v57 = vld [vmem:[%s0 + $0xac] sm:$0xf]
  %v58 = vld [vmem:[%s0 + $0xb0] sm:$0xf]
  %v59 = vld [vmem:[%s0 + $0xb4] sm:$0xf]
  %v60 = vld [vmem:[%s0 + $0xb8] sm:$0xf]
  %v61 = vld [vmem:[%s0 + $0xbc] sm:$0xf]
  %v62 = vld [vmem:[%s0 + $0xc0] sm:$0xf]
  %v63 = vld [vmem:[%s0 + $0xc4] sm:$0xf]
  %v64 = vld [vmem:[%s0 + $0xc8] sm:$0xf]
  %v65 = vld [vmem:[%s0 + $0xcc] sm:$0xf]
  %v66 = vld [vmem:[%s0 + $0xd0] sm:$0xf]
  %v67 = vld [vmem:[%s0 + $0xd4] sm:$0xf]
  %v68 = vld [vmem:[%s0 + $0xd8] sm:$0xf]
  %v69 = vld [vmem:[%s0 + $0xdc] sm:$0xf]
  %v70 = vld [vmem:[%s0 + $0xe0] sm:$0xf]
  %v71 = vld [vmem:[%s0 + $0xe4] sm:$0xf]
  %v72 = vld [vmem:[%s0 + $0xe8] sm:$0xf]
  %v73 = vld [vmem:[%s0 + $0xec] sm:$0xf]
  %v74 = vld [vmem:[%s0 + $0xf0] sm:$0xf]
  %v75 = vld [vmem:[%s0 + $0xf4] sm:$0xf]
  %v76 = vld [vmem:[%s0 + $0xf8] sm:$0xf]
  %v77 = vld [vmem:[%s0 + $0xfc] sm:$0xf]
  %v78 = vld [vmem:[%s0 + $0x100] sm:$0xf]
  %v79 = vld [vmem:[%s0 + $0x104] sm:$0xf]
  %v80 = vld [vmem:[%s0 + $0x108] sm:$0xf]
  %v81 = vld [vmem:[%s0 + $0x10c] sm:$0xf]
  %v82 = vld [vmem:[%s0 + $0x110] sm:$0xf]
  %v83 = vld [vmem:[%s0 + $0x114] sm:$0xf]
  %v84 = vld [vmem:[%s0 + $0x118] sm:$0xf]
  %v85 = vld [vmem:[%s0 + $0x11c] sm:$0xf]
  %v86 = vld [vmem:[%s0 + $0x120] sm:$0xf]
  %v87 = vld [vmem:[%s0 + $0x124] sm:$0xf]
  %v88 = vld [vmem:[%s0 + $0x128] sm:$0xf]
  %v89 = vld [vmem:[%s0 + $0x12c] sm:$0xf]
  %v90 = vld [vmem:[%s0 + $0x130] sm:$0xf]
  %v91 = vld [vmem:[%s0 + $0x134] sm:$0xf]
  %v92 = vld [vmem:[%s0 + $0x138] sm:$0xf]
  %v93 = vld [vmem:[%s0 + $0x13c] sm:$0xf]
  %v94 = vld [vmem:[%s0 + $0x140] sm:$0xf]
  %v95 = vld [vmem:[%s0 + $0x144] sm:$0xf]
  %v96 = vld [vmem:[%s0 + $0x148] sm:$0xf]
  %v97 = vld [vmem:[%s0 + $0x14c] sm:$0xf]
  %v98 = vld [vmem:[%s0 + $0x150] sm:$0xf]
  %v99 = vld [vmem:[%s0 + $0x154] sm:$0xf]
  %v100 = vld [vmem:[%s0 + $0x158] sm:$0xf]
  %v101 = vld [vmem:[%s0 + $0x15c] sm:$0xf]
  %v102 = vld [vmem:[%s0 + $0x160] sm:$0xf]
  %v103 = vld [vmem:[%s0 + $0x164] sm:$0xf]
  %v104 = vld [vmem:[%s0 + $0x168] sm:$0xf]
  %v105 = vld [vmem:[%s0 + $0x16c] sm:$0xf]
  %v106 = vld [vmem:[%s0 + $0x170] sm:$0xf]
  %v107 = vld [vmem:[%s0 + $0x174] sm:$0xf]
  %v108 = vld [vmem:[%s0 + $0x178] sm:$0xf]
  %v109 = vld [vmem:[%s0 + $0x17c] sm:$0xf]
  %v110 = vld [vmem:[%s0 + $0x180] sm:$0xf]
  %v111 = vld [vmem:[%s0 + $0x184] sm:$0xf]
  %v112 = vld [vmem:[%s0 + $0x188] sm:$0xf]
  %v113 = vld [vmem:[%s0 + $0x18c] sm:$0xf]
  %v114 = vld [vmem:[%s0 + $0x190] sm:$0xf]
  %v115 = vld [vmem:[%s0 + $0x194] sm:$0xf]
  %v116 = vld [vmem:[%s0 + $0x198] sm:$0xf]
  %v117 = vld [vmem:[%s0 + $0x19c] sm:$0xf]
  %v118 = vld [vmem:[%s0 + $0x1a0] sm:$0xf]
  %v119 = vld [vmem:[%s0 + $0x1a4] sm:$0xf]
  %v120 = vld [vmem:[%s0 + $0x1a8] sm:$0xf]
  %v121 = vld [vmem:[%s0 + $0x1ac] sm:$0xf]
  %v122 = vld [vmem:[%s0 + $0x1b0] sm:$0xf]
  %v123 = vld [vmem:[%s0 + $0x1b4] sm:$0xf]
  %v124 = vld [vmem:[%s0 + $0x1b8] sm:$0xf]
  %v125 = vld [vmem:[%s0 + $0x1bc] sm:$0xf]
  %v126 = vld [vmem:[%s0 + $0x1c0] sm:$0xf]
  %v127 = vld [vmem:[%s0 + $0x1c4] sm:$0xf]
  %v128 = vld [vmem:[%s0 + $0x1c8] sm:$0xf]
  %v129 = vld [vmem:[%s0 + $0x1cc] sm:$0xf]
  %v130 = vld [vmem:[%s0 + $0x1d0] sm:$0xf]
  %v131 = vld [vmem:[%s0 + $0x1d4] sm:$0xf]
  %v132 = vld [vmem:[%s0 + $0x1d8] sm:$0xf]
  %v133 = vld [vmem:[%s0 + $0x1dc] sm:$0xf]
  %v134 = vld [vmem:[%s0 + $0x1e0] sm:$0xf]
  %v135 = vld [vmem:[%s0 + $0x1e4] sm:$0xf]
  %v136 = vld [vmem:[%s0 + $0x1e8] sm:$0xf]
  %v137 = vld [vmem:[%s0 + $0x1ec] sm:$0xf]
  %v138 = vld [vmem:[%s0 + $0x1f0] sm:$0xf]
  %v139 = vld [vmem:[%s0 + $0x1f4] sm:$0xf]
  %v140 = vld [vmem:[%s0 + $0x1f8] sm:$0xf]
  %v141 = vld [vmem:[%s0 + $0x1fc] sm:$0xf]
  %v142 = vld [vmem:[%s0 + $0x200] sm:$0xf]
  %v143 = vld [vmem:[%s0 + $0x204] sm:$0xf]
  %v144 = vld [vmem:[%s0 + $0x208] sm:$0xf]
  %v145 = vld [vmem:[%s0 + $0x20c] sm:$0xf]
  %v146 = vld [vmem:[%s0 + $0x210] sm:$0xf]
  %v147 = vld [vmem:[%s0 + $0x214] sm:$0xf]
  %v148 = vld [vmem:[%s0 + $0x218] sm:$0xf]
  %v149 = vld [vmem:[%s0 + $0x21c] sm:$0xf]
  %v150 = vld [vmem:[%s0 + $0x220] sm:$0xf]
  %v151 = vld [vmem:[%s0 + $0x224] sm:$0xf]
  %v152 = vld [vmem:[%s0 + $0x228] sm:$0xf]
  %v153 = vld [vmem:[%s0 + $0x22c] sm:$0xf]
  %v154 = vld [vmem:[%s0 + $0x230] sm:$0xf]
  %v155 = vld [vmem:[%s0 + $0x234] sm:$0xf]
  %v156 = vld [vmem:[%s0 + $0x238] sm:$0xf]
  %v157 = vld [vmem:[%s0 + $0x23c] sm:$0xf]
  %v158 = vld [vmem:[%s0 + $0x240] sm:$0xf]
  %v159 = vld [vmem:[%s0 + $0x244] sm:$0xf]
  %v160 = vld [vmem:[%s0 + $0x248] sm:$0xf]
  %v161 = vld [vmem:[%s0 + $0x24c] sm:$0xf]
  %v162 = vld [vmem:[%s0 + $0x250] sm:$0xf]
  %v163 = vld [vmem:[%s0 + $0x254] sm:$0xf]
  %v164 = vld [vmem:[%s0 + $0x258] sm:$0xf]
  %v165 = vld [vmem:[%s0 + $0x25c] sm:$0xf]
  %v166 = vld [vmem:[%s0 + $0x260] sm:$0xf]
  %v167 = vld [vmem:[%s0 + $0x264] sm:$0xf]
  %v168 = vld [vmem:[%s0 + $0x268] sm:$0xf]
  %v169 = vld [vmem:[%s0 + $0x26c] sm:$0xf]
  %v170 = vld [vmem:[%s0 + $0x270] sm:$0xf]
  %v171 = vld [vmem:[%s0 + $0x274] sm:$0xf]
  %v172 = vld [vmem:[%s0 + $0x278] sm:$0xf]
  %v173 = vld [vmem:[%s0 + $0x27c] sm:$0xf]
  %v174 = vunpack.c.l.bf16 %v14
  %v175 = vunpack.c.l.bf16 %v15
  %v176 = vunpack.c.l.bf16 %v16
  %v177 = vunpack.c.l.bf16 %v17
  %v178 = vunpack.c.l.bf16 %v18
  %v179 = vunpack.c.l.bf16 %v19
  %v180 = vunpack.c.l.bf16 %v20
  %v181 = vunpack.c.l.bf16 %v21
  %v182 = vunpack.c.l.bf16 %v22
  %v183 = vunpack.c.l.bf16 %v23
  %v184 = vunpack.c.l.bf16 %v24
  %v185 = vunpack.c.l.bf16 %v25
  %v186 = vunpack.c.l.bf16 %v26
  %v187 = vunpack.c.l.bf16 %v27
  %v188 = vunpack.c.l.bf16 %v28
  %v189 = vunpack.c.l.bf16 %v29
  %v190 = vunpack.c.l.bf16 %v30
  %v191 = vunpack.c.l.bf16 %v31
  %v192 = vunpack.c.l.bf16 %v32
  %v193 = vunpack.c.l.bf16 %v33
  %v194 = vunpack.c.l.bf16 %v34
  %v195 = vunpack.c.l.bf16 %v35
  %v196 = vunpack.c.l.bf16 %v36
  %v197 = vunpack.c.l.bf16 %v37
  %v198 = vunpack.c.l.bf16 %v38
  %v199 = vunpack.c.l.bf16 %v39
  %v200 = vunpack.c.l.bf16 %v40
  %v201 = vunpack.c.l.bf16 %v41
  %v202 = vunpack.c.l.bf16 %v42
  %v203 = vunpack.c.l.bf16 %v43
  %v204 = vunpack.c.l.bf16 %v44
  %v205 = vunpack.c.l.bf16 %v45
  %v206 = vunpack.c.l.bf16 %v46
  %v207 = vunpack.c.l.bf16 %v47
  %v208 = vunpack.c.l.bf16 %v48
  %v209 = vunpack.c.l.bf16 %v49
  %v210 = vunpack.c.l.bf16 %v50
  %v211 = vunpack.c.l.bf16 %v51
  %v212 = vunpack.c.l.bf16 %v52
  %v213 = vunpack.c.l.bf16 %v53
  %v214 = vunpack.c.l.bf16 %v54
  %v215 = vunpack.c.l.bf16 %v55
  %v216 = vunpack.c.l.bf16 %v56
  %v217 = vunpack.c.l.bf16 %v57
  %v218 = vunpack.c.l.bf16 %v58
  %v219 = vunpack.c.l.bf16 %v59
  %v220 = vunpack.c.l.bf16 %v60
  %v221 = vunpack.c.l.bf16 %v61
  %v222 = vunpack.c.l.bf16 %v62
  %v223 = vunpack.c.l.bf16 %v63
  %v224 = vunpack.c.l.bf16 %v64
  %v225 = vunpack.c.l.bf16 %v65
  %v226 = vunpack.c.l.bf16 %v66
  %v227 = vunpack.c.l.bf16 %v67
  %v228 = vunpack.c.l.bf16 %v68
  %v229 = vunpack.c.l.bf16 %v69
  %v230 = vunpack.c.l.bf16 %v70
  %v231 = vunpack.c.l.bf16 %v71
  %v232 = vunpack.c.l.bf16 %v72
  %v233 = vunpack.c.l.bf16 %v73
  %v234 = vunpack.c.l.bf16 %v74
  %v235 = vunpack.c.l.bf16 %v75
  %v236 = vunpack.c.l.bf16 %v76
  %v237 = vunpack.c.l.bf16 %v77
  %v238 = vunpack.c.l.bf16 %v78
  %v239 = vunpack.c.l.bf16 %v79
  %v240 = vunpack.c.l.bf16 %v80
  %v241 = vunpack.c.l.bf16 %v81
  %v242 = vunpack.c.l.bf16 %v82
  %v243 = vunpack.c.l.bf16 %v83
  %v244 = vunpack.c.l.bf16 %v84
  %v245 = vunpack.c.l.bf16 %v85
  %v246 = vunpack.c.l.bf16 %v86
  %v247 = vunpack.c.l.bf16 %v87
  %v248 = vunpack.c.l.bf16 %v88
  %v249 = vunpack.c.l.bf16 %v89
  %v250 = vunpack.c.l.bf16 %v90
  %v251 = vunpack.c.l.bf16 %v91
  %v252 = vunpack.c.l.bf16 %v92
  %v253 = vunpack.c.l.bf16 %v93
  %v254 = vunpack.c.l.bf16 %v94
  %v255 = vunpack.c.l.bf16 %v95
  %v256 = vunpack.c.l.bf16 %v96
  %v257 = vunpack.c.l.bf16 %v97
  %v258 = vunpack.c.l.bf16 %v98
  %v259 = vunpack.c.l.bf16 %v99
  %v260 = vunpack.c.l.bf16 %v100
  %v261 = vunpack.c.l.bf16 %v101
  %v262 = vunpack.c.l.bf16 %v102
  %v263 = vunpack.c.l.bf16 %v103
  %v264 = vunpack.c.l.bf16 %v104
  %v265 = vunpack.c.l.bf16 %v105
  %v266 = vunpack.c.l.bf16 %v106
  %v267 = vunpack.c.l.bf16 %v107
  %v268 = vunpack.c.l.bf16 %v108
  %v269 = vunpack.c.l.bf16 %v109
  %v270 = vunpack.c.l.bf16 %v110
  %v271 = vunpack.c.l.bf16 %v111
  %v272 = vunpack.c.l.bf16 %v112
  %v273 = vunpack.c.l.bf16 %v113
  %v274 = vunpack.c.l.bf16 %v114
  %v275 = vunpack.c.l.bf16 %v115
  %v276 = vunpack.c.l.bf16 %v116
  %v277 = vunpack.c.l.bf16 %v117
  %v278 = vunpack.c.l.bf16 %v118
  %v279 = vunpack.c.l.bf16 %v119
  %v280 = vunpack.c.l.bf16 %v120
  %v281 = vunpack.c.l.bf16 %v121
  %v282 = vunpack.c.l.bf16 %v122
  %v283 = vunpack.c.l.bf16 %v123
  %v284 = vunpack.c.l.bf16 %v124
  %v285 = vunpack.c.l.bf16 %v125
  %v286 = vunpack.c.l.bf16 %v126
  %v287 = vunpack.c.l.bf16 %v127
  %v288 = vunpack.c.l.bf16 %v128
  %v289 = vunpack.c.l.bf16 %v129
  %v290 = vunpack.c.l.bf16 %v130
  %v291 = vunpack.c.l.bf16 %v131
  %v292 = vunpack.c.l.bf16 %v132
  %v293 = vunpack.c.l.bf16 %v133
  %v294 = vunpack.c.l.bf16 %v134
  %v295 = vunpack.c.l.bf16 %v135
  %v296 = vunpack.c.l.bf16 %v136
  %v297 = vunpack.c.l.bf16 %v137
  %v298 = vunpack.c.l.bf16 %v138
  %v299 = vunpack.c.l.bf16 %v139
  %v300 = vunpack.c.l.bf16 %v140
  %v301 = vunpack.c.l.bf16 %v141
  %v302 = vunpack.c.l.bf16 %v142
  %v303 = vunpack.c.l.bf16 %v143
  %v304 = vunpack.c.l.bf16 %v144
  %v305 = vunpack.c.l.bf16 %v145
  %v306 = vunpack.c.l.bf16 %v146
  %v307 = vunpack.c.l.bf16 %v147
  %v308 = vunpack.c.l.bf16 %v148
  %v309 = vunpack.c.l.bf16 %v149
  %v310 = vunpack.c.l.bf16 %v150
  %v311 = vunpack.c.l.bf16 %v151
  %v312 = vunpack.c.l.bf16 %v152
  %v313 = vunpack.c.l.bf16 %v153
  %v314 = vunpack.c.l.bf16 %v154
  %v315 = vunpack.c.l.bf16 %v155
  %v316 = vunpack.c.l.bf16 %v156
  %v317 = vunpack.c.l.bf16 %v157
  %v318 = vunpack.c.l.bf16 %v158
  %v319 = vunpack.c.l.bf16 %v159
  %v320 = vunpack.c.l.bf16 %v160
  %v321 = vunpack.c.l.bf16 %v161
  %v322 = vunpack.c.l.bf16 %v162
  %v323 = vunpack.c.l.bf16 %v163
  %v324 = vunpack.c.l.bf16 %v164
  %v325 = vunpack.c.l.bf16 %v165
  %v326 = vunpack.c.l.bf16 %v166
  %v327 = vunpack.c.l.bf16 %v167
  %v328 = vunpack.c.l.bf16 %v168
  %v329 = vunpack.c.l.bf16 %v169
  %v330 = vunpack.c.l.bf16 %v170
  %v331 = vunpack.c.l.bf16 %v171
  %v332 = vunpack.c.l.bf16 %v172
  %v333 = vunpack.c.l.bf16 %v173
  %v334 = vld [vmem:[%s1] sm:$0xff]
  %v335 = vld [vmem:[%s1 + $0x8] sm:$0xff]
  %v336 = vld [vmem:[%s1 + $0x10] sm:$0xff]
  %v337 = vld [vmem:[%s1 + $0x18] sm:$0xff]
  %v338 = vld [vmem:[%s1 + $0x20] sm:$0xff]
  %v339 = vld [vmem:[%s1 + $0x28] sm:$0xff]
  %v340 = vld [vmem:[%s1 + $0x30] sm:$0xff]
  %v341 = vld [vmem:[%s1 + $0x38] sm:$0xff]
  %v342 = vld [vmem:[%s1 + $0x40] sm:$0xff]
  %v343 = vld [vmem:[%s1 + $0x48] sm:$0xff]
  %v344 = vld [vmem:[%s1 + $0x50] sm:$0xff]
  %v345 = vld [vmem:[%s1 + $0x58] sm:$0xff]
  %v346 = vld [vmem:[%s1 + $0x60] sm:$0xff]
  %v347 = vld [vmem:[%s1 + $0x68] sm:$0xff]
  %v348 = vld [vmem:[%s1 + $0x70] sm:$0xff]
  %v349 = vld [vmem:[%s1 + $0x78] sm:$0xff]
  %350 = vmatprep.subr.mxu0 0.0
  %351 = vmatpush1.msra.mxu0 %v334
  %352 = vmatprep.subr.mxu0 0.0
  %353 = vmatpush1.msra.mxu0 %v335
  %354 = vmatprep.subr.mxu0 0.0
  %355 = vmatpush1.msra.mxu0 %v336
  %356 = vmatprep.subr.mxu0 0.0
  %357 = vmatpush1.msra.mxu0 %v337
  %358 = vmatprep.subr.mxu0 0.0
  %359 = vmatpush1.msra.mxu0 %v338
  %360 = vmatprep.subr.mxu0 0.0
  %361 = vmatpush1.msra.mxu0 %v339
  %362 = vmatprep.subr.mxu0 0.0
  %363 = vmatpush1.msra.mxu0 %v340
  %364 = vmatprep.subr.mxu0 0.0
  %365 = vmatpush1.msra.mxu0 %v341
  %366 = vmatprep.subr.mxu0 0.0
  %367 = vmatpush1.msra.mxu0 %v342
  %368 = vmatprep.subr.mxu0 0.0
  %369 = vmatpush1.msra.mxu0 %v343
  %370 = vmatprep.subr.mxu0 0.0
  %371 = vmatpush1.msra.mxu0 %v344
  %372 = vmatprep.subr.mxu0 0.0
  %373 = vmatpush1.msra.mxu0 %v345
  %374 = vmatprep.subr.mxu0 0.0
  %375 = vmatpush1.msra.mxu0 %v346
  %376 = vmatprep.subr.mxu0 0.0
  %377 = vmatpush1.msra.mxu0 %v347
  %378 = vmatprep.subr.mxu0 0.0
  %379 = vmatpush1.msra.mxu0 %v348
  %380 = vmatprep.subr.mxu0 0.0
  %381 = vmatpush1.msra.mxu0 %v349
  %382 = vmatprep.subr.mxu0 0.0
  %383 = vmatpush1.msra.mxu0 0.0
  %384 = vmatprep.subr.mxu0 0.0
  %385 = vmatpush1.msra.mxu0 0.0
  %386 = vmatprep.subr.mxu0 0.0
  %387 = vmatpush1.msra.mxu0 0.0
  %388 = vmatprep.subr.mxu0 0.0
  %389 = vmatpush1.msra.mxu0 0.0
  %390 = vmatprep.subr.mxu0 0.0
  %391 = vmatpush1.msra.mxu0 0.0
  %392 = vmatprep.subr.mxu0 0.0
  %393 = vmatpush1.msra.mxu0 0.0
  %394 = vmatprep.subr.mxu0 0.0
  %395 = vmatpush1.msra.mxu0 0.0
  %396 = vmatprep.subr.mxu0 0.0
  %397 = vmatpush1.msra.mxu0 0.0
  %398 = vmatprep.subr.mxu0 0.0
  %399 = vmatpush1.msra.mxu0 0.0
  %400 = vmatprep.subr.mxu0 0.0
  %401 = vmatpush1.msra.mxu0 0.0
  %402 = vmatprep.subr.mxu0 0.0
  %403 = vmatpush1.msra.mxu0 0.0
  %404 = vmatprep.subr.mxu0 0.0
  %405 = vmatpush1.msra.mxu0 0.0
  %406 = vmatprep.subr.mxu0 0.0
  %407 = vmatpush1.msra.mxu0 0.0
  %408 = vmatprep.subr.mxu0 0.0
  %409 = vmatpush1.msra.mxu0 0.0
  %410 = vmatprep.subr.mxu0 0.0
  %411 = vmatpush1.msra.mxu0 0.0
  %412 = vmatprep.subr.mxu0 0.0
  %413 = vmatpush1.msra.mxu0 0.0
  %414 = vmatprep.mubr.f32.mxu0 0.0
  %415 = vmatmul.mubr.f32.gmra.mrb[0].mxu0 %v174
  %v416 = vpop.f32.mrb[0].mxu0
  %v417 = vadd.f32 0.0, %v416
  %v418 = vpop.f32.mrb[0].mxu0
  %419 = vmatprep.mubr.f32.mxu0 0.0
  %420 = vmatmul.mubr.f32.gmra.mrb[0].mxu0 %v175
  %v421 = vpop.f32.mrb[0].mxu0
  %v422 = vadd.f32 0.0, %v421
  %v423 = vpop.f32.mrb[0].mxu0
  %424 = vmatprep.mubr.f32.mxu0 0.0
  %425 = vmatmul.mubr.f32.gmra.mrb[0].mxu0 %v176
  %v426 = vpop.f32.mrb[0].mxu0
  %v427 = vadd.f32 0.0, %v426
  %v428 = vpop.f32.mrb[0].mxu0
  %429 = vmatprep.mubr.f32.mxu0 0.0
  %430 = vmatmul.mubr.f32.gmra.mrb[0].mxu0 %v177
  %v431 = vpop.f32.mrb[0].mxu0
  %v432 = vadd.f32 0.0, %v431
  %v433 = vpop.f32.mrb[0].mxu0
  %434 = vmatprep.mubr.f32.mxu0 0.0
  %435 = vmatmul.mubr.f32.gmra.mrb[0].mxu0 %v178
  %v436 = vpop.f32.mrb[0].mxu0
  %v437 = vadd.f32 0.0, %v436
  %v438 = vpop.f32.mrb[0].mxu0
  %439 = vmatprep.mubr.f32.mxu0 0.0
  %440 = vmatmul.mubr.f32.gmra.mrb[0].mxu0 %v179
  %v441 = vpop.f32.mrb[0].mxu0
  %v442 = vadd.f32 0.0, %v441
  %v443 = vpop.f32.mrb[0].mxu0
  %444 = vmatprep.mubr.f32.mxu0 0.0
  %445 = vmatmul.mubr.f32.gmra.mrb[0].mxu0 %v180
  %v446 = vpop.f32.mrb[0].mxu0
  %v447 = vadd.f32 0.0, %v446
  %v448 = vpop.f32.mrb[0].mxu0
  %449 = vmatprep.mubr.f32.mxu0 0.0
  %450 = vmatmul.mubr.f32.gmra.mrb[0].mxu0 %v181
  %v451 = vpop.f32.mrb[0].mxu0
  %v452 = vadd.f32 0.0, %v451
  %v453 = vpop.f32.mrb[0].mxu0
  %454 = vmatprep.mubr.f32.mxu0 0.0
  %455 = vmatmul.mubr.f32.gmra.mrb[0].mxu0 %v182
  %v456 = vpop.f32.mrb[0].mxu0
  %v457 = vadd.f32 0.0, %v456
  %v458 = vpop.f32.mrb[0].mxu0
  %459 = vmatprep.mubr.f32.mxu0 0.0
  %460 = vmatmul.mubr.f32.gmra.mrb[0].mxu0 %v183
  %v461 = vpop.f32.mrb[0].mxu0
  %v462 = vadd.f32 0.0, %v461
  %v463 = vpop.f32.mrb[0].mxu0
  %464 = vmatprep.mubr.f32.mxu0 0.0
  %465 = vmatmul.mubr.f32.gmra.mrb[0].mxu0 %v184
  %v466 = vpop.f32.mrb[0].mxu0
  %v467 = vadd.f32 0.0, %v466
  %v468 = vpop.f32.mrb[0].mxu0
  %469 = vmatprep.mubr.f32.mxu0 0.0
  %470 = vmatmul.mubr.f32.gmra.mrb[0].mxu0 %v185
  %v471 = vpop.f32.mrb[0].mxu0
  %v472 = vadd.f32 0.0, %v471
  %v473 = vpop.f32.mrb[0].mxu0
  %474 = vmatprep.mubr.f32.mxu0 0.0
  %475 = vmatmul.mubr.f32.gmra.mrb[0].mxu0 %v186
  %v476 = vpop.f32.mrb[0].mxu0
  %v477 = vadd.f32 0.0, %v476
  %v478 = vpop.f32.mrb[0].mxu0
  %479 = vmatprep.mubr.f32.mxu0 0.0
  %480 = vmatmul.mubr.f32.gmra.mrb[0].mxu0 %v187
  %v481 = vpop.f32.mrb[0].mxu0
  %v482 = vadd.f32 0.0, %v481
  %v483 = vpop.f32.mrb[0].mxu0
  %484 = vmatprep.mubr.f32.mxu0 0.0
  %485 = vmatmul.mubr.f32.gmra.mrb[0].mxu0 %v188
  %v486 = vpop.f32.mrb[0].mxu0
  %v487 = vadd.f32 0.0, %v486
  %v488 = vpop.f32.mrb[0].mxu0
  %489 = vmatprep.mubr.f32.mxu0 0.0
  %490 = vmatmul.mubr.f32.gmra.mrb[0].mxu0 %v189
  %v491 = vpop.f32.mrb[0].mxu0
  %v492 = vadd.f32 0.0, %v491
  %v493 = vpop.f32.mrb[0].mxu0
  %494 = vmatprep.mubr.f32.mxu0 0.0
  %495 = vmatmul.mubr.f32.gmra.mrb[0].mxu0 %v190
  %v496 = vpop.f32.mrb[0].mxu0
  %v497 = vadd.f32 0.0, %v496
  %v498 = vpop.f32.mrb[0].mxu0
  %499 = vmatprep.mubr.f32.mxu0 0.0
  %500 = vmatmul.mubr.f32.gmra.mrb[0].mxu0 %v191
  %v501 = vpop.f32.mrb[0].mxu0
  %v502 = vadd.f32 0.0, %v501
  %v503 = vpop.f32.mrb[0].mxu0
  %504 = vmatprep.mubr.f32.mxu0 0.0
  %505 = vmatmul.mubr.f32.gmra.mrb[0].mxu0 %v192
  %v506 = vpop.f32.mrb[0].mxu0
  %v507 = vadd.f32 0.0, %v506
  %v508 = vpop.f32.mrb[0].mxu0
  %509 = vmatprep.mubr.f32.mxu0 0.0
  %510 = vmatmul.mubr.f32.gmra.mrb[0].mxu0 %v193
  %v511 = vpop.f32.mrb[0].mxu0
  %v512 = vadd.f32 0.0, %v511
  %v513 = vpop.f32.mrb[0].mxu0
  %514 = vmatprep.mubr.f32.mxu0 0.0
  %515 = vmatmul.mubr.f32.gmra.mrb[0].mxu0 %v194
  %v516 = vpop.f32.mrb[0].mxu0
  %v517 = vadd.f32 0.0, %v516
  %v518 = vpop.f32.mrb[0].mxu0
  %519 = vmatprep.mubr.f32.mxu0 0.0
  %520 = vmatmul.mubr.f32.gmra.mrb[0].mxu0 %v195
  %v521 = vpop.f32.mrb[0].mxu0
  %v522 = vadd.f32 0.0, %v521
  %v523 = vpop.f32.mrb[0].mxu0
  %524 = vmatprep.mubr.f32.mxu0 0.0
  %525 = vmatmul.mubr.f32.gmra.mrb[0].mxu0 %v196
  %v526 = vpop.f32.mrb[0].mxu0
  %v527 = vadd.f32 0.0, %v526
  %v528 = vpop.f32.mrb[0].mxu0
  %529 = vmatprep.mubr.f32.mxu0 0.0
  %530 = vmatmul.mubr.f32.gmra.mrb[0].mxu0 %v197
  %v531 = vpop.f32.mrb[0].mxu0
  %v532 = vadd.f32 0.0, %v531
  %v533 = vpop.f32.mrb[0].mxu0
  %534 = vmatprep.mubr.f32.mxu0 0.0
  %535 = vmatmul.mubr.f32.gmra.mrb[0].mxu0 %v198
  %v536 = vpop.f32.mrb[0].mxu0
  %v537 = vadd.f32 0.0, %v536
  %v538 = vpop.f32.mrb[0].mxu0
  %539 = vmatprep.mubr.f32.mxu0 0.0
  %540 = vmatmul.mubr.f32.gmra.mrb[0].mxu0 %v199
  %v541 = vpop.f32.mrb[0].mxu0
  %v542 = vadd.f32 0.0, %v541
  %v543 = vpop.f32.mrb[0].mxu0
  %544 = vmatprep.mubr.f32.mxu0 0.0
  %545 = vmatmul.mubr.f32.gmra.mrb[0].mxu0 %v200
  %v546 = vpop.f32.mrb[0].mxu0
  %v547 = vadd.f32 0.0, %v546
  %v548 = vpop.f32.mrb[0].mxu0
  %549 = vmatprep.mubr.f32.mxu0 0.0
  %550 = vmatmul.mubr.f32.gmra.mrb[0].mxu0 %v201
  %v551 = vpop.f32.mrb[0].mxu0
  %v552 = vadd.f32 0.0, %v551
  %v553 = vpop.f32.mrb[0].mxu0
  %554 = vmatprep.mubr.f32.mxu0 0.0
  %555 = vmatmul.mubr.f32.gmra.mrb[0].mxu0 %v202
  %v556 = vpop.f32.mrb[0].mxu0
  %v557 = vadd.f32 0.0, %v556
  %v558 = vpop.f32.mrb[0].mxu0
  %559 = vmatprep.mubr.f32.mxu0 0.0
  %560 = vmatmul.mubr.f32.gmra.mrb[0].mxu0 %v203
  %v561 = vpop.f32.mrb[0].mxu0
  %v562 = vadd.f32 0.0, %v561
  %v563 = vpop.f32.mrb[0].mxu0
  %564 = vmatprep.mubr.f32.mxu0 0.0
  %565 = vmatmul.mubr.f32.gmra.mrb[0].mxu0 %v204
  %v566 = vpop.f32.mrb[0].mxu0
  %v567 = vadd.f32 0.0, %v566
  %v568 = vpop.f32.mrb[0].mxu0
  %569 = vmatprep.mubr.f32.mxu0 0.0
  %570 = vmatmul.mubr.f32.gmra.mrb[0].mxu0 %v205
  %v571 = vpop.f32.mrb[0].mxu0
  %v572 = vadd.f32 0.0, %v571
  %v573 = vpop.f32.mrb[0].mxu0
  %574 = vmatprep.mubr.f32.mxu0 0.0
  %575 = vmatmul.mubr.f32.gmra.mrb[0].mxu0 %v206
  %v576 = vpop.f32.mrb[0].mxu0
  %v577 = vadd.f32 0.0, %v576
  %v578 = vpop.f32.mrb[0].mxu0
  %579 = vmatprep.mubr.f32.mxu0 0.0
  %580 = vmatmul.mubr.f32.gmra.mrb[0].mxu0 %v207
  %v581 = vpop.f32.mrb[0].mxu0
  %v582 = vadd.f32 0.0, %v581
  %v583 = vpop.f32.mrb[0].mxu0
  %584 = vmatprep.mubr.f32.mxu0 0.0
  %585 = vmatmul.mubr.f32.gmra.mrb[0].mxu0 %v208
  %v586 = vpop.f32.mrb[0].mxu0
  %v587 = vadd.f32 0.0, %v586
  %v588 = vpop.f32.mrb[0].mxu0
  %589 = vmatprep.mubr.f32.mxu0 0.0
  %590 = vmatmul.mubr.f32.gmra.mrb[0].mxu0 %v209
  %v591 = vpop.f32.mrb[0].mxu0
  %v592 = vadd.f32 0.0, %v591
  %v593 = vpop.f32.mrb[0].mxu0
  %594 = vmatprep.mubr.f32.mxu0 0.0
  %595 = vmatmul.mubr.f32.gmra.mrb[0].mxu0 %v210
  %v596 = vpop.f32.mrb[0].mxu0
  %v597 = vadd.f32 0.0, %v596
  %v598 = vpop.f32.mrb[0].mxu0
  %599 = vmatprep.mubr.f32.mxu0 0.0
  %600 = vmatmul.mubr.f32.gmra.mrb[0].mxu0 %v211
  %v601 = vpop.f32.mrb[0].mxu0
  %v602 = vadd.f32 0.0, %v601
  %v603 = vpop.f32.mrb[0].mxu0
  %604 = vmatprep.mubr.f32.mxu0 0.0
  %605 = vmatmul.mubr.f32.gmra.mrb[0].mxu0 %v212
  %v606 = vpop.f32.mrb[0].mxu0
  %v607 = vadd.f32 0.0, %v606
  %v608 = vpop.f32.mrb[0].mxu0
  %609 = vmatprep.mubr.f32.mxu0 0.0
  %610 = vmatmul.mubr.f32.gmra.mrb[0].mxu0 %v213
  %v611 = vpop.f32.mrb[0].mxu0
  %v612 = vadd.f32 0.0, %v611
  %v613 = vpop.f32.mrb[0].mxu0
  %614 = vmatprep.mubr.f32.mxu0 0.0
  %615 = vmatmul.mubr.f32.gmra.mrb[0].mxu0 %v214
  %v616 = vpop.f32.mrb[0].mxu0
  %v617 = vadd.f32 0.0, %v616
  %v618 = vpop.f32.mrb[0].mxu0
  %619 = vmatprep.mubr.f32.mxu0 0.0
  %620 = vmatmul.mubr.f32.gmra.mrb[0].mxu0 %v215
  %v621 = vpop.f32.mrb[0].mxu0
  %v622 = vadd.f32 0.0, %v621
  %v623 = vpop.f32.mrb[0].mxu0
  %624 = vmatprep.mubr.f32.mxu0 0.0
  %625 = vmatmul.mubr.f32.gmra.mrb[0].mxu0 %v216
  %v626 = vpop.f32.mrb[0].mxu0
  %v627 = vadd.f32 0.0, %v626
  %v628 = vpop.f32.mrb[0].mxu0
  %629 = vmatprep.mubr.f32.mxu0 0.0
  %630 = vmatmul.mubr.f32.gmra.mrb[0].mxu0 %v217
  %v631 = vpop.f32.mrb[0].mxu0
  %v632 = vadd.f32 0.0, %v631
  %v633 = vpop.f32.mrb[0].mxu0
  %634 = vmatprep.mubr.f32.mxu0 0.0
  %635 = vmatmul.mubr.f32.gmra.mrb[0].mxu0 %v218
  %v636 = vpop.f32.mrb[0].mxu0
  %v637 = vadd.f32 0.0, %v636
  %v638 = vpop.f32.mrb[0].mxu0
  %639 = vmatprep.mubr.f32.mxu0 0.0
  %640 = vmatmul.mubr.f32.gmra.mrb[0].mxu0 %v219
  %v641 = vpop.f32.mrb[0].mxu0
  %v642 = vadd.f32 0.0, %v641
  %v643 = vpop.f32.mrb[0].mxu0
  %644 = vmatprep.mubr.f32.mxu0 0.0
  %645 = vmatmul.mubr.f32.gmra.mrb[0].mxu0 %v220
  %v646 = vpop.f32.mrb[0].mxu0
  %v647 = vadd.f32 0.0, %v646
  %v648 = vpop.f32.mrb[0].mxu0
  %649 = vmatprep.mubr.f32.mxu0 0.0
  %650 = vmatmul.mubr.f32.gmra.mrb[0].mxu0 %v221
  %v651 = vpop.f32.mrb[0].mxu0
  %v652 = vadd.f32 0.0, %v651
  %v653 = vpop.f32.mrb[0].mxu0
  %654 = vmatprep.mubr.f32.mxu0 0.0
  %655 = vmatmul.mubr.f32.gmra.mrb[0].mxu0 %v222
  %v656 = vpop.f32.mrb[0].mxu0
  %v657 = vadd.f32 0.0, %v656
  %v658 = vpop.f32.mrb[0].mxu0
  %659 = vmatprep.mubr.f32.mxu0 0.0
  %660 = vmatmul.mubr.f32.gmra.mrb[0].mxu0 %v223
  %v661 = vpop.f32.mrb[0].mxu0
  %v662 = vadd.f32 0.0, %v661
  %v663 = vpop.f32.mrb[0].mxu0
  %664 = vmatprep.mubr.f32.mxu0 0.0
  %665 = vmatmul.mubr.f32.gmra.mrb[0].mxu0 %v224
  %v666 = vpop.f32.mrb[0].mxu0
  %v667 = vadd.f32 0.0, %v666
  %v668 = vpop.f32.mrb[0].mxu0
  %669 = vmatprep.mubr.f32.mxu0 0.0
  %670 = vmatmul.mubr.f32.gmra.mrb[0].mxu0 %v225
  %v671 = vpop.f32.mrb[0].mxu0
  %v672 = vadd.f32 0.0, %v671
  %v673 = vpop.f32.mrb[0].mxu0
  %674 = vmatprep.mubr.f32.mxu0 0.0
  %675 = vmatmul.mubr.f32.gmra.mrb[0].mxu0 %v226
  %v676 = vpop.f32.mrb[0].mxu0
  %v677 = vadd.f32 0.0, %v676
  %v678 = vpop.f32.mrb[0].mxu0
  %679 = vmatprep.mubr.f32.mxu0 0.0
  %680 = vmatmul.mubr.f32.gmra.mrb[0].mxu0 %v227
  %v681 = vpop.f32.mrb[0].mxu0
  %v682 = vadd.f32 0.0, %v681
  %v683 = vpop.f32.mrb[0].mxu0
  %684 = vmatprep.mubr.f32.mxu0 0.0
  %685 = vmatmul.mubr.f32.gmra.mrb[0].mxu0 %v228
  %v686 = vpop.f32.mrb[0].mxu0
  %v687 = vadd.f32 0.0, %v686
  %v688 = vpop.f32.mrb[0].mxu0
  %689 = vmatprep.mubr.f32.mxu0 0.0
  %690 = vmatmul.mubr.f32.gmra.mrb[0].mxu0 %v229
  %v691 = vpop.f32.mrb[0].mxu0
  %v692 = vadd.f32 0.0, %v691
  %v693 = vpop.f32.mrb[0].mxu0
  %694 = vmatprep.mubr.f32.mxu0 0.0
  %695 = vmatmul.mubr.f32.gmra.mrb[0].mxu0 %v230
  %v696 = vpop.f32.mrb[0].mxu0
  %v697 = vadd.f32 0.0, %v696
  %v698 = vpop.f32.mrb[0].mxu0
  %699 = vmatprep.mubr.f32.mxu0 0.0
  %700 = vmatmul.mubr.f32.gmra.mrb[0].mxu0 %v231
  %v701 = vpop.f32.mrb[0].mxu0
  %v702 = vadd.f32 0.0, %v701
  %v703 = vpop.f32.mrb[0].mxu0
  %704 = vmatprep.mubr.f32.mxu0 0.0
  %705 = vmatmul.mubr.f32.gmra.mrb[0].mxu0 %v232
  %v706 = vpop.f32.mrb[0].mxu0
  %v707 = vadd.f32 0.0, %v706
  %v708 = vpop.f32.mrb[0].mxu0
  %709 = vmatprep.mubr.f32.mxu0 0.0
  %710 = vmatmul.mubr.f32.gmra.mrb[0].mxu0 %v233
  %v711 = vpop.f32.mrb[0].mxu0
  %v712 = vadd.f32 0.0, %v711
  %v713 = vpop.f32.mrb[0].mxu0
  %714 = vmatprep.mubr.f32.mxu0 0.0
  %715 = vmatmul.mubr.f32.gmra.mrb[0].mxu0 %v234
  %v716 = vpop.f32.mrb[0].mxu0
  %v717 = vadd.f32 0.0, %v716
  %v718 = vpop.f32.mrb[0].mxu0
  %719 = vmatprep.mubr.f32.mxu0 0.0
  %720 = vmatmul.mubr.f32.gmra.mrb[0].mxu0 %v235
  %v721 = vpop.f32.mrb[0].mxu0
  %v722 = vadd.f32 0.0, %v721
  %v723 = vpop.f32.mrb[0].mxu0
  %724 = vmatprep.mubr.f32.mxu0 0.0
  %725 = vmatmul.mubr.f32.gmra.mrb[0].mxu0 %v236
  %v726 = vpop.f32.mrb[0].mxu0
  %v727 = vadd.f32 0.0, %v726
  %v728 = vpop.f32.mrb[0].mxu0
  %729 = vmatprep.mubr.f32.mxu0 0.0
  %730 = vmatmul.mubr.f32.gmra.mrb[0].mxu0 %v237
  %v731 = vpop.f32.mrb[0].mxu0
  %v732 = vadd.f32 0.0, %v731
  %v733 = vpop.f32.mrb[0].mxu0
  %734 = vmatprep.mubr.f32.mxu0 0.0
  %735 = vmatmul.mubr.f32.gmra.mrb[0].mxu0 %v238
  %v736 = vpop.f32.mrb[0].mxu0
  %v737 = vadd.f32 0.0, %v736
  %v738 = vpop.f32.mrb[0].mxu0
  %739 = vmatprep.mubr.f32.mxu0 0.0
  %740 = vmatmul.mubr.f32.gmra.mrb[0].mxu0 %v239
  %v741 = vpop.f32.mrb[0].mxu0
  %v742 = vadd.f32 0.0, %v741
  %v743 = vpop.f32.mrb[0].mxu0
  %744 = vmatprep.mubr.f32.mxu0 0.0
  %745 = vmatmul.mubr.f32.gmra.mrb[0].mxu0 %v240
  %v746 = vpop.f32.mrb[0].mxu0
  %v747 = vadd.f32 0.0, %v746
  %v748 = vpop.f32.mrb[0].mxu0
  %749 = vmatprep.mubr.f32.mxu0 0.0
  %750 = vmatmul.mubr.f32.gmra.mrb[0].mxu0 %v241
  %v751 = vpop.f32.mrb[0].mxu0
  %v752 = vadd.f32 0.0, %v751
  %v753 = vpop.f32.mrb[0].mxu0
  %754 = vmatprep.mubr.f32.mxu0 0.0
  %755 = vmatmul.mubr.f32.gmra.mrb[0].mxu0 %v242
  %v756 = vpop.f32.mrb[0].mxu0
  %v757 = vadd.f32 0.0, %v756
  %v758 = vpop.f32.mrb[0].mxu0
  %759 = vmatprep.mubr.f32.mxu0 0.0
  %760 = vmatmul.mubr.f32.gmra.mrb[0].mxu0 %v243
  %v761 = vpop.f32.mrb[0].mxu0
  %v762 = vadd.f32 0.0, %v761
  %v763 = vpop.f32.mrb[0].mxu0
  %764 = vmatprep.mubr.f32.mxu0 0.0
  %765 = vmatmul.mubr.f32.gmra.mrb[0].mxu0 %v244
  %v766 = vpop.f32.mrb[0].mxu0
  %v767 = vadd.f32 0.0, %v766
  %v768 = vpop.f32.mrb[0].mxu0
  %769 = vmatprep.mubr.f32.mxu0 0.0
  %770 = vmatmul.mubr.f32.gmra.mrb[0].mxu0 %v245
  %v771 = vpop.f32.mrb[0].mxu0
  %v772 = vadd.f32 0.0, %v771
  %v773 = vpop.f32.mrb[0].mxu0
  %774 = vmatprep.mubr.f32.mxu0 0.0
  %775 = vmatmul.mubr.f32.gmra.mrb[0].mxu0 %v246
  %v776 = vpop.f32.mrb[0].mxu0
  %v777 = vadd.f32 0.0, %v776
  %v778 = vpop.f32.mrb[0].mxu0
  %779 = vmatprep.mubr.f32.mxu0 0.0
  %780 = vmatmul.mubr.f32.gmra.mrb[0].mxu0 %v247
  %v781 = vpop.f32.mrb[0].mxu0
  %v782 = vadd.f32 0.0, %v781
  %v783 = vpop.f32.mrb[0].mxu0
  %784 = vmatprep.mubr.f32.mxu0 0.0
  %785 = vmatmul.mubr.f32.gmra.mrb[0].mxu0 %v248
  %v786 = vpop.f32.mrb[0].mxu0
  %v787 = vadd.f32 0.0, %v786
  %v788 = vpop.f32.mrb[0].mxu0
  %789 = vmatprep.mubr.f32.mxu0 0.0
  %790 = vmatmul.mubr.f32.gmra.mrb[0].mxu0 %v249
  %v791 = vpop.f32.mrb[0].mxu0
  %v792 = vadd.f32 0.0, %v791
  %v793 = vpop.f32.mrb[0].mxu0
  %794 = vmatprep.mubr.f32.mxu0 0.0
  %795 = vmatmul.mubr.f32.gmra.mrb[0].mxu0 %v250
  %v796 = vpop.f32.mrb[0].mxu0
  %v797 = vadd.f32 0.0, %v796
  %v798 = vpop.f32.mrb[0].mxu0
  %799 = vmatprep.mubr.f32.mxu0 0.0
  %800 = vmatmul.mubr.f32.gmra.mrb[0].mxu0 %v251
  %v801 = vpop.f32.mrb[0].mxu0
  %v802 = vadd.f32 0.0, %v801
  %v803 = vpop.f32.mrb[0].mxu0
  %804 = vmatprep.mubr.f32.mxu0 0.0
  %805 = vmatmul.mubr.f32.gmra.mrb[0].mxu0 %v252
  %v806 = vpop.f32.mrb[0].mxu0
  %v807 = vadd.f32 0.0, %v806
  %v808 = vpop.f32.mrb[0].mxu0
  %809 = vmatprep.mubr.f32.mxu0 0.0
  %810 = vmatmul.mubr.f32.gmra.mrb[0].mxu0 %v253
  %v811 = vpop.f32.mrb[0].mxu0
  %v812 = vadd.f32 0.0, %v811
  %v813 = vpop.f32.mrb[0].mxu0
  %814 = vmatprep.mubr.f32.mxu0 0.0
  %815 = vmatmul.mubr.f32.gmra.mrb[0].mxu0 %v254
  %v816 = vpop.f32.mrb[0].mxu0
  %v817 = vadd.f32 0.0, %v816
  %v818 = vpop.f32.mrb[0].mxu0
  %819 = vmatprep.mubr.f32.mxu0 0.0
  %820 = vmatmul.mubr.f32.gmra.mrb[0].mxu0 %v255
  %v821 = vpop.f32.mrb[0].mxu0
  %v822 = vadd.f32 0.0, %v821
  %v823 = vpop.f32.mrb[0].mxu0
  %824 = vmatprep.mubr.f32.mxu0 0.0
  %825 = vmatmul.mubr.f32.gmra.mrb[0].mxu0 %v256
  %v826 = vpop.f32.mrb[0].mxu0
  %v827 = vadd.f32 0.0, %v826
  %v828 = vpop.f32.mrb[0].mxu0
  %829 = vmatprep.mubr.f32.mxu0 0.0
  %830 = vmatmul.mubr.f32.gmra.mrb[0].mxu0 %v257
  %v831 = vpop.f32.mrb[0].mxu0
  %v832 = vadd.f32 0.0, %v831
  %v833 = vpop.f32.mrb[0].mxu0
  %834 = vmatprep.mubr.f32.mxu0 0.0
  %835 = vmatmul.mubr.f32.gmra.mrb[0].mxu0 %v258
  %v836 = vpop.f32.mrb[0].mxu0
  %v837 = vadd.f32 0.0, %v836
  %v838 = vpop.f32.mrb[0].mxu0
  %839 = vmatprep.mubr.f32.mxu0 0.0
  %840 = vmatmul.mubr.f32.gmra.mrb[0].mxu0 %v259
  %v841 = vpop.f32.mrb[0].mxu0
  %v842 = vadd.f32 0.0, %v841
  %v843 = vpop.f32.mrb[0].mxu0
  %844 = vmatprep.mubr.f32.mxu0 0.0
  %845 = vmatmul.mubr.f32.gmra.mrb[0].mxu0 %v260
  %v846 = vpop.f32.mrb[0].mxu0
  %v847 = vadd.f32 0.0, %v846
  %v848 = vpop.f32.mrb[0].mxu0
  %849 = vmatprep.mubr.f32.mxu0 0.0
  %850 = vmatmul.mubr.f32.gmra.mrb[0].mxu0 %v261
  %v851 = vpop.f32.mrb[0].mxu0
  %v852 = vadd.f32 0.0, %v851
  %v853 = vpop.f32.mrb[0].mxu0
  %854 = vmatprep.mubr.f32.mxu0 0.0
  %855 = vmatmul.mubr.f32.gmra.mrb[0].mxu0 %v262
  %v856 = vpop.f32.mrb[0].mxu0
  %v857 = vadd.f32 0.0, %v856
  %v858 = vpop.f32.mrb[0].mxu0
  %859 = vmatprep.mubr.f32.mxu0 0.0
  %860 = vmatmul.mubr.f32.gmra.mrb[0].mxu0 %v263
  %v861 = vpop.f32.mrb[0].mxu0
  %v862 = vadd.f32 0.0, %v861
  %v863 = vpop.f32.mrb[0].mxu0
  %864 = vmatprep.mubr.f32.mxu0 0.0
  %865 = vmatmul.mubr.f32.gmra.mrb[0].mxu0 %v264
  %v866 = vpop.f32.mrb[0].mxu0
  %v867 = vadd.f32 0.0, %v866
  %v868 = vpop.f32.mrb[0].mxu0
  %869 = vmatprep.mubr.f32.mxu0 0.0
  %870 = vmatmul.mubr.f32.gmra.mrb[0].mxu0 %v265
  %v871 = vpop.f32.mrb[0].mxu0
  %v872 = vadd.f32 0.0, %v871
  %v873 = vpop.f32.mrb[0].mxu0
  %874 = vmatprep.mubr.f32.mxu0 0.0
  %875 = vmatmul.mubr.f32.gmra.mrb[0].mxu0 %v266
  %v876 = vpop.f32.mrb[0].mxu0
  %v877 = vadd.f32 0.0, %v876
  %v878 = vpop.f32.mrb[0].mxu0
  %879 = vmatprep.mubr.f32.mxu0 0.0
  %880 = vmatmul.mubr.f32.gmra.mrb[0].mxu0 %v267
  %v881 = vpop.f32.mrb[0].mxu0
  %v882 = vadd.f32 0.0, %v881
  %v883 = vpop.f32.mrb[0].mxu0
  %884 = vmatprep.mubr.f32.mxu0 0.0
  %885 = vmatmul.mubr.f32.gmra.mrb[0].mxu0 %v268
  %v886 = vpop.f32.mrb[0].mxu0
  %v887 = vadd.f32 0.0, %v886
  %v888 = vpop.f32.mrb[0].mxu0
  %889 = vmatprep.mubr.f32.mxu0 0.0
  %890 = vmatmul.mubr.f32.gmra.mrb[0].mxu0 %v269
  %v891 = vpop.f32.mrb[0].mxu0
  %v892 = vadd.f32 0.0, %v891
  %v893 = vpop.f32.mrb[0].mxu0
  %894 = vmatprep.mubr.f32.mxu0 0.0
  %895 = vmatmul.mubr.f32.gmra.mrb[0].mxu0 %v270
  %v896 = vpop.f32.mrb[0].mxu0
  %v897 = vadd.f32 0.0, %v896
  %v898 = vpop.f32.mrb[0].mxu0
  %899 = vmatprep.mubr.f32.mxu0 0.0
  %900 = vmatmul.mubr.f32.gmra.mrb[0].mxu0 %v271
  %v901 = vpop.f32.mrb[0].mxu0
  %v902 = vadd.f32 0.0, %v901
  %v903 = vpop.f32.mrb[0].mxu0
  %904 = vmatprep.mubr.f32.mxu0 0.0
  %905 = vmatmul.mubr.f32.gmra.mrb[0].mxu0 %v272
  %v906 = vpop.f32.mrb[0].mxu0
  %v907 = vadd.f32 0.0, %v906
  %v908 = vpop.f32.mrb[0].mxu0
  %909 = vmatprep.mubr.f32.mxu0 0.0
  %910 = vmatmul.mubr.f32.gmra.mrb[0].mxu0 %v273
  %v911 = vpop.f32.mrb[0].mxu0
  %v912 = vadd.f32 0.0, %v911
  %v913 = vpop.f32.mrb[0].mxu0
  %914 = vmatprep.mubr.f32.mxu0 0.0
  %915 = vmatmul.mubr.f32.gmra.mrb[0].mxu0 %v274
  %v916 = vpop.f32.mrb[0].mxu0
  %v917 = vadd.f32 0.0, %v916
  %v918 = vpop.f32.mrb[0].mxu0
  %919 = vmatprep.mubr.f32.mxu0 0.0
  %920 = vmatmul.mubr.f32.gmra.mrb[0].mxu0 %v275
  %v921 = vpop.f32.mrb[0].mxu0
  %v922 = vadd.f32 0.0, %v921
  %v923 = vpop.f32.mrb[0].mxu0
  %924 = vmatprep.mubr.f32.mxu0 0.0
  %925 = vmatmul.mubr.f32.gmra.mrb[0].mxu0 %v276
  %v926 = vpop.f32.mrb[0].mxu0
  %v927 = vadd.f32 0.0, %v926
  %v928 = vpop.f32.mrb[0].mxu0
  %929 = vmatprep.mubr.f32.mxu0 0.0
  %930 = vmatmul.mubr.f32.gmra.mrb[0].mxu0 %v277
  %v931 = vpop.f32.mrb[0].mxu0
  %v932 = vadd.f32 0.0, %v931
  %v933 = vpop.f32.mrb[0].mxu0
  %934 = vmatprep.mubr.f32.mxu0 0.0
  %935 = vmatmul.mubr.f32.gmra.mrb[0].mxu0 %v278
  %v936 = vpop.f32.mrb[0].mxu0
  %v937 = vadd.f32 0.0, %v936
  %v938 = vpop.f32.mrb[0].mxu0
  %939 = vmatprep.mubr.f32.mxu0 0.0
  %940 = vmatmul.mubr.f32.gmra.mrb[0].mxu0 %v279
  %v941 = vpop.f32.mrb[0].mxu0
  %v942 = vadd.f32 0.0, %v941
  %v943 = vpop.f32.mrb[0].mxu0
  %944 = vmatprep.mubr.f32.mxu0 0.0
  %945 = vmatmul.mubr.f32.gmra.mrb[0].mxu0 %v280
  %v946 = vpop.f32.mrb[0].mxu0
  %v947 = vadd.f32 0.0, %v946
  %v948 = vpop.f32.mrb[0].mxu0
  %949 = vmatprep.mubr.f32.mxu0 0.0
  %950 = vmatmul.mubr.f32.gmra.mrb[0].mxu0 %v281
  %v951 = vpop.f32.mrb[0].mxu0
  %v952 = vadd.f32 0.0, %v951
  %v953 = vpop.f32.mrb[0].mxu0
  %954 = vmatprep.mubr.f32.mxu0 0.0
  %955 = vmatmul.mubr.f32.gmra.mrb[0].mxu0 %v282
  %v956 = vpop.f32.mrb[0].mxu0
  %v957 = vadd.f32 0.0, %v956
  %v958 = vpop.f32.mrb[0].mxu0
  %959 = vmatprep.mubr.f32.mxu0 0.0
  %960 = vmatmul.mubr.f32.gmra.mrb[0].mxu0 %v283
  %v961 = vpop.f32.mrb[0].mxu0
  %v962 = vadd.f32 0.0, %v961
  %v963 = vpop.f32.mrb[0].mxu0
  %964 = vmatprep.mubr.f32.mxu0 0.0
  %965 = vmatmul.mubr.f32.gmra.mrb[0].mxu0 %v284
  %v966 = vpop.f32.mrb[0].mxu0
  %v967 = vadd.f32 0.0, %v966
  %v968 = vpop.f32.mrb[0].mxu0
  %969 = vmatprep.mubr.f32.mxu0 0.0
  %970 = vmatmul.mubr.f32.gmra.mrb[0].mxu0 %v285
  %v971 = vpop.f32.mrb[0].mxu0
  %v972 = vadd.f32 0.0, %v971
  %v973 = vpop.f32.mrb[0].mxu0
  %974 = vmatprep.mubr.f32.mxu0 0.0
  %975 = vmatmul.mubr.f32.gmra.mrb[0].mxu0 %v286
  %v976 = vpop.f32.mrb[0].mxu0
  %v977 = vadd.f32 0.0, %v976
  %v978 = vpop.f32.mrb[0].mxu0
  %979 = vmatprep.mubr.f32.mxu0 0.0
  %980 = vmatmul.mubr.f32.gmra.mrb[0].mxu0 %v287
  %v981 = vpop.f32.mrb[0].mxu0
  %v982 = vadd.f32 0.0, %v981
  %v983 = vpop.f32.mrb[0].mxu0
  %984 = vmatprep.mubr.f32.mxu0 0.0
  %985 = vmatmul.mubr.f32.gmra.mrb[0].mxu0 %v288
  %v986 = vpop.f32.mrb[0].mxu0
  %v987 = vadd.f32 0.0, %v986
  %v988 = vpop.f32.mrb[0].mxu0
  %989 = vmatprep.mubr.f32.mxu0 0.0
  %990 = vmatmul.mubr.f32.gmra.mrb[0].mxu0 %v289
  %v991 = vpop.f32.mrb[0].mxu0
  %v992 = vadd.f32 0.0, %v991
  %v993 = vpop.f32.mrb[0].mxu0
  %994 = vmatprep.mubr.f32.mxu0 0.0
  %995 = vmatmul.mubr.f32.gmra.mrb[0].mxu0 %v290
  %v996 = vpop.f32.mrb[0].mxu0
  %v997 = vadd.f32 0.0, %v996
  %v998 = vpop.f32.mrb[0].mxu0
  %999 = vmatprep.mubr.f32.mxu0 0.0
  %1000 = vmatmul.mubr.f32.gmra.mrb[0].mxu0 %v291
  %v1001 = vpop.f32.mrb[0].mxu0
  %v1002 = vadd.f32 0.0, %v1001
  %v1003 = vpop.f32.mrb[0].mxu0
  %1004 = vmatprep.mubr.f32.mxu0 0.0
  %1005 = vmatmul.mubr.f32.gmra.mrb[0].mxu0 %v292
  %v1006 = vpop.f32.mrb[0].mxu0
  %v1007 = vadd.f32 0.0, %v1006
  %v1008 = vpop.f32.mrb[0].mxu0
  %1009 = vmatprep.mubr.f32.mxu0 0.0
  %1010 = vmatmul.mubr.f32.gmra.mrb[0].mxu0 %v293
  %v1011 = vpop.f32.mrb[0].mxu0
  %v1012 = vadd.f32 0.0, %v1011
  %v1013 = vpop.f32.mrb[0].mxu0
  %1014 = vmatprep.mubr.f32.mxu0 0.0
  %1015 = vmatmul.mubr.f32.gmra.mrb[0].mxu0 %v294
  %v1016 = vpop.f32.mrb[0].mxu0
  %v1017 = vadd.f32 0.0, %v1016
  %v1018 = vpop.f32.mrb[0].mxu0
  %1019 = vmatprep.mubr.f32.mxu0 0.0
  %1020 = vmatmul.mubr.f32.gmra.mrb[0].mxu0 %v295
  %v1021 = vpop.f32.mrb[0].mxu0
  %v1022 = vadd.f32 0.0, %v1021
  %v1023 = vpop.f32.mrb[0].mxu0
  %1024 = vmatprep.mubr.f32.mxu0 0.0
  %1025 = vmatmul.mubr.f32.gmra.mrb[0].mxu0 %v296
  %v1026 = vpop.f32.mrb[0].mxu0
  %v1027 = vadd.f32 0.0, %v1026
  %v1028 = vpop.f32.mrb[0].mxu0
  %1029 = vmatprep.mubr.f32.mxu0 0.0
  %1030 = vmatmul.mubr.f32.gmra.mrb[0].mxu0 %v297
  %v1031 = vpop.f32.mrb[0].mxu0
  %v1032 = vadd.f32 0.0, %v1031
  %v1033 = vpop.f32.mrb[0].mxu0
  %1034 = vmatprep.mubr.f32.mxu0 0.0
  %1035 = vmatmul.mubr.f32.gmra.mrb[0].mxu0 %v298
  %v1036 = vpop.f32.mrb[0].mxu0
  %v1037 = vadd.f32 0.0, %v1036
  %v1038 = vpop.f32.mrb[0].mxu0
  %1039 = vmatprep.mubr.f32.mxu0 0.0
  %1040 = vmatmul.mubr.f32.gmra.mrb[0].mxu0 %v299
  %v1041 = vpop.f32.mrb[0].mxu0
  %v1042 = vadd.f32 0.0, %v1041
  %v1043 = vpop.f32.mrb[0].mxu0
  %1044 = vmatprep.mubr.f32.mxu0 0.0
  %1045 = vmatmul.mubr.f32.gmra.mrb[0].mxu0 %v300
  %v1046 = vpop.f32.mrb[0].mxu0
  %v1047 = vadd.f32 0.0, %v1046
  %v1048 = vpop.f32.mrb[0].mxu0
  %1049 = vmatprep.mubr.f32.mxu0 0.0
  %1050 = vmatmul.mubr.f32.gmra.mrb[0].mxu0 %v301
  %v1051 = vpop.f32.mrb[0].mxu0
  %v1052 = vadd.f32 0.0, %v1051
  %v1053 = vpop.f32.mrb[0].mxu0
  %1054 = vmatprep.mubr.f32.mxu0 0.0
  %1055 = vmatmul.mubr.f32.gmra.mrb[0].mxu0 %v302
  %v1056 = vpop.f32.mrb[0].mxu0
  %v1057 = vadd.f32 0.0, %v1056
  %v1058 = vpop.f32.mrb[0].mxu0
  %1059 = vmatprep.mubr.f32.mxu0 0.0
  %1060 = vmatmul.mubr.f32.gmra.mrb[0].mxu0 %v303
  %v1061 = vpop.f32.mrb[0].mxu0
  %v1062 = vadd.f32 0.0, %v1061
  %v1063 = vpop.f32.mrb[0].mxu0
  %1064 = vmatprep.mubr.f32.mxu0 0.0
  %1065 = vmatmul.mubr.f32.gmra.mrb[0].mxu0 %v304
  %v1066 = vpop.f32.mrb[0].mxu0
  %v1067 = vadd.f32 0.0, %v1066
  %v1068 = vpop.f32.mrb[0].mxu0
  %1069 = vmatprep.mubr.f32.mxu0 0.0
  %1070 = vmatmul.mubr.f32.gmra.mrb[0].mxu0 %v305
  %v1071 = vpop.f32.mrb[0].mxu0
  %v1072 = vadd.f32 0.0, %v1071
  %v1073 = vpop.f32.mrb[0].mxu0
  %1074 = vmatprep.mubr.f32.mxu0 0.0
  %1075 = vmatmul.mubr.f32.gmra.mrb[0].mxu0 %v306
  %v1076 = vpop.f32.mrb[0].mxu0
  %v1077 = vadd.f32 0.0, %v1076
  %v1078 = vpop.f32.mrb[0].mxu0
  %1079 = vmatprep.mubr.f32.mxu0 0.0
  %1080 = vmatmul.mubr.f32.gmra.mrb[0].mxu0 %v307
  %v1081 = vpop.f32.mrb[0].mxu0
  %v1082 = vadd.f32 0.0, %v1081
  %v1083 = vpop.f32.mrb[0].mxu0
  %1084 = vmatprep.mubr.f32.mxu0 0.0
  %1085 = vmatmul.mubr.f32.gmra.mrb[0].mxu0 %v308
  %v1086 = vpop.f32.mrb[0].mxu0
  %v1087 = vadd.f32 0.0, %v1086
  %v1088 = vpop.f32.mrb[0].mxu0
  %1089 = vmatprep.mubr.f32.mxu0 0.0
  %1090 = vmatmul.mubr.f32.gmra.mrb[0].mxu0 %v309
  %v1091 = vpop.f32.mrb[0].mxu0
  %v1092 = vadd.f32 0.0, %v1091
  %v1093 = vpop.f32.mrb[0].mxu0
  %1094 = vmatprep.mubr.f32.mxu0 0.0
  %1095 = vmatmul.mubr.f32.gmra.mrb[0].mxu0 %v310
  %v1096 = vpop.f32.mrb[0].mxu0
  %v1097 = vadd.f32 0.0, %v1096
  %v1098 = vpop.f32.mrb[0].mxu0
  %1099 = vmatprep.mubr.f32.mxu0 0.0
  %1100 = vmatmul.mubr.f32.gmra.mrb[0].mxu0 %v311
  %v1101 = vpop.f32.mrb[0].mxu0
  %v1102 = vadd.f32 0.0, %v1101
  %v1103 = vpop.f32.mrb[0].mxu0
  %1104 = vmatprep.mubr.f32.mxu0 0.0
  %1105 = vmatmul.mubr.f32.gmra.mrb[0].mxu0 %v312
  %v1106 = vpop.f32.mrb[0].mxu0
  %v1107 = vadd.f32 0.0, %v1106
  %v1108 = vpop.f32.mrb[0].mxu0
  %1109 = vmatprep.mubr.f32.mxu0 0.0
  %1110 = vmatmul.mubr.f32.gmra.mrb[0].mxu0 %v313
  %v1111 = vpop.f32.mrb[0].mxu0
  %v1112 = vadd.f32 0.0, %v1111
  %v1113 = vpop.f32.mrb[0].mxu0
  %1114 = vmatprep.mubr.f32.mxu0 0.0
  %1115 = vmatmul.mubr.f32.gmra.mrb[0].mxu0 %v314
  %v1116 = vpop.f32.mrb[0].mxu0
  %v1117 = vadd.f32 0.0, %v1116
  %v1118 = vpop.f32.mrb[0].mxu0
  %1119 = vmatprep.mubr.f32.mxu0 0.0
  %1120 = vmatmul.mubr.f32.gmra.mrb[0].mxu0 %v315
  %v1121 = vpop.f32.mrb[0].mxu0
  %v1122 = vadd.f32 0.0, %v1121
  %v1123 = vpop.f32.mrb[0].mxu0
  %1124 = vmatprep.mubr.f32.mxu0 0.0
  %1125 = vmatmul.mubr.f32.gmra.mrb[0].mxu0 %v316
  %v1126 = vpop.f32.mrb[0].mxu0
  %v1127 = vadd.f32 0.0, %v1126
  %v1128 = vpop.f32.mrb[0].mxu0
  %1129 = vmatprep.mubr.f32.mxu0 0.0
  %1130 = vmatmul.mubr.f32.gmra.mrb[0].mxu0 %v317
  %v1131 = vpop.f32.mrb[0].mxu0
  %v1132 = vadd.f32 0.0, %v1131
  %v1133 = vpop.f32.mrb[0].mxu0
  %1134 = vmatprep.mubr.f32.mxu0 0.0
  %1135 = vmatmul.mubr.f32.gmra.mrb[0].mxu0 %v318
  %v1136 = vpop.f32.mrb[0].mxu0
  %v1137 = vadd.f32 0.0, %v1136
  %v1138 = vpop.f32.mrb[0].mxu0
  %1139 = vmatprep.mubr.f32.mxu0 0.0
  %1140 = vmatmul.mubr.f32.gmra.mrb[0].mxu0 %v319
  %v1141 = vpop.f32.mrb[0].mxu0
  %v1142 = vadd.f32 0.0, %v1141
  %v1143 = vpop.f32.mrb[0].mxu0
  %1144 = vmatprep.mubr.f32.mxu0 0.0
  %1145 = vmatmul.mubr.f32.gmra.mrb[0].mxu0 %v320
  %v1146 = vpop.f32.mrb[0].mxu0
  %v1147 = vadd.f32 0.0, %v1146
  %v1148 = vpop.f32.mrb[0].mxu0
  %1149 = vmatprep.mubr.f32.mxu0 0.0
  %1150 = vmatmul.mubr.f32.gmra.mrb[0].mxu0 %v321
  %v1151 = vpop.f32.mrb[0].mxu0
  %v1152 = vadd.f32 0.0, %v1151
  %v1153 = vpop.f32.mrb[0].mxu0
  %1154 = vmatprep.mubr.f32.mxu0 0.0
  %1155 = vmatmul.mubr.f32.gmra.mrb[0].mxu0 %v322
  %v1156 = vpop.f32.mrb[0].mxu0
  %v1157 = vadd.f32 0.0, %v1156
  %v1158 = vpop.f32.mrb[0].mxu0
  %1159 = vmatprep.mubr.f32.mxu0 0.0
  %1160 = vmatmul.mubr.f32.gmra.mrb[0].mxu0 %v323
  %v1161 = vpop.f32.mrb[0].mxu0
  %v1162 = vadd.f32 0.0, %v1161
  %v1163 = vpop.f32.mrb[0].mxu0
  %1164 = vmatprep.mubr.f32.mxu0 0.0
  %1165 = vmatmul.mubr.f32.gmra.mrb[0].mxu0 %v324
  %v1166 = vpop.f32.mrb[0].mxu0
  %v1167 = vadd.f32 0.0, %v1166
  %v1168 = vpop.f32.mrb[0].mxu0
  %1169 = vmatprep.mubr.f32.mxu0 0.0
  %1170 = vmatmul.mubr.f32.gmra.mrb[0].mxu0 %v325
  %v1171 = vpop.f32.mrb[0].mxu0
  %v1172 = vadd.f32 0.0, %v1171
  %v1173 = vpop.f32.mrb[0].mxu0
  %1174 = vmatprep.mubr.f32.mxu0 0.0
  %1175 = vmatmul.mubr.f32.gmra.mrb[0].mxu0 %v326
  %v1176 = vpop.f32.mrb[0].mxu0
  %v1177 = vadd.f32 0.0, %v1176
  %v1178 = vpop.f32.mrb[0].mxu0
  %1179 = vmatprep.mubr.f32.mxu0 0.0
  %1180 = vmatmul.mubr.f32.gmra.mrb[0].mxu0 %v327
  %v1181 = vpop.f32.mrb[0].mxu0
  %v1182 = vadd.f32 0.0, %v1181
  %v1183 = vpop.f32.mrb[0].mxu0
  %1184 = vmatprep.mubr.f32.mxu0 0.0
  %1185 = vmatmul.mubr.f32.gmra.mrb[0].mxu0 %v328
  %v1186 = vpop.f32.mrb[0].mxu0
  %v1187 = vadd.f32 0.0, %v1186
  %v1188 = vpop.f32.mrb[0].mxu0
  %1189 = vmatprep.mubr.f32.mxu0 0.0
  %1190 = vmatmul.mubr.f32.gmra.mrb[0].mxu0 %v329
  %v1191 = vpop.f32.mrb[0].mxu0
  %v1192 = vadd.f32 0.0, %v1191
  %v1193 = vpop.f32.mrb[0].mxu0
  %1194 = vmatprep.mubr.f32.mxu0 0.0
  %1195 = vmatmul.mubr.f32.gmra.mrb[0].mxu0 %v330
  %v1196 = vpop.f32.mrb[0].mxu0
  %v1197 = vadd.f32 0.0, %v1196
  %v1198 = vpop.f32.mrb[0].mxu0
  %1199 = vmatprep.mubr.f32.mxu0 0.0
  %1200 = vmatmul.mubr.f32.gmra.mrb[0].mxu0 %v331
  %v1201 = vpop.f32.mrb[0].mxu0
  %v1202 = vadd.f32 0.0, %v1201
  %v1203 = vpop.f32.mrb[0].mxu0
  %1204 = vmatprep.mubr.f32.mxu0 0.0
  %1205 = vmatmul.mubr.f32.gmra.mrb[0].mxu0 %v332
  %v1206 = vpop.f32.mrb[0].mxu0
  %v1207 = vadd.f32 0.0, %v1206
  %v1208 = vpop.f32.mrb[0].mxu0
  %1209 = vmatprep.mubr.f32.mxu0 0.0
  %1210 = vmatmul.mubr.f32.gmra.mrb[0].mxu0 %v333
  %v1211 = vpop.f32.mrb[0].mxu0
  %v1212 = vadd.f32 0.0, %v1211
  %v1213 = vpop.f32.mrb[0].mxu0
  %1214 = vdwg.mxu0
  %v1215 = vld [vmem:[%s2] sm:$0xff]
  %v1216 = vld [vmem:[%s2 + $0x8] sm:$0xff]
  %v1217 = vld [vmem:[%s2 + $0x10] sm:$0xff]
  %v1218 = vld [vmem:[%s2 + $0x18] sm:$0xff]
  %v1219 = vld [vmem:[%s2 + $0x20] sm:$0xff]
  %v1220 = vld [vmem:[%s2 + $0x28] sm:$0xff]
  %v1221 = vld [vmem:[%s2 + $0x30] sm:$0xff]
  %v1222 = vld [vmem:[%s2 + $0x38] sm:$0xff]
  %v1223 = vld [vmem:[%s2 + $0x40] sm:$0xff]
  %v1224 = vld [vmem:[%s2 + $0x48] sm:$0xff]
  %v1225 = vld [vmem:[%s2 + $0x50] sm:$0xff]
  %v1226 = vld [vmem:[%s2 + $0x58] sm:$0xff]
  %v1227 = vld [vmem:[%s2 + $0x60] sm:$0xff]
  %v1228 = vld [vmem:[%s2 + $0x68] sm:$0xff]
  %v1229 = vld [vmem:[%s2 + $0x70] sm:$0xff]
  %v1230 = vld [vmem:[%s2 + $0x78] sm:$0xff]
  %v1231 = vld [vmem:[%s2 + $0x80] sm:$0xff]
  %v1232 = vld [vmem:[%s2 + $0x88] sm:$0xff]
  %v1233 = vld [vmem:[%s2 + $0x90] sm:$0xff]
  %v1234 = vld [vmem:[%s2 + $0x98] sm:$0xff]
  %v1235 = vld [vmem:[%s2 + $0xa0] sm:$0xff]
  %v1236 = vld [vmem:[%s2 + $0xa8] sm:$0xff]
  %v1237 = vld [vmem:[%s2 + $0xb0] sm:$0xff]
  %v1238 = vld [vmem:[%s2 + $0xb8] sm:$0xff]
  %v1239 = vld [vmem:[%s2 + $0xc0] sm:$0xff]
  %v1240 = vld [vmem:[%s2 + $0xc8] sm:$0xff]
  %v1241 = vld [vmem:[%s2 + $0xd0] sm:$0xff]
  %v1242 = vld [vmem:[%s2 + $0xd8] sm:$0xff]
  %v1243 = vld [vmem:[%s2 + $0xe0] sm:$0xff]
  %v1244 = vld [vmem:[%s2 + $0xe8] sm:$0xff]
  %v1245 = vld [vmem:[%s2 + $0xf0] sm:$0xff]
  %v1246 = vld [vmem:[%s2 + $0xf8] sm:$0xff]
  %v1247 = vld [vmem:[%s2 + $0x100] sm:$0xff]
  %v1248 = vld [vmem:[%s2 + $0x108] sm:$0xff]
  %v1249 = vld [vmem:[%s2 + $0x110] sm:$0xff]
  %v1250 = vld [vmem:[%s2 + $0x118] sm:$0xff]
  %v1251 = vld [vmem:[%s2 + $0x120] sm:$0xff]
  %v1252 = vld [vmem:[%s2 + $0x128] sm:$0xff]
  %v1253 = vld [vmem:[%s2 + $0x130] sm:$0xff]
  %v1254 = vld [vmem:[%s2 + $0x138] sm:$0xff]
  %v1255 = vld [vmem:[%s2 + $0x140] sm:$0xff]
  %v1256 = vld [vmem:[%s2 + $0x148] sm:$0xff]
  %v1257 = vld [vmem:[%s2 + $0x150] sm:$0xff]
  %v1258 = vld [vmem:[%s2 + $0x158] sm:$0xff]
  %v1259 = vld [vmem:[%s2 + $0x160] sm:$0xff]
  %v1260 = vld [vmem:[%s2 + $0x168] sm:$0xff]
  %v1261 = vld [vmem:[%s2 + $0x170] sm:$0xff]
  %v1262 = vld [vmem:[%s2 + $0x178] sm:$0xff]
  %v1263 = vld [vmem:[%s2 + $0x180] sm:$0xff]
  %v1264 = vld [vmem:[%s2 + $0x188] sm:$0xff]
  %v1265 = vld [vmem:[%s2 + $0x190] sm:$0xff]
  %v1266 = vld [vmem:[%s2 + $0x198] sm:$0xff]
  %v1267 = vld [vmem:[%s2 + $0x1a0] sm:$0xff]
  %v1268 = vld [vmem:[%s2 + $0x1a8] sm:$0xff]
  %v1269 = vld [vmem:[%s2 + $0x1b0] sm:$0xff]
  %v1270 = vld [vmem:[%s2 + $0x1b8] sm:$0xff]
  %v1271 = vld [vmem:[%s2 + $0x1c0] sm:$0xff]
  %v1272 = vld [vmem:[%s2 + $0x1c8] sm:$0xff]
  %v1273 = vld [vmem:[%s2 + $0x1d0] sm:$0xff]
  %v1274 = vld [vmem:[%s2 + $0x1d8] sm:$0xff]
  %v1275 = vld [vmem:[%s2 + $0x1e0] sm:$0xff]
  %v1276 = vld [vmem:[%s2 + $0x1e8] sm:$0xff]
  %v1277 = vld [vmem:[%s2 + $0x1f0] sm:$0xff]
  %v1278 = vld [vmem:[%s2 + $0x1f8] sm:$0xff]
  %v1279 = vld [vmem:[%s2 + $0x200] sm:$0xff]
  %v1280 = vld [vmem:[%s2 + $0x208] sm:$0xff]
  %v1281 = vld [vmem:[%s2 + $0x210] sm:$0xff]
  %v1282 = vld [vmem:[%s2 + $0x218] sm:$0xff]
  %v1283 = vld [vmem:[%s2 + $0x220] sm:$0xff]
  %v1284 = vld [vmem:[%s2 + $0x228] sm:$0xff]
  %v1285 = vld [vmem:[%s2 + $0x230] sm:$0xff]
  %v1286 = vld [vmem:[%s2 + $0x238] sm:$0xff]
  %v1287 = vld [vmem:[%s2 + $0x240] sm:$0xff]
  %v1288 = vld [vmem:[%s2 + $0x248] sm:$0xff]
  %v1289 = vld [vmem:[%s2 + $0x250] sm:$0xff]
  %v1290 = vld [vmem:[%s2 + $0x258] sm:$0xff]
  %v1291 = vld [vmem:[%s2 + $0x260] sm:$0xff]
  %v1292 = vld [vmem:[%s2 + $0x268] sm:$0xff]
  %v1293 = vld [vmem:[%s2 + $0x270] sm:$0xff]
  %v1294 = vld [vmem:[%s2 + $0x278] sm:$0xff]
  %v1295 = vld [vmem:[%s2 + $0x280] sm:$0xff]
  %v1296 = vld [vmem:[%s2 + $0x288] sm:$0xff]
  %v1297 = vld [vmem:[%s2 + $0x290] sm:$0xff]
  %v1298 = vld [vmem:[%s2 + $0x298] sm:$0xff]
  %v1299 = vld [vmem:[%s2 + $0x2a0] sm:$0xff]
  %v1300 = vld [vmem:[%s2 + $0x2a8] sm:$0xff]
  %v1301 = vld [vmem:[%s2 + $0x2b0] sm:$0xff]
  %v1302 = vld [vmem:[%s2 + $0x2b8] sm:$0xff]
  %v1303 = vld [vmem:[%s2 + $0x2c0] sm:$0xff]
  %v1304 = vld [vmem:[%s2 + $0x2c8] sm:$0xff]
  %v1305 = vld [vmem:[%s2 + $0x2d0] sm:$0xff]
  %v1306 = vld [vmem:[%s2 + $0x2d8] sm:$0xff]
  %v1307 = vld [vmem:[%s2 + $0x2e0] sm:$0xff]
  %v1308 = vld [vmem:[%s2 + $0x2e8] sm:$0xff]
  %v1309 = vld [vmem:[%s2 + $0x2f0] sm:$0xff]
  %v1310 = vld [vmem:[%s2 + $0x2f8] sm:$0xff]
  %v1311 = vld [vmem:[%s2 + $0x300] sm:$0xff]
  %v1312 = vld [vmem:[%s2 + $0x308] sm:$0xff]
  %v1313 = vld [vmem:[%s2 + $0x310] sm:$0xff]
  %v1314 = vld [vmem:[%s2 + $0x318] sm:$0xff]
  %v1315 = vld [vmem:[%s2 + $0x320] sm:$0xff]
  %v1316 = vld [vmem:[%s2 + $0x328] sm:$0xff]
  %v1317 = vld [vmem:[%s2 + $0x330] sm:$0xff]
  %v1318 = vld [vmem:[%s2 + $0x338] sm:$0xff]
  %v1319 = vld [vmem:[%s2 + $0x340] sm:$0xff]
  %v1320 = vld [vmem:[%s2 + $0x348] sm:$0xff]
  %v1321 = vld [vmem:[%s2 + $0x350] sm:$0xff]
  %v1322 = vld [vmem:[%s2 + $0x358] sm:$0xff]
  %v1323 = vld [vmem:[%s2 + $0x360] sm:$0xff]
  %v1324 = vld [vmem:[%s2 + $0x368] sm:$0xff]
  %v1325 = vld [vmem:[%s2 + $0x370] sm:$0xff]
  %v1326 = vld [vmem:[%s2 + $0x378] sm:$0xff]
  %v1327 = vld [vmem:[%s2 + $0x380] sm:$0xff]
  %v1328 = vld [vmem:[%s2 + $0x388] sm:$0xff]
  %v1329 = vld [vmem:[%s2 + $0x390] sm:$0xff]
  %v1330 = vld [vmem:[%s2 + $0x398] sm:$0xff]
  %v1331 = vld [vmem:[%s2 + $0x3a0] sm:$0xff]
  %v1332 = vld [vmem:[%s2 + $0x3a8] sm:$0xff]
  %v1333 = vld [vmem:[%s2 + $0x3b0] sm:$0xff]
  %v1334 = vld [vmem:[%s2 + $0x3b8] sm:$0xff]
  %v1335 = vld [vmem:[%s2 + $0x3c0] sm:$0xff]
  %v1336 = vld [vmem:[%s2 + $0x3c8] sm:$0xff]
  %v1337 = vld [vmem:[%s2 + $0x3d0] sm:$0xff]
  %v1338 = vld [vmem:[%s2 + $0x3d8] sm:$0xff]
  %v1339 = vld [vmem:[%s2 + $0x3e0] sm:$0xff]
  %v1340 = vld [vmem:[%s2 + $0x3e8] sm:$0xff]
  %v1341 = vld [vmem:[%s2 + $0x3f0] sm:$0xff]
  %v1342 = vld [vmem:[%s2 + $0x3f8] sm:$0xff]
  %v1343 = vld [vmem:[%s2 + $0x400] sm:$0xff]
  %v1344 = vld [vmem:[%s2 + $0x408] sm:$0xff]
  %v1345 = vld [vmem:[%s2 + $0x410] sm:$0xff]
  %v1346 = vld [vmem:[%s2 + $0x418] sm:$0xff]
  %v1347 = vld [vmem:[%s2 + $0x420] sm:$0xff]
  %v1348 = vld [vmem:[%s2 + $0x428] sm:$0xff]
  %v1349 = vld [vmem:[%s2 + $0x430] sm:$0xff]
  %v1350 = vld [vmem:[%s2 + $0x438] sm:$0xff]
  %v1351 = vld [vmem:[%s2 + $0x440] sm:$0xff]
  %v1352 = vld [vmem:[%s2 + $0x448] sm:$0xff]
  %v1353 = vld [vmem:[%s2 + $0x450] sm:$0xff]
  %v1354 = vld [vmem:[%s2 + $0x458] sm:$0xff]
  %v1355 = vld [vmem:[%s2 + $0x460] sm:$0xff]
  %v1356 = vld [vmem:[%s2 + $0x468] sm:$0xff]
  %v1357 = vld [vmem:[%s2 + $0x470] sm:$0xff]
  %v1358 = vld [vmem:[%s2 + $0x478] sm:$0xff]
  %v1359 = vld [vmem:[%s2 + $0x480] sm:$0xff]
  %v1360 = vld [vmem:[%s2 + $0x488] sm:$0xff]
  %v1361 = vld [vmem:[%s2 + $0x490] sm:$0xff]
  %v1362 = vld [vmem:[%s2 + $0x498] sm:$0xff]
  %v1363 = vld [vmem:[%s2 + $0x4a0] sm:$0xff]
  %v1364 = vld [vmem:[%s2 + $0x4a8] sm:$0xff]
  %v1365 = vld [vmem:[%s2 + $0x4b0] sm:$0xff]
  %v1366 = vld [vmem:[%s2 + $0x4b8] sm:$0xff]
  %v1367 = vld [vmem:[%s2 + $0x4c0] sm:$0xff]
  %v1368 = vld [vmem:[%s2 + $0x4c8] sm:$0xff]
  %v1369 = vld [vmem:[%s2 + $0x4d0] sm:$0xff]
  %v1370 = vld [vmem:[%s2 + $0x4d8] sm:$0xff]
  %v1371 = vld [vmem:[%s2 + $0x4e0] sm:$0xff]
  %v1372 = vld [vmem:[%s2 + $0x4e8] sm:$0xff]
  %v1373 = vld [vmem:[%s2 + $0x4f0] sm:$0xff]
  %v1374 = vld [vmem:[%s2 + $0x4f8] sm:$0xff]
  %v1375 = vld [vmem:[%s2 + $0x500] sm:$0xff]
  %v1376 = vld [vmem:[%s2 + $0x508] sm:$0xff]
  %v1377 = vld [vmem:[%s2 + $0x510] sm:$0xff]
  %v1378 = vld [vmem:[%s2 + $0x518] sm:$0xff]
  %v1379 = vld [vmem:[%s2 + $0x520] sm:$0xff]
  %v1380 = vld [vmem:[%s2 + $0x528] sm:$0xff]
  %v1381 = vld [vmem:[%s2 + $0x530] sm:$0xff]
  %v1382 = vld [vmem:[%s2 + $0x538] sm:$0xff]
  %v1383 = vld [vmem:[%s2 + $0x540] sm:$0xff]
  %v1384 = vld [vmem:[%s2 + $0x548] sm:$0xff]
  %v1385 = vld [vmem:[%s2 + $0x550] sm:$0xff]
  %v1386 = vld [vmem:[%s2 + $0x558] sm:$0xff]
  %v1387 = vld [vmem:[%s2 + $0x560] sm:$0xff]
  %v1388 = vld [vmem:[%s2 + $0x568] sm:$0xff]
  %v1389 = vld [vmem:[%s2 + $0x570] sm:$0xff]
  %v1390 = vld [vmem:[%s2 + $0x578] sm:$0xff]
  %v1391 = vld [vmem:[%s2 + $0x580] sm:$0xff]
  %v1392 = vld [vmem:[%s2 + $0x588] sm:$0xff]
  %v1393 = vld [vmem:[%s2 + $0x590] sm:$0xff]
  %v1394 = vld [vmem:[%s2 + $0x598] sm:$0xff]
  %v1395 = vld [vmem:[%s2 + $0x5a0] sm:$0xff]
  %v1396 = vld [vmem:[%s2 + $0x5a8] sm:$0xff]
  %v1397 = vld [vmem:[%s2 + $0x5b0] sm:$0xff]
  %v1398 = vld [vmem:[%s2 + $0x5b8] sm:$0xff]
  %v1399 = vld [vmem:[%s2 + $0x5c0] sm:$0xff]
  %v1400 = vld [vmem:[%s2 + $0x5c8] sm:$0xff]
  %v1401 = vld [vmem:[%s2 + $0x5d0] sm:$0xff]
  %v1402 = vld [vmem:[%s2 + $0x5d8] sm:$0xff]
  %v1403 = vld [vmem:[%s2 + $0x5e0] sm:$0xff]
  %v1404 = vld [vmem:[%s2 + $0x5e8] sm:$0xff]
  %v1405 = vld [vmem:[%s2 + $0x5f0] sm:$0xff]
  %v1406 = vld [vmem:[%s2 + $0x5f8] sm:$0xff]
  %v1407 = vld [vmem:[%s2 + $0x600] sm:$0xff]
  %v1408 = vld [vmem:[%s2 + $0x608] sm:$0xff]
  %v1409 = vld [vmem:[%s2 + $0x610] sm:$0xff]
  %v1410 = vld [vmem:[%s2 + $0x618] sm:$0xff]
  %v1411 = vld [vmem:[%s2 + $0x620] sm:$0xff]
  %v1412 = vld [vmem:[%s2 + $0x628] sm:$0xff]
  %v1413 = vld [vmem:[%s2 + $0x630] sm:$0xff]
  %v1414 = vld [vmem:[%s2 + $0x638] sm:$0xff]
  %1415 = vmatprep.subr.mxu0 0.0
  %1416 = vmatpush1.msra.mxu0 %v417
  %1417 = vmatprep.subr.mxu0 0.0
  %1418 = vmatpush1.msra.mxu0 %v422
  %1419 = vmatprep.subr.mxu0 0.0
  %1420 = vmatpush1.msra.mxu0 %v427
  %1421 = vmatprep.subr.mxu0 0.0
  %1422 = vmatpush1.msra.mxu0 %v432
  %1423 = vmatprep.subr.mxu0 0.0
  %1424 = vmatpush1.msra.mxu0 %v437
  %1425 = vmatprep.subr.mxu0 0.0
  %1426 = vmatpush1.msra.mxu0 %v442
  %1427 = vmatprep.subr.mxu0 0.0
  %1428 = vmatpush1.msra.mxu0 %v447
  %1429 = vmatprep.subr.mxu0 0.0
  %1430 = vmatpush1.msra.mxu0 %v452
  %1431 = vmatprep.subr.mxu0 0.0
  %1432 = vmatpush1.msra.mxu0 %v457
  %1433 = vmatprep.subr.mxu0 0.0
  %1434 = vmatpush1.msra.mxu0 %v462
  %1435 = vmatprep.subr.mxu0 0.0
  %1436 = vmatpush1.msra.mxu0 %v467
  %1437 = vmatprep.subr.mxu0 0.0
  %1438 = vmatpush1.msra.mxu0 %v472
  %1439 = vmatprep.subr.mxu0 0.0
  %1440 = vmatpush1.msra.mxu0 %v477
  %1441 = vmatprep.subr.mxu0 0.0
  %1442 = vmatpush1.msra.mxu0 %v482
  %1443 = vmatprep.subr.mxu0 0.0
  %1444 = vmatpush1.msra.mxu0 %v487
  %1445 = vmatprep.subr.mxu0 0.0
  %1446 = vmatpush1.msra.mxu0 %v492
  %1447 = vmatprep.subr.mxu0 0.0
  %1448 = vmatpush1.msra.mxu0 %v497
  %1449 = vmatprep.subr.mxu0 0.0
  %1450 = vmatpush1.msra.mxu0 %v502
  %1451 = vmatprep.subr.mxu0 0.0
  %1452 = vmatpush1.msra.mxu0 %v507
  %1453 = vmatprep.subr.mxu0 0.0
  %1454 = vmatpush1.msra.mxu0 %v512
  %1455 = vmatprep.subr.mxu0 0.0
  %1456 = vmatpush1.msra.mxu0 %v517
  %1457 = vmatprep.subr.mxu0 0.0
  %1458 = vmatpush1.msra.mxu0 %v522
  %1459 = vmatprep.subr.mxu0 0.0
  %1460 = vmatpush1.msra.mxu0 %v527
  %1461 = vmatprep.subr.mxu0 0.0
  %1462 = vmatpush1.msra.mxu0 %v532
  %1463 = vmatprep.subr.mxu0 0.0
  %1464 = vmatpush1.msra.mxu0 %v537
  %1465 = vmatprep.subr.mxu0 0.0
  %1466 = vmatpush1.msra.mxu0 %v542
  %1467 = vmatprep.subr.mxu0 0.0
  %1468 = vmatpush1.msra.mxu0 %v547
  %1469 = vmatprep.subr.mxu0 0.0
  %1470 = vmatpush1.msra.mxu0 %v552
  %1471 = vmatprep.subr.mxu0 0.0
  %1472 = vmatpush1.msra.mxu0 %v557
  %1473 = vmatprep.subr.mxu0 0.0
  %1474 = vmatpush1.msra.mxu0 %v562
  %1475 = vmatprep.subr.mxu0 0.0
  %1476 = vmatpush1.msra.mxu0 %v567
  %1477 = vmatprep.subr.mxu0 0.0
  %1478 = vmatpush1.msra.mxu0 %v572
  %1479 = vmatprep.mubr.f32.mxu0 %v1216
  %1480 = vmatmul.mubr.f32.gmra.mrb[0].mxu0 %v1215
  %v1481 = vpop.f32.mrb[0].mxu0
  %v1482 = vadd.f32 0.0, %v1481
  %v1483 = vpop.f32.mrb[0].mxu0
  %1484 = vmatprep.mubr.f32.mxu0 %v1226
  %1485 = vmatmul.mubr.f32.gmra.mrb[0].mxu0 %v1225
  %v1486 = vpop.f32.mrb[0].mxu0
  %v1487 = vadd.f32 0.0, %v1486
  %v1488 = vpop.f32.mrb[0].mxu0
  %1489 = vmatprep.mubr.f32.mxu0 %v1236
  %1490 = vmatmul.mubr.f32.gmra.mrb[0].mxu0 %v1235
  %v1491 = vpop.f32.mrb[0].mxu0
  %v1492 = vadd.f32 0.0, %v1491
  %v1493 = vpop.f32.mrb[0].mxu0
  %1494 = vmatprep.mubr.f32.mxu0 %v1246
  %1495 = vmatmul.mubr.f32.gmra.mrb[0].mxu0 %v1245
  %v1496 = vpop.f32.mrb[0].mxu0
  %v1497 = vadd.f32 0.0, %v1496
  %v1498 = vpop.f32.mrb[0].mxu0
  %1499 = vmatprep.mubr.f32.mxu0 %v1256
  %1500 = vmatmul.mubr.f32.gmra.mrb[0].mxu0 %v1255
  %v1501 = vpop.f32.mrb[0].mxu0
  %v1502 = vadd.f32 0.0, %v1501
  %v1503 = vpop.f32.mrb[0].mxu0
  %1504 = vmatprep.mubr.f32.mxu0 %v1266
  %1505 = vmatmul.mubr.f32.gmra.mrb[0].mxu0 %v1265
  %v1506 = vpop.f32.mrb[0].mxu0
  %v1507 = vadd.f32 0.0, %v1506
  %v1508 = vpop.f32.mrb[0].mxu0
  %1509 = vmatprep.mubr.f32.mxu0 %v1276
  %1510 = vmatmul.mubr.f32.gmra.mrb[0].mxu0 %v1275
  %v1511 = vpop.f32.mrb[0].mxu0
  %v1512 = vadd.f32 0.0, %v1511
  %v1513 = vpop.f32.mrb[0].mxu0
  %1514 = vmatprep.mubr.f32.mxu0 %v1286
  %1515 = vmatmul.mubr.f32.gmra.mrb[0].mxu0 %v1285
  %v1516 = vpop.f32.mrb[0].mxu0
  %v1517 = vadd.f32 0.0, %v1516
  %v1518 = vpop.f32.mrb[0].mxu0
  %1519 = vmatprep.mubr.f32.mxu0 %v1296
  %1520 = vmatmul.mubr.f32.gmra.mrb[0].mxu0 %v1295
  %v1521 = vpop.f32.mrb[0].mxu0
  %v1522 = vadd.f32 0.0, %v1521
  %v1523 = vpop.f32.mrb[0].mxu0
  %1524 = vmatprep.mubr.f32.mxu0 %v1306
  %1525 = vmatmul.mubr.f32.gmra.mrb[0].mxu0 %v1305
  %v1526 = vpop.f32.mrb[0].mxu0
  %v1527 = vadd.f32 0.0, %v1526
  %v1528 = vpop.f32.mrb[0].mxu0
  %1529 = vmatprep.mubr.f32.mxu0 %v1316
  %1530 = vmatmul.mubr.f32.gmra.mrb[0].mxu0 %v1315
  %v1531 = vpop.f32.mrb[0].mxu0
  %v1532 = vadd.f32 0.0, %v1531
  %v1533 = vpop.f32.mrb[0].mxu0
  %1534 = vmatprep.mubr.f32.mxu0 %v1326
  %1535 = vmatmul.mubr.f32.gmra.mrb[0].mxu0 %v1325
  %v1536 = vpop.f32.mrb[0].mxu0
  %v1537 = vadd.f32 0.0, %v1536
  %v1538 = vpop.f32.mrb[0].mxu0
  %1539 = vmatprep.mubr.f32.mxu0 %v1336
  %1540 = vmatmul.mubr.f32.gmra.mrb[0].mxu0 %v1335
  %v1541 = vpop.f32.mrb[0].mxu0
  %v1542 = vadd.f32 0.0, %v1541
  %v1543 = vpop.f32.mrb[0].mxu0
  %1544 = vmatprep.mubr.f32.mxu0 %v1346
  %1545 = vmatmul.mubr.f32.gmra.mrb[0].mxu0 %v1345
  %v1546 = vpop.f32.mrb[0].mxu0
  %v1547 = vadd.f32 0.0, %v1546
  %v1548 = vpop.f32.mrb[0].mxu0
  %1549 = vmatprep.mubr.f32.mxu0 %v1356
  %1550 = vmatmul.mubr.f32.gmra.mrb[0].mxu0 %v1355
  %v1551 = vpop.f32.mrb[0].mxu0
  %v1552 = vadd.f32 0.0, %v1551
  %v1553 = vpop.f32.mrb[0].mxu0
  %1554 = vmatprep.mubr.f32.mxu0 %v1366
  %1555 = vmatmul.mubr.f32.gmra.mrb[0].mxu0 %v1365
  %v1556 = vpop.f32.mrb[0].mxu0
  %v1557 = vadd.f32 0.0, %v1556
  %v1558 = vpop.f32.mrb[0].mxu0
  %1559 = vmatprep.mubr.f32.mxu0 %v1376
  %1560 = vmatmul.mubr.f32.gmra.mrb[0].mxu0 %v1375
  %v1561 = vpop.f32.mrb[0].mxu0
  %v1562 = vadd.f32 0.0, %v1561
  %v1563 = vpop.f32.mrb[0].mxu0
  %1564 = vmatprep.mubr.f32.mxu0 %v1386
  %1565 = vmatmul.mubr.f32.gmra.mrb[0].mxu0 %v1385
  %v1566 = vpop.f32.mrb[0].mxu0
  %v1567 = vadd.f32 0.0, %v1566
  %v1568 = vpop.f32.mrb[0].mxu0
  %1569 = vmatprep.mubr.f32.mxu0 %v1396
  %1570 = vmatmul.mubr.f32.gmra.mrb[0].mxu0 %v1395
  %v1571 = vpop.f32.mrb[0].mxu0
  %v1572 = vadd.f32 0.0, %v1571
  %v1573 = vpop.f32.mrb[0].mxu0
  %1574 = vmatprep.mubr.f32.mxu0 %v1406
  %1575 = vmatmul.mubr.f32.gmra.mrb[0].mxu0 %v1405
  %v1576 = vpop.f32.mrb[0].mxu0
  %v1577 = vadd.f32 0.0, %v1576
  %v1578 = vpop.f32.mrb[0].mxu0
  %1579 = vdwg.mxu0
  %1580 = vmatprep.subr.mxu0 0.0
  %1581 = vmatpush1.msra.mxu0 %v577
  %1582 = vmatprep.subr.mxu0 0.0
  %1583 = vmatpush1.msra.mxu0 %v582
  %1584 = vmatprep.subr.mxu0 0.0
  %1585 = vmatpush1.msra.mxu0 %v587
  %1586 = vmatprep.subr.mxu0 0.0
  %1587 = vmatpush1.msra.mxu0 %v592
  %1588 = vmatprep.subr.mxu0 0.0
  %1589 = vmatpush1.msra.mxu0 %v597
  %1590 = vmatprep.subr.mxu0 0.0
  %1591 = vmatpush1.msra.mxu0 %v602
  %1592 = vmatprep.subr.mxu0 0.0
  %1593 = vmatpush1.msra.mxu0 %v607
  %1594 = vmatprep.subr.mxu0 0.0
  %1595 = vmatpush1.msra.mxu0 %v612
  %1596 = vmatprep.subr.mxu0 0.0
  %1597 = vmatpush1.msra.mxu0 %v617
  %1598 = vmatprep.subr.mxu0 0.0
  %1599 = vmatpush1.msra.mxu0 %v622
  %1600 = vmatprep.subr.mxu0 0.0
  %1601 = vmatpush1.msra.mxu0 %v627
  %1602 = vmatprep.subr.mxu0 0.0
  %1603 = vmatpush1.msra.mxu0 %v632
  %1604 = vmatprep.subr.mxu0 0.0
  %1605 = vmatpush1.msra.mxu0 %v637
  %1606 = vmatprep.subr.mxu0 0.0
  %1607 = vmatpush1.msra.mxu0 %v642
  %1608 = vmatprep.subr.mxu0 0.0
  %1609 = vmatpush1.msra.mxu0 %v647
  %1610 = vmatprep.subr.mxu0 0.0
  %1611 = vmatpush1.msra.mxu0 %v652
  %1612 = vmatprep.subr.mxu0 0.0
  %1613 = vmatpush1.msra.mxu0 %v657
  %1614 = vmatprep.subr.mxu0 0.0
  %1615 = vmatpush1.msra.mxu0 %v662
  %1616 = vmatprep.subr.mxu0 0.0
  %1617 = vmatpush1.msra.mxu0 %v667
  %1618 = vmatprep.subr.mxu0 0.0
  %1619 = vmatpush1.msra.mxu0 %v672
  %1620 = vmatprep.subr.mxu0 0.0
  %1621 = vmatpush1.msra.mxu0 %v677
  %1622 = vmatprep.subr.mxu0 0.0
  %1623 = vmatpush1.msra.mxu0 %v682
  %1624 = vmatprep.subr.mxu0 0.0
  %1625 = vmatpush1.msra.mxu0 %v687
  %1626 = vmatprep.subr.mxu0 0.0
  %1627 = vmatpush1.msra.mxu0 %v692
  %1628 = vmatprep.subr.mxu0 0.0
  %1629 = vmatpush1.msra.mxu0 %v697
  %1630 = vmatprep.subr.mxu0 0.0
  %1631 = vmatpush1.msra.mxu0 %v702
  %1632 = vmatprep.subr.mxu0 0.0
  %1633 = vmatpush1.msra.mxu0 %v707
  %1634 = vmatprep.subr.mxu0 0.0
  %1635 = vmatpush1.msra.mxu0 %v712
  %1636 = vmatprep.subr.mxu0 0.0
  %1637 = vmatpush1.msra.mxu0 %v717
  %1638 = vmatprep.subr.mxu0 0.0
  %1639 = vmatpush1.msra.mxu0 %v722
  %1640 = vmatprep.subr.mxu0 0.0
  %1641 = vmatpush1.msra.mxu0 %v727
  %1642 = vmatprep.subr.mxu0 0.0
  %1643 = vmatpush1.msra.mxu0 %v732
  %1644 = vmatprep.mubr.f32.mxu0 %v1218
  %1645 = vmatmul.mubr.f32.gmra.mrb[0].mxu0 %v1217
  %v1646 = vpop.f32.mrb[0].mxu0
  %v1647 = vadd.f32 %v1482, %v1646
  %v1648 = vpop.f32.mrb[0].mxu0
  %1649 = vmatprep.mubr.f32.mxu0 %v1228
  %1650 = vmatmul.mubr.f32.gmra.mrb[0].mxu0 %v1227
  %v1651 = vpop.f32.mrb[0].mxu0
  %v1652 = vadd.f32 %v1487, %v1651
  %v1653 = vpop.f32.mrb[0].mxu0
  %1654 = vmatprep.mubr.f32.mxu0 %v1238
  %1655 = vmatmul.mubr.f32.gmra.mrb[0].mxu0 %v1237
  %v1656 = vpop.f32.mrb[0].mxu0
  %v1657 = vadd.f32 %v1492, %v1656
  %v1658 = vpop.f32.mrb[0].mxu0
  %1659 = vmatprep.mubr.f32.mxu0 %v1248
  %1660 = vmatmul.mubr.f32.gmra.mrb[0].mxu0 %v1247
  %v1661 = vpop.f32.mrb[0].mxu0
  %v1662 = vadd.f32 %v1497, %v1661
  %v1663 = vpop.f32.mrb[0].mxu0
  %1664 = vmatprep.mubr.f32.mxu0 %v1258
  %1665 = vmatmul.mubr.f32.gmra.mrb[0].mxu0 %v1257
  %v1666 = vpop.f32.mrb[0].mxu0
  %v1667 = vadd.f32 %v1502, %v1666
  %v1668 = vpop.f32.mrb[0].mxu0
  %1669 = vmatprep.mubr.f32.mxu0 %v1268
  %1670 = vmatmul.mubr.f32.gmra.mrb[0].mxu0 %v1267
  %v1671 = vpop.f32.mrb[0].mxu0
  %v1672 = vadd.f32 %v1507, %v1671
  %v1673 = vpop.f32.mrb[0].mxu0
  %1674 = vmatprep.mubr.f32.mxu0 %v1278
  %1675 = vmatmul.mubr.f32.gmra.mrb[0].mxu0 %v1277
  %v1676 = vpop.f32.mrb[0].mxu0
  %v1677 = vadd.f32 %v1512, %v1676
  %v1678 = vpop.f32.mrb[0].mxu0
  %1679 = vmatprep.mubr.f32.mxu0 %v1288
  %1680 = vmatmul.mubr.f32.gmra.mrb[0].mxu0 %v1287
  %v1681 = vpop.f32.mrb[0].mxu0
  %v1682 = vadd.f32 %v1517, %v1681
  %v1683 = vpop.f32.mrb[0].mxu0
  %1684 = vmatprep.mubr.f32.mxu0 %v1298
  %1685 = vmatmul.mubr.f32.gmra.mrb[0].mxu0 %v1297
  %v1686 = vpop.f32.mrb[0].mxu0
  %v1687 = vadd.f32 %v1522, %v1686
  %v1688 = vpop.f32.mrb[0].mxu0
  %1689 = vmatprep.mubr.f32.mxu0 %v1308
  %1690 = vmatmul.mubr.f32.gmra.mrb[0].mxu0 %v1307
  %v1691 = vpop.f32.mrb[0].mxu0
  %v1692 = vadd.f32 %v1527, %v1691
  %v1693 = vpop.f32.mrb[0].mxu0
  %1694 = vmatprep.mubr.f32.mxu0 %v1318
  %1695 = vmatmul.mubr.f32.gmra.mrb[0].mxu0 %v1317
  %v1696 = vpop.f32.mrb[0].mxu0
  %v1697 = vadd.f32 %v1532, %v1696
  %v1698 = vpop.f32.mrb[0].mxu0
  %1699 = vmatprep.mubr.f32.mxu0 %v1328
  %1700 = vmatmul.mubr.f32.gmra.mrb[0].mxu0 %v1327
  %v1701 = vpop.f32.mrb[0].mxu0
  %v1702 = vadd.f32 %v1537, %v1701
  %v1703 = vpop.f32.mrb[0].mxu0
  %1704 = vmatprep.mubr.f32.mxu0 %v1338
  %1705 = vmatmul.mubr.f32.gmra.mrb[0].mxu0 %v1337
  %v1706 = vpop.f32.mrb[0].mxu0
  %v1707 = vadd.f32 %v1542, %v1706
  %v1708 = vpop.f32.mrb[0].mxu0
  %1709 = vmatprep.mubr.f32.mxu0 %v1348
  %1710 = vmatmul.mubr.f32.gmra.mrb[0].mxu0 %v1347
  %v1711 = vpop.f32.mrb[0].mxu0
  %v1712 = vadd.f32 %v1547, %v1711
  %v1713 = vpop.f32.mrb[0].mxu0
  %1714 = vmatprep.mubr.f32.mxu0 %v1358
  %1715 = vmatmul.mubr.f32.gmra.mrb[0].mxu0 %v1357
  %v1716 = vpop.f32.mrb[0].mxu0
  %v1717 = vadd.f32 %v1552, %v1716
  %v1718 = vpop.f32.mrb[0].mxu0
  %1719 = vmatprep.mubr.f32.mxu0 %v1368
  %1720 = vmatmul.mubr.f32.gmra.mrb[0].mxu0 %v1367
  %v1721 = vpop.f32.mrb[0].mxu0
  %v1722 = vadd.f32 %v1557, %v1721
  %v1723 = vpop.f32.mrb[0].mxu0
  %1724 = vmatprep.mubr.f32.mxu0 %v1378
  %1725 = vmatmul.mubr.f32.gmra.mrb[0].mxu0 %v1377
  %v1726 = vpop.f32.mrb[0].mxu0
  %v1727 = vadd.f32 %v1562, %v1726
  %v1728 = vpop.f32.mrb[0].mxu0
  %1729 = vmatprep.mubr.f32.mxu0 %v1388
  %1730 = vmatmul.mubr.f32.gmra.mrb[0].mxu0 %v1387
  %v1731 = vpop.f32.mrb[0].mxu0
  %v1732 = vadd.f32 %v1567, %v1731
  %v1733 = vpop.f32.mrb[0].mxu0
  %1734 = vmatprep.mubr.f32.mxu0 %v1398
  %1735 = vmatmul.mubr.f32.gmra.mrb[0].mxu0 %v1397
  %v1736 = vpop.f32.mrb[0].mxu0
  %v1737 = vadd.f32 %v1572, %v1736
  %v1738 = vpop.f32.mrb[0].mxu0
  %1739 = vmatprep.mubr.f32.mxu0 %v1408
  %1740 = vmatmul.mubr.f32.gmra.mrb[0].mxu0 %v1407
  %v1741 = vpop.f32.mrb[0].mxu0
  %v1742 = vadd.f32 %v1577, %v1741
  %v1743 = vpop.f32.mrb[0].mxu0
  %1744 = vdwg.mxu0
  %1745 = vmatprep.subr.mxu0 0.0
  %1746 = vmatpush1.msra.mxu0 %v737
  %1747 = vmatprep.subr.mxu0 0.0
  %1748 = vmatpush1.msra.mxu0 %v742
  %1749 = vmatprep.subr.mxu0 0.0
  %1750 = vmatpush1.msra.mxu0 %v747
  %1751 = vmatprep.subr.mxu0 0.0
  %1752 = vmatpush1.msra.mxu0 %v752
  %1753 = vmatprep.subr.mxu0 0.0
  %1754 = vmatpush1.msra.mxu0 %v757
  %1755 = vmatprep.subr.mxu0 0.0
  %1756 = vmatpush1.msra.mxu0 %v762
  %1757 = vmatprep.subr.mxu0 0.0
  %1758 = vmatpush1.msra.mxu0 %v767
  %1759 = vmatprep.subr.mxu0 0.0
  %1760 = vmatpush1.msra.mxu0 %v772
  %1761 = vmatprep.subr.mxu0 0.0
  %1762 = vmatpush1.msra.mxu0 %v777
  %1763 = vmatprep.subr.mxu0 0.0
  %1764 = vmatpush1.msra.mxu0 %v782
  %1765 = vmatprep.subr.mxu0 0.0
  %1766 = vmatpush1.msra.mxu0 %v787
  %1767 = vmatprep.subr.mxu0 0.0
  %1768 = vmatpush1.msra.mxu0 %v792
  %1769 = vmatprep.subr.mxu0 0.0
  %1770 = vmatpush1.msra.mxu0 %v797
  %1771 = vmatprep.subr.mxu0 0.0
  %1772 = vmatpush1.msra.mxu0 %v802
  %1773 = vmatprep.subr.mxu0 0.0
  %1774 = vmatpush1.msra.mxu0 %v807
  %1775 = vmatprep.subr.mxu0 0.0
  %1776 = vmatpush1.msra.mxu0 %v812
  %1777 = vmatprep.subr.mxu0 0.0
  %1778 = vmatpush1.msra.mxu0 %v817
  %1779 = vmatprep.subr.mxu0 0.0
  %1780 = vmatpush1.msra.mxu0 %v822
  %1781 = vmatprep.subr.mxu0 0.0
  %1782 = vmatpush1.msra.mxu0 %v827
  %1783 = vmatprep.subr.mxu0 0.0
  %1784 = vmatpush1.msra.mxu0 %v832
  %1785 = vmatprep.subr.mxu0 0.0
  %1786 = vmatpush1.msra.mxu0 %v837
  %1787 = vmatprep.subr.mxu0 0.0
  %1788 = vmatpush1.msra.mxu0 %v842
  %1789 = vmatprep.subr.mxu0 0.0
  %1790 = vmatpush1.msra.mxu0 %v847
  %1791 = vmatprep.subr.mxu0 0.0
  %1792 = vmatpush1.msra.mxu0 %v852
  %1793 = vmatprep.subr.mxu0 0.0
  %1794 = vmatpush1.msra.mxu0 %v857
  %1795 = vmatprep.subr.mxu0 0.0
  %1796 = vmatpush1.msra.mxu0 %v862
  %1797 = vmatprep.subr.mxu0 0.0
  %1798 = vmatpush1.msra.mxu0 %v867
  %1799 = vmatprep.subr.mxu0 0.0
  %1800 = vmatpush1.msra.mxu0 %v872
  %1801 = vmatprep.subr.mxu0 0.0
  %1802 = vmatpush1.msra.mxu0 %v877
  %1803 = vmatprep.subr.mxu0 0.0
  %1804 = vmatpush1.msra.mxu0 %v882
  %1805 = vmatprep.subr.mxu0 0.0
  %1806 = vmatpush1.msra.mxu0 %v887
  %1807 = vmatprep.subr.mxu0 0.0
  %1808 = vmatpush1.msra.mxu0 %v892
  %1809 = vmatprep.mubr.f32.mxu0 %v1220
  %1810 = vmatmul.mubr.f32.gmra.mrb[0].mxu0 %v1219
  %v1811 = vpop.f32.mrb[0].mxu0
  %v1812 = vadd.f32 %v1647, %v1811
  %v1813 = vpop.f32.mrb[0].mxu0
  %1814 = vmatprep.mubr.f32.mxu0 %v1230
  %1815 = vmatmul.mubr.f32.gmra.mrb[0].mxu0 %v1229
  %v1816 = vpop.f32.mrb[0].mxu0
  %v1817 = vadd.f32 %v1652, %v1816
  %v1818 = vpop.f32.mrb[0].mxu0
  %1819 = vmatprep.mubr.f32.mxu0 %v1240
  %1820 = vmatmul.mubr.f32.gmra.mrb[0].mxu0 %v1239
  %v1821 = vpop.f32.mrb[0].mxu0
  %v1822 = vadd.f32 %v1657, %v1821
  %v1823 = vpop.f32.mrb[0].mxu0
  %1824 = vmatprep.mubr.f32.mxu0 %v1250
  %1825 = vmatmul.mubr.f32.gmra.mrb[0].mxu0 %v1249
  %v1826 = vpop.f32.mrb[0].mxu0
  %v1827 = vadd.f32 %v1662, %v1826
  %v1828 = vpop.f32.mrb[0].mxu0
  %1829 = vmatprep.mubr.f32.mxu0 %v1260
  %1830 = vmatmul.mubr.f32.gmra.mrb[0].mxu0 %v1259
  %v1831 = vpop.f32.mrb[0].mxu0
  %v1832 = vadd.f32 %v1667, %v1831
  %v1833 = vpop.f32.mrb[0].mxu0
  %1834 = vmatprep.mubr.f32.mxu0 %v1270
  %1835 = vmatmul.mubr.f32.gmra.mrb[0].mxu0 %v1269
  %v1836 = vpop.f32.mrb[0].mxu0
  %v1837 = vadd.f32 %v1672, %v1836
  %v1838 = vpop.f32.mrb[0].mxu0
  %1839 = vmatprep.mubr.f32.mxu0 %v1280
  %1840 = vmatmul.mubr.f32.gmra.mrb[0].mxu0 %v1279
  %v1841 = vpop.f32.mrb[0].mxu0
  %v1842 = vadd.f32 %v1677, %v1841
  %v1843 = vpop.f32.mrb[0].mxu0
  %1844 = vmatprep.mubr.f32.mxu0 %v1290
  %1845 = vmatmul.mubr.f32.gmra.mrb[0].mxu0 %v1289
  %v1846 = vpop.f32.mrb[0].mxu0
  %v1847 = vadd.f32 %v1682, %v1846
  %v1848 = vpop.f32.mrb[0].mxu0
  %1849 = vmatprep.mubr.f32.mxu0 %v1300
  %1850 = vmatmul.mubr.f32.gmra.mrb[0].mxu0 %v1299
  %v1851 = vpop.f32.mrb[0].mxu0
  %v1852 = vadd.f32 %v1687, %v1851
  %v1853 = vpop.f32.mrb[0].mxu0
  %1854 = vmatprep.mubr.f32.mxu0 %v1310
  %1855 = vmatmul.mubr.f32.gmra.mrb[0].mxu0 %v1309
  %v1856 = vpop.f32.mrb[0].mxu0
  %v1857 = vadd.f32 %v1692, %v1856
  %v1858 = vpop.f32.mrb[0].mxu0
  %1859 = vmatprep.mubr.f32.mxu0 %v1320
  %1860 = vmatmul.mubr.f32.gmra.mrb[0].mxu0 %v1319
  %v1861 = vpop.f32.mrb[0].mxu0
  %v1862 = vadd.f32 %v1697, %v1861
  %v1863 = vpop.f32.mrb[0].mxu0
  %1864 = vmatprep.mubr.f32.mxu0 %v1330
  %1865 = vmatmul.mubr.f32.gmra.mrb[0].mxu0 %v1329
  %v1866 = vpop.f32.mrb[0].mxu0
  %v1867 = vadd.f32 %v1702, %v1866
  %v1868 = vpop.f32.mrb[0].mxu0
  %1869 = vmatprep.mubr.f32.mxu0 %v1340
  %1870 = vmatmul.mubr.f32.gmra.mrb[0].mxu0 %v1339
  %v1871 = vpop.f32.mrb[0].mxu0
  %v1872 = vadd.f32 %v1707, %v1871
  %v1873 = vpop.f32.mrb[0].mxu0
  %1874 = vmatprep.mubr.f32.mxu0 %v1350
  %1875 = vmatmul.mubr.f32.gmra.mrb[0].mxu0 %v1349
  %v1876 = vpop.f32.mrb[0].mxu0
  %v1877 = vadd.f32 %v1712, %v1876
  %v1878 = vpop.f32.mrb[0].mxu0
  %1879 = vmatprep.mubr.f32.mxu0 %v1360
  %1880 = vmatmul.mubr.f32.gmra.mrb[0].mxu0 %v1359
  %v1881 = vpop.f32.mrb[0].mxu0
  %v1882 = vadd.f32 %v1717, %v1881
  %v1883 = vpop.f32.mrb[0].mxu0
  %1884 = vmatprep.mubr.f32.mxu0 %v1370
  %1885 = vmatmul.mubr.f32.gmra.mrb[0].mxu0 %v1369
  %v1886 = vpop.f32.mrb[0].mxu0
  %v1887 = vadd.f32 %v1722, %v1886
  %v1888 = vpop.f32.mrb[0].mxu0
  %1889 = vmatprep.mubr.f32.mxu0 %v1380
  %1890 = vmatmul.mubr.f32.gmra.mrb[0].mxu0 %v1379
  %v1891 = vpop.f32.mrb[0].mxu0
  %v1892 = vadd.f32 %v1727, %v1891
  %v1893 = vpop.f32.mrb[0].mxu0
  %1894 = vmatprep.mubr.f32.mxu0 %v1390
  %1895 = vmatmul.mubr.f32.gmra.mrb[0].mxu0 %v1389
  %v1896 = vpop.f32.mrb[0].mxu0
  %v1897 = vadd.f32 %v1732, %v1896
  %v1898 = vpop.f32.mrb[0].mxu0
  %1899 = vmatprep.mubr.f32.mxu0 %v1400
  %1900 = vmatmul.mubr.f32.gmra.mrb[0].mxu0 %v1399
  %v1901 = vpop.f32.mrb[0].mxu0
  %v1902 = vadd.f32 %v1737, %v1901
  %v1903 = vpop.f32.mrb[0].mxu0
  %1904 = vmatprep.mubr.f32.mxu0 %v1410
  %1905 = vmatmul.mubr.f32.gmra.mrb[0].mxu0 %v1409
  %v1906 = vpop.f32.mrb[0].mxu0
  %v1907 = vadd.f32 %v1742, %v1906
  %v1908 = vpop.f32.mrb[0].mxu0
  %1909 = vdwg.mxu0
  %1910 = vmatprep.subr.mxu0 0.0
  %1911 = vmatpush1.msra.mxu0 %v897
  %1912 = vmatprep.subr.mxu0 0.0
  %1913 = vmatpush1.msra.mxu0 %v902
  %1914 = vmatprep.subr.mxu0 0.0
  %1915 = vmatpush1.msra.mxu0 %v907
  %1916 = vmatprep.subr.mxu0 0.0
  %1917 = vmatpush1.msra.mxu0 %v912
  %1918 = vmatprep.subr.mxu0 0.0
  %1919 = vmatpush1.msra.mxu0 %v917
  %1920 = vmatprep.subr.mxu0 0.0
  %1921 = vmatpush1.msra.mxu0 %v922
  %1922 = vmatprep.subr.mxu0 0.0
  %1923 = vmatpush1.msra.mxu0 %v927
  %1924 = vmatprep.subr.mxu0 0.0
  %1925 = vmatpush1.msra.mxu0 %v932
  %1926 = vmatprep.subr.mxu0 0.0
  %1927 = vmatpush1.msra.mxu0 %v937
  %1928 = vmatprep.subr.mxu0 0.0
  %1929 = vmatpush1.msra.mxu0 %v942
  %1930 = vmatprep.subr.mxu0 0.0
  %1931 = vmatpush1.msra.mxu0 %v947
  %1932 = vmatprep.subr.mxu0 0.0
  %1933 = vmatpush1.msra.mxu0 %v952
  %1934 = vmatprep.subr.mxu0 0.0
  %1935 = vmatpush1.msra.mxu0 %v957
  %1936 = vmatprep.subr.mxu0 0.0
  %1937 = vmatpush1.msra.mxu0 %v962
  %1938 = vmatprep.subr.mxu0 0.0
  %1939 = vmatpush1.msra.mxu0 %v967
  %1940 = vmatprep.subr.mxu0 0.0
  %1941 = vmatpush1.msra.mxu0 %v972
  %1942 = vmatprep.subr.mxu0 0.0
  %1943 = vmatpush1.msra.mxu0 %v977
  %1944 = vmatprep.subr.mxu0 0.0
  %1945 = vmatpush1.msra.mxu0 %v982
  %1946 = vmatprep.subr.mxu0 0.0
  %1947 = vmatpush1.msra.mxu0 %v987
  %1948 = vmatprep.subr.mxu0 0.0
  %1949 = vmatpush1.msra.mxu0 %v992
  %1950 = vmatprep.subr.mxu0 0.0
  %1951 = vmatpush1.msra.mxu0 %v997
  %1952 = vmatprep.subr.mxu0 0.0
  %1953 = vmatpush1.msra.mxu0 %v1002
  %1954 = vmatprep.subr.mxu0 0.0
  %1955 = vmatpush1.msra.mxu0 %v1007
  %1956 = vmatprep.subr.mxu0 0.0
  %1957 = vmatpush1.msra.mxu0 %v1012
  %1958 = vmatprep.subr.mxu0 0.0
  %1959 = vmatpush1.msra.mxu0 %v1017
  %1960 = vmatprep.subr.mxu0 0.0
  %1961 = vmatpush1.msra.mxu0 %v1022
  %1962 = vmatprep.subr.mxu0 0.0
  %1963 = vmatpush1.msra.mxu0 %v1027
  %1964 = vmatprep.subr.mxu0 0.0
  %1965 = vmatpush1.msra.mxu0 %v1032
  %1966 = vmatprep.subr.mxu0 0.0
  %1967 = vmatpush1.msra.mxu0 %v1037
  %1968 = vmatprep.subr.mxu0 0.0
  %1969 = vmatpush1.msra.mxu0 %v1042
  %1970 = vmatprep.subr.mxu0 0.0
  %1971 = vmatpush1.msra.mxu0 %v1047
  %1972 = vmatprep.subr.mxu0 0.0
  %1973 = vmatpush1.msra.mxu0 %v1052
  %1974 = vmatprep.mubr.f32.mxu0 %v1222
  %1975 = vmatmul.mubr.f32.gmra.mrb[0].mxu0 %v1221
  %v1976 = vpop.f32.mrb[0].mxu0
  %v1977 = vadd.f32 %v1812, %v1976
  %v1978 = vpop.f32.mrb[0].mxu0
  %1979 = vmatprep.mubr.f32.mxu0 %v1232
  %1980 = vmatmul.mubr.f32.gmra.mrb[0].mxu0 %v1231
  %v1981 = vpop.f32.mrb[0].mxu0
  %v1982 = vadd.f32 %v1817, %v1981
  %v1983 = vpop.f32.mrb[0].mxu0
  %1984 = vmatprep.mubr.f32.mxu0 %v1242
  %1985 = vmatmul.mubr.f32.gmra.mrb[0].mxu0 %v1241
  %v1986 = vpop.f32.mrb[0].mxu0
  %v1987 = vadd.f32 %v1822, %v1986
  %v1988 = vpop.f32.mrb[0].mxu0
  %1989 = vmatprep.mubr.f32.mxu0 %v1252
  %1990 = vmatmul.mubr.f32.gmra.mrb[0].mxu0 %v1251
  %v1991 = vpop.f32.mrb[0].mxu0
  %v1992 = vadd.f32 %v1827, %v1991
  %v1993 = vpop.f32.mrb[0].mxu0
  %1994 = vmatprep.mubr.f32.mxu0 %v1262
  %1995 = vmatmul.mubr.f32.gmra.mrb[0].mxu0 %v1261
  %v1996 = vpop.f32.mrb[0].mxu0
  %v1997 = vadd.f32 %v1832, %v1996
  %v1998 = vpop.f32.mrb[0].mxu0
  %1999 = vmatprep.mubr.f32.mxu0 %v1272
  %2000 = vmatmul.mubr.f32.gmra.mrb[0].mxu0 %v1271
  %v2001 = vpop.f32.mrb[0].mxu0
  %v2002 = vadd.f32 %v1837, %v2001
  %v2003 = vpop.f32.mrb[0].mxu0
  %2004 = vmatprep.mubr.f32.mxu0 %v1282
  %2005 = vmatmul.mubr.f32.gmra.mrb[0].mxu0 %v1281
  %v2006 = vpop.f32.mrb[0].mxu0
  %v2007 = vadd.f32 %v1842, %v2006
  %v2008 = vpop.f32.mrb[0].mxu0
  %2009 = vmatprep.mubr.f32.mxu0 %v1292
  %2010 = vmatmul.mubr.f32.gmra.mrb[0].mxu0 %v1291
  %v2011 = vpop.f32.mrb[0].mxu0
  %v2012 = vadd.f32 %v1847, %v2011
  %v2013 = vpop.f32.mrb[0].mxu0
  %2014 = vmatprep.mubr.f32.mxu0 %v1302
  %2015 = vmatmul.mubr.f32.gmra.mrb[0].mxu0 %v1301
  %v2016 = vpop.f32.mrb[0].mxu0
  %v2017 = vadd.f32 %v1852, %v2016
  %v2018 = vpop.f32.mrb[0].mxu0
  %2019 = vmatprep.mubr.f32.mxu0 %v1312
  %2020 = vmatmul.mubr.f32.gmra.mrb[0].mxu0 %v1311
  %v2021 = vpop.f32.mrb[0].mxu0
  %v2022 = vadd.f32 %v1857, %v2021
  %v2023 = vpop.f32.mrb[0].mxu0
  %2024 = vmatprep.mubr.f32.mxu0 %v1322
  %2025 = vmatmul.mubr.f32.gmra.mrb[0].mxu0 %v1321
  %v2026 = vpop.f32.mrb[0].mxu0
  %v2027 = vadd.f32 %v1862, %v2026
  %v2028 = vpop.f32.mrb[0].mxu0
  %2029 = vmatprep.mubr.f32.mxu0 %v1332
  %2030 = vmatmul.mubr.f32.gmra.mrb[0].mxu0 %v1331
  %v2031 = vpop.f32.mrb[0].mxu0
  %v2032 = vadd.f32 %v1867, %v2031
  %v2033 = vpop.f32.mrb[0].mxu0
  %2034 = vmatprep.mubr.f32.mxu0 %v1342
  %2035 = vmatmul.mubr.f32.gmra.mrb[0].mxu0 %v1341
  %v2036 = vpop.f32.mrb[0].mxu0
  %v2037 = vadd.f32 %v1872, %v2036
  %v2038 = vpop.f32.mrb[0].mxu0
  %2039 = vmatprep.mubr.f32.mxu0 %v1352
  %2040 = vmatmul.mubr.f32.gmra.mrb[0].mxu0 %v1351
  %v2041 = vpop.f32.mrb[0].mxu0
  %v2042 = vadd.f32 %v1877, %v2041
  %v2043 = vpop.f32.mrb[0].mxu0
  %2044 = vmatprep.mubr.f32.mxu0 %v1362
  %2045 = vmatmul.mubr.f32.gmra.mrb[0].mxu0 %v1361
  %v2046 = vpop.f32.mrb[0].mxu0
  %v2047 = vadd.f32 %v1882, %v2046
  %v2048 = vpop.f32.mrb[0].mxu0
  %2049 = vmatprep.mubr.f32.mxu0 %v1372
  %2050 = vmatmul.mubr.f32.gmra.mrb[0].mxu0 %v1371
  %v2051 = vpop.f32.mrb[0].mxu0
  %v2052 = vadd.f32 %v1887, %v2051
  %v2053 = vpop.f32.mrb[0].mxu0
  %2054 = vmatprep.mubr.f32.mxu0 %v1382
  %2055 = vmatmul.mubr.f32.gmra.mrb[0].mxu0 %v1381
  %v2056 = vpop.f32.mrb[0].mxu0
  %v2057 = vadd.f32 %v1892, %v2056
  %v2058 = vpop.f32.mrb[0].mxu0
  %2059 = vmatprep.mubr.f32.mxu0 %v1392
  %2060 = vmatmul.mubr.f32.gmra.mrb[0].mxu0 %v1391
  %v2061 = vpop.f32.mrb[0].mxu0
  %v2062 = vadd.f32 %v1897, %v2061
  %v2063 = vpop.f32.mrb[0].mxu0
  %2064 = vmatprep.mubr.f32.mxu0 %v1402
  %2065 = vmatmul.mubr.f32.gmra.mrb[0].mxu0 %v1401
  %v2066 = vpop.f32.mrb[0].mxu0
  %v2067 = vadd.f32 %v1902, %v2066
  %v2068 = vpop.f32.mrb[0].mxu0
  %2069 = vmatprep.mubr.f32.mxu0 %v1412
  %2070 = vmatmul.mubr.f32.gmra.mrb[0].mxu0 %v1411
  %v2071 = vpop.f32.mrb[0].mxu0
  %v2072 = vadd.f32 %v1907, %v2071
  %v2073 = vpop.f32.mrb[0].mxu0
  %2074 = vdwg.mxu0
  %2075 = vmatprep.subr.mxu0 0.0
  %2076 = vmatpush1.msra.mxu0 %v1057
  %2077 = vmatprep.subr.mxu0 0.0
  %2078 = vmatpush1.msra.mxu0 %v1062
  %2079 = vmatprep.subr.mxu0 0.0
  %2080 = vmatpush1.msra.mxu0 %v1067
  %2081 = vmatprep.subr.mxu0 0.0
  %2082 = vmatpush1.msra.mxu0 %v1072
  %2083 = vmatprep.subr.mxu0 0.0
  %2084 = vmatpush1.msra.mxu0 %v1077
  %2085 = vmatprep.subr.mxu0 0.0
  %2086 = vmatpush1.msra.mxu0 %v1082
  %2087 = vmatprep.subr.mxu0 0.0
  %2088 = vmatpush1.msra.mxu0 %v1087
  %2089 = vmatprep.subr.mxu0 0.0
  %2090 = vmatpush1.msra.mxu0 %v1092
  %2091 = vmatprep.subr.mxu0 0.0
  %2092 = vmatpush1.msra.mxu0 %v1097
  %2093 = vmatprep.subr.mxu0 0.0
  %2094 = vmatpush1.msra.mxu0 %v1102
  %2095 = vmatprep.subr.mxu0 0.0
  %2096 = vmatpush1.msra.mxu0 %v1107
  %2097 = vmatprep.subr.mxu0 0.0
  %2098 = vmatpush1.msra.mxu0 %v1112
  %2099 = vmatprep.subr.mxu0 0.0
  %2100 = vmatpush1.msra.mxu0 %v1117
  %2101 = vmatprep.subr.mxu0 0.0
  %2102 = vmatpush1.msra.mxu0 %v1122
  %2103 = vmatprep.subr.mxu0 0.0
  %2104 = vmatpush1.msra.mxu0 %v1127
  %2105 = vmatprep.subr.mxu0 0.0
  %2106 = vmatpush1.msra.mxu0 %v1132
  %2107 = vmatprep.subr.mxu0 0.0
  %2108 = vmatpush1.msra.mxu0 %v1137
  %2109 = vmatprep.subr.mxu0 0.0
  %2110 = vmatpush1.msra.mxu0 %v1142
  %2111 = vmatprep.subr.mxu0 0.0
  %2112 = vmatpush1.msra.mxu0 %v1147
  %2113 = vmatprep.subr.mxu0 0.0
  %2114 = vmatpush1.msra.mxu0 %v1152
  %2115 = vmatprep.subr.mxu0 0.0
  %2116 = vmatpush1.msra.mxu0 %v1157
  %2117 = vmatprep.subr.mxu0 0.0
  %2118 = vmatpush1.msra.mxu0 %v1162
  %2119 = vmatprep.subr.mxu0 0.0
  %2120 = vmatpush1.msra.mxu0 %v1167
  %2121 = vmatprep.subr.mxu0 0.0
  %2122 = vmatpush1.msra.mxu0 %v1172
  %2123 = vmatprep.subr.mxu0 0.0
  %2124 = vmatpush1.msra.mxu0 %v1177
  %2125 = vmatprep.subr.mxu0 0.0
  %2126 = vmatpush1.msra.mxu0 %v1182
  %2127 = vmatprep.subr.mxu0 0.0
  %2128 = vmatpush1.msra.mxu0 %v1187
  %2129 = vmatprep.subr.mxu0 0.0
  %2130 = vmatpush1.msra.mxu0 %v1192
  %2131 = vmatprep.subr.mxu0 0.0
  %2132 = vmatpush1.msra.mxu0 %v1197
  %2133 = vmatprep.subr.mxu0 0.0
  %2134 = vmatpush1.msra.mxu0 %v1202
  %2135 = vmatprep.subr.mxu0 0.0
  %2136 = vmatpush1.msra.mxu0 %v1207
  %2137 = vmatprep.subr.mxu0 0.0
  %2138 = vmatpush1.msra.mxu0 %v1212
  %2139 = vmatprep.mubr.f32.mxu0 %v1224
  %2140 = vmatmul.mubr.f32.gmra.mrb[0].mxu0 %v1223
  %v2141 = vpop.f32.mrb[0].mxu0
  %v2142 = vadd.f32 %v1977, %v2141
  %v2143 = vpop.f32.mrb[0].mxu0
  %2144 = vmatprep.mubr.f32.mxu0 %v1234
  %2145 = vmatmul.mubr.f32.gmra.mrb[0].mxu0 %v1233
  %v2146 = vpop.f32.mrb[0].mxu0
  %v2147 = vadd.f32 %v1982, %v2146
  %v2148 = vpop.f32.mrb[0].mxu0
  %2149 = vmatprep.mubr.f32.mxu0 %v1244
  %2150 = vmatmul.mubr.f32.gmra.mrb[0].mxu0 %v1243
  %v2151 = vpop.f32.mrb[0].mxu0
  %v2152 = vadd.f32 %v1987, %v2151
  %v2153 = vpop.f32.mrb[0].mxu0
  %2154 = vmatprep.mubr.f32.mxu0 %v1254
  %2155 = vmatmul.mubr.f32.gmra.mrb[0].mxu0 %v1253
  %v2156 = vpop.f32.mrb[0].mxu0
  %v2157 = vadd.f32 %v1992, %v2156
  %v2158 = vpop.f32.mrb[0].mxu0
  %2159 = vmatprep.mubr.f32.mxu0 %v1264
  %2160 = vmatmul.mubr.f32.gmra.mrb[0].mxu0 %v1263
  %v2161 = vpop.f32.mrb[0].mxu0
  %v2162 = vadd.f32 %v1997, %v2161
  %v2163 = vpop.f32.mrb[0].mxu0
  %2164 = vmatprep.mubr.f32.mxu0 %v1274
  %2165 = vmatmul.mubr.f32.gmra.mrb[0].mxu0 %v1273
  %v2166 = vpop.f32.mrb[0].mxu0
  %v2167 = vadd.f32 %v2002, %v2166
  %v2168 = vpop.f32.mrb[0].mxu0
  %2169 = vmatprep.mubr.f32.mxu0 %v1284
  %2170 = vmatmul.mubr.f32.gmra.mrb[0].mxu0 %v1283
  %v2171 = vpop.f32.mrb[0].mxu0
  %v2172 = vadd.f32 %v2007, %v2171
  %v2173 = vpop.f32.mrb[0].mxu0
  %2174 = vmatprep.mubr.f32.mxu0 %v1294
  %2175 = vmatmul.mubr.f32.gmra.mrb[0].mxu0 %v1293
  %v2176 = vpop.f32.mrb[0].mxu0
  %v2177 = vadd.f32 %v2012, %v2176
  %v2178 = vpop.f32.mrb[0].mxu0
  %2179 = vmatprep.mubr.f32.mxu0 %v1304
  %2180 = vmatmul.mubr.f32.gmra.mrb[0].mxu0 %v1303
  %v2181 = vpop.f32.mrb[0].mxu0
  %v2182 = vadd.f32 %v2017, %v2181
  %v2183 = vpop.f32.mrb[0].mxu0
  %2184 = vmatprep.mubr.f32.mxu0 %v1314
  %2185 = vmatmul.mubr.f32.gmra.mrb[0].mxu0 %v1313
  %v2186 = vpop.f32.mrb[0].mxu0
  %v2187 = vadd.f32 %v2022, %v2186
  %v2188 = vpop.f32.mrb[0].mxu0
  %2189 = vmatprep.mubr.f32.mxu0 %v1324
  %2190 = vmatmul.mubr.f32.gmra.mrb[0].mxu0 %v1323
  %v2191 = vpop.f32.mrb[0].mxu0
  %v2192 = vadd.f32 %v2027, %v2191
  %v2193 = vpop.f32.mrb[0].mxu0
  %2194 = vmatprep.mubr.f32.mxu0 %v1334
  %2195 = vmatmul.mubr.f32.gmra.mrb[0].mxu0 %v1333
  %v2196 = vpop.f32.mrb[0].mxu0
  %v2197 = vadd.f32 %v2032, %v2196
  %v2198 = vpop.f32.mrb[0].mxu0
  %2199 = vmatprep.mubr.f32.mxu0 %v1344
  %2200 = vmatmul.mubr.f32.gmra.mrb[0].mxu0 %v1343
  %v2201 = vpop.f32.mrb[0].mxu0
  %v2202 = vadd.f32 %v2037, %v2201
  %v2203 = vpop.f32.mrb[0].mxu0
  %2204 = vmatprep.mubr.f32.mxu0 %v1354
  %2205 = vmatmul.mubr.f32.gmra.mrb[0].mxu0 %v1353
  %v2206 = vpop.f32.mrb[0].mxu0
  %v2207 = vadd.f32 %v2042, %v2206
  %v2208 = vpop.f32.mrb[0].mxu0
  %2209 = vmatprep.mubr.f32.mxu0 %v1364
  %2210 = vmatmul.mubr.f32.gmra.mrb[0].mxu0 %v1363
  %v2211 = vpop.f32.mrb[0].mxu0
  %v2212 = vadd.f32 %v2047, %v2211
  %v2213 = vpop.f32.mrb[0].mxu0
  %2214 = vmatprep.mubr.f32.mxu0 %v1374
  %2215 = vmatmul.mubr.f32.gmra.mrb[0].mxu0 %v1373
  %v2216 = vpop.f32.mrb[0].mxu0
  %v2217 = vadd.f32 %v2052, %v2216
  %v2218 = vpop.f32.mrb[0].mxu0
  %2219 = vmatprep.mubr.f32.mxu0 %v1384
  %2220 = vmatmul.mubr.f32.gmra.mrb[0].mxu0 %v1383
  %v2221 = vpop.f32.mrb[0].mxu0
  %v2222 = vadd.f32 %v2057, %v2221
  %v2223 = vpop.f32.mrb[0].mxu0
  %2224 = vmatprep.mubr.f32.mxu0 %v1394
  %2225 = vmatmul.mubr.f32.gmra.mrb[0].mxu0 %v1393
  %v2226 = vpop.f32.mrb[0].mxu0
  %v2227 = vadd.f32 %v2062, %v2226
  %v2228 = vpop.f32.mrb[0].mxu0
  %2229 = vmatprep.mubr.f32.mxu0 %v1404
  %2230 = vmatmul.mubr.f32.gmra.mrb[0].mxu0 %v1403
  %v2231 = vpop.f32.mrb[0].mxu0
  %v2232 = vadd.f32 %v2067, %v2231
  %v2233 = vpop.f32.mrb[0].mxu0
  %2234 = vmatprep.mubr.f32.mxu0 %v1414
  %2235 = vmatmul.mubr.f32.gmra.mrb[0].mxu0 %v1413
  %v2236 = vpop.f32.mrb[0].mxu0
  %v2237 = vadd.f32 %v2072, %v2236
  %v2238 = vpop.f32.mrb[0].mxu0
  %2239 = vdwg.mxu0
  %vm2240 = vcmask 130048
  %2241 = vst.msk [vmem:[%s3] sm:$0xff] %vm2240, %v2142
  %2242 = vst.msk [vmem:[%s3 + $0x8] sm:$0xff] %vm2240, %v2147
  %2243 = vst.msk [vmem:[%s3 + $0x10] sm:$0xff] %vm2240, %v2152
  %2244 = vst.msk [vmem:[%s3 + $0x18] sm:$0xff] %vm2240, %v2157
  %2245 = vst.msk [vmem:[%s3 + $0x20] sm:$0xff] %vm2240, %v2162
  %2246 = vst.msk [vmem:[%s3 + $0x28] sm:$0xff] %vm2240, %v2167
  %2247 = vst.msk [vmem:[%s3 + $0x30] sm:$0xff] %vm2240, %v2172
  %2248 = vst.msk [vmem:[%s3 + $0x38] sm:$0xff] %vm2240, %v2177
  %2249 = vst.msk [vmem:[%s3 + $0x40] sm:$0xff] %vm2240, %v2182
  %2250 = vst.msk [vmem:[%s3 + $0x48] sm:$0xff] %vm2240, %v2187
  %2251 = vst.msk [vmem:[%s3 + $0x50] sm:$0xff] %vm2240, %v2192
  %2252 = vst.msk [vmem:[%s3 + $0x58] sm:$0xff] %vm2240, %v2197
  %2253 = vst.msk [vmem:[%s3 + $0x60] sm:$0xff] %vm2240, %v2202
  %2254 = vst.msk [vmem:[%s3 + $0x68] sm:$0xff] %vm2240, %v2207
  %2255 = vst.msk [vmem:[%s3 + $0x70] sm:$0xff] %vm2240, %v2212
  %2256 = vst.msk [vmem:[%s3 + $0x78] sm:$0xff] %vm2240, %v2217
  %2257 = vst.msk [vmem:[%s3 + $0x80] sm:$0xff] %vm2240, %v2222
  %2258 = vst.msk [vmem:[%s3 + $0x88] sm:$0xff] %vm2240, %v2227
  %2259 = vst.msk [vmem:[%s3 + $0x90] sm:$0xff] %vm2240, %v2232
  %2260 = vst.msk [vmem:[%s3 + $0x98] sm:$0xff] %vm2240, %v2237
  // Predicated region
  $region14: #{forward.3} parent=0 // pred_check
    _
  $region15: #{forward.3} parent=0 // pred_check_branch
    %2262 = sbr.rel (0) target = $region17
  $region16: #{forward.3} parent=0 // pred_region
    _
  $region17: #{forward.3} parent=0 // pred_fallthru
    _
  // Predicated region
  $region18: #{forward.3} parent=0 // pred_check
    _
  $region19: #{forward.3} parent=0 // pred_check_branch
    %2264 = sbr.rel (0) target = $region21
  $region20: #{forward.3} parent=0 // pred_region
    _
  $region21: #{forward.3} parent=0 // pred_fallthru
    _

// kernel: forward.4
$region0: #{forward.4}
  #allocation0 [shape = 'u32[]', space=smem, size = 0x4, offset = 0x4, fixed_abs, tag = 'smem constant byte address 0x4 - core index']
  #allocation1 [shape = 'u32[144,128]{1,0:T(1,128)}', space=vmem, size = 0x12000, scoped, tag = 'internal scratch']
  %s0 = inlined_call_operand.vmem [shape: f32[192,16], index: 0, kind: input, shape index: {}]
  %s1 = inlined_call_operand.vmem [shape: f32[16,6], index: 1, kind: input, shape index: {}]
  %s2 = inlined_call_operand.vmem [shape: f32[72,192], index: 2, kind: input, shape index: {}]
  %s3 = inlined_call_operand.vmem [shape: f32[72,6], index: 3, kind: output, shape index: {}]
  %s4 = sld [smem:[#allocation0]]
  $region22: #{forward.4} parent=0
    _
  %s6 = ssub.s32 1, %s4
  %s7 = scalar_select 0, %s6, %s4
  // Predicated region
  $region2: #{forward.4} parent=0 // pred_check
    _
  $region3: #{forward.4} parent=0 // pred_check_branch
    %9 = sbr.rel (0) target = $region5
  $region4: #{forward.4} parent=0 // pred_region
    _
  $region5: #{forward.4} parent=0 // pred_fallthru
    _
  // Predicated region
  $region6: #{forward.4} parent=0 // pred_check
    _
  $region7: #{forward.4} parent=0 // pred_check_branch
    %11 = sbr.rel (0) target = $region9
  $region8: #{forward.4} parent=0 // pred_region
    _
  $region9: #{forward.4} parent=0 // pred_fallthru
    _
  // Predicated region
  $region10: #{forward.4} parent=0 // pred_check
    _
  $region11: #{forward.4} parent=0 // pred_check_branch
    %13 = sbr.rel (0) target = $region13
  $region12: #{forward.4} parent=0 // pred_region
    _
  $region13: #{forward.4} parent=0 // pred_fallthru
    _
  %v14 = vld [vmem:[%s0] sm:$0xff]
  %v15 = vld [vmem:[%s0 + $0x8] sm:$0xff]
  %v16 = vld [vmem:[%s0 + $0x10] sm:$0xff]
  %v17 = vld [vmem:[%s0 + $0x18] sm:$0xff]
  %v18 = vld [vmem:[%s0 + $0x20] sm:$0xff]
  %v19 = vld [vmem:[%s0 + $0x28] sm:$0xff]
  %v20 = vld [vmem:[%s0 + $0x30] sm:$0xff]
  %v21 = vld [vmem:[%s0 + $0x38] sm:$0xff]
  %v22 = vld [vmem:[%s0 + $0x40] sm:$0xff]
  %v23 = vld [vmem:[%s0 + $0x48] sm:$0xff]
  %v24 = vld [vmem:[%s0 + $0x50] sm:$0xff]
  %v25 = vld [vmem:[%s0 + $0x58] sm:$0xff]
  %v26 = vld [vmem:[%s0 + $0x60] sm:$0xff]
  %v27 = vld [vmem:[%s0 + $0x68] sm:$0xff]
  %v28 = vld [vmem:[%s0 + $0x70] sm:$0xff]
  %v29 = vld [vmem:[%s0 + $0x78] sm:$0xff]
  %v30 = vld [vmem:[%s0 + $0x80] sm:$0xff]
  %v31 = vld [vmem:[%s0 + $0x88] sm:$0xff]
  %v32 = vld [vmem:[%s0 + $0x90] sm:$0xff]
  %v33 = vld [vmem:[%s0 + $0x98] sm:$0xff]
  %v34 = vld [vmem:[%s0 + $0xa0] sm:$0xff]
  %v35 = vld [vmem:[%s0 + $0xa8] sm:$0xff]
  %v36 = vld [vmem:[%s0 + $0xb0] sm:$0xff]
  %v37 = vld [vmem:[%s0 + $0xb8] sm:$0xff]
  %v38 = vld [vmem:[%s1] sm:$0xff]
  %v39 = vld [vmem:[%s1 + $0x8] sm:$0xff]
  %vm40 = vcmask 130048
  %v42 = vsel %vm40, %v14, 0
  %v45 = vsel %vm40, %v15, 0
  %v48 = vsel %vm40, %v16, 0
  %v51 = vsel %vm40, %v17, 0
  %v54 = vsel %vm40, %v18, 0
  %v57 = vsel %vm40, %v19, 0
  %v60 = vsel %vm40, %v20, 0
  %v63 = vsel %vm40, %v21, 0
  %v66 = vsel %vm40, %v22, 0
  %v69 = vsel %vm40, %v23, 0
  %v72 = vsel %vm40, %v24, 0
  %v75 = vsel %vm40, %v25, 0
  %v78 = vsel %vm40, %v26, 0
  %v81 = vsel %vm40, %v27, 0
  %v84 = vsel %vm40, %v28, 0
  %v87 = vsel %vm40, %v29, 0
  %v90 = vsel %vm40, %v30, 0
  %v93 = vsel %vm40, %v31, 0
  %v96 = vsel %vm40, %v32, 0
  %v99 = vsel %vm40, %v33, 0
  %v102 = vsel %vm40, %v34, 0
  %v105 = vsel %vm40, %v35, 0
  %v108 = vsel %vm40, %v36, 0
  %v111 = vsel %vm40, %v37, 0
  %113 = vmatprep.subr.mxu0 0.0
  %114 = vmatpush1.msra.mxu0 %v38
  %115 = vmatprep.subr.mxu0 0.0
  %116 = vmatpush1.msra.mxu0 %v39
  %117 = vmatprep.subr.mxu0 0.0
  %118 = vmatpush1.msra.mxu0 0.0
  %119 = vmatprep.subr.mxu0 0.0
  %120 = vmatpush1.msra.mxu0 0.0
  %121 = vmatprep.subr.mxu0 0.0
  %122 = vmatpush1.msra.mxu0 0.0
  %123 = vmatprep.subr.mxu0 0.0
  %124 = vmatpush1.msra.mxu0 0.0
  %125 = vmatprep.subr.mxu0 0.0
  %126 = vmatpush1.msra.mxu0 0.0
  %127 = vmatprep.subr.mxu0 0.0
  %128 = vmatpush1.msra.mxu0 0.0
  %129 = vmatprep.subr.mxu0 0.0
  %130 = vmatpush1.msra.mxu0 0.0
  %131 = vmatprep.subr.mxu0 0.0
  %132 = vmatpush1.msra.mxu0 0.0
  %133 = vmatprep.subr.mxu0 0.0
  %134 = vmatpush1.msra.mxu0 0.0
  %135 = vmatprep.subr.mxu0 0.0
  %136 = vmatpush1.msra.mxu0 0.0
  %137 = vmatprep.subr.mxu0 0.0
  %138 = vmatpush1.msra.mxu0 0.0
  %139 = vmatprep.subr.mxu0 0.0
  %140 = vmatpush1.msra.mxu0 0.0
  %141 = vmatprep.subr.mxu0 0.0
  %142 = vmatpush1.msra.mxu0 0.0
  %143 = vmatprep.subr.mxu0 0.0
  %144 = vmatpush1.msra.mxu0 0.0
  %145 = vmatprep.subr.mxu0 0.0
  %146 = vmatpush1.msra.mxu0 0.0
  %147 = vmatprep.subr.mxu0 0.0
  %148 = vmatpush1.msra.mxu0 0.0
  %149 = vmatprep.subr.mxu0 0.0
  %150 = vmatpush1.msra.mxu0 0.0
  %151 = vmatprep.subr.mxu0 0.0
  %152 = vmatpush1.msra.mxu0 0.0
  %153 = vmatprep.subr.mxu0 0.0
  %154 = vmatpush1.msra.mxu0 0.0
  %155 = vmatprep.subr.mxu0 0.0
  %156 = vmatpush1.msra.mxu0 0.0
  %157 = vmatprep.subr.mxu0 0.0
  %158 = vmatpush1.msra.mxu0 0.0
  %159 = vmatprep.subr.mxu0 0.0
  %160 = vmatpush1.msra.mxu0 0.0
  %161 = vmatprep.subr.mxu0 0.0
  %162 = vmatpush1.msra.mxu0 0.0
  %163 = vmatprep.subr.mxu0 0.0
  %164 = vmatpush1.msra.mxu0 0.0
  %165 = vmatprep.subr.mxu0 0.0
  %166 = vmatpush1.msra.mxu0 0.0
  %167 = vmatprep.subr.mxu0 0.0
  %168 = vmatpush1.msra.mxu0 0.0
  %169 = vmatprep.subr.mxu0 0.0
  %170 = vmatpush1.msra.mxu0 0.0
  %171 = vmatprep.subr.mxu0 0.0
  %172 = vmatpush1.msra.mxu0 0.0
  %173 = vmatprep.subr.mxu0 0.0
  %174 = vmatpush1.msra.mxu0 0.0
  %175 = vmatprep.subr.mxu0 0.0
  %176 = vmatpush1.msra.mxu0 0.0
  %177 = vmatprep.mubr.f32.mxu0 0.0
  %178 = vmatmul.mubr.f32.gmra.mrb[0].mxu0 %v42
  %v179 = vpop.f32.mrb[0].mxu0
  %v180 = vadd.f32 0.0, %v179
  %v181 = vpop.f32.mrb[0].mxu0
  %182 = vmatprep.mubr.f32.mxu0 0.0
  %183 = vmatmul.mubr.f32.gmra.mrb[0].mxu0 %v45
  %v184 = vpop.f32.mrb[0].mxu0
  %v185 = vadd.f32 0.0, %v184
  %v186 = vpop.f32.mrb[0].mxu0
  %187 = vmatprep.mubr.f32.mxu0 0.0
  %188 = vmatmul.mubr.f32.gmra.mrb[0].mxu0 %v48
  %v189 = vpop.f32.mrb[0].mxu0
  %v190 = vadd.f32 0.0, %v189
  %v191 = vpop.f32.mrb[0].mxu0
  %192 = vmatprep.mubr.f32.mxu0 0.0
  %193 = vmatmul.mubr.f32.gmra.mrb[0].mxu0 %v51
  %v194 = vpop.f32.mrb[0].mxu0
  %v195 = vadd.f32 0.0, %v194
  %v196 = vpop.f32.mrb[0].mxu0
  %197 = vmatprep.mubr.f32.mxu0 0.0
  %198 = vmatmul.mubr.f32.gmra.mrb[0].mxu0 %v54
  %v199 = vpop.f32.mrb[0].mxu0
  %v200 = vadd.f32 0.0, %v199
  %v201 = vpop.f32.mrb[0].mxu0
  %202 = vmatprep.mubr.f32.mxu0 0.0
  %203 = vmatmul.mubr.f32.gmra.mrb[0].mxu0 %v57
  %v204 = vpop.f32.mrb[0].mxu0
  %v205 = vadd.f32 0.0, %v204
  %v206 = vpop.f32.mrb[0].mxu0
  %207 = vmatprep.mubr.f32.mxu0 0.0
  %208 = vmatmul.mubr.f32.gmra.mrb[0].mxu0 %v60
  %v209 = vpop.f32.mrb[0].mxu0
  %v210 = vadd.f32 0.0, %v209
  %v211 = vpop.f32.mrb[0].mxu0
  %212 = vmatprep.mubr.f32.mxu0 0.0
  %213 = vmatmul.mubr.f32.gmra.mrb[0].mxu0 %v63
  %v214 = vpop.f32.mrb[0].mxu0
  %v215 = vadd.f32 0.0, %v214
  %v216 = vpop.f32.mrb[0].mxu0
  %217 = vmatprep.mubr.f32.mxu0 0.0
  %218 = vmatmul.mubr.f32.gmra.mrb[0].mxu0 %v66
  %v219 = vpop.f32.mrb[0].mxu0
  %v220 = vadd.f32 0.0, %v219
  %v221 = vpop.f32.mrb[0].mxu0
  %222 = vmatprep.mubr.f32.mxu0 0.0
  %223 = vmatmul.mubr.f32.gmra.mrb[0].mxu0 %v69
  %v224 = vpop.f32.mrb[0].mxu0
  %v225 = vadd.f32 0.0, %v224
  %v226 = vpop.f32.mrb[0].mxu0
  %227 = vmatprep.mubr.f32.mxu0 0.0
  %228 = vmatmul.mubr.f32.gmra.mrb[0].mxu0 %v72
  %v229 = vpop.f32.mrb[0].mxu0
  %v230 = vadd.f32 0.0, %v229
  %v231 = vpop.f32.mrb[0].mxu0
  %232 = vmatprep.mubr.f32.mxu0 0.0
  %233 = vmatmul.mubr.f32.gmra.mrb[0].mxu0 %v75
  %v234 = vpop.f32.mrb[0].mxu0
  %v235 = vadd.f32 0.0, %v234
  %v236 = vpop.f32.mrb[0].mxu0
  %237 = vmatprep.mubr.f32.mxu0 0.0
  %238 = vmatmul.mubr.f32.gmra.mrb[0].mxu0 %v78
  %v239 = vpop.f32.mrb[0].mxu0
  %v240 = vadd.f32 0.0, %v239
  %v241 = vpop.f32.mrb[0].mxu0
  %242 = vmatprep.mubr.f32.mxu0 0.0
  %243 = vmatmul.mubr.f32.gmra.mrb[0].mxu0 %v81
  %v244 = vpop.f32.mrb[0].mxu0
  %v245 = vadd.f32 0.0, %v244
  %v246 = vpop.f32.mrb[0].mxu0
  %247 = vmatprep.mubr.f32.mxu0 0.0
  %248 = vmatmul.mubr.f32.gmra.mrb[0].mxu0 %v84
  %v249 = vpop.f32.mrb[0].mxu0
  %v250 = vadd.f32 0.0, %v249
  %v251 = vpop.f32.mrb[0].mxu0
  %252 = vmatprep.mubr.f32.mxu0 0.0
  %253 = vmatmul.mubr.f32.gmra.mrb[0].mxu0 %v87
  %v254 = vpop.f32.mrb[0].mxu0
  %v255 = vadd.f32 0.0, %v254
  %v256 = vpop.f32.mrb[0].mxu0
  %257 = vmatprep.mubr.f32.mxu0 0.0
  %258 = vmatmul.mubr.f32.gmra.mrb[0].mxu0 %v90
  %v259 = vpop.f32.mrb[0].mxu0
  %v260 = vadd.f32 0.0, %v259
  %v261 = vpop.f32.mrb[0].mxu0
  %262 = vmatprep.mubr.f32.mxu0 0.0
  %263 = vmatmul.mubr.f32.gmra.mrb[0].mxu0 %v93
  %v264 = vpop.f32.mrb[0].mxu0
  %v265 = vadd.f32 0.0, %v264
  %v266 = vpop.f32.mrb[0].mxu0
  %267 = vmatprep.mubr.f32.mxu0 0.0
  %268 = vmatmul.mubr.f32.gmra.mrb[0].mxu0 %v96
  %v269 = vpop.f32.mrb[0].mxu0
  %v270 = vadd.f32 0.0, %v269
  %v271 = vpop.f32.mrb[0].mxu0
  %272 = vmatprep.mubr.f32.mxu0 0.0
  %273 = vmatmul.mubr.f32.gmra.mrb[0].mxu0 %v99
  %v274 = vpop.f32.mrb[0].mxu0
  %v275 = vadd.f32 0.0, %v274
  %v276 = vpop.f32.mrb[0].mxu0
  %277 = vmatprep.mubr.f32.mxu0 0.0
  %278 = vmatmul.mubr.f32.gmra.mrb[0].mxu0 %v102
  %v279 = vpop.f32.mrb[0].mxu0
  %v280 = vadd.f32 0.0, %v279
  %v281 = vpop.f32.mrb[0].mxu0
  %282 = vmatprep.mubr.f32.mxu0 0.0
  %283 = vmatmul.mubr.f32.gmra.mrb[0].mxu0 %v105
  %v284 = vpop.f32.mrb[0].mxu0
  %v285 = vadd.f32 0.0, %v284
  %v286 = vpop.f32.mrb[0].mxu0
  %287 = vmatprep.mubr.f32.mxu0 0.0
  %288 = vmatmul.mubr.f32.gmra.mrb[0].mxu0 %v108
  %v289 = vpop.f32.mrb[0].mxu0
  %v290 = vadd.f32 0.0, %v289
  %v291 = vpop.f32.mrb[0].mxu0
  %292 = vmatprep.mubr.f32.mxu0 0.0
  %293 = vmatmul.mubr.f32.gmra.mrb[0].mxu0 %v111
  %v294 = vpop.f32.mrb[0].mxu0
  %v295 = vadd.f32 0.0, %v294
  %v296 = vpop.f32.mrb[0].mxu0
  %297 = vdwg.mxu0
  %v298 = vld [vmem:[%s2] sm:$0xff]
  %v299 = vld [vmem:[%s2 + $0x8] sm:$0xff]
  %v300 = vld [vmem:[%s2 + $0x10] sm:$0xff]
  %v301 = vld [vmem:[%s2 + $0x18] sm:$0xff]
  %v302 = vld [vmem:[%s2 + $0x20] sm:$0xff]
  %v303 = vld [vmem:[%s2 + $0x28] sm:$0xff]
  %v304 = vld [vmem:[%s2 + $0x30] sm:$0xff]
  %v305 = vld [vmem:[%s2 + $0x38] sm:$0xff]
  %v306 = vld [vmem:[%s2 + $0x40] sm:$0xff]
  %v307 = vld [vmem:[%s2 + $0x48] sm:$0xff]
  %v308 = vld [vmem:[%s2 + $0x50] sm:$0xff]
  %v309 = vld [vmem:[%s2 + $0x58] sm:$0xff]
  %v310 = vld [vmem:[%s2 + $0x60] sm:$0xff]
  %v311 = vld [vmem:[%s2 + $0x68] sm:$0xff]
  %v312 = vld [vmem:[%s2 + $0x70] sm:$0xff]
  %v313 = vld [vmem:[%s2 + $0x78] sm:$0xff]
  %v314 = vld [vmem:[%s2 + $0x80] sm:$0xff]
  %v315 = vld [vmem:[%s2 + $0x88] sm:$0xff]
  %vm316 = vcmask 523264
  %v318 = vsel %vm316, %v299, 0
  %v321 = vsel %vm316, %v301, 0
  %v324 = vsel %vm316, %v303, 0
  %v327 = vsel %vm316, %v305, 0
  %v330 = vsel %vm316, %v307, 0
  %v333 = vsel %vm316, %v309, 0
  %v336 = vsel %vm316, %v311, 0
  %v339 = vsel %vm316, %v313, 0
  %v342 = vsel %vm316, %v315, 0
  %344 = vmatprep.subr.mxu0 0.0
  %345 = vmatpush1.msra.mxu0 %v180
  %346 = vmatprep.subr.mxu0 0.0
  %347 = vmatpush1.msra.mxu0 %v185
  %348 = vmatprep.subr.mxu0 0.0
  %349 = vmatpush1.msra.mxu0 %v190
  %350 = vmatprep.subr.mxu0 0.0
  %351 = vmatpush1.msra.mxu0 %v195
  %352 = vmatprep.subr.mxu0 0.0
  %353 = vmatpush1.msra.mxu0 %v200
  %354 = vmatprep.subr.mxu0 0.0
  %355 = vmatpush1.msra.mxu0 %v205
  %356 = vmatprep.subr.mxu0 0.0
  %357 = vmatpush1.msra.mxu0 %v210
  %358 = vmatprep.subr.mxu0 0.0
  %359 = vmatpush1.msra.mxu0 %v215
  %360 = vmatprep.subr.mxu0 0.0
  %361 = vmatpush1.msra.mxu0 %v220
  %362 = vmatprep.subr.mxu0 0.0
  %363 = vmatpush1.msra.mxu0 %v225
  %364 = vmatprep.subr.mxu0 0.0
  %365 = vmatpush1.msra.mxu0 %v230
  %366 = vmatprep.subr.mxu0 0.0
  %367 = vmatpush1.msra.mxu0 %v235
  %368 = vmatprep.subr.mxu0 0.0
  %369 = vmatpush1.msra.mxu0 %v240
  %370 = vmatprep.subr.mxu0 0.0
  %371 = vmatpush1.msra.mxu0 %v245
  %372 = vmatprep.subr.mxu0 0.0
  %373 = vmatpush1.msra.mxu0 %v250
  %374 = vmatprep.subr.mxu0 0.0
  %375 = vmatpush1.msra.mxu0 %v255
  %376 = vmatprep.subr.mxu0 0.0
  %377 = vmatpush1.msra.mxu0 %v260
  %378 = vmatprep.subr.mxu0 0.0
  %379 = vmatpush1.msra.mxu0 %v265
  %380 = vmatprep.subr.mxu0 0.0
  %381 = vmatpush1.msra.mxu0 %v270
  %382 = vmatprep.subr.mxu0 0.0
  %383 = vmatpush1.msra.mxu0 %v275
  %384 = vmatprep.subr.mxu0 0.0
  %385 = vmatpush1.msra.mxu0 %v280
  %386 = vmatprep.subr.mxu0 0.0
  %387 = vmatpush1.msra.mxu0 %v285
  %388 = vmatprep.subr.mxu0 0.0
  %389 = vmatpush1.msra.mxu0 %v290
  %390 = vmatprep.subr.mxu0 0.0
  %391 = vmatpush1.msra.mxu0 %v295
  %392 = vmatprep.subr.mxu0 0.0
  %393 = vmatpush1.msra.mxu0 0.0
  %394 = vmatprep.subr.mxu0 0.0
  %395 = vmatpush1.msra.mxu0 0.0
  %396 = vmatprep.subr.mxu0 0.0
  %397 = vmatpush1.msra.mxu0 0.0
  %398 = vmatprep.subr.mxu0 0.0
  %399 = vmatpush1.msra.mxu0 0.0
  %400 = vmatprep.subr.mxu0 0.0
  %401 = vmatpush1.msra.mxu0 0.0
  %402 = vmatprep.subr.mxu0 0.0
  %403 = vmatpush1.msra.mxu0 0.0
  %404 = vmatprep.subr.mxu0 0.0
  %405 = vmatpush1.msra.mxu0 0.0
  %406 = vmatprep.subr.mxu0 0.0
  %407 = vmatpush1.msra.mxu0 0.0
  %408 = vmatprep.mubr.f32.mxu0 %v318
  %409 = vmatmul.mubr.f32.gmra.mrb[0].mxu0 %v298
  %v410 = vpop.f32.mrb[0].mxu0
  %v411 = vadd.f32 0.0, %v410
  %v412 = vpop.f32.mrb[0].mxu0
  %413 = vmatprep.mubr.f32.mxu0 %v321
  %414 = vmatmul.mubr.f32.gmra.mrb[0].mxu0 %v300
  %v415 = vpop.f32.mrb[0].mxu0
  %v416 = vadd.f32 0.0, %v415
  %v417 = vpop.f32.mrb[0].mxu0
  %418 = vmatprep.mubr.f32.mxu0 %v324
  %419 = vmatmul.mubr.f32.gmra.mrb[0].mxu0 %v302
  %v420 = vpop.f32.mrb[0].mxu0
  %v421 = vadd.f32 0.0, %v420
  %v422 = vpop.f32.mrb[0].mxu0
  %423 = vmatprep.mubr.f32.mxu0 %v327
  %424 = vmatmul.mubr.f32.gmra.mrb[0].mxu0 %v304
  %v425 = vpop.f32.mrb[0].mxu0
  %v426 = vadd.f32 0.0, %v425
  %v427 = vpop.f32.mrb[0].mxu0
  %428 = vmatprep.mubr.f32.mxu0 %v330
  %429 = vmatmul.mubr.f32.gmra.mrb[0].mxu0 %v306
  %v430 = vpop.f32.mrb[0].mxu0
  %v431 = vadd.f32 0.0, %v430
  %v432 = vpop.f32.mrb[0].mxu0
  %433 = vmatprep.mubr.f32.mxu0 %v333
  %434 = vmatmul.mubr.f32.gmra.mrb[0].mxu0 %v308
  %v435 = vpop.f32.mrb[0].mxu0
  %v436 = vadd.f32 0.0, %v435
  %v437 = vpop.f32.mrb[0].mxu0
  %438 = vmatprep.mubr.f32.mxu0 %v336
  %439 = vmatmul.mubr.f32.gmra.mrb[0].mxu0 %v310
  %v440 = vpop.f32.mrb[0].mxu0
  %v441 = vadd.f32 0.0, %v440
  %v442 = vpop.f32.mrb[0].mxu0
  %443 = vmatprep.mubr.f32.mxu0 %v339
  %444 = vmatmul.mubr.f32.gmra.mrb[0].mxu0 %v312
  %v445 = vpop.f32.mrb[0].mxu0
  %v446 = vadd.f32 0.0, %v445
  %v447 = vpop.f32.mrb[0].mxu0
  %448 = vmatprep.mubr.f32.mxu0 %v342
  %449 = vmatmul.mubr.f32.gmra.mrb[0].mxu0 %v314
  %v450 = vpop.f32.mrb[0].mxu0
  %v451 = vadd.f32 0.0, %v450
  %v452 = vpop.f32.mrb[0].mxu0
  %453 = vdwg.mxu0
  %vm454 = vcmask 48128
  %455 = vst.msk [vmem:[%s3] sm:$0xff] %vm454, %v411
  %456 = vst.msk [vmem:[%s3 + $0x8] sm:$0xff] %vm454, %v416
  %457 = vst.msk [vmem:[%s3 + $0x10] sm:$0xff] %vm454, %v421
  %458 = vst.msk [vmem:[%s3 + $0x18] sm:$0xff] %vm454, %v426
  %459 = vst.msk [vmem:[%s3 + $0x20] sm:$0xff] %vm454, %v431
  %460 = vst.msk [vmem:[%s3 + $0x28] sm:$0xff] %vm454, %v436
  %461 = vst.msk [vmem:[%s3 + $0x30] sm:$0xff] %vm454, %v441
  %462 = vst.msk [vmem:[%s3 + $0x38] sm:$0xff] %vm454, %v446
  %463 = vst.msk [vmem:[%s3 + $0x40] sm:$0xff] %vm454, %v451
  // Predicated region
  $region14: #{forward.4} parent=0 // pred_check
    _
  $region15: #{forward.4} parent=0 // pred_check_branch
    %465 = sbr.rel (0) target = $region17
  $region16: #{forward.4} parent=0 // pred_region
    _
  $region17: #{forward.4} parent=0 // pred_fallthru
    _
  // Predicated region
  $region18: #{forward.4} parent=0 // pred_check
    _
  $region19: #{forward.4} parent=0 // pred_check_branch
    %467 = sbr.rel (0) target = $region21
  $region20: #{forward.4} parent=0 // pred_region
    _
  $region21: #{forward.4} parent=0 // pred_fallthru
    _

// kernel: squeeze.16
$region0: #{squeeze.16}
  %s0 = inlined_call_operand.vmem [shape: f32[36,6], index: 0, kind: input, shape index: {}]
  %s1 = inlined_call_operand.vmem [shape: f32[2,3,36], index: 1, kind: output, shape index: {}]
  $region1: #{squeeze.16} parent=0
    #allocation0 [shape = 'u8[8192]{0}', space=vmem, size = 0x2000, scoped, tag = 'scoped mem for output reshape']
    %v2 = vld [vmem:[%s0] ss:$6 sm:$0x3f]
    %vm3 = vcmask 48128
    %4 = vst.msk [vmem:[#allocation0] sm:$0x7] %vm3, %v2
    %s5 = scalar_lea.vmem [#allocation0], 5
    %6 = vst.msk [vmem:[%s5] sm:$0x38] %vm3, %v2
    %s7 = scalar_lea.vmem %s0, 5
    %v8 = vld [vmem:[%s7] ss:$6 sm:$0x3f]
    %9 = vrot.lane.b32.xlu0 %v8, 30
    %v10 = vpop.permute.xlu0 %9
    %vm11 = vcmask 294128
    %12 = vst.msk [vmem:[#allocation0] sm:$0x7] %vm11, %v10
    %s13 = scalar_lea.vmem [#allocation0], 5
    %14 = vst.msk [vmem:[%s13] sm:$0x38] %vm11, %v10
    %s15 = scalar_lea.vmem %s0, 4
    %v16 = vld [vmem:[%s15] ss:$6 sm:$0x3f]
    %17 = vrot.lane.b32.xlu0 %v16, 24
    %v18 = vpop.permute.xlu0 %17
    %vm19 = vcmask 244928
    %20 = vst.msk [vmem:[#allocation0] sm:$0x7] %vm19, %v18
    %s21 = scalar_lea.vmem [#allocation0], 5
    %22 = vst.msk [vmem:[%s21] sm:$0x38] %vm19, %v18
    %s23 = scalar_lea.vmem %s0, 3
    %v24 = vld [vmem:[%s23] ss:$6 sm:$0x3f]
    %25 = vrot.lane.b32.xlu0 %v24, 18
    %v26 = vpop.permute.xlu0 %25
    %vm27 = vcmask 195728
    %28 = vst.msk [vmem:[#allocation0] sm:$0x7] %vm27, %v26
    %s29 = scalar_lea.vmem [#allocation0], 5
    %30 = vst.msk [vmem:[%s29] sm:$0x38] %vm27, %v26
    %s31 = scalar_lea.vmem %s0, 2
    %v32 = vld [vmem:[%s31] ss:$6 sm:$0x3f]
    %33 = vrot.lane.b32.xlu0 %v32, 12
    %v34 = vpop.permute.xlu0 %33
    %vm35 = vcmask 146528
    %36 = vst.msk [vmem:[#allocation0] sm:$0x7] %vm35, %v34
    %s37 = scalar_lea.vmem [#allocation0], 5
    %38 = vst.msk [vmem:[%s37] sm:$0x38] %vm35, %v34
    %s39 = scalar_lea.vmem %s0, 1
    %v40 = vld [vmem:[%s39] ss:$6 sm:$0x3f]
    %41 = vrot.lane.b32.xlu0 %v40, 6
    %v42 = vpop.permute.xlu0 %41
    %vm43 = vcmask 97328
    %44 = vst.msk [vmem:[#allocation0] sm:$0x7] %vm43, %v42
    %s45 = scalar_lea.vmem [#allocation0], 5
    %46 = vst.msk [vmem:[%s45] sm:$0x38] %vm43, %v42
    %s48 = sshllo.u32 0, 4
    %v50 = vld [vmem:[#allocation0] sm:%s48]
    %s51 = sshllo.u32 0, 4
    %52 = vst [vmem:[%s1] sm:%s51] %v50
    %s53 = scalar_lea.vmem [#allocation0], 8
    %v54 = vld [vmem:[%s53] sm:%s48]
    %s55 = sshllo.u32 0, 4
    %s56 = scalar_lea.vmem %s1, 4
    %57 = vst [vmem:[%s56] sm:%s55] %v54

// kernel: custom-call.8
$region0: #{custom-call.8}
  %s0 = inlined_call_operand.vmem [shape: f32[2,3,3], index: 0, kind: input, shape index: {}]
  %s1 = inlined_call_operand.vmem [shape: f32[2,3,3], index: 1, kind: output, shape index: {0}]
  %s2 = inlined_call_operand.hbm [shape: s32[2,3], index: 2, kind: output, shape index: {1}]
  %s3 = inlined_call_operand.vmem [shape: s32[2,3], index: 3, kind: output, shape index: {2}]
  %4 = xla_tuple %s1, %s2, %s3
  $region1: #{custom-call.8} parent=0
    #allocation0 [shape = 'u8[4096]{0}', space=vmem, size = 0x1000, scoped, tag = 'operand span for operand 0']
    #allocation1 [shape = 'u8[4096]{0}', space=vmem, size = 0x1000, scoped, tag = 'packed  for operand 0']
    #allocation2 [shape = 'u8[4096]{0}', space=vmem, size = 0x1000, scoped, tag = 'operand span for operand 1']
    #allocation3 [shape = 'u8[4096]{0}', space=vmem, size = 0x1000, scoped, tag = 'packed  for operand 1']
    #allocation4 [shape = 'u8[4096]{0}', space=vmem, size = 0x1000, scoped, tag = 'operand span for operand 2']
    #allocation5 [shape = 'u8[2048]{0}', space=vmem, size = 0x800, scoped, tag = 'packed  for operand 2']
    #allocation6 [shape = 's32[2]{0}', space=sflag, size = 0x8, scoped, tag = 'scoped memory for custom-call.8']
    #allocation7 [shape = 'u8[4096]{0}', space=vmem, size = 0x1000, scoped, tag = 'operand span for operand 3']
    #allocation8 [shape = 'u8[2048]{0}', space=vmem, size = 0x800, scoped, tag = 'packed  for operand 3']
    %5 = vsyncpa [#allocation6], 0
    %s6 = scalar_lea.sflag [#allocation6], 1
    %7 = vsyncpa %s6, 0
    loop: start=0, step=1, limit=4
    $region2: #{custom-call.8} parent=1 // loop_pre_header
      _
    $region3: #{custom-call.8} parent=1 // loop_header
      %s9 = sphi 0, %s13
      %p10 = scmp.ge.s32.totalorder %s9, 4
      %s21 = sphi 0, %s23
      %s24 = sphi 0, %s21
      %s25 = sphi 0, %s24
      %s41 = sphi 0, %s25
      %s49 = sphi 0, %s51
      %s52 = sphi 0, %s49
      %s53 = sphi 0, %s52
      %s69 = sphi 0, %s53
    $region4: #{custom-call.8} parent=1 // loop_header_branch
      %12 = sbr.rel (%p10) target = $region8
    $region5: #{custom-call.8} parent=1 // loop_body
      %s14 = ssub.s32 %s9, 1
      %s15 = ssub.s32 %s9, 2
      %s16 = sadd.s32 %s9, 1
      %s17 = sshrl.u32 %s9, 3
      %s18 = sshrl.u32 %s16, 3
      %s19 = ssub.s32 %s17, %s18
      %p20 = scmp.eq.s32.totalorder %s19, 0
      %s22 = sadd.s32 %s21, 1
      %s23 = scalar_select %p20, %s21, %s22
      %p26 = pneg %p20
      %p27 = scmp.eq.s32.totalorder %s9, 1
      %p28 = por %p26, %p27
      %p29 = scmp.ne.s32.totalorder %s21, %s24
      %p30 = scmp.eq.s32.totalorder %s9, 0
      %p31 = por %p29, %p30
      %p32 = scmp.ne.s32.totalorder %s21, %s24
      %p33 = scmp.eq.s32.totalorder %s14, 1
      %p34 = por %p32, %p33
      %p35 = scmp.ne.s32.totalorder %s24, %s25
      %p36 = scmp.eq.s32.totalorder %s14, 0
      %p37 = por %p35, %p36
      %p38 = scmp.ne.s32.totalorder %s24, %s25
      %p39 = scmp.eq.s32.totalorder %s15, 1
      %p40 = por %p38, %p39
      %p42 = scmp.ne.s32.totalorder %s25, %s41
      %p43 = scmp.eq.s32.totalorder %s15, 0
      %p44 = por %p42, %p43
      %s45 = sshrl.u32 %s9, 3
      %s46 = sshrl.u32 %s16, 3
      %s47 = ssub.s32 %s45, %s46
      %p48 = scmp.eq.s32.totalorder %s47, 0
      %s50 = sadd.s32 %s49, 1
      %s51 = scalar_select %p48, %s49, %s50
      %p54 = pneg %p48
      %p55 = scmp.eq.s32.totalorder %s9, 1
      %p56 = por %p54, %p55
      %p57 = scmp.ne.s32.totalorder %s49, %s52
      %p58 = scmp.eq.s32.totalorder %s9, 0
      %p59 = por %p57, %p58
      %p60 = scmp.ne.s32.totalorder %s49, %s52
      %p61 = scmp.eq.s32.totalorder %s14, 1
      %p62 = por %p60, %p61
      %p63 = scmp.ne.s32.totalorder %s52, %s53
      %p64 = scmp.eq.s32.totalorder %s14, 0
      %p65 = por %p63, %p64
      %p66 = scmp.ne.s32.totalorder %s52, %s53
      %p67 = scmp.eq.s32.totalorder %s15, 1
      %p68 = por %p66, %p67
      %p70 = scmp.ne.s32.totalorder %s53, %s69
      %p71 = scmp.eq.s32.totalorder %s15, 0
      %p72 = por %p70, %p71
      %p73 = scmp.le.s32.totalorder 1, %s9
      %p74 = scmp.lt.s32.totalorder %s9, 3
      %p75 = pnand %p73, %p74
      %p76 = pneg %p75
      // Predicated region
      $region9: #{custom-call.8} parent=5 // pred_check
        _
      $region10: #{custom-call.8} parent=5 // pred_check_branch
        %78 = sbr.rel (%p75) target = $region12
      $region11: #{custom-call.8} parent=5 // pred_region
        %s79 = ssub.s32 %s9, 1
      $region12: #{custom-call.8} parent=5 // pred_fallthru
        _
      %p80 = scmp.lt.s32.totalorder %s9, 2
      // Predicated region
      $region13: #{custom-call.8} parent=5 // pred_check
        %p81 = pneg %p80
      $region14: #{custom-call.8} parent=5 // pred_check_branch
        %83 = sbr.rel (%p81) target = $region16
      $region15: #{custom-call.8} parent=5 // pred_region
        %s84 = sand.u32 %s9, 1
        %s85 = sand.u32 %s9, 1
        %s86 = smul.addr %s85, 4
        %s87 = scalar_lea.vmem [#allocation1], %s86
        %s88 = smul.addr %s9, 4
        %s89 = scalar_lea.vmem %s0, %s88
        // Predicated region
        $region17: #{custom-call.8} parent=15 // pred_check
          _
        $region18: #{custom-call.8} parent=15 // pred_check_branch
          %91 = sbr.rel (0) target = $region20
        $region19: #{custom-call.8} parent=15 // pred_region
          // Predicated region
          $region21: #{custom-call.8} parent=19 // pred_check
            _
          $region22: #{custom-call.8} parent=19 // pred_check_branch
            %93 = sbr.rel target = $region24
          $region23: #{custom-call.8} parent=19 // pred_region
            // Predicated region
            $region36: #{custom-call.8} parent=23 // pred_check
              _
            $region37: #{custom-call.8} parent=23 // pred_check_branch
              %108 = sbr.rel (0) target = $region39
            $region38: #{custom-call.8} parent=23 // pred_region
              loop: start=0, step=1, limit=1
              $region40: #{custom-call.8} parent=38 // loop_pre_header
                _
              $region41: #{custom-call.8} parent=38 // loop_header
                %s111 = sphi 0, %s115
                %p112 = scmp.ge.s32.totalorder %s111, 1
                %s116 = sphi %s89, %s89
                %s117 = sphi %s87, %s87
              $region42: #{custom-call.8} parent=38 // loop_header_branch
                %114 = sbr.rel (%p112) target = $region46
              $region43: #{custom-call.8} parent=38 // loop_body
                %v118 = vld [vmem:[%s116] sm:$0xf]
                %119 = vst [vmem:[%s117] sm:$0xf] %v118
              $region44: #{custom-call.8} parent=38 // loop_footer
                %s115 = sadd.s32 1, %s111
              $region45: #{custom-call.8} parent=38 // loop_footer_branch
                %110 = sbr.rel target = $region41
              $region46: #{custom-call.8} parent=38 // loop_exit
                _
            $region39: #{custom-call.8} parent=23 // pred_fallthru
              _
          $region24: #{custom-call.8} parent=19 // pred_fallthru
            _
          // Predicated region
          $region25: #{custom-call.8} parent=19 // pred_check
            _
          $region26: #{custom-call.8} parent=19 // pred_check_branch
            %95 = sbr.rel (0) target = $region28
          $region27: #{custom-call.8} parent=19 // pred_region
            loop: start=0, step=1, limit=1
            $region29: #{custom-call.8} parent=27 // loop_pre_header
              _
            $region30: #{custom-call.8} parent=27 // loop_header
              %s98 = sphi 0, %s102
              %p99 = scmp.ge.s32.totalorder %s98, 1
              %s103 = sphi %s89, %s89
              %s104 = sphi %s87, %s87
            $region31: #{custom-call.8} parent=27 // loop_header_branch
              %101 = sbr.rel (%p99) target = $region35
            $region32: #{custom-call.8} parent=27 // loop_body
              %v105 = vld [vmem:[%s103] sm:$0xf]
              %106 = vst [vmem:[%s104] sm:$0xf] %v105
            $region33: #{custom-call.8} parent=27 // loop_footer
              %s102 = sadd.s32 1, %s98
            $region34: #{custom-call.8} parent=27 // loop_footer_branch
              %97 = sbr.rel target = $region30
            $region35: #{custom-call.8} parent=27 // loop_exit
              _
          $region28: #{custom-call.8} parent=19 // pred_fallthru
            _
        $region20: #{custom-call.8} parent=15 // pred_fallthru
          _
        %120 = vnop
      $region16: #{custom-call.8} parent=5 // pred_fallthru
        _
      %p121 = scmp.le.s32.totalorder 1, %s9
      %p122 = scmp.lt.s32.totalorder %s9, 3
      %p123 = pnand %p121, %p122
      %p124 = pneg %p123
      // Predicated region
      $region47: #{custom-call.8} parent=5 // pred_check
        _
      $region48: #{custom-call.8} parent=5 // pred_check_branch
        %126 = sbr.rel (%p123) target = $region50
      $region49: #{custom-call.8} parent=5 // pred_region
        #allocation9 [shape = 's32[3,128]{1,0}', space=vmem, size = 0x1000, scoped, tag = 'scratch for permutations']
        %s127 = ssub.s32 %s9, 1
        %s128 = sand.u32 %s14, 1
        %s129 = sand.u32 %s14, 1
        %s130 = smul.addr %s129, 4
        %s131 = scalar_lea.vmem [#allocation1], %s130
        %s132 = sand.u32 %s14, 1
        %s133 = sand.u32 %s14, 1
        %s134 = smul.addr %s133, 4
        %s135 = scalar_lea.vmem [#allocation1], %s134
        %s136 = sand.u32 %s14, 1
        %s137 = sand.u32 %s14, 1
        %s138 = smul.addr %s137, 4
        %s139 = scalar_lea.vmem [#allocation3], %s138
        %p140 = pneg %p37
        %p141 = pneg %p34
        %s142 = sand.u32 %s24, 1
        %s143 = scalar_lea.sflag [#allocation6], %s142
        %s144 = sand.u32 %s24, 1
        %s145 = smul.addr %s144, 2
        %s146 = scalar_lea.vmem [#allocation5], %s145
        %p147 = pneg %p65
        %p148 = pneg %p62
        %s149 = sand.u32 %s52, 1
        %s150 = sand.u32 %s52, 1
        %s151 = smul.addr %s150, 2
        %s152 = scalar_lea.vmem [#allocation8], %s151
        %s154 = sshllo.u32 0, 4
        %v155 = vld [vmem:[%s135] sm:%s154]
        %156 = vst [vmem:[#allocation0] sm:%s154] %v155
        %s157 = sshrl.u32 %s14, 3
        %s158 = sshrl.u32 %s14, 3
        %v159 = vld [vmem:[#allocation0] sm:$0xff]
        %160 = vst [vmem:[#allocation2] sm:$0xff] %v159
        %s161 = sand.u32 %s14, 7
        %s162 = scalar_lea.vmem [#allocation4], %s161
        %s163 = sand.u32 %s14, 7
        %s164 = scalar_lea.vmem [#allocation7], %s163
        %165 = vst [vmem:[%s162] sm:$0x1] 0
        %v166 = vlaneseq
        %v167 = vshrl.u32 %v166, 7
        %v168 = vmov %v167
        %170 = vst [vmem:[#allocation9] sm:$0xff] %v168
        loop: start=0, step=1, limit=3
        $region52: #{custom-call.8} parent=49 // loop_pre_header
          _
        $region53: #{custom-call.8} parent=49 // loop_header
          %s172 = sphi 0, %s176
          %p173 = scmp.ge.s32.totalorder %s172, 3
        $region54: #{custom-call.8} parent=49 // loop_header_branch
          %175 = sbr.rel (%p173) target = $region58
        $region55: #{custom-call.8} parent=49 // loop_body
          %v177 = vstv %s172
          %v178 = vlaneseq
          %v179 = vshrl.u32 %v178, 7
          %v180 = vmov %v179
          %v181 = vld [vmem:[#allocation2] sm:$0xff]
          %v182 = vand.u32 2147483647, %v181
          %v184 = vstv %s172
          %vm185 = vcmp.ge.s32.totalorder %v180, %v184
          %vm186 = vcmp.lt.s32.totalorder %v180, 3
          %vm187 = vmand %vm185, %vm186
          %vm188 = vcmp.lt.f32.partialorder -inf, %v182
          %vm189 = vmand %vm187, %vm188
          %v190 = vsel %vm189, %v180, %v177
          %v191 = vsel %vm189, %v182, -inf
          %v192 = vrot.slane %v191, 1
          %v193 = vrot.slane %v190, 1
          %vm194 = vcmp.ge.f32.partialorder %v192, %v191
          %v195 = vsel %vm194, %v192, %v191
          %v196 = vsel %vm194, %v193, %v190
          %v197 = vrot.slane %v192, 1
          %v198 = vrot.slane %v193, 1
          %vm199 = vcmp.ge.f32.partialorder %v197, %v195
          %v200 = vsel %vm199, %v197, %v195
          %v201 = vsel %vm199, %v198, %v196
          %v202 = vrot.slane %v197, 1
          %v203 = vrot.slane %v198, 1
          %vm204 = vcmp.ge.f32.partialorder %v202, %v200
          %v205 = vsel %vm204, %v202, %v200
          %v206 = vsel %vm204, %v203, %v201
          %v207 = vrot.slane %v202, 1
          %v208 = vrot.slane %v203, 1
          %vm209 = vcmp.ge.f32.partialorder %v207, %v205
          %v210 = vsel %vm209, %v207, %v205
          %v211 = vsel %vm209, %v208, %v206
          %v212 = vrot.slane %v207, 1
          %v213 = vrot.slane %v208, 1
          %vm214 = vcmp.ge.f32.partialorder %v212, %v210
          %v215 = vsel %vm214, %v212, %v210
          %v216 = vsel %vm214, %v213, %v211
          %v217 = vrot.slane %v212, 1
          %v218 = vrot.slane %v213, 1
          %vm219 = vcmp.ge.f32.partialorder %v217, %v215
          %v220 = vsel %vm219, %v217, %v215
          %v221 = vsel %vm219, %v218, %v216
          %v222 = vrot.slane %v217, 1
          %v223 = vrot.slane %v218, 1
          %vm224 = vcmp.ge.f32.partialorder %v222, %v220
          %v225 = vsel %vm224, %v222, %v220
          %v226 = vsel %vm224, %v223, %v221
          %s227 = ssub.s32 128, %s172
          %228 = vrot.lane.b32.xlu0 %v226, %s227
          %v229 = vpop.permute.xlu0 %228
          %s230 = vtos %v229
          %v231 = vstv %s172
          %v232 = vlaneseq
          %v233 = vand.u32 %v232, 127
          %vm234 = vcmp.eq.s32.totalorder %v233, %v231
          %v235 = vstv %s230
          %v236 = vld [vmem:[%s162] ss:$0 sm:$0xff]
          %v237 = vsel %vm234, %v235, %v236
          %238 = vst [vmem:[%s162] sm:$0x1] %v237
          %s239 = scalar_lea.vmem [#allocation2], %s172
          %s240 = scalar_lea.vmem [#allocation2], %s230
          %v241 = vld [vmem:[%s239] ss:$0 sm:$0xff]
          %v242 = vld [vmem:[%s240] ss:$0 sm:$0xff]
          %243 = vst [vmem:[%s240] sm:$0x1] %v241
          %244 = vst [vmem:[%s239] sm:$0x1] %v242
          %s245 = scalar_lea.vmem [#allocation9], %s172
          %s246 = scalar_lea.vmem [#allocation9], %s230
          %v247 = vld [vmem:[%s245] ss:$0 sm:$0xff]
          %v248 = vld [vmem:[%s246] ss:$0 sm:$0xff]
          %249 = vst [vmem:[%s246] sm:$0x1] %v247
          %250 = vst [vmem:[%s245] sm:$0x1] %v248
          %vm251 = vcmp.ne.f32.partialorder %v242, 0.0
          %vm252 = vmand %vm234, %vm251
          %v253 = vsel %vm252, %v242, 1.0
          %v254 = vlaneseq
          %v255 = vand.u32 %v254, 127
          %v256 = vstv %s172
          %vm257 = vcmp.gt.s32.totalorder %v255, %v256
          %v258 = vsel %vm257, %v242, 0.0
          %v259 = vlaneseq
          %v260 = vshrl.u32 %v259, 7
          %v261 = vmov %v260
          %v262 = vld [vmem:[#allocation2] sm:$0xff]
          %v264 = vstv %s172
          %vm265 = vcmp.gt.s32.totalorder %v261, %v264
          %v266 = vsel %vm265, %v253, 1.0
          %v267 = vrcp.pop %v266
          %v268 = vmul.f32 %v262, %v267
          %vm269 = vmand %vm265, %vm234
          %v270 = vsel %vm269, %v268, 0.0
          %271 = vadd.xlane.f32.xlu0 %v270
          %v272 = vpop.xlane.xlu0 %271
          %v273 = vmul.f32 %v272, %v258
          %v274 = vsub.f32 %v268, %v273
          %275 = vst [vmem:[#allocation2] sm:$0xff] %v274
        $region56: #{custom-call.8} parent=49 // loop_footer
          %s176 = sadd.s32 1, %s172
        $region57: #{custom-call.8} parent=49 // loop_footer_branch
          %171 = sbr.rel target = $region53
        $region58: #{custom-call.8} parent=49 // loop_exit
          _
        %v276 = vld [vmem:[#allocation9] sm:$0xff]
        %s277 = scalar_lea.vmem [#allocation9], 8
        %s278 = scalar_lea.vmem [#allocation9], 16
        %s279 = scalar_lea.vmem [#allocation9], 24
        %s280 = scalar_lea.vmem [#allocation9], 32
        %s281 = scalar_lea.vmem [#allocation9], 40
        %s282 = scalar_lea.vmem [#allocation9], 48
        %s283 = scalar_lea.vmem [#allocation9], 56
        %s284 = scalar_lea.vmem [#allocation9], 64
        %s285 = scalar_lea.vmem [#allocation9], 72
        %s286 = scalar_lea.vmem [#allocation9], 80
        %s287 = scalar_lea.vmem [#allocation9], 88
        %s288 = scalar_lea.vmem [#allocation9], 96
        %s289 = scalar_lea.vmem [#allocation9], 104
        %s290 = scalar_lea.vmem [#allocation9], 112
        %s291 = scalar_lea.vmem [#allocation9], 120
        %292 = vxpose.xlu0.b32.start [1/16] %v276, 128
        %293 = vxpose.xlu0.b32.cont [2/16] 0, 128
        %294 = vxpose.xlu0.b32.cont [3/16] 0, 128
        %295 = vxpose.xlu0.b32.cont [4/16] 0, 128
        %296 = vxpose.xlu0.b32.cont [5/16] 0, 128
        %297 = vxpose.xlu0.b32.cont [6/16] 0, 128
        %298 = vxpose.xlu0.b32.cont [7/16] 0, 128
        %299 = vxpose.xlu0.b32.cont [8/16] 0, 128
        %300 = vxpose.xlu0.b32.cont [9/16] 0, 128
        %301 = vxpose.xlu0.b32.cont [10/16] 0, 128
        %302 = vxpose.xlu0.b32.cont [11/16] 0, 128
        %303 = vxpose.xlu0.b32.cont [12/16] 0, 128
        %304 = vxpose.xlu0.b32.cont [13/16] 0, 128
        %305 = vxpose.xlu0.b32.cont [14/16] 0, 128
        %306 = vxpose.xlu0.b32.cont [15/16] 0, 128
        %307 = vxpose.xlu0.b32.end [16/16] 0, 128
        %v308 = vpop.trf.xlu0
        %v309 = vpop.trf.xlu0
        %v310 = vpop.trf.xlu0
        %v311 = vpop.trf.xlu0
        %v312 = vpop.trf.xlu0
        %v313 = vpop.trf.xlu0
        %v314 = vpop.trf.xlu0
        %v315 = vpop.trf.xlu0
        %v316 = vpop.trf.xlu0
        %v317 = vpop.trf.xlu0
        %v318 = vpop.trf.xlu0
        %v319 = vpop.trf.xlu0
        %v320 = vpop.trf.xlu0
        %v321 = vpop.trf.xlu0
        %v322 = vpop.trf.xlu0
        %v323 = vpop.trf.xlu0
        %324 = vst [vmem:[%s164] sm:$0x1] %v308
        %s326 = sshllo.u32 0, 4
        %v328 = vld [vmem:[#allocation2] sm:%s326]
        %s329 = sshllo.u32 0, 4
        %330 = vst [vmem:[%s139] sm:%s329] %v328
        %s332 = sshllo.u32 0, 2
        %v334 = vld [vmem:[#allocation4] sm:%s332]
        %s335 = sshllo.u32 0, 2
        %336 = vst [vmem:[%s146] sm:%s335] %v334
        %s338 = sshllo.u32 0, 2
        %v340 = vld [vmem:[#allocation7] sm:%s338]
        %s341 = sshllo.u32 0, 2
        %342 = vst [vmem:[%s152] sm:%s341] %v340
        %s343 = sand.u32 %s14, 1
        %s344 = sand.u32 %s14, 1
        %s345 = smul.addr %s344, 4
        %s346 = scalar_lea.vmem [#allocation3], %s345
        %s347 = sand.u32 %s24, 1
        %s348 = scalar_lea.sflag [#allocation6], %s347
        %s349 = sand.u32 %s24, 1
        %s350 = smul.addr %s349, 2
        %s351 = scalar_lea.vmem [#allocation5], %s350
        %s352 = sand.u32 %s52, 1
        %s353 = sand.u32 %s52, 1
        %s354 = smul.addr %s353, 2
        %s355 = scalar_lea.vmem [#allocation8], %s354
        %s356 = smul.addr %s14, 4
        %s357 = scalar_lea.vmem %s1, %s356
        // Predicated region
        $region59: #{custom-call.8} parent=49 // pred_check
          _
        $region60: #{custom-call.8} parent=49 // pred_check_branch
          %359 = sbr.rel (0) target = $region62
        $region61: #{custom-call.8} parent=49 // pred_region
          // Predicated region
          $region63: #{custom-call.8} parent=61 // pred_check
            _
          $region64: #{custom-call.8} parent=61 // pred_check_branch
            %361 = sbr.rel target = $region66
          $region65: #{custom-call.8} parent=61 // pred_region
            // Predicated region
            $region78: #{custom-call.8} parent=65 // pred_check
              _
            $region79: #{custom-call.8} parent=65 // pred_check_branch
              %376 = sbr.rel (0) target = $region81
            $region80: #{custom-call.8} parent=65 // pred_region
              loop: start=0, step=1, limit=1
              $region82: #{custom-call.8} parent=80 // loop_pre_header
                _
              $region83: #{custom-call.8} parent=80 // loop_header
                %s379 = sphi 0, %s383
                %p380 = scmp.ge.s32.totalorder %s379, 1
                %s384 = sphi %s346, %s346
                %s385 = sphi %s357, %s357
              $region84: #{custom-call.8} parent=80 // loop_header_branch
                %382 = sbr.rel (%p380) target = $region88
              $region85: #{custom-call.8} parent=80 // loop_body
                %v386 = vld [vmem:[%s384] sm:$0xf]
                %387 = vst [vmem:[%s385] sm:$0xf] %v386
              $region86: #{custom-call.8} parent=80 // loop_footer
                %s383 = sadd.s32 1, %s379
              $region87: #{custom-call.8} parent=80 // loop_footer_branch
                %378 = sbr.rel target = $region83
              $region88: #{custom-call.8} parent=80 // loop_exit
                _
            $region81: #{custom-call.8} parent=65 // pred_fallthru
              _
          $region66: #{custom-call.8} parent=61 // pred_fallthru
            _
          // Predicated region
          $region67: #{custom-call.8} parent=61 // pred_check
            _
          $region68: #{custom-call.8} parent=61 // pred_check_branch
            %363 = sbr.rel (0) target = $region70
          $region69: #{custom-call.8} parent=61 // pred_region
            loop: start=0, step=1, limit=1
            $region71: #{custom-call.8} parent=69 // loop_pre_header
              _
            $region72: #{custom-call.8} parent=69 // loop_header
              %s366 = sphi 0, %s370
              %p367 = scmp.ge.s32.totalorder %s366, 1
              %s371 = sphi %s346, %s346
              %s372 = sphi %s357, %s357
            $region73: #{custom-call.8} parent=69 // loop_header_branch
              %369 = sbr.rel (%p367) target = $region77
            $region74: #{custom-call.8} parent=69 // loop_body
              %v373 = vld [vmem:[%s371] sm:$0xf]
              %374 = vst [vmem:[%s372] sm:$0xf] %v373
            $region75: #{custom-call.8} parent=69 // loop_footer
              %s370 = sadd.s32 1, %s366
            $region76: #{custom-call.8} parent=69 // loop_footer_branch
              %365 = sbr.rel target = $region72
            $region77: #{custom-call.8} parent=69 // loop_exit
              _
          $region70: #{custom-call.8} parent=61 // pred_fallthru
            _
        $region62: #{custom-call.8} parent=49 // pred_fallthru
          _
        %388 = vnop
        // Predicated region
        $region89: #{custom-call.8} parent=49 // pred_check
          %p389 = pneg %p34
        $region90: #{custom-call.8} parent=49 // pred_check_branch
          %391 = sbr.rel (%p389) target = $region92
        $region91: #{custom-call.8} parent=49 // pred_region
          %s392 = sshrl.u32 %s14, 3
          %s394 = ssub.s32 32, 32
          %395 = vsyncadd %s348, %s394
          %s396 = smul.addr %s392, 32
          %s397 = scalar_lea.hbm %s2, %s396
          %s399 = sshll.u32 %s351, 4
          %s400 = int_to_ptr.vmem [resolvable:$true] %s399
          %402 = dma.vmem_to_hbm [thread:$0]  %s400, 32, %s397, %s348
        $region92: #{custom-call.8} parent=49 // pred_fallthru
          _
        // Predicated region
        $region93: #{custom-call.8} parent=49 // pred_check
          %p403 = pneg %p62
        $region94: #{custom-call.8} parent=49 // pred_check_branch
          %405 = sbr.rel (%p403) target = $region96
        $region95: #{custom-call.8} parent=49 // pred_region
          %s406 = sshrl.u32 %s14, 3
          %s407 = smul.addr %s406, 2
          %s408 = scalar_lea.vmem %s3, %s407
          // Predicated region
          $region97: #{custom-call.8} parent=95 // pred_check
            _
          $region98: #{custom-call.8} parent=95 // pred_check_branch
            %410 = sbr.rel (0) target = $region100
          $region99: #{custom-call.8} parent=95 // pred_region
            // Predicated region
            $region101: #{custom-call.8} parent=99 // pred_check
              _
            $region102: #{custom-call.8} parent=99 // pred_check_branch
              %412 = sbr.rel target = $region104
            $region103: #{custom-call.8} parent=99 // pred_region
              // Predicated region
              $region116: #{custom-call.8} parent=103 // pred_check
                _
              $region117: #{custom-call.8} parent=103 // pred_check_branch
                %427 = sbr.rel (0) target = $region119
              $region118: #{custom-call.8} parent=103 // pred_region
                loop: start=0, step=1, limit=1
                $region120: #{custom-call.8} parent=118 // loop_pre_header
                  _
                $region121: #{custom-call.8} parent=118 // loop_header
                  %s430 = sphi 0, %s434
                  %p431 = scmp.ge.s32.totalorder %s430, 1
                  %s435 = sphi %s355, %s355
                  %s436 = sphi %s408, %s408
                $region122: #{custom-call.8} parent=118 // loop_header_branch
                  %433 = sbr.rel (%p431) target = $region126
                $region123: #{custom-call.8} parent=118 // loop_body
                  %v437 = vld [vmem:[%s435] sm:$0x3]
                  %438 = vst [vmem:[%s436] sm:$0x3] %v437
                $region124: #{custom-call.8} parent=118 // loop_footer
                  %s434 = sadd.s32 1, %s430
                $region125: #{custom-call.8} parent=118 // loop_footer_branch
                  %429 = sbr.rel target = $region121
                $region126: #{custom-call.8} parent=118 // loop_exit
                  _
              $region119: #{custom-call.8} parent=103 // pred_fallthru
                _
            $region104: #{custom-call.8} parent=99 // pred_fallthru
              _
            // Predicated region
            $region105: #{custom-call.8} parent=99 // pred_check
              _
            $region106: #{custom-call.8} parent=99 // pred_check_branch
              %414 = sbr.rel (0) target = $region108
            $region107: #{custom-call.8} parent=99 // pred_region
              loop: start=0, step=1, limit=1
              $region109: #{custom-call.8} parent=107 // loop_pre_header
                _
              $region110: #{custom-call.8} parent=107 // loop_header
                %s417 = sphi 0, %s421
                %p418 = scmp.ge.s32.totalorder %s417, 1
                %s422 = sphi %s355, %s355
                %s423 = sphi %s408, %s408
              $region111: #{custom-call.8} parent=107 // loop_header_branch
                %420 = sbr.rel (%p418) target = $region115
              $region112: #{custom-call.8} parent=107 // loop_body
                %v424 = vld [vmem:[%s422] sm:$0x3]
                %425 = vst [vmem:[%s423] sm:$0x3] %v424
              $region113: #{custom-call.8} parent=107 // loop_footer
                %s421 = sadd.s32 1, %s417
              $region114: #{custom-call.8} parent=107 // loop_footer_branch
                %416 = sbr.rel target = $region110
              $region115: #{custom-call.8} parent=107 // loop_exit
                _
            $region108: #{custom-call.8} parent=99 // pred_fallthru
              _
          $region100: #{custom-call.8} parent=95 // pred_fallthru
            _
          %439 = vnop
        $region96: #{custom-call.8} parent=49 // pred_fallthru
          _
      $region50: #{custom-call.8} parent=5 // pred_fallthru
        _
      %p440 = scmp.le.s32.totalorder 2, %s9
      // Predicated region
      $region127: #{custom-call.8} parent=5 // pred_check
        %p441 = pneg %p440
      $region128: #{custom-call.8} parent=5 // pred_check_branch
        %443 = sbr.rel (%p441) target = $region130
      $region129: #{custom-call.8} parent=5 // pred_region
        %s444 = ssub.s32 %s9, 2
        %s445 = sand.u32 %s15, 1
        %s446 = sand.u32 %s15, 1
        %s447 = smul.addr %s446, 4
        %s448 = scalar_lea.vmem [#allocation3], %s447
        // Predicated region
        $region131: #{custom-call.8} parent=129 // pred_check
          %p449 = pneg %p40
        $region132: #{custom-call.8} parent=129 // pred_check_branch
          %451 = sbr.rel (%p449) target = $region134
        $region133: #{custom-call.8} parent=129 // pred_region
          %s452 = sand.u32 %s25, 1
          %s453 = scalar_lea.sflag [#allocation6], %s452
          %s454 = sand.u32 %s25, 1
          %s455 = smul.addr %s454, 2
          %s456 = scalar_lea.vmem [#allocation5], %s455
          %457 = dma.done %s453, 32
        $region134: #{custom-call.8} parent=129 // pred_fallthru
          _
        // Predicated region
        $region135: #{custom-call.8} parent=129 // pred_check
          %p458 = pneg %p68
        $region136: #{custom-call.8} parent=129 // pred_check_branch
          %460 = sbr.rel (%p458) target = $region138
        $region137: #{custom-call.8} parent=129 // pred_region
          %s461 = sand.u32 %s53, 1
          %s462 = sand.u32 %s53, 1
          %s463 = smul.addr %s462, 2
          %s464 = scalar_lea.vmem [#allocation8], %s463
        $region138: #{custom-call.8} parent=129 // pred_fallthru
          _
      $region130: #{custom-call.8} parent=5 // pred_fallthru
        _
    $region6: #{custom-call.8} parent=1 // loop_footer
      %s13 = sadd.s32 1, %s9
    $region7: #{custom-call.8} parent=1 // loop_footer_branch
      %8 = sbr.rel target = $region3
    $region8: #{custom-call.8} parent=1 // loop_exit
      _
    %465 = vsyncpa [#allocation6], 1
    %s466 = scalar_lea.sflag [#allocation6], 1
    %467 = vsyncpa %s466, 1

// kernel: custom-call.10
$region0: #{custom-call.10}
  %s0 = inlined_call_operand.vmem [shape: f32[2,1,3,3], index: 0, kind: input, shape index: {}]
  %s1 = inlined_call_operand.vmem [shape: f32[2,1,3,3], index: 1, kind: output, shape index: {}]
  $region1: #{custom-call.10} parent=0
    #allocation0 [shape = 'u8[4096]{0}', space=vmem, size = 0x1000, scoped, tag = 'operand span for operand 0']
    #allocation1 [shape = 'u8[4096]{0}', space=vmem, size = 0x1000, scoped, tag = 'packed  for operand 0']
    #allocation2 [shape = 'u8[4096]{0}', space=vmem, size = 0x1000, scoped, tag = 'operand span for operand 1']
    #allocation3 [shape = 'u8[4096]{0}', space=vmem, size = 0x1000, scoped, tag = 'packed  for operand 1']
    loop: start=0, step=1, limit=4
    $region2: #{custom-call.10} parent=1 // loop_pre_header
      _
    $region3: #{custom-call.10} parent=1 // loop_header
      %s3 = sphi 0, %s7
      %p4 = scmp.ge.s32.totalorder %s3, 4
      %s10 = sphi 0, %s36
      %s11 = sphi 0, %s32
      %s12 = sphi 0, %s28
      %s13 = sphi 0, %s24
      %s14 = sphi 0, %s10
      %s15 = sphi 0, %s11
      %s16 = sphi 0, %s12
      %s17 = sphi 0, %s13
      %s18 = sphi 0, %s14
      %s19 = sphi 0, %s15
      %s20 = sphi 0, %s16
      %s21 = sphi 0, %s17
    $region4: #{custom-call.10} parent=1 // loop_header_branch
      %6 = sbr.rel (%p4) target = $region8
    $region5: #{custom-call.10} parent=1 // loop_body
      %s8 = ssub.s32 %s3, 1
      %s9 = ssub.s32 %s3, 2
      %s22 = sadd.s32 1, %s13
      %p23 = scmp.ge.s32.totalorder %s22, 1
      %s24 = scalar_select %p23, 0, %s22
      %s25 = sadd.s32 1, %s12
      %s26 = scalar_select %p23, %s25, %s12
      %p27 = scmp.ge.s32.totalorder %s26, 1
      %s28 = scalar_select %p27, 0, %s26
      %s29 = sadd.s32 1, %s11
      %s30 = scalar_select %p27, %s29, %s11
      %p31 = scmp.ge.s32.totalorder %s30, 1
      %s32 = scalar_select %p31, 0, %s30
      %s33 = sadd.s32 1, %s10
      %s34 = scalar_select %p31, %s33, %s10
      %p35 = scmp.ge.s32.totalorder %s34, 2
      %s36 = scalar_select %p35, 0, %s34
      %p37 = scmp.le.s32.totalorder 1, %s3
      %p38 = scmp.lt.s32.totalorder %s3, 3
      %p39 = pnand %p37, %p38
      %p40 = pneg %p39
      // Predicated region
      $region9: #{custom-call.10} parent=5 // pred_check
        _
      $region10: #{custom-call.10} parent=5 // pred_check_branch
        %42 = sbr.rel (%p39) target = $region12
      $region11: #{custom-call.10} parent=5 // pred_region
        %s43 = ssub.s32 %s3, 1
      $region12: #{custom-call.10} parent=5 // pred_fallthru
        _
      %p44 = scmp.lt.s32.totalorder %s3, 2
      // Predicated region
      $region13: #{custom-call.10} parent=5 // pred_check
        %p45 = pneg %p44
      $region14: #{custom-call.10} parent=5 // pred_check_branch
        %47 = sbr.rel (%p45) target = $region16
      $region15: #{custom-call.10} parent=5 // pred_region
        %s48 = sand.u32 %s3, 1
        %s49 = sand.u32 %s3, 1
        %s50 = smul.addr %s49, 4
        %s51 = scalar_lea.vmem [#allocation1], %s50
        %s52 = sadd.s32 %s13, %s12
        %s53 = sadd.s32 %s52, %s11
        %s54 = sadd.s32 %s53, %s10
        %s55 = smul.addr %s54, 4
        %s56 = scalar_lea.vmem %s0, %s55
        // Predicated region
        $region17: #{custom-call.10} parent=15 // pred_check
          _
        $region18: #{custom-call.10} parent=15 // pred_check_branch
          %58 = sbr.rel (0) target = $region20
        $region19: #{custom-call.10} parent=15 // pred_region
          // Predicated region
          $region21: #{custom-call.10} parent=19 // pred_check
            _
          $region22: #{custom-call.10} parent=19 // pred_check_branch
            %60 = sbr.rel target = $region24
          $region23: #{custom-call.10} parent=19 // pred_region
            // Predicated region
            $region36: #{custom-call.10} parent=23 // pred_check
              _
            $region37: #{custom-call.10} parent=23 // pred_check_branch
              %75 = sbr.rel (0) target = $region39
            $region38: #{custom-call.10} parent=23 // pred_region
              loop: start=0, step=1, limit=1
              $region40: #{custom-call.10} parent=38 // loop_pre_header
                _
              $region41: #{custom-call.10} parent=38 // loop_header
                %s78 = sphi 0, %s82
                %p79 = scmp.ge.s32.totalorder %s78, 1
                %s83 = sphi %s56, %s56
                %s84 = sphi %s51, %s51
              $region42: #{custom-call.10} parent=38 // loop_header_branch
                %81 = sbr.rel (%p79) target = $region46
              $region43: #{custom-call.10} parent=38 // loop_body
                %v85 = vld [vmem:[%s83] sm:$0xf]
                %86 = vst [vmem:[%s84] sm:$0xf] %v85
              $region44: #{custom-call.10} parent=38 // loop_footer
                %s82 = sadd.s32 1, %s78
              $region45: #{custom-call.10} parent=38 // loop_footer_branch
                %77 = sbr.rel target = $region41
              $region46: #{custom-call.10} parent=38 // loop_exit
                _
            $region39: #{custom-call.10} parent=23 // pred_fallthru
              _
          $region24: #{custom-call.10} parent=19 // pred_fallthru
            _
          // Predicated region
          $region25: #{custom-call.10} parent=19 // pred_check
            _
          $region26: #{custom-call.10} parent=19 // pred_check_branch
            %62 = sbr.rel (0) target = $region28
          $region27: #{custom-call.10} parent=19 // pred_region
            loop: start=0, step=1, limit=1
            $region29: #{custom-call.10} parent=27 // loop_pre_header
              _
            $region30: #{custom-call.10} parent=27 // loop_header
              %s65 = sphi 0, %s69
              %p66 = scmp.ge.s32.totalorder %s65, 1
              %s70 = sphi %s56, %s56
              %s71 = sphi %s51, %s51
            $region31: #{custom-call.10} parent=27 // loop_header_branch
              %68 = sbr.rel (%p66) target = $region35
            $region32: #{custom-call.10} parent=27 // loop_body
              %v72 = vld [vmem:[%s70] sm:$0xf]
              %73 = vst [vmem:[%s71] sm:$0xf] %v72
            $region33: #{custom-call.10} parent=27 // loop_footer
              %s69 = sadd.s32 1, %s65
            $region34: #{custom-call.10} parent=27 // loop_footer_branch
              %64 = sbr.rel target = $region30
            $region35: #{custom-call.10} parent=27 // loop_exit
              _
          $region28: #{custom-call.10} parent=19 // pred_fallthru
            _
        $region20: #{custom-call.10} parent=15 // pred_fallthru
          _
        %87 = vnop
      $region16: #{custom-call.10} parent=5 // pred_fallthru
        _
      %p88 = scmp.le.s32.totalorder 1, %s3
      %p89 = scmp.lt.s32.totalorder %s3, 3
      %p90 = pnand %p88, %p89
      %p91 = pneg %p90
      // Predicated region
      $region47: #{custom-call.10} parent=5 // pred_check
        _
      $region48: #{custom-call.10} parent=5 // pred_check_branch
        %93 = sbr.rel (%p90) target = $region50
      $region49: #{custom-call.10} parent=5 // pred_region
        #allocation4 [shape = 'f32[3,3]{1,0}', space=vmem, size = 0x1000, scoped, tag = 'rescaled input a']
        %s94 = ssub.s32 %s3, 1
        %s95 = sand.u32 %s8, 1
        %s96 = sand.u32 %s8, 1
        %s97 = smul.addr %s96, 4
        %s98 = scalar_lea.vmem [#allocation1], %s97
        %s99 = sand.u32 %s8, 1
        %s100 = sand.u32 %s8, 1
        %s101 = smul.addr %s100, 4
        %s102 = scalar_lea.vmem [#allocation1], %s101
        %s103 = sand.u32 %s8, 1
        %s104 = sand.u32 %s8, 1
        %s105 = smul.addr %s104, 4
        %s106 = scalar_lea.vmem [#allocation3], %s105
        %s108 = sshllo.u32 0, 4
        %v109 = vld [vmem:[%s102] sm:%s108]
        %110 = vst [vmem:[#allocation0] sm:%s108] %v109
        %v111 = vlaneseq
        %v112 = vand.u32 %v111, 127
        %vm113 = vcmp.lt.s32.totalorder %v112, 3
        %v114 = vlaneseq
        %v115 = vshrl.u32 %v114, 7
        %vm117 = vcmp.eq.s32.totalorder %v115, %v112
        %v118 = vld [vmem:[#allocation0] sm:$0xff]
        %v119 = vsel %vm117, %v118, 0.0
        %120 = vadd.xlane.f32.xlu0 %v119
        %v121 = vpop.xlane.xlu0 %120
        %vm122 = vcmp.ge.s32.totalorder %v115, %v112
        %vm123 = vmand %vm122, %vm113
        %v124 = vsel %vm123, %v118, 0.0
        %v125 = vrcp.pop %v121
        %v126 = vmul.f32 %v124, %v125
        %127 = vst [vmem:[#allocation4] sm:$0xff] %v126
        %v128 = vlaneseq
        %v129 = vand.u32 %v128, 127
        %v130 = vlaneseq
        %v131 = vshrl.u32 %v130, 7
        %vm133 = vcmp.eq.s32.totalorder %v129, %v131
        %v134 = vlaneseq
        %v135 = vand.u32 %v134, 127
        %vm136 = vcmp.eq.s32.totalorder %v135, 0
        %v137 = vsel %vm136, 1.0, -1.0
        %v138 = vsel %vm133, %v137, 0.0
        %s139 = scalar_lea.vmem [#allocation4], 1
        %v140 = vld [vmem:[%s139] ss:$0 sm:$0xff]
        %v141 = vxor.u32 %v140, 2147483648
        %v142 = vlaneseq
        %v143 = vand.u32 %v142, 127
        %vm144 = vcmp.eq.s32.totalorder %v143, 1
        %v145 = vmul.f32 %v141, %v138
        %146 = vadd.xlane.f32.xlu0 %v145
        %v147 = vpop.xlane.xlu0 %146
        %v148 = vsel %vm144, %v147, %v138
        %s149 = scalar_lea.vmem [#allocation4], 2
        %v150 = vld [vmem:[%s149] ss:$0 sm:$0xff]
        %v151 = vxor.u32 %v150, 2147483648
        %v152 = vlaneseq
        %v153 = vand.u32 %v152, 127
        %vm154 = vcmp.eq.s32.totalorder %v153, 2
        %v155 = vmul.f32 %v151, %v148
        %156 = vadd.xlane.f32.xlu0 %v155
        %v157 = vpop.xlane.xlu0 %156
        %v158 = vsel %vm154, %v157, %v148
        %v159 = vrcp.pop %v121
        %v160 = vmul.f32 %v158, %v159
        %vm161 = vweird.f32 %v121
        %v162 = vsel %vm161, %v158, %v160
        %163 = vst [vmem:[#allocation2] sm:$0xff] %v162
        %s165 = sshllo.u32 0, 4
        %v167 = vld [vmem:[#allocation2] sm:%s165]
        %s168 = sshllo.u32 0, 4
        %169 = vst [vmem:[%s106] sm:%s168] %v167
        %s170 = sand.u32 %s8, 1
        %s171 = sand.u32 %s8, 1
        %s172 = smul.addr %s171, 4
        %s173 = scalar_lea.vmem [#allocation3], %s172
        %s174 = sadd.s32 %s17, %s16
        %s175 = sadd.s32 %s174, %s15
        %s176 = sadd.s32 %s175, %s14
        %s177 = smul.addr %s176, 4
        %s178 = scalar_lea.vmem %s1, %s177
        // Predicated region
        $region51: #{custom-call.10} parent=49 // pred_check
          _
        $region52: #{custom-call.10} parent=49 // pred_check_branch
          %180 = sbr.rel (0) target = $region54
        $region53: #{custom-call.10} parent=49 // pred_region
          // Predicated region
          $region55: #{custom-call.10} parent=53 // pred_check
            _
          $region56: #{custom-call.10} parent=53 // pred_check_branch
            %182 = sbr.rel target = $region58
          $region57: #{custom-call.10} parent=53 // pred_region
            // Predicated region
            $region70: #{custom-call.10} parent=57 // pred_check
              _
            $region71: #{custom-call.10} parent=57 // pred_check_branch
              %197 = sbr.rel (0) target = $region73
            $region72: #{custom-call.10} parent=57 // pred_region
              loop: start=0, step=1, limit=1
              $region74: #{custom-call.10} parent=72 // loop_pre_header
                _
              $region75: #{custom-call.10} parent=72 // loop_header
                %s200 = sphi 0, %s204
                %p201 = scmp.ge.s32.totalorder %s200, 1
                %s205 = sphi %s173, %s173
                %s206 = sphi %s178, %s178
              $region76: #{custom-call.10} parent=72 // loop_header_branch
                %203 = sbr.rel (%p201) target = $region80
              $region77: #{custom-call.10} parent=72 // loop_body
                %v207 = vld [vmem:[%s205] sm:$0xf]
                %208 = vst [vmem:[%s206] sm:$0xf] %v207
              $region78: #{custom-call.10} parent=72 // loop_footer
                %s204 = sadd.s32 1, %s200
              $region79: #{custom-call.10} parent=72 // loop_footer_branch
                %199 = sbr.rel target = $region75
              $region80: #{custom-call.10} parent=72 // loop_exit
                _
            $region73: #{custom-call.10} parent=57 // pred_fallthru
              _
          $region58: #{custom-call.10} parent=53 // pred_fallthru
            _
          // Predicated region
          $region59: #{custom-call.10} parent=53 // pred_check
            _
          $region60: #{custom-call.10} parent=53 // pred_check_branch
            %184 = sbr.rel (0) target = $region62
          $region61: #{custom-call.10} parent=53 // pred_region
            loop: start=0, step=1, limit=1
            $region63: #{custom-call.10} parent=61 // loop_pre_header
              _
            $region64: #{custom-call.10} parent=61 // loop_header
              %s187 = sphi 0, %s191
              %p188 = scmp.ge.s32.totalorder %s187, 1
              %s192 = sphi %s173, %s173
              %s193 = sphi %s178, %s178
            $region65: #{custom-call.10} parent=61 // loop_header_branch
              %190 = sbr.rel (%p188) target = $region69
            $region66: #{custom-call.10} parent=61 // loop_body
              %v194 = vld [vmem:[%s192] sm:$0xf]
              %195 = vst [vmem:[%s193] sm:$0xf] %v194
            $region67: #{custom-call.10} parent=61 // loop_footer
              %s191 = sadd.s32 1, %s187
            $region68: #{custom-call.10} parent=61 // loop_footer_branch
              %186 = sbr.rel target = $region64
            $region69: #{custom-call.10} parent=61 // loop_exit
              _
          $region62: #{custom-call.10} parent=53 // pred_fallthru
            _
        $region54: #{custom-call.10} parent=49 // pred_fallthru
          _
        %209 = vnop
      $region50: #{custom-call.10} parent=5 // pred_fallthru
        _
      %p210 = scmp.le.s32.totalorder 2, %s3
      // Predicated region
      $region81: #{custom-call.10} parent=5 // pred_check
        %p211 = pneg %p210
      $region82: #{custom-call.10} parent=5 // pred_check_branch
        %213 = sbr.rel (%p211) target = $region84
      $region83: #{custom-call.10} parent=5 // pred_region
        %s214 = ssub.s32 %s3, 2
        %s215 = sand.u32 %s9, 1
        %s216 = sand.u32 %s9, 1
        %s217 = smul.addr %s216, 4
        %s218 = scalar_lea.vmem [#allocation3], %s217
      $region84: #{custom-call.10} parent=5 // pred_fallthru
        _
    $region6: #{custom-call.10} parent=1 // loop_footer
      %s7 = sadd.s32 1, %s3
    $region7: #{custom-call.10} parent=1 // loop_footer_branch
      %2 = sbr.rel target = $region3
    $region8: #{custom-call.10} parent=1 // loop_exit
      _

// kernel: custom-call.9
$region0: #{custom-call.9}
  %s0 = inlined_call_operand.vmem [shape: f32[2,1,3,3], index: 0, kind: input, shape index: {}]
  %s1 = inlined_call_operand.vmem [shape: f32[2,1,3,3], index: 1, kind: output, shape index: {}]
  $region1: #{custom-call.9} parent=0
    #allocation0 [shape = 'u8[4096]{0}', space=vmem, size = 0x1000, scoped, tag = 'operand span for operand 0']
    #allocation1 [shape = 'u8[4096]{0}', space=vmem, size = 0x1000, scoped, tag = 'packed  for operand 0']
    #allocation2 [shape = 'u8[4096]{0}', space=vmem, size = 0x1000, scoped, tag = 'operand span for operand 1']
    #allocation3 [shape = 'u8[4096]{0}', space=vmem, size = 0x1000, scoped, tag = 'packed  for operand 1']
    loop: start=0, step=1, limit=4
    $region2: #{custom-call.9} parent=1 // loop_pre_header
      _
    $region3: #{custom-call.9} parent=1 // loop_header
      %s3 = sphi 0, %s7
      %p4 = scmp.ge.s32.totalorder %s3, 4
      %s10 = sphi 0, %s36
      %s11 = sphi 0, %s32
      %s12 = sphi 0, %s28
      %s13 = sphi 0, %s24
      %s14 = sphi 0, %s10
      %s15 = sphi 0, %s11
      %s16 = sphi 0, %s12
      %s17 = sphi 0, %s13
      %s18 = sphi 0, %s14
      %s19 = sphi 0, %s15
      %s20 = sphi 0, %s16
      %s21 = sphi 0, %s17
    $region4: #{custom-call.9} parent=1 // loop_header_branch
      %6 = sbr.rel (%p4) target = $region8
    $region5: #{custom-call.9} parent=1 // loop_body
      %s8 = ssub.s32 %s3, 1
      %s9 = ssub.s32 %s3, 2
      %s22 = sadd.s32 1, %s13
      %p23 = scmp.ge.s32.totalorder %s22, 1
      %s24 = scalar_select %p23, 0, %s22
      %s25 = sadd.s32 1, %s12
      %s26 = scalar_select %p23, %s25, %s12
      %p27 = scmp.ge.s32.totalorder %s26, 1
      %s28 = scalar_select %p27, 0, %s26
      %s29 = sadd.s32 1, %s11
      %s30 = scalar_select %p27, %s29, %s11
      %p31 = scmp.ge.s32.totalorder %s30, 1
      %s32 = scalar_select %p31, 0, %s30
      %s33 = sadd.s32 1, %s10
      %s34 = scalar_select %p31, %s33, %s10
      %p35 = scmp.ge.s32.totalorder %s34, 2
      %s36 = scalar_select %p35, 0, %s34
      %p37 = scmp.le.s32.totalorder 1, %s3
      %p38 = scmp.lt.s32.totalorder %s3, 3
      %p39 = pnand %p37, %p38
      %p40 = pneg %p39
      // Predicated region
      $region9: #{custom-call.9} parent=5 // pred_check
        _
      $region10: #{custom-call.9} parent=5 // pred_check_branch
        %42 = sbr.rel (%p39) target = $region12
      $region11: #{custom-call.9} parent=5 // pred_region
        %s43 = ssub.s32 %s3, 1
      $region12: #{custom-call.9} parent=5 // pred_fallthru
        _
      %p44 = scmp.lt.s32.totalorder %s3, 2
      // Predicated region
      $region13: #{custom-call.9} parent=5 // pred_check
        %p45 = pneg %p44
      $region14: #{custom-call.9} parent=5 // pred_check_branch
        %47 = sbr.rel (%p45) target = $region16
      $region15: #{custom-call.9} parent=5 // pred_region
        %s48 = sand.u32 %s3, 1
        %s49 = sand.u32 %s3, 1
        %s50 = smul.addr %s49, 4
        %s51 = scalar_lea.vmem [#allocation1], %s50
        %s52 = sadd.s32 %s13, %s12
        %s53 = sadd.s32 %s52, %s11
        %s54 = sadd.s32 %s53, %s10
        %s55 = smul.addr %s54, 4
        %s56 = scalar_lea.vmem %s0, %s55
        // Predicated region
        $region17: #{custom-call.9} parent=15 // pred_check
          _
        $region18: #{custom-call.9} parent=15 // pred_check_branch
          %58 = sbr.rel (0) target = $region20
        $region19: #{custom-call.9} parent=15 // pred_region
          // Predicated region
          $region21: #{custom-call.9} parent=19 // pred_check
            _
          $region22: #{custom-call.9} parent=19 // pred_check_branch
            %60 = sbr.rel target = $region24
          $region23: #{custom-call.9} parent=19 // pred_region
            // Predicated region
            $region36: #{custom-call.9} parent=23 // pred_check
              _
            $region37: #{custom-call.9} parent=23 // pred_check_branch
              %75 = sbr.rel (0) target = $region39
            $region38: #{custom-call.9} parent=23 // pred_region
              loop: start=0, step=1, limit=1
              $region40: #{custom-call.9} parent=38 // loop_pre_header
                _
              $region41: #{custom-call.9} parent=38 // loop_header
                %s78 = sphi 0, %s82
                %p79 = scmp.ge.s32.totalorder %s78, 1
                %s83 = sphi %s56, %s56
                %s84 = sphi %s51, %s51
              $region42: #{custom-call.9} parent=38 // loop_header_branch
                %81 = sbr.rel (%p79) target = $region46
              $region43: #{custom-call.9} parent=38 // loop_body
                %v85 = vld [vmem:[%s83] sm:$0xf]
                %86 = vst [vmem:[%s84] sm:$0xf] %v85
              $region44: #{custom-call.9} parent=38 // loop_footer
                %s82 = sadd.s32 1, %s78
              $region45: #{custom-call.9} parent=38 // loop_footer_branch
                %77 = sbr.rel target = $region41
              $region46: #{custom-call.9} parent=38 // loop_exit
                _
            $region39: #{custom-call.9} parent=23 // pred_fallthru
              _
          $region24: #{custom-call.9} parent=19 // pred_fallthru
            _
          // Predicated region
          $region25: #{custom-call.9} parent=19 // pred_check
            _
          $region26: #{custom-call.9} parent=19 // pred_check_branch
            %62 = sbr.rel (0) target = $region28
          $region27: #{custom-call.9} parent=19 // pred_region
            loop: start=0, step=1, limit=1
            $region29: #{custom-call.9} parent=27 // loop_pre_header
              _
            $region30: #{custom-call.9} parent=27 // loop_header
              %s65 = sphi 0, %s69
              %p66 = scmp.ge.s32.totalorder %s65, 1
              %s70 = sphi %s56, %s56
              %s71 = sphi %s51, %s51
            $region31: #{custom-call.9} parent=27 // loop_header_branch
              %68 = sbr.rel (%p66) target = $region35
            $region32: #{custom-call.9} parent=27 // loop_body
              %v72 = vld [vmem:[%s70] sm:$0xf]
              %73 = vst [vmem:[%s71] sm:$0xf] %v72
            $region33: #{custom-call.9} parent=27 // loop_footer
              %s69 = sadd.s32 1, %s65
            $region34: #{custom-call.9} parent=27 // loop_footer_branch
              %64 = sbr.rel target = $region30
            $region35: #{custom-call.9} parent=27 // loop_exit
              _
          $region28: #{custom-call.9} parent=19 // pred_fallthru
            _
        $region20: #{custom-call.9} parent=15 // pred_fallthru
          _
        %87 = vnop
      $region16: #{custom-call.9} parent=5 // pred_fallthru
        _
      %p88 = scmp.le.s32.totalorder 1, %s3
      %p89 = scmp.lt.s32.totalorder %s3, 3
      %p90 = pnand %p88, %p89
      %p91 = pneg %p90
      // Predicated region
      $region47: #{custom-call.9} parent=5 // pred_check
        _
      $region48: #{custom-call.9} parent=5 // pred_check_branch
        %93 = sbr.rel (%p90) target = $region50
      $region49: #{custom-call.9} parent=5 // pred_region
        #allocation4 [shape = 'f32[3,3]{1,0}', space=vmem, size = 0x1000, scoped, tag = 'rescaled input a']
        %s94 = ssub.s32 %s3, 1
        %s95 = sand.u32 %s8, 1
        %s96 = sand.u32 %s8, 1
        %s97 = smul.addr %s96, 4
        %s98 = scalar_lea.vmem [#allocation1], %s97
        %s99 = sand.u32 %s8, 1
        %s100 = sand.u32 %s8, 1
        %s101 = smul.addr %s100, 4
        %s102 = scalar_lea.vmem [#allocation1], %s101
        %s103 = sand.u32 %s8, 1
        %s104 = sand.u32 %s8, 1
        %s105 = smul.addr %s104, 4
        %s106 = scalar_lea.vmem [#allocation3], %s105
        %s108 = sshllo.u32 0, 4
        %v109 = vld [vmem:[%s102] sm:%s108]
        %110 = vst [vmem:[#allocation0] sm:%s108] %v109
        %v111 = vlaneseq
        %v112 = vand.u32 %v111, 127
        %vm113 = vcmp.lt.s32.totalorder %v112, 3
        %v114 = vlaneseq
        %v115 = vshrl.u32 %v114, 7
        %vm117 = vcmp.eq.s32.totalorder %v115, %v112
        %v118 = vld [vmem:[#allocation0] sm:$0xff]
        %v119 = vsel %vm117, %v118, 0.0
        %120 = vadd.xlane.f32.xlu0 %v119
        %v121 = vpop.xlane.xlu0 %120
        %vm122 = vcmp.le.s32.totalorder %v115, %v112
        %vm123 = vmand %vm122, %vm113
        %v124 = vsel %vm123, %v118, 0.0
        %v125 = vrcp.pop %v121
        %v126 = vmul.f32 %v124, %v125
        %127 = vst [vmem:[#allocation4] sm:$0xff] %v126
        %v128 = vlaneseq
        %v129 = vand.u32 %v128, 127
        %v130 = vlaneseq
        %v131 = vshrl.u32 %v130, 7
        %vm133 = vcmp.eq.s32.totalorder %v129, %v131
        %v134 = vlaneseq
        %v135 = vand.u32 %v134, 127
        %vm136 = vcmp.eq.s32.totalorder %v135, 2
        %v137 = vsel %vm136, 1.0, -1.0
        %v138 = vsel %vm133, %v137, 0.0
        %s139 = scalar_lea.vmem [#allocation4], 1
        %v140 = vld [vmem:[%s139] ss:$0 sm:$0xff]
        %v141 = vxor.u32 %v140, 2147483648
        %v142 = vlaneseq
        %v143 = vand.u32 %v142, 127
        %vm144 = vcmp.eq.s32.totalorder %v143, 1
        %v145 = vmul.f32 %v141, %v138
        %146 = vadd.xlane.f32.xlu0 %v145
        %v147 = vpop.xlane.xlu0 %146
        %v148 = vsel %vm144, %v147, %v138
        %v149 = vld [vmem:[#allocation4] ss:$0 sm:$0xff]
        %v150 = vxor.u32 %v149, 2147483648
        %v151 = vlaneseq
        %v152 = vand.u32 %v151, 127
        %vm153 = vcmp.eq.s32.totalorder %v152, 0
        %v154 = vmul.f32 %v150, %v148
        %155 = vadd.xlane.f32.xlu0 %v154
        %v156 = vpop.xlane.xlu0 %155
        %v157 = vsel %vm153, %v156, %v148
        %v158 = vrcp.pop %v121
        %v159 = vmul.f32 %v157, %v158
        %vm160 = vweird.f32 %v121
        %v161 = vsel %vm160, %v157, %v159
        %162 = vst [vmem:[#allocation2] sm:$0xff] %v161
        %s164 = sshllo.u32 0, 4
        %v166 = vld [vmem:[#allocation2] sm:%s164]
        %s167 = sshllo.u32 0, 4
        %168 = vst [vmem:[%s106] sm:%s167] %v166
        %s169 = sand.u32 %s8, 1
        %s170 = sand.u32 %s8, 1
        %s171 = smul.addr %s170, 4
        %s172 = scalar_lea.vmem [#allocation3], %s171
        %s173 = sadd.s32 %s17, %s16
        %s174 = sadd.s32 %s173, %s15
        %s175 = sadd.s32 %s174, %s14
        %s176 = smul.addr %s175, 4
        %s177 = scalar_lea.vmem %s1, %s176
        // Predicated region
        $region51: #{custom-call.9} parent=49 // pred_check
          _
        $region52: #{custom-call.9} parent=49 // pred_check_branch
          %179 = sbr.rel (0) target = $region54
        $region53: #{custom-call.9} parent=49 // pred_region
          // Predicated region
          $region55: #{custom-call.9} parent=53 // pred_check
            _
          $region56: #{custom-call.9} parent=53 // pred_check_branch
            %181 = sbr.rel target = $region58
          $region57: #{custom-call.9} parent=53 // pred_region
            // Predicated region
            $region70: #{custom-call.9} parent=57 // pred_check
              _
            $region71: #{custom-call.9} parent=57 // pred_check_branch
              %196 = sbr.rel (0) target = $region73
            $region72: #{custom-call.9} parent=57 // pred_region
              loop: start=0, step=1, limit=1
              $region74: #{custom-call.9} parent=72 // loop_pre_header
                _
              $region75: #{custom-call.9} parent=72 // loop_header
                %s199 = sphi 0, %s203
                %p200 = scmp.ge.s32.totalorder %s199, 1
                %s204 = sphi %s172, %s172
                %s205 = sphi %s177, %s177
              $region76: #{custom-call.9} parent=72 // loop_header_branch
                %202 = sbr.rel (%p200) target = $region80
              $region77: #{custom-call.9} parent=72 // loop_body
                %v206 = vld [vmem:[%s204] sm:$0xf]
                %207 = vst [vmem:[%s205] sm:$0xf] %v206
              $region78: #{custom-call.9} parent=72 // loop_footer
                %s203 = sadd.s32 1, %s199
              $region79: #{custom-call.9} parent=72 // loop_footer_branch
                %198 = sbr.rel target = $region75
              $region80: #{custom-call.9} parent=72 // loop_exit
                _
            $region73: #{custom-call.9} parent=57 // pred_fallthru
              _
          $region58: #{custom-call.9} parent=53 // pred_fallthru
            _
          // Predicated region
          $region59: #{custom-call.9} parent=53 // pred_check
            _
          $region60: #{custom-call.9} parent=53 // pred_check_branch
            %183 = sbr.rel (0) target = $region62
          $region61: #{custom-call.9} parent=53 // pred_region
            loop: start=0, step=1, limit=1
            $region63: #{custom-call.9} parent=61 // loop_pre_header
              _
            $region64: #{custom-call.9} parent=61 // loop_header
              %s186 = sphi 0, %s190
              %p187 = scmp.ge.s32.totalorder %s186, 1
              %s191 = sphi %s172, %s172
              %s192 = sphi %s177, %s177
            $region65: #{custom-call.9} parent=61 // loop_header_branch
              %189 = sbr.rel (%p187) target = $region69
            $region66: #{custom-call.9} parent=61 // loop_body
              %v193 = vld [vmem:[%s191] sm:$0xf]
              %194 = vst [vmem:[%s192] sm:$0xf] %v193
            $region67: #{custom-call.9} parent=61 // loop_footer
              %s190 = sadd.s32 1, %s186
            $region68: #{custom-call.9} parent=61 // loop_footer_branch
              %185 = sbr.rel target = $region64
            $region69: #{custom-call.9} parent=61 // loop_exit
              _
          $region62: #{custom-call.9} parent=53 // pred_fallthru
            _
        $region54: #{custom-call.9} parent=49 // pred_fallthru
          _
        %208 = vnop
      $region50: #{custom-call.9} parent=5 // pred_fallthru
        _
      %p209 = scmp.le.s32.totalorder 2, %s3
      // Predicated region
      $region81: #{custom-call.9} parent=5 // pred_check
        %p210 = pneg %p209
      $region82: #{custom-call.9} parent=5 // pred_check_branch
        %212 = sbr.rel (%p210) target = $region84
      $region83: #{custom-call.9} parent=5 // pred_region
        %s213 = ssub.s32 %s3, 2
        %s214 = sand.u32 %s9, 1
        %s215 = sand.u32 %s9, 1
        %s216 = smul.addr %s215, 4
        %s217 = scalar_lea.vmem [#allocation3], %s216
      $region84: #{custom-call.9} parent=5 // pred_fallthru
        _
    $region6: #{custom-call.9} parent=1 // loop_footer
      %s7 = sadd.s32 1, %s3
    $region7: #{custom-call.9} parent=1 // loop_footer_branch
      %2 = sbr.rel target = $region3
    $region8: #{custom-call.9} parent=1 // loop_exit
      _

// kernel: forward.5
$region0: #{forward.5}
  #allocation0 [shape = 'u32[]', space=smem, size = 0x4, offset = 0x4, fixed_abs, tag = 'smem constant byte address 0x4 - core index']
  #allocation1 [shape = 'u32[144,128]{1,0:T(1,128)}', space=vmem, size = 0x12000, scoped, tag = 'internal scratch']
  %s0 = inlined_call_operand.vmem [shape: f32[18], index: 0, kind: input, shape index: {}]
  %s1 = inlined_call_operand.vmem [shape: f32[2,3,128,128], index: 1, kind: input, shape index: {}]
  %s2 = inlined_call_operand.vmem [shape: f32[2,3,128,128], index: 2, kind: input, shape index: {}]
  %s3 = inlined_call_operand.vmem [shape: f32[2,1,128,128], index: 3, kind: input, shape index: {}]
  %s4 = inlined_call_operand.hbm [shape: f32[1,1], index: 4, kind: output, shape index: {0}]
  %s5 = inlined_call_operand.hbm [shape: f32[1,1], index: 5, kind: output, shape index: {1}]
  %6 = xla_tuple %s4, %s5
  %s7 = sld [smem:[#allocation0]]
  $region38: #{forward.5} parent=0
    _
  %s9 = ssub.s32 1, %s7
  %s10 = scalar_select 0, %s9, %s7
  $region1: #{forward.5} parent=0
    #allocation2 [shape = 'u8[512]{0}', space=smem, size = 0x200, scoped, tag = 'input window, operand 0, single buffered']
    #allocation3 [shape = 's32[1]{0}', space=sflag, size = 0x4, scoped, tag = 'scoped memory for forward.5']
    #allocation4 [shape = 's32[1]{0}', space=sflag, size = 0x4, scoped, tag = 'scoped memory for forward.5']
    #allocation5 [shape = 'u8[512]{0}', space=vmem, size = 0x400, scoped, tag = 'output window, operand 0, single buffered']
    #allocation6 [shape = 'u8[512]{0}', space=vmem, size = 0x400, scoped, tag = 'output window, operand 1, single buffered']
    #allocation7 [shape = 's32[1]{0}', space=sflag, size = 0x4, scoped, tag = 'scoped memory for forward.5']
    %11 = vsyncpa [#allocation4], 0
    %12 = vsyncpa [#allocation3], 0
    %13 = vsyncpa [#allocation7], 0
    // Predicated region
    $region2: #{forward.5} parent=1 // pred_check
      _
    $region3: #{forward.5} parent=1 // pred_check_branch
      %15 = sbr.rel (0) target = $region5
    $region4: #{forward.5} parent=1 // pred_region
      %s17 = ssub.s32 16, 16
      %18 = vsyncadd [#allocation4], %s17
      %s20 = sshll.u32 %s0, 4
      %s21 = int_to_ptr.vmem [resolvable:$true] %s20
      %23 = dma.vmem_to_smem %s21, 16, [#allocation2], [#allocation4]
    $region5: #{forward.5} parent=1 // pred_fallthru
      _
    // Predicated region
    $region6: #{forward.5} parent=1 // pred_check
      _
    $region7: #{forward.5} parent=1 // pred_check_branch
      %25 = sbr.rel (0) target = $region9
    $region8: #{forward.5} parent=1 // pred_region
      _
    $region9: #{forward.5} parent=1 // pred_fallthru
      _
    // Predicated region
    $region10: #{forward.5} parent=1 // pred_check
      _
    $region11: #{forward.5} parent=1 // pred_check_branch
      %27 = sbr.rel (0) target = $region13
    $region12: #{forward.5} parent=1 // pred_region
      _
    $region13: #{forward.5} parent=1 // pred_fallthru
      _
    // Predicated region
    $region14: #{forward.5} parent=1 // pred_check
      _
    $region15: #{forward.5} parent=1 // pred_check_branch
      %29 = sbr.rel (0) target = $region17
    $region16: #{forward.5} parent=1 // pred_region
      _
    $region17: #{forward.5} parent=1 // pred_fallthru
      _
    // Predicated region
    $region18: #{forward.5} parent=1 // pred_check
      _
    $region19: #{forward.5} parent=1 // pred_check_branch
      %31 = sbr.rel (0) target = $region21
    $region20: #{forward.5} parent=1 // pred_region
      %32 = dma.done [#allocation4], 16
    $region21: #{forward.5} parent=1 // pred_fallthru
      _
    %33 = sfence
    %s34 = sld [smem:[#allocation2]]
    %s35 = sld [smem:[#allocation2 + $0x1]]
    %s36 = sld [smem:[#allocation2 + $0x2]]
    %s37 = sld [smem:[#allocation2 + $0x3]]
    %s38 = sld [smem:[#allocation2 + $0x4]]
    %s39 = sld [smem:[#allocation2 + $0x5]]
    %s40 = sld [smem:[#allocation2 + $0x6]]
    %s41 = sld [smem:[#allocation2 + $0x7]]
    %s42 = sld [smem:[#allocation2 + $0x8]]
    %v43 = vld [vmem:[%s3] sm:$0xff]
    %v44 = vld [vmem:[%s3 + $0x8] sm:$0xff]
    %v45 = vld [vmem:[%s3 + $0x10] sm:$0xff]
    %v46 = vld [vmem:[%s3 + $0x18] sm:$0xff]
    %vm47 = vcmp.gt.f32.partialorder %v43, 0.9
    %vm48 = vcmp.gt.f32.partialorder %v44, 0.9
    %vm49 = vcmp.gt.f32.partialorder %v45, 0.9
    %vm50 = vcmp.gt.f32.partialorder %v46, 0.9
    %v51 = vsel %vm47, 1.0, 0.0
    %v52 = vsel %vm48, 1.0, 0.0
    %v53 = vsel %vm49, 1.0, 0.0
    %v54 = vsel %vm50, 1.0, 0.0
    %v55 = vld [vmem:[%s1] sm:$0xff]
    %v56 = vld [vmem:[%s1 + $0x8] sm:$0xff]
    %v57 = vld [vmem:[%s1 + $0x10] sm:$0xff]
    %v58 = vld [vmem:[%s1 + $0x18] sm:$0xff]
    %s59 = scalar_lea.vmem %s1, 128
    %v60 = vld [vmem:[%s59] sm:$0xff]
    %v61 = vld [vmem:[%s59 + $0x8] sm:$0xff]
    %v62 = vld [vmem:[%s59 + $0x10] sm:$0xff]
    %v63 = vld [vmem:[%s59 + $0x18] sm:$0xff]
    %s64 = scalar_lea.vmem %s1, 256
    %v65 = vld [vmem:[%s64] sm:$0xff]
    %v66 = vld [vmem:[%s64 + $0x8] sm:$0xff]
    %v67 = vld [vmem:[%s64 + $0x10] sm:$0xff]
    %v68 = vld [vmem:[%s64 + $0x18] sm:$0xff]
    %v69 = vstv %s34
    %v70 = vmul.f32 %v55, %v69
    %v71 = vmul.f32 %v56, %v69
    %v72 = vmul.f32 %v57, %v69
    %v73 = vmul.f32 %v58, %v69
    %v74 = vstv %s37
    %v75 = vmul.f32 %v60, %v74
    %v76 = vmul.f32 %v61, %v74
    %v77 = vmul.f32 %v62, %v74
    %v78 = vmul.f32 %v63, %v74
    %v79 = vadd.f32 %v70, %v75
    %v80 = vadd.f32 %v71, %v76
    %v81 = vadd.f32 %v72, %v77
    %v82 = vadd.f32 %v73, %v78
    %v83 = vstv %s40
    %v84 = vmul.f32 %v65, %v83
    %v85 = vmul.f32 %v66, %v83
    %v86 = vmul.f32 %v67, %v83
    %v87 = vmul.f32 %v68, %v83
    %v88 = vadd.f32 %v79, %v84
    %v89 = vadd.f32 %v80, %v85
    %v90 = vadd.f32 %v81, %v86
    %v91 = vadd.f32 %v82, %v87
    %v92 = vld [vmem:[%s2] sm:$0xff]
    %v93 = vld [vmem:[%s2 + $0x8] sm:$0xff]
    %v94 = vld [vmem:[%s2 + $0x10] sm:$0xff]
    %v95 = vld [vmem:[%s2 + $0x18] sm:$0xff]
    %v96 = vsub.f32 %v88, %v92
    %v97 = vsub.f32 %v89, %v93
    %v98 = vsub.f32 %v90, %v94
    %v99 = vsub.f32 %v91, %v95
    %v100 = vmul.f32 %v96, %v96
    %v101 = vmul.f32 %v97, %v97
    %v102 = vmul.f32 %v98, %v98
    %v103 = vmul.f32 %v99, %v99
    %v104 = vstv %s35
    %v105 = vmul.f32 %v55, %v104
    %v106 = vmul.f32 %v56, %v104
    %v107 = vmul.f32 %v57, %v104
    %v108 = vmul.f32 %v58, %v104
    %v109 = vstv %s38
    %v110 = vmul.f32 %v60, %v109
    %v111 = vmul.f32 %v61, %v109
    %v112 = vmul.f32 %v62, %v109
    %v113 = vmul.f32 %v63, %v109
    %v114 = vadd.f32 %v105, %v110
    %v115 = vadd.f32 %v106, %v111
    %v116 = vadd.f32 %v107, %v112
    %v117 = vadd.f32 %v108, %v113
    %v118 = vstv %s41
    %v119 = vmul.f32 %v65, %v118
    %v120 = vmul.f32 %v66, %v118
    %v121 = vmul.f32 %v67, %v118
    %v122 = vmul.f32 %v68, %v118
    %v123 = vadd.f32 %v114, %v119
    %v124 = vadd.f32 %v115, %v120
    %v125 = vadd.f32 %v116, %v121
    %v126 = vadd.f32 %v117, %v122
    %s127 = scalar_lea.vmem %s2, 128
    %v128 = vld [vmem:[%s127] sm:$0xff]
    %v129 = vld [vmem:[%s127 + $0x8] sm:$0xff]
    %v130 = vld [vmem:[%s127 + $0x10] sm:$0xff]
    %v131 = vld [vmem:[%s127 + $0x18] sm:$0xff]
    %v132 = vsub.f32 %v123, %v128
    %v133 = vsub.f32 %v124, %v129
    %v134 = vsub.f32 %v125, %v130
    %v135 = vsub.f32 %v126, %v131
    %v136 = vmul.f32 %v132, %v132
    %v137 = vmul.f32 %v133, %v133
    %v138 = vmul.f32 %v134, %v134
    %v139 = vmul.f32 %v135, %v135
    %v140 = vadd.f32 %v100, %v136
    %v141 = vadd.f32 %v101, %v137
    %v142 = vadd.f32 %v102, %v138
    %v143 = vadd.f32 %v103, %v139
    %v144 = vstv %s36
    %v145 = vmul.f32 %v55, %v144
    %v146 = vmul.f32 %v56, %v144
    %v147 = vmul.f32 %v57, %v144
    %v148 = vmul.f32 %v58, %v144
    %v149 = vstv %s39
    %v150 = vmul.f32 %v60, %v149
    %v151 = vmul.f32 %v61, %v149
    %v152 = vmul.f32 %v62, %v149
    %v153 = vmul.f32 %v63, %v149
    %v154 = vadd.f32 %v145, %v150
    %v155 = vadd.f32 %v146, %v151
    %v156 = vadd.f32 %v147, %v152
    %v157 = vadd.f32 %v148, %v153
    %v158 = vstv %s42
    %v159 = vmul.f32 %v65, %v158
    %v160 = vmul.f32 %v66, %v158
    %v161 = vmul.f32 %v67, %v158
    %v162 = vmul.f32 %v68, %v158
    %v163 = vadd.f32 %v154, %v159
    %v164 = vadd.f32 %v155, %v160
    %v165 = vadd.f32 %v156, %v161
    %v166 = vadd.f32 %v157, %v162
    %s167 = scalar_lea.vmem %s2, 256
    %v168 = vld [vmem:[%s167] sm:$0xff]
    %v169 = vld [vmem:[%s167 + $0x8] sm:$0xff]
    %v170 = vld [vmem:[%s167 + $0x10] sm:$0xff]
    %v171 = vld [vmem:[%s167 + $0x18] sm:$0xff]
    %v172 = vsub.f32 %v163, %v168
    %v173 = vsub.f32 %v164, %v169
    %v174 = vsub.f32 %v165, %v170
    %v175 = vsub.f32 %v166, %v171
    %v176 = vmul.f32 %v172, %v172
    %v177 = vmul.f32 %v173, %v173
    %v178 = vmul.f32 %v174, %v174
    %v179 = vmul.f32 %v175, %v175
    %v180 = vadd.f32 %v140, %v176
    %v181 = vadd.f32 %v141, %v177
    %v182 = vadd.f32 %v142, %v178
    %v183 = vadd.f32 %v143, %v179
    %v184 = vmul.f32 %v180, %v51
    %v185 = vmul.f32 %v181, %v52
    %v186 = vmul.f32 %v182, %v53
    %v187 = vmul.f32 %v183, %v54
    %v188 = vadd.f32 %v184, 0.0
    %v189 = vadd.f32 %v185, 0.0
    %v190 = vadd.f32 %v186, 0.0
    %v191 = vadd.f32 %v187, 0.0
    %v192 = vadd.f32 %v51, 0.0
    %v193 = vadd.f32 %v52, 0.0
    %v194 = vadd.f32 %v53, 0.0
    %v195 = vadd.f32 %v54, 0.0
    %v196 = vld [vmem:[%s3 + $0x20] sm:$0xff]
    %v197 = vld [vmem:[%s3 + $0x28] sm:$0xff]
    %v198 = vld [vmem:[%s3 + $0x30] sm:$0xff]
    %v199 = vld [vmem:[%s3 + $0x38] sm:$0xff]
    %vm200 = vcmp.gt.f32.partialorder %v196, 0.9
    %vm201 = vcmp.gt.f32.partialorder %v197, 0.9
    %vm202 = vcmp.gt.f32.partialorder %v198, 0.9
    %vm203 = vcmp.gt.f32.partialorder %v199, 0.9
    %v204 = vsel %vm200, 1.0, 0.0
    %v205 = vsel %vm201, 1.0, 0.0
    %v206 = vsel %vm202, 1.0, 0.0
    %v207 = vsel %vm203, 1.0, 0.0
    %v208 = vld [vmem:[%s1 + $0x20] sm:$0xff]
    %v209 = vld [vmem:[%s1 + $0x28] sm:$0xff]
    %v210 = vld [vmem:[%s1 + $0x30] sm:$0xff]
    %v211 = vld [vmem:[%s1 + $0x38] sm:$0xff]
    %v212 = vld [vmem:[%s59 + $0x20] sm:$0xff]
    %v213 = vld [vmem:[%s59 + $0x28] sm:$0xff]
    %v214 = vld [vmem:[%s59 + $0x30] sm:$0xff]
    %v215 = vld [vmem:[%s59 + $0x38] sm:$0xff]
    %v216 = vld [vmem:[%s64 + $0x20] sm:$0xff]
    %v217 = vld [vmem:[%s64 + $0x28] sm:$0xff]
    %v218 = vld [vmem:[%s64 + $0x30] sm:$0xff]
    %v219 = vld [vmem:[%s64 + $0x38] sm:$0xff]
    %v220 = vmul.f32 %v208, %v69
    %v221 = vmul.f32 %v209, %v69
    %v222 = vmul.f32 %v210, %v69
    %v223 = vmul.f32 %v211, %v69
    %v224 = vmul.f32 %v212, %v74
    %v225 = vmul.f32 %v213, %v74
    %v226 = vmul.f32 %v214, %v74
    %v227 = vmul.f32 %v215, %v74
    %v228 = vadd.f32 %v220, %v224
    %v229 = vadd.f32 %v221, %v225
    %v230 = vadd.f32 %v222, %v226
    %v231 = vadd.f32 %v223, %v227
    %v232 = vmul.f32 %v216, %v83
    %v233 = vmul.f32 %v217, %v83
    %v234 = vmul.f32 %v218, %v83
    %v235 = vmul.f32 %v219, %v83
    %v236 = vadd.f32 %v228, %v232
    %v237 = vadd.f32 %v229, %v233
    %v238 = vadd.f32 %v230, %v234
    %v239 = vadd.f32 %v231, %v235
    %v240 = vld [vmem:[%s2 + $0x20] sm:$0xff]
    %v241 = vld [vmem:[%s2 + $0x28] sm:$0xff]
    %v242 = vld [vmem:[%s2 + $0x30] sm:$0xff]
    %v243 = vld [vmem:[%s2 + $0x38] sm:$0xff]
    %v244 = vsub.f32 %v236, %v240
    %v245 = vsub.f32 %v237, %v241
    %v246 = vsub.f32 %v238, %v242
    %v247 = vsub.f32 %v239, %v243
    %v248 = vmul.f32 %v244, %v244
    %v249 = vmul.f32 %v245, %v245
    %v250 = vmul.f32 %v246, %v246
    %v251 = vmul.f32 %v247, %v247
    %v252 = vmul.f32 %v208, %v104
    %v253 = vmul.f32 %v209, %v104
    %v254 = vmul.f32 %v210, %v104
    %v255 = vmul.f32 %v211, %v104
    %v256 = vmul.f32 %v212, %v109
    %v257 = vmul.f32 %v213, %v109
    %v258 = vmul.f32 %v214, %v109
    %v259 = vmul.f32 %v215, %v109
    %v260 = vadd.f32 %v252, %v256
    %v261 = vadd.f32 %v253, %v257
    %v262 = vadd.f32 %v254, %v258
    %v263 = vadd.f32 %v255, %v259
    %v264 = vmul.f32 %v216, %v118
    %v265 = vmul.f32 %v217, %v118
    %v266 = vmul.f32 %v218, %v118
    %v267 = vmul.f32 %v219, %v118
    %v268 = vadd.f32 %v260, %v264
    %v269 = vadd.f32 %v261, %v265
    %v270 = vadd.f32 %v262, %v266
    %v271 = vadd.f32 %v263, %v267
    %v272 = vld [vmem:[%s127 + $0x20] sm:$0xff]
    %v273 = vld [vmem:[%s127 + $0x28] sm:$0xff]
    %v274 = vld [vmem:[%s127 + $0x30] sm:$0xff]
    %v275 = vld [vmem:[%s127 + $0x38] sm:$0xff]
    %v276 = vsub.f32 %v268, %v272
    %v277 = vsub.f32 %v269, %v273
    %v278 = vsub.f32 %v270, %v274
    %v279 = vsub.f32 %v271, %v275
    %v280 = vmul.f32 %v276, %v276
    %v281 = vmul.f32 %v277, %v277
    %v282 = vmul.f32 %v278, %v278
    %v283 = vmul.f32 %v279, %v279
    %v284 = vadd.f32 %v248, %v280
    %v285 = vadd.f32 %v249, %v281
    %v286 = vadd.f32 %v250, %v282
    %v287 = vadd.f32 %v251, %v283
    %v288 = vmul.f32 %v208, %v144
    %v289 = vmul.f32 %v209, %v144
    %v290 = vmul.f32 %v210, %v144
    %v291 = vmul.f32 %v211, %v144
    %v292 = vmul.f32 %v212, %v149
    %v293 = vmul.f32 %v213, %v149
    %v294 = vmul.f32 %v214, %v149
    %v295 = vmul.f32 %v215, %v149
    %v296 = vadd.f32 %v288, %v292
    %v297 = vadd.f32 %v289, %v293
    %v298 = vadd.f32 %v290, %v294
    %v299 = vadd.f32 %v291, %v295
    %v300 = vmul.f32 %v216, %v158
    %v301 = vmul.f32 %v217, %v158
    %v302 = vmul.f32 %v218, %v158
    %v303 = vmul.f32 %v219, %v158
    %v304 = vadd.f32 %v296, %v300
    %v305 = vadd.f32 %v297, %v301
    %v306 = vadd.f32 %v298, %v302
    %v307 = vadd.f32 %v299, %v303
    %v308 = vld [vmem:[%s167 + $0x20] sm:$0xff]
    %v309 = vld [vmem:[%s167 + $0x28] sm:$0xff]
    %v310 = vld [vmem:[%s167 + $0x30] sm:$0xff]
    %v311 = vld [vmem:[%s167 + $0x38] sm:$0xff]
    %v312 = vsub.f32 %v304, %v308
    %v313 = vsub.f32 %v305, %v309
    %v314 = vsub.f32 %v306, %v310
    %v315 = vsub.f32 %v307, %v311
    %v316 = vmul.f32 %v312, %v312
    %v317 = vmul.f32 %v313, %v313
    %v318 = vmul.f32 %v314, %v314
    %v319 = vmul.f32 %v315, %v315
    %v320 = vadd.f32 %v284, %v316
    %v321 = vadd.f32 %v285, %v317
    %v322 = vadd.f32 %v286, %v318
    %v323 = vadd.f32 %v287, %v319
    %v324 = vmul.f32 %v320, %v204
    %v325 = vmul.f32 %v321, %v205
    %v326 = vmul.f32 %v322, %v206
    %v327 = vmul.f32 %v323, %v207
    %v328 = vadd.f32 %v188, %v324
    %v329 = vadd.f32 %v189, %v325
    %v330 = vadd.f32 %v190, %v326
    %v331 = vadd.f32 %v191, %v327
    %v332 = vadd.f32 %v192, %v204
    %v333 = vadd.f32 %v193, %v205
    %v334 = vadd.f32 %v194, %v206
    %v335 = vadd.f32 %v195, %v207
    %v336 = vld [vmem:[%s3 + $0x40] sm:$0xff]
    %v337 = vld [vmem:[%s3 + $0x48] sm:$0xff]
    %v338 = vld [vmem:[%s3 + $0x50] sm:$0xff]
    %v339 = vld [vmem:[%s3 + $0x58] sm:$0xff]
    %vm340 = vcmp.gt.f32.partialorder %v336, 0.9
    %vm341 = vcmp.gt.f32.partialorder %v337, 0.9
    %vm342 = vcmp.gt.f32.partialorder %v338, 0.9
    %vm343 = vcmp.gt.f32.partialorder %v339, 0.9
    %v344 = vsel %vm340, 1.0, 0.0
    %v345 = vsel %vm341, 1.0, 0.0
    %v346 = vsel %vm342, 1.0, 0.0
    %v347 = vsel %vm343, 1.0, 0.0
    %v348 = vld [vmem:[%s1 + $0x40] sm:$0xff]
    %v349 = vld [vmem:[%s1 + $0x48] sm:$0xff]
    %v350 = vld [vmem:[%s1 + $0x50] sm:$0xff]
    %v351 = vld [vmem:[%s1 + $0x58] sm:$0xff]
    %v352 = vld [vmem:[%s59 + $0x40] sm:$0xff]
    %v353 = vld [vmem:[%s59 + $0x48] sm:$0xff]
    %v354 = vld [vmem:[%s59 + $0x50] sm:$0xff]
    %v355 = vld [vmem:[%s59 + $0x58] sm:$0xff]
    %v356 = vld [vmem:[%s64 + $0x40] sm:$0xff]
    %v357 = vld [vmem:[%s64 + $0x48] sm:$0xff]
    %v358 = vld [vmem:[%s64 + $0x50] sm:$0xff]
    %v359 = vld [vmem:[%s64 + $0x58] sm:$0xff]
    %v360 = vmul.f32 %v348, %v69
    %v361 = vmul.f32 %v349, %v69
    %v362 = vmul.f32 %v350, %v69
    %v363 = vmul.f32 %v351, %v69
    %v364 = vmul.f32 %v352, %v74
    %v365 = vmul.f32 %v353, %v74
    %v366 = vmul.f32 %v354, %v74
    %v367 = vmul.f32 %v355, %v74
    %v368 = vadd.f32 %v360, %v364
    %v369 = vadd.f32 %v361, %v365
    %v370 = vadd.f32 %v362, %v366
    %v371 = vadd.f32 %v363, %v367
    %v372 = vmul.f32 %v356, %v83
    %v373 = vmul.f32 %v357, %v83
    %v374 = vmul.f32 %v358, %v83
    %v375 = vmul.f32 %v359, %v83
    %v376 = vadd.f32 %v368, %v372
    %v377 = vadd.f32 %v369, %v373
    %v378 = vadd.f32 %v370, %v374
    %v379 = vadd.f32 %v371, %v375
    %v380 = vld [vmem:[%s2 + $0x40] sm:$0xff]
    %v381 = vld [vmem:[%s2 + $0x48] sm:$0xff]
    %v382 = vld [vmem:[%s2 + $0x50] sm:$0xff]
    %v383 = vld [vmem:[%s2 + $0x58] sm:$0xff]
    %v384 = vsub.f32 %v376, %v380
    %v385 = vsub.f32 %v377, %v381
    %v386 = vsub.f32 %v378, %v382
    %v387 = vsub.f32 %v379, %v383
    %v388 = vmul.f32 %v384, %v384
    %v389 = vmul.f32 %v385, %v385
    %v390 = vmul.f32 %v386, %v386
    %v391 = vmul.f32 %v387, %v387
    %v392 = vmul.f32 %v348, %v104
    %v393 = vmul.f32 %v349, %v104
    %v394 = vmul.f32 %v350, %v104
    %v395 = vmul.f32 %v351, %v104
    %v396 = vmul.f32 %v352, %v109
    %v397 = vmul.f32 %v353, %v109
    %v398 = vmul.f32 %v354, %v109
    %v399 = vmul.f32 %v355, %v109
    %v400 = vadd.f32 %v392, %v396
    %v401 = vadd.f32 %v393, %v397
    %v402 = vadd.f32 %v394, %v398
    %v403 = vadd.f32 %v395, %v399
    %v404 = vmul.f32 %v356, %v118
    %v405 = vmul.f32 %v357, %v118
    %v406 = vmul.f32 %v358, %v118
    %v407 = vmul.f32 %v359, %v118
    %v408 = vadd.f32 %v400, %v404
    %v409 = vadd.f32 %v401, %v405
    %v410 = vadd.f32 %v402, %v406
    %v411 = vadd.f32 %v403, %v407
    %v412 = vld [vmem:[%s127 + $0x40] sm:$0xff]
    %v413 = vld [vmem:[%s127 + $0x48] sm:$0xff]
    %v414 = vld [vmem:[%s127 + $0x50] sm:$0xff]
    %v415 = vld [vmem:[%s127 + $0x58] sm:$0xff]
    %v416 = vsub.f32 %v408, %v412
    %v417 = vsub.f32 %v409, %v413
    %v418 = vsub.f32 %v410, %v414
    %v419 = vsub.f32 %v411, %v415
    %v420 = vmul.f32 %v416, %v416
    %v421 = vmul.f32 %v417, %v417
    %v422 = vmul.f32 %v418, %v418
    %v423 = vmul.f32 %v419, %v419
    %v424 = vadd.f32 %v388, %v420
    %v425 = vadd.f32 %v389, %v421
    %v426 = vadd.f32 %v390, %v422
    %v427 = vadd.f32 %v391, %v423
    %v428 = vmul.f32 %v348, %v144
    %v429 = vmul.f32 %v349, %v144
    %v430 = vmul.f32 %v350, %v144
    %v431 = vmul.f32 %v351, %v144
    %v432 = vmul.f32 %v352, %v149
    %v433 = vmul.f32 %v353, %v149
    %v434 = vmul.f32 %v354, %v149
    %v435 = vmul.f32 %v355, %v149
    %v436 = vadd.f32 %v428, %v432
    %v437 = vadd.f32 %v429, %v433
    %v438 = vadd.f32 %v430, %v434
    %v439 = vadd.f32 %v431, %v435
    %v440 = vmul.f32 %v356, %v158
    %v441 = vmul.f32 %v357, %v158
    %v442 = vmul.f32 %v358, %v158
    %v443 = vmul.f32 %v359, %v158
    %v444 = vadd.f32 %v436, %v440
    %v445 = vadd.f32 %v437, %v441
    %v446 = vadd.f32 %v438, %v442
    %v447 = vadd.f32 %v439, %v443
    %v448 = vld [vmem:[%s167 + $0x40] sm:$0xff]
    %v449 = vld [vmem:[%s167 + $0x48] sm:$0xff]
    %v450 = vld [vmem:[%s167 + $0x50] sm:$0xff]
    %v451 = vld [vmem:[%s167 + $0x58] sm:$0xff]
    %v452 = vsub.f32 %v444, %v448
    %v453 = vsub.f32 %v445, %v449
    %v454 = vsub.f32 %v446, %v450
    %v455 = vsub.f32 %v447, %v451
    %v456 = vmul.f32 %v452, %v452
    %v457 = vmul.f32 %v453, %v453
    %v458 = vmul.f32 %v454, %v454
    %v459 = vmul.f32 %v455, %v455
    %v460 = vadd.f32 %v424, %v456
    %v461 = vadd.f32 %v425, %v457
    %v462 = vadd.f32 %v426, %v458
    %v463 = vadd.f32 %v427, %v459
    %v464 = vmul.f32 %v460, %v344
    %v465 = vmul.f32 %v461, %v345
    %v466 = vmul.f32 %v462, %v346
    %v467 = vmul.f32 %v463, %v347
    %v468 = vadd.f32 %v328, %v464
    %v469 = vadd.f32 %v329, %v465
    %v470 = vadd.f32 %v330, %v466
    %v471 = vadd.f32 %v331, %v467
    %v472 = vadd.f32 %v332, %v344
    %v473 = vadd.f32 %v333, %v345
    %v474 = vadd.f32 %v334, %v346
    %v475 = vadd.f32 %v335, %v347
    %v476 = vld [vmem:[%s3 + $0x60] sm:$0xff]
    %v477 = vld [vmem:[%s3 + $0x68] sm:$0xff]
    %v478 = vld [vmem:[%s3 + $0x70] sm:$0xff]
    %v479 = vld [vmem:[%s3 + $0x78] sm:$0xff]
    %vm480 = vcmp.gt.f32.partialorder %v476, 0.9
    %vm481 = vcmp.gt.f32.partialorder %v477, 0.9
    %vm482 = vcmp.gt.f32.partialorder %v478, 0.9
    %vm483 = vcmp.gt.f32.partialorder %v479, 0.9
    %v484 = vsel %vm480, 1.0, 0.0
    %v485 = vsel %vm481, 1.0, 0.0
    %v486 = vsel %vm482, 1.0, 0.0
    %v487 = vsel %vm483, 1.0, 0.0
    %v488 = vld [vmem:[%s1 + $0x60] sm:$0xff]
    %v489 = vld [vmem:[%s1 + $0x68] sm:$0xff]
    %v490 = vld [vmem:[%s1 + $0x70] sm:$0xff]
    %v491 = vld [vmem:[%s1 + $0x78] sm:$0xff]
    %v492 = vld [vmem:[%s59 + $0x60] sm:$0xff]
    %v493 = vld [vmem:[%s59 + $0x68] sm:$0xff]
    %v494 = vld [vmem:[%s59 + $0x70] sm:$0xff]
    %v495 = vld [vmem:[%s59 + $0x78] sm:$0xff]
    %v496 = vld [vmem:[%s64 + $0x60] sm:$0xff]
    %v497 = vld [vmem:[%s64 + $0x68] sm:$0xff]
    %v498 = vld [vmem:[%s64 + $0x70] sm:$0xff]
    %v499 = vld [vmem:[%s64 + $0x78] sm:$0xff]
    %v500 = vmul.f32 %v488, %v69
    %v501 = vmul.f32 %v489, %v69
    %v502 = vmul.f32 %v490, %v69
    %v503 = vmul.f32 %v491, %v69
    %v504 = vmul.f32 %v492, %v74
    %v505 = vmul.f32 %v493, %v74
    %v506 = vmul.f32 %v494, %v74
    %v507 = vmul.f32 %v495, %v74
    %v508 = vadd.f32 %v500, %v504
    %v509 = vadd.f32 %v501, %v505
    %v510 = vadd.f32 %v502, %v506
    %v511 = vadd.f32 %v503, %v507
    %v512 = vmul.f32 %v496, %v83
    %v513 = vmul.f32 %v497, %v83
    %v514 = vmul.f32 %v498, %v83
    %v515 = vmul.f32 %v499, %v83
    %v516 = vadd.f32 %v508, %v512
    %v517 = vadd.f32 %v509, %v513
    %v518 = vadd.f32 %v510, %v514
    %v519 = vadd.f32 %v511, %v515
    %v520 = vld [vmem:[%s2 + $0x60] sm:$0xff]
    %v521 = vld [vmem:[%s2 + $0x68] sm:$0xff]
    %v522 = vld [vmem:[%s2 + $0x70] sm:$0xff]
    %v523 = vld [vmem:[%s2 + $0x78] sm:$0xff]
    %v524 = vsub.f32 %v516, %v520
    %v525 = vsub.f32 %v517, %v521
    %v526 = vsub.f32 %v518, %v522
    %v527 = vsub.f32 %v519, %v523
    %v528 = vmul.f32 %v524, %v524
    %v529 = vmul.f32 %v525, %v525
    %v530 = vmul.f32 %v526, %v526
    %v531 = vmul.f32 %v527, %v527
    %v532 = vmul.f32 %v488, %v104
    %v533 = vmul.f32 %v489, %v104
    %v534 = vmul.f32 %v490, %v104
    %v535 = vmul.f32 %v491, %v104
    %v536 = vmul.f32 %v492, %v109
    %v537 = vmul.f32 %v493, %v109
    %v538 = vmul.f32 %v494, %v109
    %v539 = vmul.f32 %v495, %v109
    %v540 = vadd.f32 %v532, %v536
    %v541 = vadd.f32 %v533, %v537
    %v542 = vadd.f32 %v534, %v538
    %v543 = vadd.f32 %v535, %v539
    %v544 = vmul.f32 %v496, %v118
    %v545 = vmul.f32 %v497, %v118
    %v546 = vmul.f32 %v498, %v118
    %v547 = vmul.f32 %v499, %v118
    %v548 = vadd.f32 %v540, %v544
    %v549 = vadd.f32 %v541, %v545
    %v550 = vadd.f32 %v542, %v546
    %v551 = vadd.f32 %v543, %v547
    %v552 = vld [vmem:[%s127 + $0x60] sm:$0xff]
    %v553 = vld [vmem:[%s127 + $0x68] sm:$0xff]
    %v554 = vld [vmem:[%s127 + $0x70] sm:$0xff]
    %v555 = vld [vmem:[%s127 + $0x78] sm:$0xff]
    %v556 = vsub.f32 %v548, %v552
    %v557 = vsub.f32 %v549, %v553
    %v558 = vsub.f32 %v550, %v554
    %v559 = vsub.f32 %v551, %v555
    %v560 = vmul.f32 %v556, %v556
    %v561 = vmul.f32 %v557, %v557
    %v562 = vmul.f32 %v558, %v558
    %v563 = vmul.f32 %v559, %v559
    %v564 = vadd.f32 %v528, %v560
    %v565 = vadd.f32 %v529, %v561
    %v566 = vadd.f32 %v530, %v562
    %v567 = vadd.f32 %v531, %v563
    %v568 = vmul.f32 %v488, %v144
    %v569 = vmul.f32 %v489, %v144
    %v570 = vmul.f32 %v490, %v144
    %v571 = vmul.f32 %v491, %v144
    %v572 = vmul.f32 %v492, %v149
    %v573 = vmul.f32 %v493, %v149
    %v574 = vmul.f32 %v494, %v149
    %v575 = vmul.f32 %v495, %v149
    %v576 = vadd.f32 %v568, %v572
    %v577 = vadd.f32 %v569, %v573
    %v578 = vadd.f32 %v570, %v574
    %v579 = vadd.f32 %v571, %v575
    %v580 = vmul.f32 %v496, %v158
    %v581 = vmul.f32 %v497, %v158
    %v582 = vmul.f32 %v498, %v158
    %v583 = vmul.f32 %v499, %v158
    %v584 = vadd.f32 %v576, %v580
    %v585 = vadd.f32 %v577, %v581
    %v586 = vadd.f32 %v578, %v582
    %v587 = vadd.f32 %v579, %v583
    %v588 = vld [vmem:[%s167 + $0x60] sm:$0xff]
    %v589 = vld [vmem:[%s167 + $0x68] sm:$0xff]
    %v590 = vld [vmem:[%s167 + $0x70] sm:$0xff]
    %v591 = vld [vmem:[%s167 + $0x78] sm:$0xff]
    %v592 = vsub.f32 %v584, %v588
    %v593 = vsub.f32 %v585, %v589
    %v594 = vsub.f32 %v586, %v590
    %v595 = vsub.f32 %v587, %v591
    %v596 = vmul.f32 %v592, %v592
    %v597 = vmul.f32 %v593, %v593
    %v598 = vmul.f32 %v594, %v594
    %v599 = vmul.f32 %v595, %v595
    %v600 = vadd.f32 %v564, %v596
    %v601 = vadd.f32 %v565, %v597
    %v602 = vadd.f32 %v566, %v598
    %v603 = vadd.f32 %v567, %v599
    %v604 = vmul.f32 %v600, %v484
    %v605 = vmul.f32 %v601, %v485
    %v606 = vmul.f32 %v602, %v486
    %v607 = vmul.f32 %v603, %v487
    %v608 = vadd.f32 %v468, %v604
    %v609 = vadd.f32 %v469, %v605
    %v610 = vadd.f32 %v470, %v606
    %v611 = vadd.f32 %v471, %v607
    %v612 = vadd.f32 %v472, %v484
    %v613 = vadd.f32 %v473, %v485
    %v614 = vadd.f32 %v474, %v486
    %v615 = vadd.f32 %v475, %v487
    %s616 = sld [smem:[#allocation2 + $0x9]]
    %s617 = sld [smem:[#allocation2 + $0xa]]
    %s618 = sld [smem:[#allocation2 + $0xb]]
    %s619 = sld [smem:[#allocation2 + $0xc]]
    %s620 = sld [smem:[#allocation2 + $0xd]]
    %s621 = sld [smem:[#allocation2 + $0xe]]
    %s622 = sld [smem:[#allocation2 + $0xf]]
    %s623 = sld [smem:[#allocation2 + $0x10]]
    %s624 = sld [smem:[#allocation2 + $0x11]]
    %s625 = scalar_lea.vmem %s3, 128
    %v626 = vld [vmem:[%s625] sm:$0xff]
    %v627 = vld [vmem:[%s625 + $0x8] sm:$0xff]
    %v628 = vld [vmem:[%s625 + $0x10] sm:$0xff]
    %v629 = vld [vmem:[%s625 + $0x18] sm:$0xff]
    %vm630 = vcmp.gt.f32.partialorder %v626, 0.9
    %vm631 = vcmp.gt.f32.partialorder %v627, 0.9
    %vm632 = vcmp.gt.f32.partialorder %v628, 0.9
    %vm633 = vcmp.gt.f32.partialorder %v629, 0.9
    %v634 = vsel %vm630, 1.0, 0.0
    %v635 = vsel %vm631, 1.0, 0.0
    %v636 = vsel %vm632, 1.0, 0.0
    %v637 = vsel %vm633, 1.0, 0.0
    %s638 = scalar_lea.vmem %s1, 384
    %v639 = vld [vmem:[%s638] sm:$0xff]
    %v640 = vld [vmem:[%s638 + $0x8] sm:$0xff]
    %v641 = vld [vmem:[%s638 + $0x10] sm:$0xff]
    %v642 = vld [vmem:[%s638 + $0x18] sm:$0xff]
    %s643 = scalar_lea.vmem %s1, 512
    %v644 = vld [vmem:[%s643] sm:$0xff]
    %v645 = vld [vmem:[%s643 + $0x8] sm:$0xff]
    %v646 = vld [vmem:[%s643 + $0x10] sm:$0xff]
    %v647 = vld [vmem:[%s643 + $0x18] sm:$0xff]
    %s648 = scalar_lea.vmem %s1, 640
    %v649 = vld [vmem:[%s648] sm:$0xff]
    %v650 = vld [vmem:[%s648 + $0x8] sm:$0xff]
    %v651 = vld [vmem:[%s648 + $0x10] sm:$0xff]
    %v652 = vld [vmem:[%s648 + $0x18] sm:$0xff]
    %v653 = vstv %s616
    %v654 = vmul.f32 %v639, %v653
    %v655 = vmul.f32 %v640, %v653
    %v656 = vmul.f32 %v641, %v653
    %v657 = vmul.f32 %v642, %v653
    %v658 = vstv %s619
    %v659 = vmul.f32 %v644, %v658
    %v660 = vmul.f32 %v645, %v658
    %v661 = vmul.f32 %v646, %v658
    %v662 = vmul.f32 %v647, %v658
    %v663 = vadd.f32 %v654, %v659
    %v664 = vadd.f32 %v655, %v660
    %v665 = vadd.f32 %v656, %v661
    %v666 = vadd.f32 %v657, %v662
    %v667 = vstv %s622
    %v668 = vmul.f32 %v649, %v667
    %v669 = vmul.f32 %v650, %v667
    %v670 = vmul.f32 %v651, %v667
    %v671 = vmul.f32 %v652, %v667
    %v672 = vadd.f32 %v663, %v668
    %v673 = vadd.f32 %v664, %v669
    %v674 = vadd.f32 %v665, %v670
    %v675 = vadd.f32 %v666, %v671
    %s676 = scalar_lea.vmem %s2, 384
    %v677 = vld [vmem:[%s676] sm:$0xff]
    %v678 = vld [vmem:[%s676 + $0x8] sm:$0xff]
    %v679 = vld [vmem:[%s676 + $0x10] sm:$0xff]
    %v680 = vld [vmem:[%s676 + $0x18] sm:$0xff]
    %v681 = vsub.f32 %v672, %v677
    %v682 = vsub.f32 %v673, %v678
    %v683 = vsub.f32 %v674, %v679
    %v684 = vsub.f32 %v675, %v680
    %v685 = vmul.f32 %v681, %v681
    %v686 = vmul.f32 %v682, %v682
    %v687 = vmul.f32 %v683, %v683
    %v688 = vmul.f32 %v684, %v684
    %v689 = vstv %s617
    %v690 = vmul.f32 %v639, %v689
    %v691 = vmul.f32 %v640, %v689
    %v692 = vmul.f32 %v641, %v689
    %v693 = vmul.f32 %v642, %v689
    %v694 = vstv %s620
    %v695 = vmul.f32 %v644, %v694
    %v696 = vmul.f32 %v645, %v694
    %v697 = vmul.f32 %v646, %v694
    %v698 = vmul.f32 %v647, %v694
    %v699 = vadd.f32 %v690, %v695
    %v700 = vadd.f32 %v691, %v696
    %v701 = vadd.f32 %v692, %v697
    %v702 = vadd.f32 %v693, %v698
    %v703 = vstv %s623
    %v704 = vmul.f32 %v649, %v703
    %v705 = vmul.f32 %v650, %v703
    %v706 = vmul.f32 %v651, %v703
    %v707 = vmul.f32 %v652, %v703
    %v708 = vadd.f32 %v699, %v704
    %v709 = vadd.f32 %v700, %v705
    %v710 = vadd.f32 %v701, %v706
    %v711 = vadd.f32 %v702, %v707
    %s712 = scalar_lea.vmem %s2, 512
    %v713 = vld [vmem:[%s712] sm:$0xff]
    %v714 = vld [vmem:[%s712 + $0x8] sm:$0xff]
    %v715 = vld [vmem:[%s712 + $0x10] sm:$0xff]
    %v716 = vld [vmem:[%s712 + $0x18] sm:$0xff]
    %v717 = vsub.f32 %v708, %v713
    %v718 = vsub.f32 %v709, %v714
    %v719 = vsub.f32 %v710, %v715
    %v720 = vsub.f32 %v711, %v716
    %v721 = vmul.f32 %v717, %v717
    %v722 = vmul.f32 %v718, %v718
    %v723 = vmul.f32 %v719, %v719
    %v724 = vmul.f32 %v720, %v720
    %v725 = vadd.f32 %v685, %v721
    %v726 = vadd.f32 %v686, %v722
    %v727 = vadd.f32 %v687, %v723
    %v728 = vadd.f32 %v688, %v724
    %v729 = vstv %s618
    %v730 = vmul.f32 %v639, %v729
    %v731 = vmul.f32 %v640, %v729
    %v732 = vmul.f32 %v641, %v729
    %v733 = vmul.f32 %v642, %v729
    %v734 = vstv %s621
    %v735 = vmul.f32 %v644, %v734
    %v736 = vmul.f32 %v645, %v734
    %v737 = vmul.f32 %v646, %v734
    %v738 = vmul.f32 %v647, %v734
    %v739 = vadd.f32 %v730, %v735
    %v740 = vadd.f32 %v731, %v736
    %v741 = vadd.f32 %v732, %v737
    %v742 = vadd.f32 %v733, %v738
    %v743 = vstv %s624
    %v744 = vmul.f32 %v649, %v743
    %v745 = vmul.f32 %v650, %v743
    %v746 = vmul.f32 %v651, %v743
    %v747 = vmul.f32 %v652, %v743
    %v748 = vadd.f32 %v739, %v744
    %v749 = vadd.f32 %v740, %v745
    %v750 = vadd.f32 %v741, %v746
    %v751 = vadd.f32 %v742, %v747
    %s752 = scalar_lea.vmem %s2, 640
    %v753 = vld [vmem:[%s752] sm:$0xff]
    %v754 = vld [vmem:[%s752 + $0x8] sm:$0xff]
    %v755 = vld [vmem:[%s752 + $0x10] sm:$0xff]
    %v756 = vld [vmem:[%s752 + $0x18] sm:$0xff]
    %v757 = vsub.f32 %v748, %v753
    %v758 = vsub.f32 %v749, %v754
    %v759 = vsub.f32 %v750, %v755
    %v760 = vsub.f32 %v751, %v756
    %v761 = vmul.f32 %v757, %v757
    %v762 = vmul.f32 %v758, %v758
    %v763 = vmul.f32 %v759, %v759
    %v764 = vmul.f32 %v760, %v760
    %v765 = vadd.f32 %v725, %v761
    %v766 = vadd.f32 %v726, %v762
    %v767 = vadd.f32 %v727, %v763
    %v768 = vadd.f32 %v728, %v764
    %v769 = vmul.f32 %v765, %v634
    %v770 = vmul.f32 %v766, %v635
    %v771 = vmul.f32 %v767, %v636
    %v772 = vmul.f32 %v768, %v637
    %v773 = vadd.f32 %v608, %v769
    %v774 = vadd.f32 %v609, %v770
    %v775 = vadd.f32 %v610, %v771
    %v776 = vadd.f32 %v611, %v772
    %v777 = vadd.f32 %v612, %v634
    %v778 = vadd.f32 %v613, %v635
    %v779 = vadd.f32 %v614, %v636
    %v780 = vadd.f32 %v615, %v637
    %v781 = vld [vmem:[%s625 + $0x20] sm:$0xff]
    %v782 = vld [vmem:[%s625 + $0x28] sm:$0xff]
    %v783 = vld [vmem:[%s625 + $0x30] sm:$0xff]
    %v784 = vld [vmem:[%s625 + $0x38] sm:$0xff]
    %vm785 = vcmp.gt.f32.partialorder %v781, 0.9
    %vm786 = vcmp.gt.f32.partialorder %v782, 0.9
    %vm787 = vcmp.gt.f32.partialorder %v783, 0.9
    %vm788 = vcmp.gt.f32.partialorder %v784, 0.9
    %v789 = vsel %vm785, 1.0, 0.0
    %v790 = vsel %vm786, 1.0, 0.0
    %v791 = vsel %vm787, 1.0, 0.0
    %v792 = vsel %vm788, 1.0, 0.0
    %v793 = vld [vmem:[%s638 + $0x20] sm:$0xff]
    %v794 = vld [vmem:[%s638 + $0x28] sm:$0xff]
    %v795 = vld [vmem:[%s638 + $0x30] sm:$0xff]
    %v796 = vld [vmem:[%s638 + $0x38] sm:$0xff]
    %v797 = vld [vmem:[%s643 + $0x20] sm:$0xff]
    %v798 = vld [vmem:[%s643 + $0x28] sm:$0xff]
    %v799 = vld [vmem:[%s643 + $0x30] sm:$0xff]
    %v800 = vld [vmem:[%s643 + $0x38] sm:$0xff]
    %v801 = vld [vmem:[%s648 + $0x20] sm:$0xff]
    %v802 = vld [vmem:[%s648 + $0x28] sm:$0xff]
    %v803 = vld [vmem:[%s648 + $0x30] sm:$0xff]
    %v804 = vld [vmem:[%s648 + $0x38] sm:$0xff]
    %v805 = vmul.f32 %v793, %v653
    %v806 = vmul.f32 %v794, %v653
    %v807 = vmul.f32 %v795, %v653
    %v808 = vmul.f32 %v796, %v653
    %v809 = vmul.f32 %v797, %v658
    %v810 = vmul.f32 %v798, %v658
    %v811 = vmul.f32 %v799, %v658
    %v812 = vmul.f32 %v800, %v658
    %v813 = vadd.f32 %v805, %v809
    %v814 = vadd.f32 %v806, %v810
    %v815 = vadd.f32 %v807, %v811
    %v816 = vadd.f32 %v808, %v812
    %v817 = vmul.f32 %v801, %v667
    %v818 = vmul.f32 %v802, %v667
    %v819 = vmul.f32 %v803, %v667
    %v820 = vmul.f32 %v804, %v667
    %v821 = vadd.f32 %v813, %v817
    %v822 = vadd.f32 %v814, %v818
    %v823 = vadd.f32 %v815, %v819
    %v824 = vadd.f32 %v816, %v820
    %v825 = vld [vmem:[%s676 + $0x20] sm:$0xff]
    %v826 = vld [vmem:[%s676 + $0x28] sm:$0xff]
    %v827 = vld [vmem:[%s676 + $0x30] sm:$0xff]
    %v828 = vld [vmem:[%s676 + $0x38] sm:$0xff]
    %v829 = vsub.f32 %v821, %v825
    %v830 = vsub.f32 %v822, %v826
    %v831 = vsub.f32 %v823, %v827
    %v832 = vsub.f32 %v824, %v828
    %v833 = vmul.f32 %v829, %v829
    %v834 = vmul.f32 %v830, %v830
    %v835 = vmul.f32 %v831, %v831
    %v836 = vmul.f32 %v832, %v832
    %v837 = vmul.f32 %v793, %v689
    %v838 = vmul.f32 %v794, %v689
    %v839 = vmul.f32 %v795, %v689
    %v840 = vmul.f32 %v796, %v689
    %v841 = vmul.f32 %v797, %v694
    %v842 = vmul.f32 %v798, %v694
    %v843 = vmul.f32 %v799, %v694
    %v844 = vmul.f32 %v800, %v694
    %v845 = vadd.f32 %v837, %v841
    %v846 = vadd.f32 %v838, %v842
    %v847 = vadd.f32 %v839, %v843
    %v848 = vadd.f32 %v840, %v844
    %v849 = vmul.f32 %v801, %v703
    %v850 = vmul.f32 %v802, %v703
    %v851 = vmul.f32 %v803, %v703
    %v852 = vmul.f32 %v804, %v703
    %v853 = vadd.f32 %v845, %v849
    %v854 = vadd.f32 %v846, %v850
    %v855 = vadd.f32 %v847, %v851
    %v856 = vadd.f32 %v848, %v852
    %v857 = vld [vmem:[%s712 + $0x20] sm:$0xff]
    %v858 = vld [vmem:[%s712 + $0x28] sm:$0xff]
    %v859 = vld [vmem:[%s712 + $0x30] sm:$0xff]
    %v860 = vld [vmem:[%s712 + $0x38] sm:$0xff]
    %v861 = vsub.f32 %v853, %v857
    %v862 = vsub.f32 %v854, %v858
    %v863 = vsub.f32 %v855, %v859
    %v864 = vsub.f32 %v856, %v860
    %v865 = vmul.f32 %v861, %v861
    %v866 = vmul.f32 %v862, %v862
    %v867 = vmul.f32 %v863, %v863
    %v868 = vmul.f32 %v864, %v864
    %v869 = vadd.f32 %v833, %v865
    %v870 = vadd.f32 %v834, %v866
    %v871 = vadd.f32 %v835, %v867
    %v872 = vadd.f32 %v836, %v868
    %v873 = vmul.f32 %v793, %v729
    %v874 = vmul.f32 %v794, %v729
    %v875 = vmul.f32 %v795, %v729
    %v876 = vmul.f32 %v796, %v729
    %v877 = vmul.f32 %v797, %v734
    %v878 = vmul.f32 %v798, %v734
    %v879 = vmul.f32 %v799, %v734
    %v880 = vmul.f32 %v800, %v734
    %v881 = vadd.f32 %v873, %v877
    %v882 = vadd.f32 %v874, %v878
    %v883 = vadd.f32 %v875, %v879
    %v884 = vadd.f32 %v876, %v880
    %v885 = vmul.f32 %v801, %v743
    %v886 = vmul.f32 %v802, %v743
    %v887 = vmul.f32 %v803, %v743
    %v888 = vmul.f32 %v804, %v743
    %v889 = vadd.f32 %v881, %v885
    %v890 = vadd.f32 %v882, %v886
    %v891 = vadd.f32 %v883, %v887
    %v892 = vadd.f32 %v884, %v888
    %v893 = vld [vmem:[%s752 + $0x20] sm:$0xff]
    %v894 = vld [vmem:[%s752 + $0x28] sm:$0xff]
    %v895 = vld [vmem:[%s752 + $0x30] sm:$0xff]
    %v896 = vld [vmem:[%s752 + $0x38] sm:$0xff]
    %v897 = vsub.f32 %v889, %v893
    %v898 = vsub.f32 %v890, %v894
    %v899 = vsub.f32 %v891, %v895
    %v900 = vsub.f32 %v892, %v896
    %v901 = vmul.f32 %v897, %v897
    %v902 = vmul.f32 %v898, %v898
    %v903 = vmul.f32 %v899, %v899
    %v904 = vmul.f32 %v900, %v900
    %v905 = vadd.f32 %v869, %v901
    %v906 = vadd.f32 %v870, %v902
    %v907 = vadd.f32 %v871, %v903
    %v908 = vadd.f32 %v872, %v904
    %v909 = vmul.f32 %v905, %v789
    %v910 = vmul.f32 %v906, %v790
    %v911 = vmul.f32 %v907, %v791
    %v912 = vmul.f32 %v908, %v792
    %v913 = vadd.f32 %v773, %v909
    %v914 = vadd.f32 %v774, %v910
    %v915 = vadd.f32 %v775, %v911
    %v916 = vadd.f32 %v776, %v912
    %v917 = vadd.f32 %v777, %v789
    %v918 = vadd.f32 %v778, %v790
    %v919 = vadd.f32 %v779, %v791
    %v920 = vadd.f32 %v780, %v792
    %v921 = vld [vmem:[%s625 + $0x40] sm:$0xff]
    %v922 = vld [vmem:[%s625 + $0x48] sm:$0xff]
    %v923 = vld [vmem:[%s625 + $0x50] sm:$0xff]
    %v924 = vld [vmem:[%s625 + $0x58] sm:$0xff]
    %vm925 = vcmp.gt.f32.partialorder %v921, 0.9
    %vm926 = vcmp.gt.f32.partialorder %v922, 0.9
    %vm927 = vcmp.gt.f32.partialorder %v923, 0.9
    %vm928 = vcmp.gt.f32.partialorder %v924, 0.9
    %v929 = vsel %vm925, 1.0, 0.0
    %v930 = vsel %vm926, 1.0, 0.0
    %v931 = vsel %vm927, 1.0, 0.0
    %v932 = vsel %vm928, 1.0, 0.0
    %v933 = vld [vmem:[%s638 + $0x40] sm:$0xff]
    %v934 = vld [vmem:[%s638 + $0x48] sm:$0xff]
    %v935 = vld [vmem:[%s638 + $0x50] sm:$0xff]
    %v936 = vld [vmem:[%s638 + $0x58] sm:$0xff]
    %v937 = vld [vmem:[%s643 + $0x40] sm:$0xff]
    %v938 = vld [vmem:[%s643 + $0x48] sm:$0xff]
    %v939 = vld [vmem:[%s643 + $0x50] sm:$0xff]
    %v940 = vld [vmem:[%s643 + $0x58] sm:$0xff]
    %v941 = vld [vmem:[%s648 + $0x40] sm:$0xff]
    %v942 = vld [vmem:[%s648 + $0x48] sm:$0xff]
    %v943 = vld [vmem:[%s648 + $0x50] sm:$0xff]
    %v944 = vld [vmem:[%s648 + $0x58] sm:$0xff]
    %v945 = vmul.f32 %v933, %v653
    %v946 = vmul.f32 %v934, %v653
    %v947 = vmul.f32 %v935, %v653
    %v948 = vmul.f32 %v936, %v653
    %v949 = vmul.f32 %v937, %v658
    %v950 = vmul.f32 %v938, %v658
    %v951 = vmul.f32 %v939, %v658
    %v952 = vmul.f32 %v940, %v658
    %v953 = vadd.f32 %v945, %v949
    %v954 = vadd.f32 %v946, %v950
    %v955 = vadd.f32 %v947, %v951
    %v956 = vadd.f32 %v948, %v952
    %v957 = vmul.f32 %v941, %v667
    %v958 = vmul.f32 %v942, %v667
    %v959 = vmul.f32 %v943, %v667
    %v960 = vmul.f32 %v944, %v667
    %v961 = vadd.f32 %v953, %v957
    %v962 = vadd.f32 %v954, %v958
    %v963 = vadd.f32 %v955, %v959
    %v964 = vadd.f32 %v956, %v960
    %v965 = vld [vmem:[%s676 + $0x40] sm:$0xff]
    %v966 = vld [vmem:[%s676 + $0x48] sm:$0xff]
    %v967 = vld [vmem:[%s676 + $0x50] sm:$0xff]
    %v968 = vld [vmem:[%s676 + $0x58] sm:$0xff]
    %v969 = vsub.f32 %v961, %v965
    %v970 = vsub.f32 %v962, %v966
    %v971 = vsub.f32 %v963, %v967
    %v972 = vsub.f32 %v964, %v968
    %v973 = vmul.f32 %v969, %v969
    %v974 = vmul.f32 %v970, %v970
    %v975 = vmul.f32 %v971, %v971
    %v976 = vmul.f32 %v972, %v972
    %v977 = vmul.f32 %v933, %v689
    %v978 = vmul.f32 %v934, %v689
    %v979 = vmul.f32 %v935, %v689
    %v980 = vmul.f32 %v936, %v689
    %v981 = vmul.f32 %v937, %v694
    %v982 = vmul.f32 %v938, %v694
    %v983 = vmul.f32 %v939, %v694
    %v984 = vmul.f32 %v940, %v694
    %v985 = vadd.f32 %v977, %v981
    %v986 = vadd.f32 %v978, %v982
    %v987 = vadd.f32 %v979, %v983
    %v988 = vadd.f32 %v980, %v984
    %v989 = vmul.f32 %v941, %v703
    %v990 = vmul.f32 %v942, %v703
    %v991 = vmul.f32 %v943, %v703
    %v992 = vmul.f32 %v944, %v703
    %v993 = vadd.f32 %v985, %v989
    %v994 = vadd.f32 %v986, %v990
    %v995 = vadd.f32 %v987, %v991
    %v996 = vadd.f32 %v988, %v992
    %v997 = vld [vmem:[%s712 + $0x40] sm:$0xff]
    %v998 = vld [vmem:[%s712 + $0x48] sm:$0xff]
    %v999 = vld [vmem:[%s712 + $0x50] sm:$0xff]
    %v1000 = vld [vmem:[%s712 + $0x58] sm:$0xff]
    %v1001 = vsub.f32 %v993, %v997
    %v1002 = vsub.f32 %v994, %v998
    %v1003 = vsub.f32 %v995, %v999
    %v1004 = vsub.f32 %v996, %v1000
    %v1005 = vmul.f32 %v1001, %v1001
    %v1006 = vmul.f32 %v1002, %v1002
    %v1007 = vmul.f32 %v1003, %v1003
    %v1008 = vmul.f32 %v1004, %v1004
    %v1009 = vadd.f32 %v973, %v1005
    %v1010 = vadd.f32 %v974, %v1006
    %v1011 = vadd.f32 %v975, %v1007
    %v1012 = vadd.f32 %v976, %v1008
    %v1013 = vmul.f32 %v933, %v729
    %v1014 = vmul.f32 %v934, %v729
    %v1015 = vmul.f32 %v935, %v729
    %v1016 = vmul.f32 %v936, %v729
    %v1017 = vmul.f32 %v937, %v734
    %v1018 = vmul.f32 %v938, %v734
    %v1019 = vmul.f32 %v939, %v734
    %v1020 = vmul.f32 %v940, %v734
    %v1021 = vadd.f32 %v1013, %v1017
    %v1022 = vadd.f32 %v1014, %v1018
    %v1023 = vadd.f32 %v1015, %v1019
    %v1024 = vadd.f32 %v1016, %v1020
    %v1025 = vmul.f32 %v941, %v743
    %v1026 = vmul.f32 %v942, %v743
    %v1027 = vmul.f32 %v943, %v743
    %v1028 = vmul.f32 %v944, %v743
    %v1029 = vadd.f32 %v1021, %v1025
    %v1030 = vadd.f32 %v1022, %v1026
    %v1031 = vadd.f32 %v1023, %v1027
    %v1032 = vadd.f32 %v1024, %v1028
    %v1033 = vld [vmem:[%s752 + $0x40] sm:$0xff]
    %v1034 = vld [vmem:[%s752 + $0x48] sm:$0xff]
    %v1035 = vld [vmem:[%s752 + $0x50] sm:$0xff]
    %v1036 = vld [vmem:[%s752 + $0x58] sm:$0xff]
    %v1037 = vsub.f32 %v1029, %v1033
    %v1038 = vsub.f32 %v1030, %v1034
    %v1039 = vsub.f32 %v1031, %v1035
    %v1040 = vsub.f32 %v1032, %v1036
    %v1041 = vmul.f32 %v1037, %v1037
    %v1042 = vmul.f32 %v1038, %v1038
    %v1043 = vmul.f32 %v1039, %v1039
    %v1044 = vmul.f32 %v1040, %v1040
    %v1045 = vadd.f32 %v1009, %v1041
    %v1046 = vadd.f32 %v1010, %v1042
    %v1047 = vadd.f32 %v1011, %v1043
    %v1048 = vadd.f32 %v1012, %v1044
    %v1049 = vmul.f32 %v1045, %v929
    %v1050 = vmul.f32 %v1046, %v930
    %v1051 = vmul.f32 %v1047, %v931
    %v1052 = vmul.f32 %v1048, %v932
    %v1053 = vadd.f32 %v913, %v1049
    %v1054 = vadd.f32 %v914, %v1050
    %v1055 = vadd.f32 %v915, %v1051
    %v1056 = vadd.f32 %v916, %v1052
    %v1057 = vadd.f32 %v917, %v929
    %v1058 = vadd.f32 %v918, %v930
    %v1059 = vadd.f32 %v919, %v931
    %v1060 = vadd.f32 %v920, %v932
    %v1061 = vld [vmem:[%s625 + $0x60] sm:$0xff]
    %v1062 = vld [vmem:[%s625 + $0x68] sm:$0xff]
    %v1063 = vld [vmem:[%s625 + $0x70] sm:$0xff]
    %v1064 = vld [vmem:[%s625 + $0x78] sm:$0xff]
    %vm1065 = vcmp.gt.f32.partialorder %v1061, 0.9
    %vm1066 = vcmp.gt.f32.partialorder %v1062, 0.9
    %vm1067 = vcmp.gt.f32.partialorder %v1063, 0.9
    %vm1068 = vcmp.gt.f32.partialorder %v1064, 0.9
    %v1069 = vsel %vm1065, 1.0, 0.0
    %v1070 = vsel %vm1066, 1.0, 0.0
    %v1071 = vsel %vm1067, 1.0, 0.0
    %v1072 = vsel %vm1068, 1.0, 0.0
    %v1073 = vld [vmem:[%s638 + $0x60] sm:$0xff]
    %v1074 = vld [vmem:[%s638 + $0x68] sm:$0xff]
    %v1075 = vld [vmem:[%s638 + $0x70] sm:$0xff]
    %v1076 = vld [vmem:[%s638 + $0x78] sm:$0xff]
    %v1077 = vld [vmem:[%s643 + $0x60] sm:$0xff]
    %v1078 = vld [vmem:[%s643 + $0x68] sm:$0xff]
    %v1079 = vld [vmem:[%s643 + $0x70] sm:$0xff]
    %v1080 = vld [vmem:[%s643 + $0x78] sm:$0xff]
    %v1081 = vld [vmem:[%s648 + $0x60] sm:$0xff]
    %v1082 = vld [vmem:[%s648 + $0x68] sm:$0xff]
    %v1083 = vld [vmem:[%s648 + $0x70] sm:$0xff]
    %v1084 = vld [vmem:[%s648 + $0x78] sm:$0xff]
    %v1085 = vmul.f32 %v1073, %v653
    %v1086 = vmul.f32 %v1074, %v653
    %v1087 = vmul.f32 %v1075, %v653
    %v1088 = vmul.f32 %v1076, %v653
    %v1089 = vmul.f32 %v1077, %v658
    %v1090 = vmul.f32 %v1078, %v658
    %v1091 = vmul.f32 %v1079, %v658
    %v1092 = vmul.f32 %v1080, %v658
    %v1093 = vadd.f32 %v1085, %v1089
    %v1094 = vadd.f32 %v1086, %v1090
    %v1095 = vadd.f32 %v1087, %v1091
    %v1096 = vadd.f32 %v1088, %v1092
    %v1097 = vmul.f32 %v1081, %v667
    %v1098 = vmul.f32 %v1082, %v667
    %v1099 = vmul.f32 %v1083, %v667
    %v1100 = vmul.f32 %v1084, %v667
    %v1101 = vadd.f32 %v1093, %v1097
    %v1102 = vadd.f32 %v1094, %v1098
    %v1103 = vadd.f32 %v1095, %v1099
    %v1104 = vadd.f32 %v1096, %v1100
    %v1105 = vld [vmem:[%s676 + $0x60] sm:$0xff]
    %v1106 = vld [vmem:[%s676 + $0x68] sm:$0xff]
    %v1107 = vld [vmem:[%s676 + $0x70] sm:$0xff]
    %v1108 = vld [vmem:[%s676 + $0x78] sm:$0xff]
    %v1109 = vsub.f32 %v1101, %v1105
    %v1110 = vsub.f32 %v1102, %v1106
    %v1111 = vsub.f32 %v1103, %v1107
    %v1112 = vsub.f32 %v1104, %v1108
    %v1113 = vmul.f32 %v1109, %v1109
    %v1114 = vmul.f32 %v1110, %v1110
    %v1115 = vmul.f32 %v1111, %v1111
    %v1116 = vmul.f32 %v1112, %v1112
    %v1117 = vmul.f32 %v1073, %v689
    %v1118 = vmul.f32 %v1074, %v689
    %v1119 = vmul.f32 %v1075, %v689
    %v1120 = vmul.f32 %v1076, %v689
    %v1121 = vmul.f32 %v1077, %v694
    %v1122 = vmul.f32 %v1078, %v694
    %v1123 = vmul.f32 %v1079, %v694
    %v1124 = vmul.f32 %v1080, %v694
    %v1125 = vadd.f32 %v1117, %v1121
    %v1126 = vadd.f32 %v1118, %v1122
    %v1127 = vadd.f32 %v1119, %v1123
    %v1128 = vadd.f32 %v1120, %v1124
    %v1129 = vmul.f32 %v1081, %v703
    %v1130 = vmul.f32 %v1082, %v703
    %v1131 = vmul.f32 %v1083, %v703
    %v1132 = vmul.f32 %v1084, %v703
    %v1133 = vadd.f32 %v1125, %v1129
    %v1134 = vadd.f32 %v1126, %v1130
    %v1135 = vadd.f32 %v1127, %v1131
    %v1136 = vadd.f32 %v1128, %v1132
    %v1137 = vld [vmem:[%s712 + $0x60] sm:$0xff]
    %v1138 = vld [vmem:[%s712 + $0x68] sm:$0xff]
    %v1139 = vld [vmem:[%s712 + $0x70] sm:$0xff]
    %v1140 = vld [vmem:[%s712 + $0x78] sm:$0xff]
    %v1141 = vsub.f32 %v1133, %v1137
    %v1142 = vsub.f32 %v1134, %v1138
    %v1143 = vsub.f32 %v1135, %v1139
    %v1144 = vsub.f32 %v1136, %v1140
    %v1145 = vmul.f32 %v1141, %v1141
    %v1146 = vmul.f32 %v1142, %v1142
    %v1147 = vmul.f32 %v1143, %v1143
    %v1148 = vmul.f32 %v1144, %v1144
    %v1149 = vadd.f32 %v1113, %v1145
    %v1150 = vadd.f32 %v1114, %v1146
    %v1151 = vadd.f32 %v1115, %v1147
    %v1152 = vadd.f32 %v1116, %v1148
    %v1153 = vmul.f32 %v1073, %v729
    %v1154 = vmul.f32 %v1074, %v729
    %v1155 = vmul.f32 %v1075, %v729
    %v1156 = vmul.f32 %v1076, %v729
    %v1157 = vmul.f32 %v1077, %v734
    %v1158 = vmul.f32 %v1078, %v734
    %v1159 = vmul.f32 %v1079, %v734
    %v1160 = vmul.f32 %v1080, %v734
    %v1161 = vadd.f32 %v1153, %v1157
    %v1162 = vadd.f32 %v1154, %v1158
    %v1163 = vadd.f32 %v1155, %v1159
    %v1164 = vadd.f32 %v1156, %v1160
    %v1165 = vmul.f32 %v1081, %v743
    %v1166 = vmul.f32 %v1082, %v743
    %v1167 = vmul.f32 %v1083, %v743
    %v1168 = vmul.f32 %v1084, %v743
    %v1169 = vadd.f32 %v1161, %v1165
    %v1170 = vadd.f32 %v1162, %v1166
    %v1171 = vadd.f32 %v1163, %v1167
    %v1172 = vadd.f32 %v1164, %v1168
    %v1173 = vld [vmem:[%s752 + $0x60] sm:$0xff]
    %v1174 = vld [vmem:[%s752 + $0x68] sm:$0xff]
    %v1175 = vld [vmem:[%s752 + $0x70] sm:$0xff]
    %v1176 = vld [vmem:[%s752 + $0x78] sm:$0xff]
    %v1177 = vsub.f32 %v1169, %v1173
    %v1178 = vsub.f32 %v1170, %v1174
    %v1179 = vsub.f32 %v1171, %v1175
    %v1180 = vsub.f32 %v1172, %v1176
    %v1181 = vmul.f32 %v1177, %v1177
    %v1182 = vmul.f32 %v1178, %v1178
    %v1183 = vmul.f32 %v1179, %v1179
    %v1184 = vmul.f32 %v1180, %v1180
    %v1185 = vadd.f32 %v1149, %v1181
    %v1186 = vadd.f32 %v1150, %v1182
    %v1187 = vadd.f32 %v1151, %v1183
    %v1188 = vadd.f32 %v1152, %v1184
    %v1189 = vmul.f32 %v1185, %v1069
    %v1190 = vmul.f32 %v1186, %v1070
    %v1191 = vmul.f32 %v1187, %v1071
    %v1192 = vmul.f32 %v1188, %v1072
    %v1193 = vadd.f32 %v1053, %v1189
    %v1194 = vadd.f32 %v1054, %v1190
    %v1195 = vadd.f32 %v1055, %v1191
    %v1196 = vadd.f32 %v1056, %v1192
    %v1197 = vadd.f32 %v1057, %v1069
    %v1198 = vadd.f32 %v1058, %v1070
    %v1199 = vadd.f32 %v1059, %v1071
    %v1200 = vadd.f32 %v1060, %v1072
    %v1201 = vadd.f32 %v1193, %v1194
    %v1202 = vadd.f32 %v1201, %v1195
    %v1203 = vadd.f32 %v1202, %v1196
    %1204 = vadd.xlane.f32.xlu0 %v1203
    %v1205 = vpop.xlane.xlu0 %1204
    %v1206 = vrot.slane %v1205, 4
    %v1207 = vadd.f32 %v1205, %v1206
    %v1208 = vrot.slane %v1207, 2
    %v1209 = vadd.f32 %v1207, %v1208
    %v1210 = vrot.slane %v1209, 1
    %v1211 = vadd.f32 %v1209, %v1210
    %s1212 = vtos %v1211
    %v1213 = vstv %s1212
    %v1214 = vadd.f32 %v1213, 0.0
    %vm1215 = vcmask 0
    %1216 = vst.msk [vmem:[#allocation5] sm:$0x1] %vm1215, %v1214
    %v1217 = vadd.f32 %v1197, %v1198
    %v1218 = vadd.f32 %v1217, %v1199
    %v1219 = vadd.f32 %v1218, %v1200
    %1220 = vadd.xlane.f32.xlu0 %v1219
    %v1221 = vpop.xlane.xlu0 %1220
    %v1222 = vrot.slane %v1221, 4
    %v1223 = vadd.f32 %v1221, %v1222
    %v1224 = vrot.slane %v1223, 2
    %v1225 = vadd.f32 %v1223, %v1224
    %v1226 = vrot.slane %v1225, 1
    %v1227 = vadd.f32 %v1225, %v1226
    %s1228 = vtos %v1227
    %v1229 = vstv %s1228
    %v1230 = vadd.f32 %v1229, 0.0
    %1231 = vst.msk [vmem:[#allocation6] sm:$0x1] %vm1215, %v1230
    // Predicated region
    $region22: #{forward.5} parent=1 // pred_check
      _
    $region23: #{forward.5} parent=1 // pred_check_branch
      %1233 = sbr.rel (0) target = $region25
    $region24: #{forward.5} parent=1 // pred_region
      %s1235 = ssub.s32 16, 16
      %1236 = vsyncadd [#allocation3], %s1235
      %s1238 = sshll.u32 [#allocation5], 4
      %s1239 = int_to_ptr.vmem [resolvable:$true] %s1238
      %1241 = dma.vmem_to_hbm [thread:$0]  %s1239, 16, %s4, [#allocation3]
    $region25: #{forward.5} parent=1 // pred_fallthru
      _
    // Predicated region
    $region26: #{forward.5} parent=1 // pred_check
      _
    $region27: #{forward.5} parent=1 // pred_check_branch
      %1243 = sbr.rel (0) target = $region29
    $region28: #{forward.5} parent=1 // pred_region
      %s1245 = ssub.s32 16, 16
      %1246 = vsyncadd [#allocation7], %s1245
      %s1248 = sshll.u32 [#allocation6], 4
      %s1249 = int_to_ptr.vmem [resolvable:$true] %s1248
      %1251 = dma.vmem_to_hbm [thread:$0]  %s1249, 16, %s5, [#allocation7]
    $region29: #{forward.5} parent=1 // pred_fallthru
      _
    // Predicated region
    $region30: #{forward.5} parent=1 // pred_check
      _
    $region31: #{forward.5} parent=1 // pred_check_branch
      %1253 = sbr.rel (0) target = $region33
    $region32: #{forward.5} parent=1 // pred_region
      %1254 = dma.done [#allocation3], 16
    $region33: #{forward.5} parent=1 // pred_fallthru
      _
    // Predicated region
    $region34: #{forward.5} parent=1 // pred_check
      _
    $region35: #{forward.5} parent=1 // pred_check_branch
      %1256 = sbr.rel (0) target = $region37
    $region36: #{forward.5} parent=1 // pred_region
      %1257 = dma.done [#allocation7], 16
    $region37: #{forward.5} parent=1 // pred_fallthru
      _
    %1258 = vsyncpa [#allocation3], 1
    %1259 = vsyncpa [#allocation7], 1
    %1260 = vsyncpa [#allocation4], 1

</llo_original>
